<compile_context>
chip_gen: v6e
topology: v6e:2x2x1
jax: 0.10.0
libtpu: 0.0.40
codegen_flags: <defaults>
</compile_context>

<pallas_src>
import functools
import math

import jax
import jax.numpy as jnp
from jax.experimental import pallas as pl
from jax.experimental.pallas import tpu as pltpu


def _round_up(n, m):
    return ((n + m - 1) // m) * m


def _roll_fields(a, shift):
    """Circular lane roll by `shift` (a multiple of embed_size) along axis 1."""
    if shift == 0:
        return a
    return pltpu.roll(a, shift, axis=1)


# --------------------------------------------------------------------------
# Fused kernel: one (Bt, D) batch block per grid step.
# --------------------------------------------------------------------------
def att_mechanism_kernel(x_ref, wqkvr_ref, hsum_ref, gamma_ref, beta_ref,
                         w1_ref, b1_ref, w2_ref, b2_ref, o_ref,
                         *, field_dim, embed_size, eps):
    f, e = field_dim, embed_size
    D = f * e
    bt = x_ref.shape[0]

    x = x_ref[...].astype(jnp.float32)                          # (Bt, D)

    # ---- fused Q/K/V/R projection: one (Bt, D) @ (D, 4D) GEMM ----
    qkvr = jnp.dot(x.astype(jnp.bfloat16), wqkvr_ref[...],
                   preferred_element_type=jnp.float32)          # (Bt, 4D) f32 acc
    q = qkvr[:, 0 * D:1 * D]
    k = qkvr[:, 1 * D:2 * D]
    v = qkvr[:, 2 * D:3 * D]
    r = qkvr[:, 3 * D:4 * D]                                    # x @ W_R residual

    # ---- attention scores for all (batch, query-field, head) at once ----
    # For relative field offset d, rolling K by d*e lanes aligns key field
    # j = (i -/+ d) % f with query field i (the sign of the roll convention is
    # irrelevant because V uses the same roll).  The per-head sum over hs lanes
    # (+ 1/sqrt(hs) scale) is one GEMM against a constant block-diagonal matrix,
    # stacked over all offsets so the MXU weight is loaded once.
    prods = []
    for d in range(f):
        kd = _roll_fields(k, d * e)
        prods.append((q * kd).astype(jnp.bfloat16))             # (Bt, D)
    s_all = jnp.dot(jnp.concatenate(prods, axis=0), hsum_ref[...],
                    preferred_element_type=jnp.float32)         # (f*Bt, D)
    s_list = [s_all[d * bt:(d + 1) * bt] for d in range(f)]     # f x (Bt, D)

    # ---- softmax over the key-field axis (elementwise across the f arrays) ----
    m = s_list[0]
    for s in s_list[1:]:
        m = jnp.maximum(m, s)
    p_list = [jnp.exp(s - m) for s in s_list]
    denom = p_list[0]
    for p in p_list[1:]:
        denom = denom + p
    # NOTE: approximate EUP reciprocal; use exact division if tight parity with
    # the f32 PyTorch module is required (fine for eval-mode serving).
    inv_denom = pl.reciprocal(denom, approx=True)
    # TODO(synk): F.dropout(attn_w, p) (functional dropout, active even in eval)
    # has no deterministic equivalent; treated as identity.

    # ---- PV: weighted sum of field-rolled V (same offset parametrization) ----
    acc = p_list[0] * v
    for d in range(1, f):
        acc = acc + p_list[d] * _roll_fields(v, d * e)
    attn = jnp.maximum(acc * inv_denom + r, 0.0)                # + residual, ReLU

    # ---- LayerNorm over all f*e features per batch row (biased variance) ----
    mu = jnp.mean(attn, axis=-1, keepdims=True)
    cen = attn - mu
    var = jnp.mean(cen * cen, axis=-1, keepdims=True)
    ln = cen * jax.lax.rsqrt(var + eps)
    ln = ln * gamma_ref[...] + beta_ref[...]

    # ---- MLP: (Bt, D) @ (D, H) -> GELU(erf) -> (Bt, H) @ (H, D) ----
    h1 = jnp.dot(ln.astype(jnp.bfloat16), w1_ref[...],
                 preferred_element_type=jnp.float32) + b1_ref[...]
    # exact-erf GELU (torch.nn.GELU default), kept f32 (v5e-safe; on v6e/v7x a
    # bf16 erf would give ~2x EUP throughput if tolerance allows).
    h1 = 0.5 * h1 * (1.0 + jax.lax.erf(h1 * (1.0 / math.sqrt(2.0))))
    out = jnp.dot(h1.astype(jnp.bfloat16), w2_ref[...],
                  preferred_element_type=jnp.float32) + b2_ref[...]
    # TODO(synk): trailing nn.Dropout treated as inference-mode identity.
    o_ref[...] = (out + x).astype(o_ref.dtype)                  # final residual


def _weight_spec(shape, single_buffer):
    if single_buffer:
        # Grid-invariant block: DMA'd once; a single buffer halves its VMEM cost.
        return pl.BlockSpec(shape, lambda i: (0, 0), pipeline_mode=pl.Buffered(1))
    return pl.BlockSpec(shape, lambda i: (0, 0))


def _call_kernel(x2, kp, *, field_dim, embed_size, eps, bt, single_buffer):
    bp, D = x2.shape
    H = kp["w1"].shape[1]
    kernel = functools.partial(att_mechanism_kernel, field_dim=field_dim,
                               embed_size=embed_size, eps=eps)
    return pl.pallas_call(
        kernel,
        out_shape=jax.ShapeDtypeStruct((bp, D), x2.dtype),
        grid=(bp // bt,),
        in_specs=[
            pl.BlockSpec((bt, D), lambda i: (i, 0)),            # x (flat batch block)
            _weight_spec((D, 4 * D), single_buffer),            # block-diag [Wq|Wk|Wv|Wr] bf16
            _weight_spec((D, D), single_buffer),                 # per-head sum + scale, bf16
            _weight_spec((1, D), single_buffer),                 # LN gamma
            _weight_spec((1, D), single_buffer),                 # LN beta
            _weight_spec((D, H), single_buffer),                 # w1 bf16
            _weight_spec((1, H), single_buffer),                 # b1
            _weight_spec((H, D), single_buffer),                 # w2 bf16
            _weight_spec((1, D), single_buffer),                 # b2
        ],
        out_specs=pl.BlockSpec((bt, D), lambda i: (i, 0)),
        compiler_params=pltpu.CompilerParams(
            dimension_semantics=("parallel",)),
    )(x2, kp["wqkvr"], kp["hsum"], kp["gamma"], kp["beta"],
      kp["w1"], kp["b1"], kp["w2"], kp["b2"])


def att_mechanism(x, kp, *, field_dim, embed_size, eps=1e-5, batch_block=256):
    """Fused AttMechanism forward. x: (b, f, e) f32.  Returns (b, f*e).

    batch_block: batch rows per grid step.  Use a multiple of 256 on v6e/v7x
    (2x256x256 MXU) and 128 on v5e (4x128x128 MXU); it is capped/rounded for
    tiny batches.  At 256 the per-step VMEM footprint is ~10 MiB, well inside
    the 32 MiB scoped default on all three generations (v7x physical: 64 MiB).
    """
    b, f, e = x.shape
    assert f == field_dim and e == embed_size
    D = f * e
    bt = min(batch_block, _round_up(b, 8))
    bp = _round_up(b, bt)
    x2 = x.reshape(b, D)          # contiguous flatten: free, single input stream
    if bp != b:
        x2 = jnp.pad(x2, ((0, bp - b), (0, 0)))

    try:
        out = jax.block_until_ready(
            _call_kernel(x2, kp, field_dim=f, embed_size=e, eps=eps, bt=bt,
                         single_buffer=True))
    except Exception:
        # Fallback if this JAX version rejects pl.Buffered(1) on weight specs.
        out = jax.block_until_ready(
            _call_kernel(x2, kp, field_dim=f, embed_size=e, eps=eps, bt=bt,
                         single_buffer=False))
    return out[:b]


# --------------------------------------------------------------------------
# Parameters: torch-like f32 params + one-time kernel-ready transform.
# --------------------------------------------------------------------------
def init_params(key, field_dim, embed_size, hidden_dim=1024):
    D = field_dim * embed_size
    ks = jax.random.split(key, 8)
    bound_e = math.sqrt(6.0 / (embed_size + embed_size))      # xavier_uniform
    mk = lambda k: jax.random.uniform(k, (embed_size, embed_size), jnp.float32,
                                      -bound_e, bound_e)
    b1w = math.sqrt(6.0 / (D + hidden_dim))
    b2w = math.sqrt(6.0 / (hidden_dim + D))
    return {
        "W_Q": mk(ks[0]), "W_K": mk(ks[1]), "W_V": mk(ks[2]), "W_R": mk(ks[3]),
        "ln_gamma": jnp.ones((D,), jnp.float32),
        "ln_beta": jnp.zeros((D,), jnp.float32),
        "w1": jax.random.uniform(ks[4], (D, hidden_dim), jnp.float32, -b1w, b1w),
        "b1": jax.random.uniform(ks[5], (hidden_dim,), jnp.float32, -0.05, 0.05),
        "w2": jax.random.uniform(ks[6], (hidden_dim, D), jnp.float32, -b2w, b2w),
        "b2": jax.random.uniform(ks[7], (D,), jnp.float32, -0.05, 0.05),
    }


def prepare_params(params, field_dim, embed_size, head_num):
    """One-time weight transforms (NOT per call):
      * field-block-diagonal expansion + fusion of W_Q/W_K/W_V/W_R -> (D, 4D),
      * constant per-head-sum matrix with the 1/sqrt(head_size) scale folded in,
      * bf16 casts of MXU-facing weights; (1, D)/(1, H) biases and LN affine.
    """
    assert embed_size % head_num == 0, "head_num must divide embed_size"
    f, e = field_dim, embed_size
    hs = e // head_num
    D = f * e
    eye_f = jnp.eye(f, dtype=jnp.float32)
    big = lambda w: jnp.kron(eye_f, w)                         # (D, D) block-diag per field
    wqkvr = jnp.concatenate(
        [big(params["W_Q"]), big(params["W_K"]), big(params["W_V"]),
         big(params["W_R"])], axis=1).astype(jnp.bfloat16)     # (D, 4D)
    hsum = (jnp.kron(jnp.eye(f * head_num, dtype=jnp.float32),
                     jnp.ones((hs, hs), jnp.float32))
            * (1.0 / math.sqrt(hs))).astype(jnp.bfloat16)      # (D, D)
    return {
        "wqkvr": wqkvr,
        "hsum": hsum,
        "gamma": params["ln_gamma"].reshape(1, D).astype(jnp.float32),
        "beta": params["ln_beta"].reshape(1, D).astype(jnp.float32),
        "w1": params["w1"].astype(jnp.bfloat16),
        "b1": params["b1"].reshape(1, -1).astype(jnp.float32),
        "w2": params["w2"].astype(jnp.bfloat16),
        "b2": params["b2"].reshape(1, -1).astype(jnp.float32),
    }


# --------------------------------------------------------------------------
# Pure-JAX reference (f32), mirroring the PyTorch module in eval mode.
# --------------------------------------------------------------------------
def reference_forward(x, params, head_num, eps=1e-5):
    b, f, e = x.shape
    hs = e // head_num
    q = jnp.einsum("bfe,eo->bfo", x, params["W_Q"])
    k = jnp.einsum("bfe,eo->bfo", x, params["W_K"])
    v = jnp.einsum("bfe,eo->bfo", x, params["W_V"])
    qh = q.reshape(b, f, head_num, hs).transpose(2, 0, 1, 3)
    kh = k.reshape(b, f, head_num, hs).transpose(2, 0, 1, 3)
    vh = v.reshape(b, f, head_num, hs).transpose(2, 0, 1, 3)
    s = jnp.einsum("hbqd,hbkd->hbqk", qh, kh) / math.sqrt(hs)
    p = jax.nn.softmax(s, axis=-1)
    o = jnp.einsum("hbqk,hbkd->hbqd", p, vh)
    o = o.transpose(1, 2, 0, 3).reshape(b, f, e)              # concat heads
    o = o + jnp.einsum("bfe,eo->bfo", x, params["W_R"])
    o = jax.nn.relu(o)
    a = o.reshape(b, f * e)
    mu = jnp.mean(a, axis=-1, keepdims=True)
    var = jnp.mean((a - mu) ** 2, axis=-1, keepdims=True)
    ln = (a - mu) / jnp.sqrt(var + eps)
    ln = ln * params["ln_gamma"] + params["ln_beta"]
    h1 = ln @ params["w1"] + params["b1"]
    h1 = 0.5 * h1 * (1.0 + jax.lax.erf(h1 / math.sqrt(2.0)))
    m = h1 @ params["w2"] + params["b2"]
    return m + x.reshape(b, f * e)


if __name__ == "__main__":
    # small shapes: batch=2, field_dim=8, embed_size=32, heads=4 (head_size=8)
    b, f, e, head_num = 2, 8, 32, 4
    key = jax.random.PRNGKey(0)
    k_x, k_p = jax.random.split(key)
    x = jax.random.normal(k_x, (b, f, e), dtype=jnp.float32)

    params = init_params(k_p, f, e)
    kparams = prepare_params(params, f, e, head_num)          # one-time transform

    out = att_mechanism(x, kparams, field_dim=f, embed_size=e)
    out = jax.block_until_ready(out)
    assert out.shape == (b, f * e), out.shape
    assert bool(jnp.all(jnp.isfinite(out)))

    # Loose tolerance: bf16 MXU operands + approx softmax reciprocal vs f32 ref.
    ref = reference_forward(x, params, head_num)
    max_err = float(jnp.max(jnp.abs(out - ref)))
    assert max_err < 0.5, max_err

    print("KERNEL_OK")
</pallas_src>

<mosaic_0001>
module attributes {stable_mosaic.version = 11 : i64} {
  func.func @att_mechanism_kernel(%arg0: i32, %arg1: memref<8x256xf32, #tpu.memory_space<vmem>>, %arg2: memref<256x1024xbf16, #tpu.memory_space<vmem>>, %arg3: memref<256x256xbf16, #tpu.memory_space<vmem>>, %arg4: memref<1x256xf32, #tpu.memory_space<vmem>>, %arg5: memref<1x256xf32, #tpu.memory_space<vmem>>, %arg6: memref<256x1024xbf16, #tpu.memory_space<vmem>>, %arg7: memref<1x1024xf32, #tpu.memory_space<vmem>>, %arg8: memref<1024x256xbf16, #tpu.memory_space<vmem>>, %arg9: memref<1x256xf32, #tpu.memory_space<vmem>>, %arg10: memref<8x256xf32, #tpu.memory_space<vmem>>) attributes {dimension_semantics = [#tpu.dimension_semantics<parallel>], iteration_bounds = array<i64: 1>, scalar_prefetch = 0 : i64, scratch_operands = 0 : i64, tpu.core_type = #tpu.core_type<tc>, window_params = [{transform_indices = @transform_0, window_bounds = array<i64: 8, 256>}, {pipeline_mode = #tpu.pipeline_mode<synchronous>, transform_indices = @transform_1, window_bounds = array<i64: 256, 1024>}, {pipeline_mode = #tpu.pipeline_mode<synchronous>, transform_indices = @transform_2, window_bounds = array<i64: 256, 256>}, {pipeline_mode = #tpu.pipeline_mode<synchronous>, transform_indices = @transform_3, window_bounds = array<i64: 1, 256>}, {pipeline_mode = #tpu.pipeline_mode<synchronous>, transform_indices = @transform_4, window_bounds = array<i64: 1, 256>}, {pipeline_mode = #tpu.pipeline_mode<synchronous>, transform_indices = @transform_5, window_bounds = array<i64: 256, 1024>}, {pipeline_mode = #tpu.pipeline_mode<synchronous>, transform_indices = @transform_6, window_bounds = array<i64: 1, 1024>}, {pipeline_mode = #tpu.pipeline_mode<synchronous>, transform_indices = @transform_7, window_bounds = array<i64: 1024, 256>}, {pipeline_mode = #tpu.pipeline_mode<synchronous>, transform_indices = @transform_8, window_bounds = array<i64: 1, 256>}, {transform_indices = @transform_9, window_bounds = array<i64: 8, 256>}]} {
    %c0 = arith.constant 0 : index
    %c0_0 = arith.constant 0 : index
    %0 = vector.load %arg1[%c0, %c0_0] : memref<8x256xf32, #tpu.memory_space<vmem>>, vector<8x256xf32>
    %1 = arith.truncf %0 : vector<8x256xf32> to vector<8x256xbf16>
    %c0_1 = arith.constant 0 : index
    %c0_2 = arith.constant 0 : index
    %2 = vector.load %arg2[%c0_1, %c0_2] : memref<256x1024xbf16, #tpu.memory_space<vmem>>, vector<256x1024xbf16>
    %cst = arith.constant dense<0.000000e+00> : vector<8x1024xf32>
    %3 = tpu.matmul %1, %2, %cst {dimension_numbers = #tpu.dot_dimension_numbers<[1], [0], [0], [1], [0, 0, 1, 1], [], []>} : vector<8x256xbf16>, vector<256x1024xbf16>, vector<8x1024xf32> -> vector<8x1024xf32>
    %4 = vector.extract_strided_slice %3 {offsets = [0, 0], sizes = [8, 256], strides = [1, 1]} : vector<8x1024xf32> to vector<8x256xf32>
    %5 = vector.extract_strided_slice %3 {offsets = [0, 256], sizes = [8, 256], strides = [1, 1]} : vector<8x1024xf32> to vector<8x256xf32>
    %6 = vector.extract_strided_slice %3 {offsets = [0, 512], sizes = [8, 256], strides = [1, 1]} : vector<8x1024xf32> to vector<8x256xf32>
    %7 = vector.extract_strided_slice %3 {offsets = [0, 768], sizes = [8, 256], strides = [1, 1]} : vector<8x1024xf32> to vector<8x256xf32>
    %8 = arith.mulf %4, %5 : vector<8x256xf32>
    %9 = arith.truncf %8 : vector<8x256xf32> to vector<8x256xbf16>
    %c32_i32 = arith.constant 32 : i32
    %10 = tpu.dynamic_rotate %5 by %c32_i32 dim 1 : vector<8x256xf32>, i32 -> vector<8x256xf32>
    %11 = arith.mulf %4, %10 : vector<8x256xf32>
    %12 = arith.truncf %11 : vector<8x256xf32> to vector<8x256xbf16>
    %c64_i32 = arith.constant 64 : i32
    %13 = tpu.dynamic_rotate %5 by %c64_i32 dim 1 : vector<8x256xf32>, i32 -> vector<8x256xf32>
    %14 = arith.mulf %4, %13 : vector<8x256xf32>
    %15 = arith.truncf %14 : vector<8x256xf32> to vector<8x256xbf16>
    %c96_i32 = arith.constant 96 : i32
    %16 = tpu.dynamic_rotate %5 by %c96_i32 dim 1 : vector<8x256xf32>, i32 -> vector<8x256xf32>
    %17 = arith.mulf %4, %16 : vector<8x256xf32>
    %18 = arith.truncf %17 : vector<8x256xf32> to vector<8x256xbf16>
    %c128_i32 = arith.constant 128 : i32
    %19 = tpu.dynamic_rotate %5 by %c128_i32 dim 1 : vector<8x256xf32>, i32 -> vector<8x256xf32>
    %20 = arith.mulf %4, %19 : vector<8x256xf32>
    %21 = arith.truncf %20 : vector<8x256xf32> to vector<8x256xbf16>
    %c160_i32 = arith.constant 160 : i32
    %22 = tpu.dynamic_rotate %5 by %c160_i32 dim 1 : vector<8x256xf32>, i32 -> vector<8x256xf32>
    %23 = arith.mulf %4, %22 : vector<8x256xf32>
    %24 = arith.truncf %23 : vector<8x256xf32> to vector<8x256xbf16>
    %c192_i32 = arith.constant 192 : i32
    %25 = tpu.dynamic_rotate %5 by %c192_i32 dim 1 : vector<8x256xf32>, i32 -> vector<8x256xf32>
    %26 = arith.mulf %4, %25 : vector<8x256xf32>
    %27 = arith.truncf %26 : vector<8x256xf32> to vector<8x256xbf16>
    %c224_i32 = arith.constant 224 : i32
    %28 = tpu.dynamic_rotate %5 by %c224_i32 dim 1 : vector<8x256xf32>, i32 -> vector<8x256xf32>
    %29 = arith.mulf %4, %28 : vector<8x256xf32>
    %30 = arith.truncf %29 : vector<8x256xf32> to vector<8x256xbf16>
    %31 = tpu.concatenate %9, %12, %15, %18, %21, %24, %27, %30 in 0 : vector<8x256xbf16>, vector<8x256xbf16>, vector<8x256xbf16>, vector<8x256xbf16>, vector<8x256xbf16>, vector<8x256xbf16>, vector<8x256xbf16>, vector<8x256xbf16> -> vector<64x256xbf16>
    %c0_3 = arith.constant 0 : index
    %c0_4 = arith.constant 0 : index
    %32 = vector.load %arg3[%c0_3, %c0_4] : memref<256x256xbf16, #tpu.memory_space<vmem>>, vector<256x256xbf16>
    %cst_5 = arith.constant dense<0.000000e+00> : vector<64x256xf32>
    %33 = tpu.matmul %31, %32, %cst_5 {dimension_numbers = #tpu.dot_dimension_numbers<[1], [0], [0], [1], [0, 0, 1, 1], [], []>} : vector<64x256xbf16>, vector<256x256xbf16>, vector<64x256xf32> -> vector<64x256xf32>
    %34 = vector.extract_strided_slice %33 {offsets = [0, 0], sizes = [8, 256], strides = [1, 1]} : vector<64x256xf32> to vector<8x256xf32>
    %35 = vector.extract_strided_slice %33 {offsets = [8, 0], sizes = [8, 256], strides = [1, 1]} : vector<64x256xf32> to vector<8x256xf32>
    %36 = vector.extract_strided_slice %33 {offsets = [16, 0], sizes = [8, 256], strides = [1, 1]} : vector<64x256xf32> to vector<8x256xf32>
    %37 = vector.extract_strided_slice %33 {offsets = [24, 0], sizes = [8, 256], strides = [1, 1]} : vector<64x256xf32> to vector<8x256xf32>
    %38 = vector.extract_strided_slice %33 {offsets = [32, 0], sizes = [8, 256], strides = [1, 1]} : vector<64x256xf32> to vector<8x256xf32>
    %39 = vector.extract_strided_slice %33 {offsets = [40, 0], sizes = [8, 256], strides = [1, 1]} : vector<64x256xf32> to vector<8x256xf32>
    %40 = vector.extract_strided_slice %33 {offsets = [48, 0], sizes = [8, 256], strides = [1, 1]} : vector<64x256xf32> to vector<8x256xf32>
    %41 = vector.extract_strided_slice %33 {offsets = [56, 0], sizes = [8, 256], strides = [1, 1]} : vector<64x256xf32> to vector<8x256xf32>
    %42 = arith.maximumf %34, %35 : vector<8x256xf32>
    %43 = arith.maximumf %42, %36 : vector<8x256xf32>
    %44 = arith.maximumf %43, %37 : vector<8x256xf32>
    %45 = arith.maximumf %44, %38 : vector<8x256xf32>
    %46 = arith.maximumf %45, %39 : vector<8x256xf32>
    %47 = arith.maximumf %46, %40 : vector<8x256xf32>
    %48 = arith.maximumf %47, %41 : vector<8x256xf32>
    %49 = arith.subf %34, %48 : vector<8x256xf32>
    %50 = math.exp %49 : vector<8x256xf32>
    %51 = arith.subf %35, %48 : vector<8x256xf32>
    %52 = math.exp %51 : vector<8x256xf32>
    %53 = arith.subf %36, %48 : vector<8x256xf32>
    %54 = math.exp %53 : vector<8x256xf32>
    %55 = arith.subf %37, %48 : vector<8x256xf32>
    %56 = math.exp %55 : vector<8x256xf32>
    %57 = arith.subf %38, %48 : vector<8x256xf32>
    %58 = math.exp %57 : vector<8x256xf32>
    %59 = arith.subf %39, %48 : vector<8x256xf32>
    %60 = math.exp %59 : vector<8x256xf32>
    %61 = arith.subf %40, %48 : vector<8x256xf32>
    %62 = math.exp %61 : vector<8x256xf32>
    %63 = arith.subf %41, %48 : vector<8x256xf32>
    %64 = math.exp %63 : vector<8x256xf32>
    %65 = arith.addf %50, %52 : vector<8x256xf32>
    %66 = arith.addf %65, %54 : vector<8x256xf32>
    %67 = arith.addf %66, %56 : vector<8x256xf32>
    %68 = arith.addf %67, %58 : vector<8x256xf32>
    %69 = arith.addf %68, %60 : vector<8x256xf32>
    %70 = arith.addf %69, %62 : vector<8x256xf32>
    %71 = arith.addf %70, %64 : vector<8x256xf32>
    %72 = tpu.reciprocal %71 {approx = true} : vector<8x256xf32> -> vector<8x256xf32>
    %73 = arith.mulf %50, %6 : vector<8x256xf32>
    %c32_i32_6 = arith.constant 32 : i32
    %74 = tpu.dynamic_rotate %6 by %c32_i32_6 dim 1 : vector<8x256xf32>, i32 -> vector<8x256xf32>
    %75 = arith.mulf %52, %74 : vector<8x256xf32>
    %76 = arith.addf %73, %75 : vector<8x256xf32>
    %c64_i32_7 = arith.constant 64 : i32
    %77 = tpu.dynamic_rotate %6 by %c64_i32_7 dim 1 : vector<8x256xf32>, i32 -> vector<8x256xf32>
    %78 = arith.mulf %54, %77 : vector<8x256xf32>
    %79 = arith.addf %76, %78 : vector<8x256xf32>
    %c96_i32_8 = arith.constant 96 : i32
    %80 = tpu.dynamic_rotate %6 by %c96_i32_8 dim 1 : vector<8x256xf32>, i32 -> vector<8x256xf32>
    %81 = arith.mulf %56, %80 : vector<8x256xf32>
    %82 = arith.addf %79, %81 : vector<8x256xf32>
    %c128_i32_9 = arith.constant 128 : i32
    %83 = tpu.dynamic_rotate %6 by %c128_i32_9 dim 1 : vector<8x256xf32>, i32 -> vector<8x256xf32>
    %84 = arith.mulf %58, %83 : vector<8x256xf32>
    %85 = arith.addf %82, %84 : vector<8x256xf32>
    %c160_i32_10 = arith.constant 160 : i32
    %86 = tpu.dynamic_rotate %6 by %c160_i32_10 dim 1 : vector<8x256xf32>, i32 -> vector<8x256xf32>
    %87 = arith.mulf %60, %86 : vector<8x256xf32>
    %88 = arith.addf %85, %87 : vector<8x256xf32>
    %c192_i32_11 = arith.constant 192 : i32
    %89 = tpu.dynamic_rotate %6 by %c192_i32_11 dim 1 : vector<8x256xf32>, i32 -> vector<8x256xf32>
    %90 = arith.mulf %62, %89 : vector<8x256xf32>
    %91 = arith.addf %88, %90 : vector<8x256xf32>
    %c224_i32_12 = arith.constant 224 : i32
    %92 = tpu.dynamic_rotate %6 by %c224_i32_12 dim 1 : vector<8x256xf32>, i32 -> vector<8x256xf32>
    %93 = arith.mulf %64, %92 : vector<8x256xf32>
    %94 = arith.addf %91, %93 : vector<8x256xf32>
    %95 = arith.mulf %94, %72 : vector<8x256xf32>
    %96 = arith.addf %95, %7 : vector<8x256xf32>
    %cst_13 = arith.constant 0.000000e+00 : f32
    %97 = vector.broadcast %cst_13 : f32 to vector<8x256xf32>
    %98 = arith.maximumf %96, %97 : vector<8x256xf32>
    %cst_14 = arith.constant dense<0.000000e+00> : vector<8xf32>
    %99 = vector.multi_reduction <add>, %98, %cst_14 [1] : vector<8x256xf32> to vector<8xf32>
    %100 = vector.shape_cast %99 : vector<8xf32> to vector<8x1xf32>
    %cst_15 = arith.constant 2.560000e+02 : f32
    %101 = vector.broadcast %cst_15 : f32 to vector<8x1xf32>
    %102 = arith.divf %100, %101 : vector<8x1xf32>
    %103 = vector.broadcast %102 : vector<8x1xf32> to vector<8x256xf32>
    %104 = arith.subf %98, %103 : vector<8x256xf32>
    %105 = arith.mulf %104, %104 : vector<8x256xf32>
    %cst_16 = arith.constant dense<0.000000e+00> : vector<8xf32>
    %106 = vector.multi_reduction <add>, %105, %cst_16 [1] : vector<8x256xf32> to vector<8xf32>
    %107 = vector.shape_cast %106 : vector<8xf32> to vector<8x1xf32>
    %cst_17 = arith.constant 2.560000e+02 : f32
    %108 = vector.broadcast %cst_17 : f32 to vector<8x1xf32>
    %109 = arith.divf %107, %108 : vector<8x1xf32>
    %cst_18 = arith.constant 9.99999974E-6 : f32
    %110 = vector.broadcast %cst_18 : f32 to vector<8x1xf32>
    %111 = arith.addf %109, %110 : vector<8x1xf32>
    %112 = math.rsqrt %111 : vector<8x1xf32>
    %113 = vector.broadcast %112 : vector<8x1xf32> to vector<8x256xf32>
    %114 = arith.mulf %104, %113 : vector<8x256xf32>
    %c0_19 = arith.constant 0 : index
    %c0_20 = arith.constant 0 : index
    %115 = vector.load %arg4[%c0_19, %c0_20] : memref<1x256xf32, #tpu.memory_space<vmem>>, vector<1x256xf32>
    %116 = vector.broadcast %115 : vector<1x256xf32> to vector<8x256xf32>
    %117 = arith.mulf %114, %116 : vector<8x256xf32>
    %c0_21 = arith.constant 0 : index
    %c0_22 = arith.constant 0 : index
    %118 = vector.load %arg5[%c0_21, %c0_22] : memref<1x256xf32, #tpu.memory_space<vmem>>, vector<1x256xf32>
    %119 = vector.broadcast %118 : vector<1x256xf32> to vector<8x256xf32>
    %120 = arith.addf %117, %119 : vector<8x256xf32>
    %121 = arith.truncf %120 : vector<8x256xf32> to vector<8x256xbf16>
    %c0_23 = arith.constant 0 : index
    %c0_24 = arith.constant 0 : index
    %122 = vector.load %arg6[%c0_23, %c0_24] : memref<256x1024xbf16, #tpu.memory_space<vmem>>, vector<256x1024xbf16>
    %cst_25 = arith.constant dense<0.000000e+00> : vector<8x1024xf32>
    %123 = tpu.matmul %121, %122, %cst_25 {dimension_numbers = #tpu.dot_dimension_numbers<[1], [0], [0], [1], [0, 0, 1, 1], [], []>} : vector<8x256xbf16>, vector<256x1024xbf16>, vector<8x1024xf32> -> vector<8x1024xf32>
    %c0_26 = arith.constant 0 : index
    %c0_27 = arith.constant 0 : index
    %124 = vector.load %arg7[%c0_26, %c0_27] : memref<1x1024xf32, #tpu.memory_space<vmem>>, vector<1x1024xf32>
    %125 = vector.broadcast %124 : vector<1x1024xf32> to vector<8x1024xf32>
    %126 = arith.addf %123, %125 : vector<8x1024xf32>
    %cst_28 = arith.constant 5.000000e-01 : f32
    %127 = vector.broadcast %cst_28 : f32 to vector<8x1024xf32>
    %128 = arith.mulf %127, %126 : vector<8x1024xf32>
    %cst_29 = arith.constant 0.707106769 : f32
    %129 = vector.broadcast %cst_29 : f32 to vector<8x1024xf32>
    %130 = arith.mulf %126, %129 : vector<8x1024xf32>
    %131 = math.erf %130 : vector<8x1024xf32>
    %cst_30 = arith.constant 1.000000e+00 : f32
    %132 = vector.broadcast %cst_30 : f32 to vector<8x1024xf32>
    %133 = arith.addf %132, %131 : vector<8x1024xf32>
    %134 = arith.mulf %128, %133 : vector<8x1024xf32>
    %135 = arith.truncf %134 : vector<8x1024xf32> to vector<8x1024xbf16>
    %c0_31 = arith.constant 0 : index
    %c0_32 = arith.constant 0 : index
    %136 = vector.load %arg8[%c0_31, %c0_32] : memref<1024x256xbf16, #tpu.memory_space<vmem>>, vector<1024x256xbf16>
    %cst_33 = arith.constant dense<0.000000e+00> : vector<8x256xf32>
    %137 = tpu.matmul %135, %136, %cst_33 {dimension_numbers = #tpu.dot_dimension_numbers<[1], [0], [0], [1], [0, 0, 1, 1], [], []>} : vector<8x1024xbf16>, vector<1024x256xbf16>, vector<8x256xf32> -> vector<8x256xf32>
    %c0_34 = arith.constant 0 : index
    %c0_35 = arith.constant 0 : index
    %138 = vector.load %arg9[%c0_34, %c0_35] : memref<1x256xf32, #tpu.memory_space<vmem>>, vector<1x256xf32>
    %139 = vector.broadcast %138 : vector<1x256xf32> to vector<8x256xf32>
    %140 = arith.addf %137, %139 : vector<8x256xf32>
    %141 = arith.addf %140, %0 : vector<8x256xf32>
    %c0_36 = arith.constant 0 : index
    %c0_37 = arith.constant 0 : index
    %142 = vector.load %arg10[%c0_36, %c0_37] : memref<8x256xf32, #tpu.memory_space<vmem>>, vector<8x256xf32>
    tpu.vector_store %arg10[%c0_36, %c0_37], %141 {strides = array<i32>} : memref<8x256xf32, #tpu.memory_space<vmem>>, vector<8x256xf32>,
    return
  }
  func.func @transform_0(%arg0: i32) -> (i32, i32) {
    %c0_i32 = arith.constant 0 : i32
    %c0_i32_0 = arith.constant 0 : i32
    return %arg0, %c0_i32 : i32, i32
  }
  func.func @transform_1(%arg0: i32) -> (i32, i32) {
    %c0_i32 = arith.constant 0 : i32
    %c0_i32_0 = arith.constant 0 : i32
    %c0_i32_1 = arith.constant 0 : i32
    return %c0_i32, %c0_i32_0 : i32, i32
  }
  func.func @transform_2(%arg0: i32) -> (i32, i32) {
    %c0_i32 = arith.constant 0 : i32
    %c0_i32_0 = arith.constant 0 : i32
    %c0_i32_1 = arith.constant 0 : i32
    return %c0_i32, %c0_i32_0 : i32, i32
  }
  func.func @transform_3(%arg0: i32) -> (i32, i32) {
    %c0_i32 = arith.constant 0 : i32
    %c0_i32_0 = arith.constant 0 : i32
    %c0_i32_1 = arith.constant 0 : i32
    return %c0_i32, %c0_i32_0 : i32, i32
  }
  func.func @transform_4(%arg0: i32) -> (i32, i32) {
    %c0_i32 = arith.constant 0 : i32
    %c0_i32_0 = arith.constant 0 : i32
    %c0_i32_1 = arith.constant 0 : i32
    return %c0_i32, %c0_i32_0 : i32, i32
  }
  func.func @transform_5(%arg0: i32) -> (i32, i32) {
    %c0_i32 = arith.constant 0 : i32
    %c0_i32_0 = arith.constant 0 : i32
    %c0_i32_1 = arith.constant 0 : i32
    return %c0_i32, %c0_i32_0 : i32, i32
  }
  func.func @transform_6(%arg0: i32) -> (i32, i32) {
    %c0_i32 = arith.constant 0 : i32
    %c0_i32_0 = arith.constant 0 : i32
    %c0_i32_1 = arith.constant 0 : i32
    return %c0_i32, %c0_i32_0 : i32, i32
  }
  func.func @transform_7(%arg0: i32) -> (i32, i32) {
    %c0_i32 = arith.constant 0 : i32
    %c0_i32_0 = arith.constant 0 : i32
    %c0_i32_1 = arith.constant 0 : i32
    return %c0_i32, %c0_i32_0 : i32, i32
  }
  func.func @transform_8(%arg0: i32) -> (i32, i32) {
    %c0_i32 = arith.constant 0 : i32
    %c0_i32_0 = arith.constant 0 : i32
    %c0_i32_1 = arith.constant 0 : i32
    return %c0_i32, %c0_i32_0 : i32, i32
  }
  func.func @transform_9(%arg0: i32) -> (i32, i32) {
    %c0_i32 = arith.constant 0 : i32
    %c0_i32_0 = arith.constant 0 : i32
    return %arg0, %c0_i32 : i32, i32
  }
}

module attributes {stable_mosaic.version = 11 : i64} {
  func.func @att_mechanism_kernel(%arg0: i32, %arg1: memref<8x256xf32, #tpu.memory_space<vmem>>, %arg2: memref<256x1024xbf16, #tpu.memory_space<vmem>>, %arg3: memref<256x256xbf16, #tpu.memory_space<vmem>>, %arg4: memref<1x256xf32, #tpu.memory_space<vmem>>, %arg5: memref<1x256xf32, #tpu.memory_space<vmem>>, %arg6: memref<256x1024xbf16, #tpu.memory_space<vmem>>, %arg7: memref<1x1024xf32, #tpu.memory_space<vmem>>, %arg8: memref<1024x256xbf16, #tpu.memory_space<vmem>>, %arg9: memref<1x256xf32, #tpu.memory_space<vmem>>, %arg10: memref<8x256xf32, #tpu.memory_space<vmem>>) attributes {dimension_semantics = [#tpu.dimension_semantics<parallel>], iteration_bounds = array<i64: 1>, scalar_prefetch = 0 : i64, scratch_operands = 0 : i64, tpu.core_type = #tpu.core_type<tc>, window_params = [{transform_indices = @transform_0, window_bounds = array<i64: 8, 256>}, {pipeline_mode = #tpu.pipeline_mode<synchronous>, transform_indices = @transform_1, window_bounds = array<i64: 256, 1024>}, {pipeline_mode = #tpu.pipeline_mode<synchronous>, transform_indices = @transform_2, window_bounds = array<i64: 256, 256>}, {pipeline_mode = #tpu.pipeline_mode<synchronous>, transform_indices = @transform_3, window_bounds = array<i64: 1, 256>}, {pipeline_mode = #tpu.pipeline_mode<synchronous>, transform_indices = @transform_4, window_bounds = array<i64: 1, 256>}, {pipeline_mode = #tpu.pipeline_mode<synchronous>, transform_indices = @transform_5, window_bounds = array<i64: 256, 1024>}, {pipeline_mode = #tpu.pipeline_mode<synchronous>, transform_indices = @transform_6, window_bounds = array<i64: 1, 1024>}, {pipeline_mode = #tpu.pipeline_mode<synchronous>, transform_indices = @transform_7, window_bounds = array<i64: 1024, 256>}, {pipeline_mode = #tpu.pipeline_mode<synchronous>, transform_indices = @transform_8, window_bounds = array<i64: 1, 256>}, {transform_indices = @transform_9, window_bounds = array<i64: 8, 256>}]} {
    %c0 = arith.constant 0 : index
    %c0_0 = arith.constant 0 : index
    %0 = vector.load %arg1[%c0, %c0_0] : memref<8x256xf32, #tpu.memory_space<vmem>>, vector<8x256xf32>
    %1 = arith.truncf %0 : vector<8x256xf32> to vector<8x256xbf16>
    %c0_1 = arith.constant 0 : index
    %c0_2 = arith.constant 0 : index
    %2 = vector.load %arg2[%c0_1, %c0_2] : memref<256x1024xbf16, #tpu.memory_space<vmem>>, vector<256x1024xbf16>
    %cst = arith.constant dense<0.000000e+00> : vector<8x1024xf32>
    %3 = tpu.matmul %1, %2, %cst {dimension_numbers = #tpu.dot_dimension_numbers<[1], [0], [0], [1], [0, 0, 1, 1], [], []>} : vector<8x256xbf16>, vector<256x1024xbf16>, vector<8x1024xf32> -> vector<8x1024xf32>
    %4 = vector.extract_strided_slice %3 {offsets = [0, 0], sizes = [8, 256], strides = [1, 1]} : vector<8x1024xf32> to vector<8x256xf32>
    %5 = vector.extract_strided_slice %3 {offsets = [0, 256], sizes = [8, 256], strides = [1, 1]} : vector<8x1024xf32> to vector<8x256xf32>
    %6 = vector.extract_strided_slice %3 {offsets = [0, 512], sizes = [8, 256], strides = [1, 1]} : vector<8x1024xf32> to vector<8x256xf32>
    %7 = vector.extract_strided_slice %3 {offsets = [0, 768], sizes = [8, 256], strides = [1, 1]} : vector<8x1024xf32> to vector<8x256xf32>
    %8 = arith.mulf %4, %5 : vector<8x256xf32>
    %9 = arith.truncf %8 : vector<8x256xf32> to vector<8x256xbf16>
    %c32_i32 = arith.constant 32 : i32
    %10 = tpu.dynamic_rotate %5 by %c32_i32 dim 1 : vector<8x256xf32>, i32 -> vector<8x256xf32>
    %11 = arith.mulf %4, %10 : vector<8x256xf32>
    %12 = arith.truncf %11 : vector<8x256xf32> to vector<8x256xbf16>
    %c64_i32 = arith.constant 64 : i32
    %13 = tpu.dynamic_rotate %5 by %c64_i32 dim 1 : vector<8x256xf32>, i32 -> vector<8x256xf32>
    %14 = arith.mulf %4, %13 : vector<8x256xf32>
    %15 = arith.truncf %14 : vector<8x256xf32> to vector<8x256xbf16>
    %c96_i32 = arith.constant 96 : i32
    %16 = tpu.dynamic_rotate %5 by %c96_i32 dim 1 : vector<8x256xf32>, i32 -> vector<8x256xf32>
    %17 = arith.mulf %4, %16 : vector<8x256xf32>
    %18 = arith.truncf %17 : vector<8x256xf32> to vector<8x256xbf16>
    %c128_i32 = arith.constant 128 : i32
    %19 = tpu.dynamic_rotate %5 by %c128_i32 dim 1 : vector<8x256xf32>, i32 -> vector<8x256xf32>
    %20 = arith.mulf %4, %19 : vector<8x256xf32>
    %21 = arith.truncf %20 : vector<8x256xf32> to vector<8x256xbf16>
    %c160_i32 = arith.constant 160 : i32
    %22 = tpu.dynamic_rotate %5 by %c160_i32 dim 1 : vector<8x256xf32>, i32 -> vector<8x256xf32>
    %23 = arith.mulf %4, %22 : vector<8x256xf32>
    %24 = arith.truncf %23 : vector<8x256xf32> to vector<8x256xbf16>
    %c192_i32 = arith.constant 192 : i32
    %25 = tpu.dynamic_rotate %5 by %c192_i32 dim 1 : vector<8x256xf32>, i32 -> vector<8x256xf32>
    %26 = arith.mulf %4, %25 : vector<8x256xf32>
    %27 = arith.truncf %26 : vector<8x256xf32> to vector<8x256xbf16>
    %c224_i32 = arith.constant 224 : i32
    %28 = tpu.dynamic_rotate %5 by %c224_i32 dim 1 : vector<8x256xf32>, i32 -> vector<8x256xf32>
    %29 = arith.mulf %4, %28 : vector<8x256xf32>
    %30 = arith.truncf %29 : vector<8x256xf32> to vector<8x256xbf16>
    %31 = tpu.concatenate %9, %12, %15, %18, %21, %24, %27, %30 in 0 : vector<8x256xbf16>, vector<8x256xbf16>, vector<8x256xbf16>, vector<8x256xbf16>, vector<8x256xbf16>, vector<8x256xbf16>, vector<8x256xbf16>, vector<8x256xbf16> -> vector<64x256xbf16>
    %c0_3 = arith.constant 0 : index
    %c0_4 = arith.constant 0 : index
    %32 = vector.load %arg3[%c0_3, %c0_4] : memref<256x256xbf16, #tpu.memory_space<vmem>>, vector<256x256xbf16>
    %cst_5 = arith.constant dense<0.000000e+00> : vector<64x256xf32>
    %33 = tpu.matmul %31, %32, %cst_5 {dimension_numbers = #tpu.dot_dimension_numbers<[1], [0], [0], [1], [0, 0, 1, 1], [], []>} : vector<64x256xbf16>, vector<256x256xbf16>, vector<64x256xf32> -> vector<64x256xf32>
    %34 = vector.extract_strided_slice %33 {offsets = [0, 0], sizes = [8, 256], strides = [1, 1]} : vector<64x256xf32> to vector<8x256xf32>
    %35 = vector.extract_strided_slice %33 {offsets = [8, 0], sizes = [8, 256], strides = [1, 1]} : vector<64x256xf32> to vector<8x256xf32>
    %36 = vector.extract_strided_slice %33 {offsets = [16, 0], sizes = [8, 256], strides = [1, 1]} : vector<64x256xf32> to vector<8x256xf32>
    %37 = vector.extract_strided_slice %33 {offsets = [24, 0], sizes = [8, 256], strides = [1, 1]} : vector<64x256xf32> to vector<8x256xf32>
    %38 = vector.extract_strided_slice %33 {offsets = [32, 0], sizes = [8, 256], strides = [1, 1]} : vector<64x256xf32> to vector<8x256xf32>
    %39 = vector.extract_strided_slice %33 {offsets = [40, 0], sizes = [8, 256], strides = [1, 1]} : vector<64x256xf32> to vector<8x256xf32>
    %40 = vector.extract_strided_slice %33 {offsets = [48, 0], sizes = [8, 256], strides = [1, 1]} : vector<64x256xf32> to vector<8x256xf32>
    %41 = vector.extract_strided_slice %33 {offsets = [56, 0], sizes = [8, 256], strides = [1, 1]} : vector<64x256xf32> to vector<8x256xf32>
    %42 = arith.maximumf %34, %35 : vector<8x256xf32>
    %43 = arith.maximumf %42, %36 : vector<8x256xf32>
    %44 = arith.maximumf %43, %37 : vector<8x256xf32>
    %45 = arith.maximumf %44, %38 : vector<8x256xf32>
    %46 = arith.maximumf %45, %39 : vector<8x256xf32>
    %47 = arith.maximumf %46, %40 : vector<8x256xf32>
    %48 = arith.maximumf %47, %41 : vector<8x256xf32>
    %49 = arith.subf %34, %48 : vector<8x256xf32>
    %50 = math.exp %49 : vector<8x256xf32>
    %51 = arith.subf %35, %48 : vector<8x256xf32>
    %52 = math.exp %51 : vector<8x256xf32>
    %53 = arith.subf %36, %48 : vector<8x256xf32>
    %54 = math.exp %53 : vector<8x256xf32>
    %55 = arith.subf %37, %48 : vector<8x256xf32>
    %56 = math.exp %55 : vector<8x256xf32>
    %57 = arith.subf %38, %48 : vector<8x256xf32>
    %58 = math.exp %57 : vector<8x256xf32>
    %59 = arith.subf %39, %48 : vector<8x256xf32>
    %60 = math.exp %59 : vector<8x256xf32>
    %61 = arith.subf %40, %48 : vector<8x256xf32>
    %62 = math.exp %61 : vector<8x256xf32>
    %63 = arith.subf %41, %48 : vector<8x256xf32>
    %64 = math.exp %63 : vector<8x256xf32>
    %65 = arith.addf %50, %52 : vector<8x256xf32>
    %66 = arith.addf %65, %54 : vector<8x256xf32>
    %67 = arith.addf %66, %56 : vector<8x256xf32>
    %68 = arith.addf %67, %58 : vector<8x256xf32>
    %69 = arith.addf %68, %60 : vector<8x256xf32>
    %70 = arith.addf %69, %62 : vector<8x256xf32>
    %71 = arith.addf %70, %64 : vector<8x256xf32>
    %72 = tpu.reciprocal %71 {approx = true} : vector<8x256xf32> -> vector<8x256xf32>
    %73 = arith.mulf %50, %6 : vector<8x256xf32>
    %c32_i32_6 = arith.constant 32 : i32
    %74 = tpu.dynamic_rotate %6 by %c32_i32_6 dim 1 : vector<8x256xf32>, i32 -> vector<8x256xf32>
    %75 = arith.mulf %52, %74 : vector<8x256xf32>
    %76 = arith.addf %73, %75 : vector<8x256xf32>
    %c64_i32_7 = arith.constant 64 : i32
    %77 = tpu.dynamic_rotate %6 by %c64_i32_7 dim 1 : vector<8x256xf32>, i32 -> vector<8x256xf32>
    %78 = arith.mulf %54, %77 : vector<8x256xf32>
    %79 = arith.addf %76, %78 : vector<8x256xf32>
    %c96_i32_8 = arith.constant 96 : i32
    %80 = tpu.dynamic_rotate %6 by %c96_i32_8 dim 1 : vector<8x256xf32>, i32 -> vector<8x256xf32>
    %81 = arith.mulf %56, %80 : vector<8x256xf32>
    %82 = arith.addf %79, %81 : vector<8x256xf32>
    %c128_i32_9 = arith.constant 128 : i32
    %83 = tpu.dynamic_rotate %6 by %c128_i32_9 dim 1 : vector<8x256xf32>, i32 -> vector<8x256xf32>
    %84 = arith.mulf %58, %83 : vector<8x256xf32>
    %85 = arith.addf %82, %84 : vector<8x256xf32>
    %c160_i32_10 = arith.constant 160 : i32
    %86 = tpu.dynamic_rotate %6 by %c160_i32_10 dim 1 : vector<8x256xf32>, i32 -> vector<8x256xf32>
    %87 = arith.mulf %60, %86 : vector<8x256xf32>
    %88 = arith.addf %85, %87 : vector<8x256xf32>
    %c192_i32_11 = arith.constant 192 : i32
    %89 = tpu.dynamic_rotate %6 by %c192_i32_11 dim 1 : vector<8x256xf32>, i32 -> vector<8x256xf32>
    %90 = arith.mulf %62, %89 : vector<8x256xf32>
    %91 = arith.addf %88, %90 : vector<8x256xf32>
    %c224_i32_12 = arith.constant 224 : i32
    %92 = tpu.dynamic_rotate %6 by %c224_i32_12 dim 1 : vector<8x256xf32>, i32 -> vector<8x256xf32>
    %93 = arith.mulf %64, %92 : vector<8x256xf32>
    %94 = arith.addf %91, %93 : vector<8x256xf32>
    %95 = arith.mulf %94, %72 : vector<8x256xf32>
    %96 = arith.addf %95, %7 : vector<8x256xf32>
    %cst_13 = arith.constant 0.000000e+00 : f32
    %97 = vector.broadcast %cst_13 : f32 to vector<8x256xf32>
    %98 = arith.maximumf %96, %97 : vector<8x256xf32>
    %cst_14 = arith.constant dense<0.000000e+00> : vector<8xf32>
    %99 = vector.multi_reduction <add>, %98, %cst_14 [1] : vector<8x256xf32> to vector<8xf32>
    %100 = vector.shape_cast %99 : vector<8xf32> to vector<8x1xf32>
    %cst_15 = arith.constant 2.560000e+02 : f32
    %101 = vector.broadcast %cst_15 : f32 to vector<8x1xf32>
    %102 = arith.divf %100, %101 : vector<8x1xf32>
    %103 = vector.broadcast %102 : vector<8x1xf32> to vector<8x256xf32>
    %104 = arith.subf %98, %103 : vector<8x256xf32>
    %105 = arith.mulf %104, %104 : vector<8x256xf32>
    %cst_16 = arith.constant dense<0.000000e+00> : vector<8xf32>
    %106 = vector.multi_reduction <add>, %105, %cst_16 [1] : vector<8x256xf32> to vector<8xf32>
    %107 = vector.shape_cast %106 : vector<8xf32> to vector<8x1xf32>
    %cst_17 = arith.constant 2.560000e+02 : f32
    %108 = vector.broadcast %cst_17 : f32 to vector<8x1xf32>
    %109 = arith.divf %107, %108 : vector<8x1xf32>
    %cst_18 = arith.constant 9.99999974E-6 : f32
    %110 = vector.broadcast %cst_18 : f32 to vector<8x1xf32>
    %111 = arith.addf %109, %110 : vector<8x1xf32>
    %112 = math.rsqrt %111 : vector<8x1xf32>
    %113 = vector.broadcast %112 : vector<8x1xf32> to vector<8x256xf32>
    %114 = arith.mulf %104, %113 : vector<8x256xf32>
    %c0_19 = arith.constant 0 : index
    %c0_20 = arith.constant 0 : index
    %115 = vector.load %arg4[%c0_19, %c0_20] : memref<1x256xf32, #tpu.memory_space<vmem>>, vector<1x256xf32>
    %116 = vector.broadcast %115 : vector<1x256xf32> to vector<8x256xf32>
    %117 = arith.mulf %114, %116 : vector<8x256xf32>
    %c0_21 = arith.constant 0 : index
    %c0_22 = arith.constant 0 : index
    %118 = vector.load %arg5[%c0_21, %c0_22] : memref<1x256xf32, #tpu.memory_space<vmem>>, vector<1x256xf32>
    %119 = vector.broadcast %118 : vector<1x256xf32> to vector<8x256xf32>
    %120 = arith.addf %117, %119 : vector<8x256xf32>
    %121 = arith.truncf %120 : vector<8x256xf32> to vector<8x256xbf16>
    %c0_23 = arith.constant 0 : index
    %c0_24 = arith.constant 0 : index
    %122 = vector.load %arg6[%c0_23, %c0_24] : memref<256x1024xbf16, #tpu.memory_space<vmem>>, vector<256x1024xbf16>
    %cst_25 = arith.constant dense<0.000000e+00> : vector<8x1024xf32>
    %123 = tpu.matmul %121, %122, %cst_25 {dimension_numbers = #tpu.dot_dimension_numbers<[1], [0], [0], [1], [0, 0, 1, 1], [], []>} : vector<8x256xbf16>, vector<256x1024xbf16>, vector<8x1024xf32> -> vector<8x1024xf32>
    %c0_26 = arith.constant 0 : index
    %c0_27 = arith.constant 0 : index
    %124 = vector.load %arg7[%c0_26, %c0_27] : memref<1x1024xf32, #tpu.memory_space<vmem>>, vector<1x1024xf32>
    %125 = vector.broadcast %124 : vector<1x1024xf32> to vector<8x1024xf32>
    %126 = arith.addf %123, %125 : vector<8x1024xf32>
    %cst_28 = arith.constant 5.000000e-01 : f32
    %127 = vector.broadcast %cst_28 : f32 to vector<8x1024xf32>
    %128 = arith.mulf %127, %126 : vector<8x1024xf32>
    %cst_29 = arith.constant 0.707106769 : f32
    %129 = vector.broadcast %cst_29 : f32 to vector<8x1024xf32>
    %130 = arith.mulf %126, %129 : vector<8x1024xf32>
    %131 = math.erf %130 : vector<8x1024xf32>
    %cst_30 = arith.constant 1.000000e+00 : f32
    %132 = vector.broadcast %cst_30 : f32 to vector<8x1024xf32>
    %133 = arith.addf %132, %131 : vector<8x1024xf32>
    %134 = arith.mulf %128, %133 : vector<8x1024xf32>
    %135 = arith.truncf %134 : vector<8x1024xf32> to vector<8x1024xbf16>
    %c0_31 = arith.constant 0 : index
    %c0_32 = arith.constant 0 : index
    %136 = vector.load %arg8[%c0_31, %c0_32] : memref<1024x256xbf16, #tpu.memory_space<vmem>>, vector<1024x256xbf16>
    %cst_33 = arith.constant dense<0.000000e+00> : vector<8x256xf32>
    %137 = tpu.matmul %135, %136, %cst_33 {dimension_numbers = #tpu.dot_dimension_numbers<[1], [0], [0], [1], [0, 0, 1, 1], [], []>} : vector<8x1024xbf16>, vector<1024x256xbf16>, vector<8x256xf32> -> vector<8x256xf32>
    %c0_34 = arith.constant 0 : index
    %c0_35 = arith.constant 0 : index
    %138 = vector.load %arg9[%c0_34, %c0_35] : memref<1x256xf32, #tpu.memory_space<vmem>>, vector<1x256xf32>
    %139 = vector.broadcast %138 : vector<1x256xf32> to vector<8x256xf32>
    %140 = arith.addf %137, %139 : vector<8x256xf32>
    %141 = arith.addf %140, %0 : vector<8x256xf32>
    %c0_36 = arith.constant 0 : index
    %c0_37 = arith.constant 0 : index
    %142 = vector.load %arg10[%c0_36, %c0_37] : memref<8x256xf32, #tpu.memory_space<vmem>>, vector<8x256xf32>
    tpu.vector_store %arg10[%c0_36, %c0_37], %141 {strides = array<i32>} : memref<8x256xf32, #tpu.memory_space<vmem>>, vector<8x256xf32>,
    return
  }
  func.func @transform_0(%arg0: i32) -> (i32, i32) {
    %c0_i32 = arith.constant 0 : i32
    %c0_i32_0 = arith.constant 0 : i32
    return %arg0, %c0_i32 : i32, i32
  }
  func.func @transform_1(%arg0: i32) -> (i32, i32) {
    %c0_i32 = arith.constant 0 : i32
    %c0_i32_0 = arith.constant 0 : i32
    %c0_i32_1 = arith.constant 0 : i32
    return %c0_i32, %c0_i32_0 : i32, i32
  }
  func.func @transform_2(%arg0: i32) -> (i32, i32) {
    %c0_i32 = arith.constant 0 : i32
    %c0_i32_0 = arith.constant 0 : i32
    %c0_i32_1 = arith.constant 0 : i32
    return %c0_i32, %c0_i32_0 : i32, i32
  }
  func.func @transform_3(%arg0: i32) -> (i32, i32) {
    %c0_i32 = arith.constant 0 : i32
    %c0_i32_0 = arith.constant 0 : i32
    %c0_i32_1 = arith.constant 0 : i32
    return %c0_i32, %c0_i32_0 : i32, i32
  }
  func.func @transform_4(%arg0: i32) -> (i32, i32) {
    %c0_i32 = arith.constant 0 : i32
    %c0_i32_0 = arith.constant 0 : i32
    %c0_i32_1 = arith.constant 0 : i32
    return %c0_i32, %c0_i32_0 : i32, i32
  }
  func.func @transform_5(%arg0: i32) -> (i32, i32) {
    %c0_i32 = arith.constant 0 : i32
    %c0_i32_0 = arith.constant 0 : i32
    %c0_i32_1 = arith.constant 0 : i32
    return %c0_i32, %c0_i32_0 : i32, i32
  }
  func.func @transform_6(%arg0: i32) -> (i32, i32) {
    %c0_i32 = arith.constant 0 : i32
    %c0_i32_0 = arith.constant 0 : i32
    %c0_i32_1 = arith.constant 0 : i32
    return %c0_i32, %c0_i32_0 : i32, i32
  }
  func.func @transform_7(%arg0: i32) -> (i32, i32) {
    %c0_i32 = arith.constant 0 : i32
    %c0_i32_0 = arith.constant 0 : i32
    %c0_i32_1 = arith.constant 0 : i32
    return %c0_i32, %c0_i32_0 : i32, i32
  }
  func.func @transform_8(%arg0: i32) -> (i32, i32) {
    %c0_i32 = arith.constant 0 : i32
    %c0_i32_0 = arith.constant 0 : i32
    %c0_i32_1 = arith.constant 0 : i32
    return %c0_i32, %c0_i32_0 : i32, i32
  }
  func.func @transform_9(%arg0: i32) -> (i32, i32) {
    %c0_i32 = arith.constant 0 : i32
    %c0_i32_0 = arith.constant 0 : i32
    return %arg0, %c0_i32 : i32, i32
  }
}

</mosaic_0001>

<llo_original>
// kernel: tpu_custom_call.1
$region0: #{tpu_custom_call.1}
  #allocation0 [shape = 'u32[]', space=smem, size = 0x4, offset = 0x4, fixed_abs, tag = 'smem constant byte address 0x4 - core index']
  #allocation1 [shape = 'u32[144,128]{1,0:T(1,128)}', space=vmem, size = 0x12000, scoped, tag = 'internal scratch']
  %s0 = inlined_call_operand.hbm [shape: f32[8,256], index: 0, kind: input, shape index: {}]
  %s1 = inlined_call_operand.hbm [shape: bf16[256,1024], index: 1, kind: input, shape index: {}]
  %s2 = inlined_call_operand.hbm [shape: bf16[256,256], index: 2, kind: input, shape index: {}]
  %s3 = inlined_call_operand.vmem [shape: f32[1,256], index: 3, kind: input, shape index: {}]
  %s4 = inlined_call_operand.hbm [shape: f32[1,256], index: 4, kind: input, shape index: {}]
  %s5 = inlined_call_operand.hbm [shape: bf16[256,1024], index: 5, kind: input, shape index: {}]
  %s6 = inlined_call_operand.vmem [shape: f32[1,1024], index: 6, kind: input, shape index: {}]
  %s7 = inlined_call_operand.hbm [shape: bf16[1024,256], index: 7, kind: input, shape index: {}]
  %s8 = inlined_call_operand.vmem [shape: f32[1,256], index: 8, kind: input, shape index: {}]
  %s9 = inlined_call_operand.hbm [shape: f32[8,256], index: 9, kind: output, shape index: {}]
  %s10 = sld [smem:[#allocation0]]
  $region70: #{tpu_custom_call.1} parent=0
    _
  %s12 = ssub.s32 1, %s10
  %s13 = scalar_select 0, %s12, %s10
  $region1: #{tpu_custom_call.1} parent=0
    #allocation2 [shape = 'u8[8192]{0}', space=vmem, size = 0x2000, scoped, tag = 'input window, operand 0, single buffered']
    #allocation3 [shape = 's32[1]{0}', space=sflag, size = 0x4, scoped, tag = 'scoped memory for tpu_custom_call.1']
    #allocation4 [shape = 's32[1]{0}', space=sflag, size = 0x4, scoped, tag = 'scoped memory for tpu_custom_call.1']
    #allocation5 [shape = 'u8[524288]{0}', space=vmem, size = 0x80000, scoped, tag = 'input window, operand 1, single buffered']
    #allocation6 [shape = 's32[1]{0}', space=sflag, size = 0x4, scoped, tag = 'scoped memory for tpu_custom_call.1']
    #allocation7 [shape = 'u8[131072]{0}', space=vmem, size = 0x20000, scoped, tag = 'input window, operand 2, single buffered']
    #allocation8 [shape = 'u8[1024]{0}', space=vmem, size = 0x400, scoped, tag = 'input window, operand 4, single buffered']
    #allocation9 [shape = 's32[1]{0}', space=sflag, size = 0x4, scoped, tag = 'scoped memory for tpu_custom_call.1']
    #allocation10 [shape = 'u8[524288]{0}', space=vmem, size = 0x80000, scoped, tag = 'input window, operand 5, single buffered']
    #allocation11 [shape = 'u8[524288]{0}', space=vmem, size = 0x80000, scoped, tag = 'input window, operand 7, single buffered']
    #allocation12 [shape = 's32[1]{0}', space=sflag, size = 0x4, scoped, tag = 'scoped memory for tpu_custom_call.1']
    #allocation13 [shape = 'u8[8192]{0}', space=vmem, size = 0x2000, scoped, tag = 'output window, operand 0, single buffered']
    %14 = vsyncpa [#allocation3], 0
    %15 = vsyncpa [#allocation6], 0
    %16 = vsyncpa [#allocation9], 0
    %17 = vsyncpa [#allocation12], 0
    %18 = vsyncpa [#allocation4], 0
    // Predicated region
    $region2: #{tpu_custom_call.1} parent=1 // pred_check
      _
    $region3: #{tpu_custom_call.1} parent=1 // pred_check_branch
      %20 = sbr.rel (0) target = $region5
    $region4: #{tpu_custom_call.1} parent=1 // pred_region
      %s22 = ssub.s32 256, 256
      %23 = vsyncadd [#allocation3], %s22
      %s25 = sshll.u32 [#allocation2], 4
      %s26 = int_to_ptr.vmem [resolvable:$true] %s25
      %28 = dma.hbm_to_vmem [thread:$0]  %s0, 256, %s26, [#allocation3]
    $region5: #{tpu_custom_call.1} parent=1 // pred_fallthru
      _
    // Predicated region
    $region6: #{tpu_custom_call.1} parent=1 // pred_check
      _
    $region7: #{tpu_custom_call.1} parent=1 // pred_check_branch
      %30 = sbr.rel (0) target = $region9
    $region8: #{tpu_custom_call.1} parent=1 // pred_region
      %s32 = ssub.s32 16384, 16384
      %33 = vsyncadd [#allocation6], %s32
      %s34 = sshll.u32 [#allocation5], 4
      %s35 = int_to_ptr.vmem [resolvable:$true] %s34
      %40 = dma.hbm_to_vmem [thread:$0]  %s1, 16384, %s35, [#allocation6], 512, 512, 32
    $region9: #{tpu_custom_call.1} parent=1 // pred_fallthru
      _
    // Predicated region
    $region10: #{tpu_custom_call.1} parent=1 // pred_check
      _
    $region11: #{tpu_custom_call.1} parent=1 // pred_check_branch
      %42 = sbr.rel (0) target = $region13
    $region12: #{tpu_custom_call.1} parent=1 // pred_region
      %s44 = ssub.s32 4096, 4096
      %45 = vsyncadd [#allocation6], %s44
      %s46 = sshll.u32 [#allocation7], 4
      %s47 = int_to_ptr.vmem [resolvable:$true] %s46
      %52 = dma.hbm_to_vmem [thread:$0]  %s2, 4096, %s47, [#allocation6], 128, 128, 8
    $region13: #{tpu_custom_call.1} parent=1 // pred_fallthru
      _
    // Predicated region
    $region14: #{tpu_custom_call.1} parent=1 // pred_check
      _
    $region15: #{tpu_custom_call.1} parent=1 // pred_check_branch
      %54 = sbr.rel (0) target = $region17
    $region16: #{tpu_custom_call.1} parent=1 // pred_region
      _
    $region17: #{tpu_custom_call.1} parent=1 // pred_fallthru
      _
    // Predicated region
    $region18: #{tpu_custom_call.1} parent=1 // pred_check
      _
    $region19: #{tpu_custom_call.1} parent=1 // pred_check_branch
      %56 = sbr.rel (0) target = $region21
    $region20: #{tpu_custom_call.1} parent=1 // pred_region
      %s58 = ssub.s32 32, 32
      %59 = vsyncadd [#allocation9], %s58
      %s61 = sshll.u32 [#allocation8], 4
      %s62 = int_to_ptr.vmem [resolvable:$true] %s61
      %64 = dma.hbm_to_vmem [thread:$0]  %s4, 32, %s62, [#allocation9]
    $region21: #{tpu_custom_call.1} parent=1 // pred_fallthru
      _
    // Predicated region
    $region22: #{tpu_custom_call.1} parent=1 // pred_check
      _
    $region23: #{tpu_custom_call.1} parent=1 // pred_check_branch
      %66 = sbr.rel (0) target = $region25
    $region24: #{tpu_custom_call.1} parent=1 // pred_region
      %s68 = ssub.s32 16384, 16384
      %69 = vsyncadd [#allocation9], %s68
      %s70 = sshll.u32 [#allocation10], 4
      %s71 = int_to_ptr.vmem [resolvable:$true] %s70
      %76 = dma.hbm_to_vmem [thread:$0]  %s5, 16384, %s71, [#allocation9], 512, 512, 32
    $region25: #{tpu_custom_call.1} parent=1 // pred_fallthru
      _
    // Predicated region
    $region26: #{tpu_custom_call.1} parent=1 // pred_check
      _
    $region27: #{tpu_custom_call.1} parent=1 // pred_check_branch
      %78 = sbr.rel (0) target = $region29
    $region28: #{tpu_custom_call.1} parent=1 // pred_region
      _
    $region29: #{tpu_custom_call.1} parent=1 // pred_fallthru
      _
    // Predicated region
    $region30: #{tpu_custom_call.1} parent=1 // pred_check
      _
    $region31: #{tpu_custom_call.1} parent=1 // pred_check_branch
      %80 = sbr.rel (0) target = $region33
    $region32: #{tpu_custom_call.1} parent=1 // pred_region
      %s82 = ssub.s32 16384, 16384
      %83 = vsyncadd [#allocation12], %s82
      %s84 = sshll.u32 [#allocation11], 4
      %s85 = int_to_ptr.vmem [resolvable:$true] %s84
      %90 = dma.hbm_to_vmem [thread:$0]  %s7, 16384, %s85, [#allocation12], 128, 128, 8
    $region33: #{tpu_custom_call.1} parent=1 // pred_fallthru
      _
    // Predicated region
    $region34: #{tpu_custom_call.1} parent=1 // pred_check
      _
    $region35: #{tpu_custom_call.1} parent=1 // pred_check_branch
      %92 = sbr.rel (0) target = $region37
    $region36: #{tpu_custom_call.1} parent=1 // pred_region
      _
    $region37: #{tpu_custom_call.1} parent=1 // pred_fallthru
      _
    // Predicated region
    $region38: #{tpu_custom_call.1} parent=1 // pred_check
      _
    $region39: #{tpu_custom_call.1} parent=1 // pred_check_branch
      %94 = sbr.rel (0) target = $region41
    $region40: #{tpu_custom_call.1} parent=1 // pred_region
      %95 = dma.done [#allocation3], 256
    $region41: #{tpu_custom_call.1} parent=1 // pred_fallthru
      _
    // Predicated region
    $region42: #{tpu_custom_call.1} parent=1 // pred_check
      _
    $region43: #{tpu_custom_call.1} parent=1 // pred_check_branch
      %97 = sbr.rel (0) target = $region45
    $region44: #{tpu_custom_call.1} parent=1 // pred_region
      %98 = dma.done [#allocation6], 16384
    $region45: #{tpu_custom_call.1} parent=1 // pred_fallthru
      _
    // Predicated region
    $region46: #{tpu_custom_call.1} parent=1 // pred_check
      _
    $region47: #{tpu_custom_call.1} parent=1 // pred_check_branch
      %100 = sbr.rel (0) target = $region49
    $region48: #{tpu_custom_call.1} parent=1 // pred_region
      %101 = dma.done [#allocation6], 4096
    $region49: #{tpu_custom_call.1} parent=1 // pred_fallthru
      _
    // Predicated region
    $region50: #{tpu_custom_call.1} parent=1 // pred_check
      _
    $region51: #{tpu_custom_call.1} parent=1 // pred_check_branch
      %103 = sbr.rel (0) target = $region53
    $region52: #{tpu_custom_call.1} parent=1 // pred_region
      %104 = dma.done [#allocation9], 32
    $region53: #{tpu_custom_call.1} parent=1 // pred_fallthru
      _
    // Predicated region
    $region54: #{tpu_custom_call.1} parent=1 // pred_check
      _
    $region55: #{tpu_custom_call.1} parent=1 // pred_check_branch
      %106 = sbr.rel (0) target = $region57
    $region56: #{tpu_custom_call.1} parent=1 // pred_region
      %107 = dma.done [#allocation9], 16384
    $region57: #{tpu_custom_call.1} parent=1 // pred_fallthru
      _
    // Predicated region
    $region58: #{tpu_custom_call.1} parent=1 // pred_check
      _
    $region59: #{tpu_custom_call.1} parent=1 // pred_check_branch
      %109 = sbr.rel (0) target = $region61
    $region60: #{tpu_custom_call.1} parent=1 // pred_region
      %110 = dma.done [#allocation12], 16384
    $region61: #{tpu_custom_call.1} parent=1 // pred_fallthru
      _
    %v111 = vld [vmem:[#allocation2] sm:$0xff]
    %v112 = vld [vmem:[#allocation2 + $0x8] sm:$0xff]
    %v113 = vpack.c.bf16 %v111, %v111
    %v114 = vpack.c.bf16 %v112, %v112
    %v115 = vld [vmem:[#allocation5] sm:$0xff]
    %v116 = vld [vmem:[#allocation5 + $0x8] sm:$0xff]
    %v117 = vld [vmem:[#allocation5 + $0x10] sm:$0xff]
    %v118 = vld [vmem:[#allocation5 + $0x18] sm:$0xff]
    %v119 = vld [vmem:[#allocation5 + $0x20] sm:$0xff]
    %v120 = vld [vmem:[#allocation5 + $0x28] sm:$0xff]
    %v121 = vld [vmem:[#allocation5 + $0x30] sm:$0xff]
    %v122 = vld [vmem:[#allocation5 + $0x38] sm:$0xff]
    %v123 = vld [vmem:[#allocation5 + $0x40] sm:$0xff]
    %v124 = vld [vmem:[#allocation5 + $0x48] sm:$0xff]
    %v125 = vld [vmem:[#allocation5 + $0x50] sm:$0xff]
    %v126 = vld [vmem:[#allocation5 + $0x58] sm:$0xff]
    %v127 = vld [vmem:[#allocation5 + $0x60] sm:$0xff]
    %v128 = vld [vmem:[#allocation5 + $0x68] sm:$0xff]
    %v129 = vld [vmem:[#allocation5 + $0x70] sm:$0xff]
    %v130 = vld [vmem:[#allocation5 + $0x78] sm:$0xff]
    %v131 = vld [vmem:[#allocation5 + $0x80] sm:$0xff]
    %v132 = vld [vmem:[#allocation5 + $0x88] sm:$0xff]
    %v133 = vld [vmem:[#allocation5 + $0x90] sm:$0xff]
    %v134 = vld [vmem:[#allocation5 + $0x98] sm:$0xff]
    %v135 = vld [vmem:[#allocation5 + $0xa0] sm:$0xff]
    %v136 = vld [vmem:[#allocation5 + $0xa8] sm:$0xff]
    %v137 = vld [vmem:[#allocation5 + $0xb0] sm:$0xff]
    %v138 = vld [vmem:[#allocation5 + $0xb8] sm:$0xff]
    %v139 = vld [vmem:[#allocation5 + $0xc0] sm:$0xff]
    %v140 = vld [vmem:[#allocation5 + $0xc8] sm:$0xff]
    %v141 = vld [vmem:[#allocation5 + $0xd0] sm:$0xff]
    %v142 = vld [vmem:[#allocation5 + $0xd8] sm:$0xff]
    %v143 = vld [vmem:[#allocation5 + $0xe0] sm:$0xff]
    %v144 = vld [vmem:[#allocation5 + $0xe8] sm:$0xff]
    %v145 = vld [vmem:[#allocation5 + $0xf0] sm:$0xff]
    %v146 = vld [vmem:[#allocation5 + $0xf8] sm:$0xff]
    %v147 = vld [vmem:[#allocation5 + $0x100] sm:$0xff]
    %v148 = vld [vmem:[#allocation5 + $0x108] sm:$0xff]
    %v149 = vld [vmem:[#allocation5 + $0x110] sm:$0xff]
    %v150 = vld [vmem:[#allocation5 + $0x118] sm:$0xff]
    %v151 = vld [vmem:[#allocation5 + $0x120] sm:$0xff]
    %v152 = vld [vmem:[#allocation5 + $0x128] sm:$0xff]
    %v153 = vld [vmem:[#allocation5 + $0x130] sm:$0xff]
    %v154 = vld [vmem:[#allocation5 + $0x138] sm:$0xff]
    %v155 = vld [vmem:[#allocation5 + $0x140] sm:$0xff]
    %v156 = vld [vmem:[#allocation5 + $0x148] sm:$0xff]
    %v157 = vld [vmem:[#allocation5 + $0x150] sm:$0xff]
    %v158 = vld [vmem:[#allocation5 + $0x158] sm:$0xff]
    %v159 = vld [vmem:[#allocation5 + $0x160] sm:$0xff]
    %v160 = vld [vmem:[#allocation5 + $0x168] sm:$0xff]
    %v161 = vld [vmem:[#allocation5 + $0x170] sm:$0xff]
    %v162 = vld [vmem:[#allocation5 + $0x178] sm:$0xff]
    %v163 = vld [vmem:[#allocation5 + $0x180] sm:$0xff]
    %v164 = vld [vmem:[#allocation5 + $0x188] sm:$0xff]
    %v165 = vld [vmem:[#allocation5 + $0x190] sm:$0xff]
    %v166 = vld [vmem:[#allocation5 + $0x198] sm:$0xff]
    %v167 = vld [vmem:[#allocation5 + $0x1a0] sm:$0xff]
    %v168 = vld [vmem:[#allocation5 + $0x1a8] sm:$0xff]
    %v169 = vld [vmem:[#allocation5 + $0x1b0] sm:$0xff]
    %v170 = vld [vmem:[#allocation5 + $0x1b8] sm:$0xff]
    %v171 = vld [vmem:[#allocation5 + $0x1c0] sm:$0xff]
    %v172 = vld [vmem:[#allocation5 + $0x1c8] sm:$0xff]
    %v173 = vld [vmem:[#allocation5 + $0x1d0] sm:$0xff]
    %v174 = vld [vmem:[#allocation5 + $0x1d8] sm:$0xff]
    %v175 = vld [vmem:[#allocation5 + $0x1e0] sm:$0xff]
    %v176 = vld [vmem:[#allocation5 + $0x1e8] sm:$0xff]
    %v177 = vld [vmem:[#allocation5 + $0x1f0] sm:$0xff]
    %v178 = vld [vmem:[#allocation5 + $0x1f8] sm:$0xff]
    %v179 = vld [vmem:[#allocation5 + $0x200] sm:$0xff]
    %v180 = vld [vmem:[#allocation5 + $0x208] sm:$0xff]
    %v181 = vld [vmem:[#allocation5 + $0x210] sm:$0xff]
    %v182 = vld [vmem:[#allocation5 + $0x218] sm:$0xff]
    %v183 = vld [vmem:[#allocation5 + $0x220] sm:$0xff]
    %v184 = vld [vmem:[#allocation5 + $0x228] sm:$0xff]
    %v185 = vld [vmem:[#allocation5 + $0x230] sm:$0xff]
    %v186 = vld [vmem:[#allocation5 + $0x238] sm:$0xff]
    %v187 = vld [vmem:[#allocation5 + $0x240] sm:$0xff]
    %v188 = vld [vmem:[#allocation5 + $0x248] sm:$0xff]
    %v189 = vld [vmem:[#allocation5 + $0x250] sm:$0xff]
    %v190 = vld [vmem:[#allocation5 + $0x258] sm:$0xff]
    %v191 = vld [vmem:[#allocation5 + $0x260] sm:$0xff]
    %v192 = vld [vmem:[#allocation5 + $0x268] sm:$0xff]
    %v193 = vld [vmem:[#allocation5 + $0x270] sm:$0xff]
    %v194 = vld [vmem:[#allocation5 + $0x278] sm:$0xff]
    %v195 = vld [vmem:[#allocation5 + $0x280] sm:$0xff]
    %v196 = vld [vmem:[#allocation5 + $0x288] sm:$0xff]
    %v197 = vld [vmem:[#allocation5 + $0x290] sm:$0xff]
    %v198 = vld [vmem:[#allocation5 + $0x298] sm:$0xff]
    %v199 = vld [vmem:[#allocation5 + $0x2a0] sm:$0xff]
    %v200 = vld [vmem:[#allocation5 + $0x2a8] sm:$0xff]
    %v201 = vld [vmem:[#allocation5 + $0x2b0] sm:$0xff]
    %v202 = vld [vmem:[#allocation5 + $0x2b8] sm:$0xff]
    %v203 = vld [vmem:[#allocation5 + $0x2c0] sm:$0xff]
    %v204 = vld [vmem:[#allocation5 + $0x2c8] sm:$0xff]
    %v205 = vld [vmem:[#allocation5 + $0x2d0] sm:$0xff]
    %v206 = vld [vmem:[#allocation5 + $0x2d8] sm:$0xff]
    %v207 = vld [vmem:[#allocation5 + $0x2e0] sm:$0xff]
    %v208 = vld [vmem:[#allocation5 + $0x2e8] sm:$0xff]
    %v209 = vld [vmem:[#allocation5 + $0x2f0] sm:$0xff]
    %v210 = vld [vmem:[#allocation5 + $0x2f8] sm:$0xff]
    %v211 = vld [vmem:[#allocation5 + $0x300] sm:$0xff]
    %v212 = vld [vmem:[#allocation5 + $0x308] sm:$0xff]
    %v213 = vld [vmem:[#allocation5 + $0x310] sm:$0xff]
    %v214 = vld [vmem:[#allocation5 + $0x318] sm:$0xff]
    %v215 = vld [vmem:[#allocation5 + $0x320] sm:$0xff]
    %v216 = vld [vmem:[#allocation5 + $0x328] sm:$0xff]
    %v217 = vld [vmem:[#allocation5 + $0x330] sm:$0xff]
    %v218 = vld [vmem:[#allocation5 + $0x338] sm:$0xff]
    %v219 = vld [vmem:[#allocation5 + $0x340] sm:$0xff]
    %v220 = vld [vmem:[#allocation5 + $0x348] sm:$0xff]
    %v221 = vld [vmem:[#allocation5 + $0x350] sm:$0xff]
    %v222 = vld [vmem:[#allocation5 + $0x358] sm:$0xff]
    %v223 = vld [vmem:[#allocation5 + $0x360] sm:$0xff]
    %v224 = vld [vmem:[#allocation5 + $0x368] sm:$0xff]
    %v225 = vld [vmem:[#allocation5 + $0x370] sm:$0xff]
    %v226 = vld [vmem:[#allocation5 + $0x378] sm:$0xff]
    %v227 = vld [vmem:[#allocation5 + $0x380] sm:$0xff]
    %v228 = vld [vmem:[#allocation5 + $0x388] sm:$0xff]
    %v229 = vld [vmem:[#allocation5 + $0x390] sm:$0xff]
    %v230 = vld [vmem:[#allocation5 + $0x398] sm:$0xff]
    %v231 = vld [vmem:[#allocation5 + $0x3a0] sm:$0xff]
    %v232 = vld [vmem:[#allocation5 + $0x3a8] sm:$0xff]
    %v233 = vld [vmem:[#allocation5 + $0x3b0] sm:$0xff]
    %v234 = vld [vmem:[#allocation5 + $0x3b8] sm:$0xff]
    %v235 = vld [vmem:[#allocation5 + $0x3c0] sm:$0xff]
    %v236 = vld [vmem:[#allocation5 + $0x3c8] sm:$0xff]
    %v237 = vld [vmem:[#allocation5 + $0x3d0] sm:$0xff]
    %v238 = vld [vmem:[#allocation5 + $0x3d8] sm:$0xff]
    %v239 = vld [vmem:[#allocation5 + $0x3e0] sm:$0xff]
    %v240 = vld [vmem:[#allocation5 + $0x3e8] sm:$0xff]
    %v241 = vld [vmem:[#allocation5 + $0x3f0] sm:$0xff]
    %v242 = vld [vmem:[#allocation5 + $0x3f8] sm:$0xff]
    %v371 = vunpack.c.l.b16 %v115
    %v372 = vunpack.c.h.b16 %v115
    %v373 = vunpack.c.l.b16 %v116
    %v374 = vunpack.c.h.b16 %v116
    %v375 = vunpack.c.l.b16 %v117
    %v376 = vunpack.c.h.b16 %v117
    %v377 = vunpack.c.l.b16 %v118
    %v378 = vunpack.c.h.b16 %v118
    %v379 = vunpack.c.l.b16 %v119
    %v380 = vunpack.c.h.b16 %v119
    %v381 = vunpack.c.l.b16 %v120
    %v382 = vunpack.c.h.b16 %v120
    %v383 = vunpack.c.l.b16 %v121
    %v384 = vunpack.c.h.b16 %v121
    %v385 = vunpack.c.l.b16 %v122
    %v386 = vunpack.c.h.b16 %v122
    %v387 = vunpack.c.l.b16 %v123
    %v388 = vunpack.c.h.b16 %v123
    %v389 = vunpack.c.l.b16 %v124
    %v390 = vunpack.c.h.b16 %v124
    %v391 = vunpack.c.l.b16 %v125
    %v392 = vunpack.c.h.b16 %v125
    %v393 = vunpack.c.l.b16 %v126
    %v394 = vunpack.c.h.b16 %v126
    %v395 = vunpack.c.l.b16 %v127
    %v396 = vunpack.c.h.b16 %v127
    %v397 = vunpack.c.l.b16 %v128
    %v398 = vunpack.c.h.b16 %v128
    %v399 = vunpack.c.l.b16 %v129
    %v400 = vunpack.c.h.b16 %v129
    %v401 = vunpack.c.l.b16 %v130
    %v402 = vunpack.c.h.b16 %v130
    %v403 = vunpack.c.l.b16 %v131
    %v404 = vunpack.c.h.b16 %v131
    %v405 = vunpack.c.l.b16 %v132
    %v406 = vunpack.c.h.b16 %v132
    %v407 = vunpack.c.l.b16 %v133
    %v408 = vunpack.c.h.b16 %v133
    %v409 = vunpack.c.l.b16 %v134
    %v410 = vunpack.c.h.b16 %v134
    %v411 = vunpack.c.l.b16 %v135
    %v412 = vunpack.c.h.b16 %v135
    %v413 = vunpack.c.l.b16 %v136
    %v414 = vunpack.c.h.b16 %v136
    %v415 = vunpack.c.l.b16 %v137
    %v416 = vunpack.c.h.b16 %v137
    %v417 = vunpack.c.l.b16 %v138
    %v418 = vunpack.c.h.b16 %v138
    %v419 = vunpack.c.l.b16 %v139
    %v420 = vunpack.c.h.b16 %v139
    %v421 = vunpack.c.l.b16 %v140
    %v422 = vunpack.c.h.b16 %v140
    %v423 = vunpack.c.l.b16 %v141
    %v424 = vunpack.c.h.b16 %v141
    %v425 = vunpack.c.l.b16 %v142
    %v426 = vunpack.c.h.b16 %v142
    %v427 = vunpack.c.l.b16 %v143
    %v428 = vunpack.c.h.b16 %v143
    %v429 = vunpack.c.l.b16 %v144
    %v430 = vunpack.c.h.b16 %v144
    %v431 = vunpack.c.l.b16 %v145
    %v432 = vunpack.c.h.b16 %v145
    %v433 = vunpack.c.l.b16 %v146
    %v434 = vunpack.c.h.b16 %v146
    %v435 = vunpack.c.l.b16 %v147
    %v436 = vunpack.c.h.b16 %v147
    %v437 = vunpack.c.l.b16 %v148
    %v438 = vunpack.c.h.b16 %v148
    %v439 = vunpack.c.l.b16 %v149
    %v440 = vunpack.c.h.b16 %v149
    %v441 = vunpack.c.l.b16 %v150
    %v442 = vunpack.c.h.b16 %v150
    %v443 = vunpack.c.l.b16 %v151
    %v444 = vunpack.c.h.b16 %v151
    %v445 = vunpack.c.l.b16 %v152
    %v446 = vunpack.c.h.b16 %v152
    %v447 = vunpack.c.l.b16 %v153
    %v448 = vunpack.c.h.b16 %v153
    %v449 = vunpack.c.l.b16 %v154
    %v450 = vunpack.c.h.b16 %v154
    %v451 = vunpack.c.l.b16 %v155
    %v452 = vunpack.c.h.b16 %v155
    %v453 = vunpack.c.l.b16 %v156
    %v454 = vunpack.c.h.b16 %v156
    %v455 = vunpack.c.l.b16 %v157
    %v456 = vunpack.c.h.b16 %v157
    %v457 = vunpack.c.l.b16 %v158
    %v458 = vunpack.c.h.b16 %v158
    %v459 = vunpack.c.l.b16 %v159
    %v460 = vunpack.c.h.b16 %v159
    %v461 = vunpack.c.l.b16 %v160
    %v462 = vunpack.c.h.b16 %v160
    %v463 = vunpack.c.l.b16 %v161
    %v464 = vunpack.c.h.b16 %v161
    %v465 = vunpack.c.l.b16 %v162
    %v466 = vunpack.c.h.b16 %v162
    %v467 = vunpack.c.l.b16 %v163
    %v468 = vunpack.c.h.b16 %v163
    %v469 = vunpack.c.l.b16 %v164
    %v470 = vunpack.c.h.b16 %v164
    %v471 = vunpack.c.l.b16 %v165
    %v472 = vunpack.c.h.b16 %v165
    %v473 = vunpack.c.l.b16 %v166
    %v474 = vunpack.c.h.b16 %v166
    %v475 = vunpack.c.l.b16 %v167
    %v476 = vunpack.c.h.b16 %v167
    %v477 = vunpack.c.l.b16 %v168
    %v478 = vunpack.c.h.b16 %v168
    %v479 = vunpack.c.l.b16 %v169
    %v480 = vunpack.c.h.b16 %v169
    %v481 = vunpack.c.l.b16 %v170
    %v482 = vunpack.c.h.b16 %v170
    %v483 = vunpack.c.l.b16 %v171
    %v484 = vunpack.c.h.b16 %v171
    %v485 = vunpack.c.l.b16 %v172
    %v486 = vunpack.c.h.b16 %v172
    %v487 = vunpack.c.l.b16 %v173
    %v488 = vunpack.c.h.b16 %v173
    %v489 = vunpack.c.l.b16 %v174
    %v490 = vunpack.c.h.b16 %v174
    %v491 = vunpack.c.l.b16 %v175
    %v492 = vunpack.c.h.b16 %v175
    %v493 = vunpack.c.l.b16 %v176
    %v494 = vunpack.c.h.b16 %v176
    %v495 = vunpack.c.l.b16 %v177
    %v496 = vunpack.c.h.b16 %v177
    %v497 = vunpack.c.l.b16 %v178
    %v498 = vunpack.c.h.b16 %v178
    %v499 = vunpack.c.l.b16 %v179
    %v500 = vunpack.c.h.b16 %v179
    %v501 = vunpack.c.l.b16 %v180
    %v502 = vunpack.c.h.b16 %v180
    %v503 = vunpack.c.l.b16 %v181
    %v504 = vunpack.c.h.b16 %v181
    %v505 = vunpack.c.l.b16 %v182
    %v506 = vunpack.c.h.b16 %v182
    %v507 = vunpack.c.l.b16 %v183
    %v508 = vunpack.c.h.b16 %v183
    %v509 = vunpack.c.l.b16 %v184
    %v510 = vunpack.c.h.b16 %v184
    %v511 = vunpack.c.l.b16 %v185
    %v512 = vunpack.c.h.b16 %v185
    %v513 = vunpack.c.l.b16 %v186
    %v514 = vunpack.c.h.b16 %v186
    %v515 = vunpack.c.l.b16 %v187
    %v516 = vunpack.c.h.b16 %v187
    %v517 = vunpack.c.l.b16 %v188
    %v518 = vunpack.c.h.b16 %v188
    %v519 = vunpack.c.l.b16 %v189
    %v520 = vunpack.c.h.b16 %v189
    %v521 = vunpack.c.l.b16 %v190
    %v522 = vunpack.c.h.b16 %v190
    %v523 = vunpack.c.l.b16 %v191
    %v524 = vunpack.c.h.b16 %v191
    %v525 = vunpack.c.l.b16 %v192
    %v526 = vunpack.c.h.b16 %v192
    %v527 = vunpack.c.l.b16 %v193
    %v528 = vunpack.c.h.b16 %v193
    %v529 = vunpack.c.l.b16 %v194
    %v530 = vunpack.c.h.b16 %v194
    %v531 = vunpack.c.l.b16 %v195
    %v532 = vunpack.c.h.b16 %v195
    %v533 = vunpack.c.l.b16 %v196
    %v534 = vunpack.c.h.b16 %v196
    %v535 = vunpack.c.l.b16 %v197
    %v536 = vunpack.c.h.b16 %v197
    %v537 = vunpack.c.l.b16 %v198
    %v538 = vunpack.c.h.b16 %v198
    %v539 = vunpack.c.l.b16 %v199
    %v540 = vunpack.c.h.b16 %v199
    %v541 = vunpack.c.l.b16 %v200
    %v542 = vunpack.c.h.b16 %v200
    %v543 = vunpack.c.l.b16 %v201
    %v544 = vunpack.c.h.b16 %v201
    %v545 = vunpack.c.l.b16 %v202
    %v546 = vunpack.c.h.b16 %v202
    %v547 = vunpack.c.l.b16 %v203
    %v548 = vunpack.c.h.b16 %v203
    %v549 = vunpack.c.l.b16 %v204
    %v550 = vunpack.c.h.b16 %v204
    %v551 = vunpack.c.l.b16 %v205
    %v552 = vunpack.c.h.b16 %v205
    %v553 = vunpack.c.l.b16 %v206
    %v554 = vunpack.c.h.b16 %v206
    %v555 = vunpack.c.l.b16 %v207
    %v556 = vunpack.c.h.b16 %v207
    %v557 = vunpack.c.l.b16 %v208
    %v558 = vunpack.c.h.b16 %v208
    %v559 = vunpack.c.l.b16 %v209
    %v560 = vunpack.c.h.b16 %v209
    %v561 = vunpack.c.l.b16 %v210
    %v562 = vunpack.c.h.b16 %v210
    %v563 = vunpack.c.l.b16 %v211
    %v564 = vunpack.c.h.b16 %v211
    %v565 = vunpack.c.l.b16 %v212
    %v566 = vunpack.c.h.b16 %v212
    %v567 = vunpack.c.l.b16 %v213
    %v568 = vunpack.c.h.b16 %v213
    %v569 = vunpack.c.l.b16 %v214
    %v570 = vunpack.c.h.b16 %v214
    %v571 = vunpack.c.l.b16 %v215
    %v572 = vunpack.c.h.b16 %v215
    %v573 = vunpack.c.l.b16 %v216
    %v574 = vunpack.c.h.b16 %v216
    %v575 = vunpack.c.l.b16 %v217
    %v576 = vunpack.c.h.b16 %v217
    %v577 = vunpack.c.l.b16 %v218
    %v578 = vunpack.c.h.b16 %v218
    %v579 = vunpack.c.l.b16 %v219
    %v580 = vunpack.c.h.b16 %v219
    %v581 = vunpack.c.l.b16 %v220
    %v582 = vunpack.c.h.b16 %v220
    %v583 = vunpack.c.l.b16 %v221
    %v584 = vunpack.c.h.b16 %v221
    %v585 = vunpack.c.l.b16 %v222
    %v586 = vunpack.c.h.b16 %v222
    %v587 = vunpack.c.l.b16 %v223
    %v588 = vunpack.c.h.b16 %v223
    %v589 = vunpack.c.l.b16 %v224
    %v590 = vunpack.c.h.b16 %v224
    %v591 = vunpack.c.l.b16 %v225
    %v592 = vunpack.c.h.b16 %v225
    %v593 = vunpack.c.l.b16 %v226
    %v594 = vunpack.c.h.b16 %v226
    %v595 = vunpack.c.l.b16 %v227
    %v596 = vunpack.c.h.b16 %v227
    %v597 = vunpack.c.l.b16 %v228
    %v598 = vunpack.c.h.b16 %v228
    %v599 = vunpack.c.l.b16 %v229
    %v600 = vunpack.c.h.b16 %v229
    %v601 = vunpack.c.l.b16 %v230
    %v602 = vunpack.c.h.b16 %v230
    %v603 = vunpack.c.l.b16 %v231
    %v604 = vunpack.c.h.b16 %v231
    %v605 = vunpack.c.l.b16 %v232
    %v606 = vunpack.c.h.b16 %v232
    %v607 = vunpack.c.l.b16 %v233
    %v608 = vunpack.c.h.b16 %v233
    %v609 = vunpack.c.l.b16 %v234
    %v610 = vunpack.c.h.b16 %v234
    %v611 = vunpack.c.l.b16 %v235
    %v612 = vunpack.c.h.b16 %v235
    %v613 = vunpack.c.l.b16 %v236
    %v614 = vunpack.c.h.b16 %v236
    %v615 = vunpack.c.l.b16 %v237
    %v616 = vunpack.c.h.b16 %v237
    %v617 = vunpack.c.l.b16 %v238
    %v618 = vunpack.c.h.b16 %v238
    %v619 = vunpack.c.l.b16 %v239
    %v620 = vunpack.c.h.b16 %v239
    %v621 = vunpack.c.l.b16 %v240
    %v622 = vunpack.c.h.b16 %v240
    %v623 = vunpack.c.l.b16 %v241
    %v624 = vunpack.c.h.b16 %v241
    %v625 = vunpack.c.l.b16 %v242
    %v626 = vunpack.c.h.b16 %v242
    %v627 = vpack.c.b16 %v379, %v371
    %v628 = vpack.c.b16 %v380, %v372
    %v629 = vpack.c.b16 %v381, %v373
    %v630 = vpack.c.b16 %v382, %v374
    %v631 = vpack.c.b16 %v383, %v375
    %v632 = vpack.c.b16 %v384, %v376
    %v633 = vpack.c.b16 %v385, %v377
    %v634 = vpack.c.b16 %v386, %v378
    %v635 = vpack.c.b16 %v395, %v387
    %v636 = vpack.c.b16 %v396, %v388
    %v637 = vpack.c.b16 %v397, %v389
    %v638 = vpack.c.b16 %v398, %v390
    %v639 = vpack.c.b16 %v399, %v391
    %v640 = vpack.c.b16 %v400, %v392
    %v641 = vpack.c.b16 %v401, %v393
    %v642 = vpack.c.b16 %v402, %v394
    %v643 = vpack.c.b16 %v411, %v403
    %v644 = vpack.c.b16 %v412, %v404
    %v645 = vpack.c.b16 %v413, %v405
    %v646 = vpack.c.b16 %v414, %v406
    %v647 = vpack.c.b16 %v415, %v407
    %v648 = vpack.c.b16 %v416, %v408
    %v649 = vpack.c.b16 %v417, %v409
    %v650 = vpack.c.b16 %v418, %v410
    %v651 = vpack.c.b16 %v427, %v419
    %v652 = vpack.c.b16 %v428, %v420
    %v653 = vpack.c.b16 %v429, %v421
    %v654 = vpack.c.b16 %v430, %v422
    %v655 = vpack.c.b16 %v431, %v423
    %v656 = vpack.c.b16 %v432, %v424
    %v657 = vpack.c.b16 %v433, %v425
    %v658 = vpack.c.b16 %v434, %v426
    %v659 = vpack.c.b16 %v443, %v435
    %v660 = vpack.c.b16 %v444, %v436
    %v661 = vpack.c.b16 %v445, %v437
    %v662 = vpack.c.b16 %v446, %v438
    %v663 = vpack.c.b16 %v447, %v439
    %v664 = vpack.c.b16 %v448, %v440
    %v665 = vpack.c.b16 %v449, %v441
    %v666 = vpack.c.b16 %v450, %v442
    %v667 = vpack.c.b16 %v459, %v451
    %v668 = vpack.c.b16 %v460, %v452
    %v669 = vpack.c.b16 %v461, %v453
    %v670 = vpack.c.b16 %v462, %v454
    %v671 = vpack.c.b16 %v463, %v455
    %v672 = vpack.c.b16 %v464, %v456
    %v673 = vpack.c.b16 %v465, %v457
    %v674 = vpack.c.b16 %v466, %v458
    %v675 = vpack.c.b16 %v475, %v467
    %v676 = vpack.c.b16 %v476, %v468
    %v677 = vpack.c.b16 %v477, %v469
    %v678 = vpack.c.b16 %v478, %v470
    %v679 = vpack.c.b16 %v479, %v471
    %v680 = vpack.c.b16 %v480, %v472
    %v681 = vpack.c.b16 %v481, %v473
    %v682 = vpack.c.b16 %v482, %v474
    %v683 = vpack.c.b16 %v491, %v483
    %v684 = vpack.c.b16 %v492, %v484
    %v685 = vpack.c.b16 %v493, %v485
    %v686 = vpack.c.b16 %v494, %v486
    %v687 = vpack.c.b16 %v495, %v487
    %v688 = vpack.c.b16 %v496, %v488
    %v689 = vpack.c.b16 %v497, %v489
    %v690 = vpack.c.b16 %v498, %v490
    %v691 = vpack.c.b16 %v507, %v499
    %v692 = vpack.c.b16 %v508, %v500
    %v693 = vpack.c.b16 %v509, %v501
    %v694 = vpack.c.b16 %v510, %v502
    %v695 = vpack.c.b16 %v511, %v503
    %v696 = vpack.c.b16 %v512, %v504
    %v697 = vpack.c.b16 %v513, %v505
    %v698 = vpack.c.b16 %v514, %v506
    %v699 = vpack.c.b16 %v523, %v515
    %v700 = vpack.c.b16 %v524, %v516
    %v701 = vpack.c.b16 %v525, %v517
    %v702 = vpack.c.b16 %v526, %v518
    %v703 = vpack.c.b16 %v527, %v519
    %v704 = vpack.c.b16 %v528, %v520
    %v705 = vpack.c.b16 %v529, %v521
    %v706 = vpack.c.b16 %v530, %v522
    %v707 = vpack.c.b16 %v539, %v531
    %v708 = vpack.c.b16 %v540, %v532
    %v709 = vpack.c.b16 %v541, %v533
    %v710 = vpack.c.b16 %v542, %v534
    %v711 = vpack.c.b16 %v543, %v535
    %v712 = vpack.c.b16 %v544, %v536
    %v713 = vpack.c.b16 %v545, %v537
    %v714 = vpack.c.b16 %v546, %v538
    %v715 = vpack.c.b16 %v555, %v547
    %v716 = vpack.c.b16 %v556, %v548
    %v717 = vpack.c.b16 %v557, %v549
    %v718 = vpack.c.b16 %v558, %v550
    %v719 = vpack.c.b16 %v559, %v551
    %v720 = vpack.c.b16 %v560, %v552
    %v721 = vpack.c.b16 %v561, %v553
    %v722 = vpack.c.b16 %v562, %v554
    %v723 = vpack.c.b16 %v571, %v563
    %v724 = vpack.c.b16 %v572, %v564
    %v725 = vpack.c.b16 %v573, %v565
    %v726 = vpack.c.b16 %v574, %v566
    %v727 = vpack.c.b16 %v575, %v567
    %v728 = vpack.c.b16 %v576, %v568
    %v729 = vpack.c.b16 %v577, %v569
    %v730 = vpack.c.b16 %v578, %v570
    %v731 = vpack.c.b16 %v587, %v579
    %v732 = vpack.c.b16 %v588, %v580
    %v733 = vpack.c.b16 %v589, %v581
    %v734 = vpack.c.b16 %v590, %v582
    %v735 = vpack.c.b16 %v591, %v583
    %v736 = vpack.c.b16 %v592, %v584
    %v737 = vpack.c.b16 %v593, %v585
    %v738 = vpack.c.b16 %v594, %v586
    %v739 = vpack.c.b16 %v603, %v595
    %v740 = vpack.c.b16 %v604, %v596
    %v741 = vpack.c.b16 %v605, %v597
    %v742 = vpack.c.b16 %v606, %v598
    %v743 = vpack.c.b16 %v607, %v599
    %v744 = vpack.c.b16 %v608, %v600
    %v745 = vpack.c.b16 %v609, %v601
    %v746 = vpack.c.b16 %v610, %v602
    %v747 = vpack.c.b16 %v619, %v611
    %v748 = vpack.c.b16 %v620, %v612
    %v749 = vpack.c.b16 %v621, %v613
    %v750 = vpack.c.b16 %v622, %v614
    %v751 = vpack.c.b16 %v623, %v615
    %v752 = vpack.c.b16 %v624, %v616
    %v753 = vpack.c.b16 %v625, %v617
    %v754 = vpack.c.b16 %v626, %v618
    %883 = vmatprep.subr.bf16.mxu0 %v684
    %884 = vmatpush1.bf16.msra.mxu0 %v683
    %885 = vmatprep.subr.bf16.mxu0 %v676
    %886 = vmatpush1.bf16.msra.mxu0 %v675
    %887 = vmatprep.subr.bf16.mxu0 %v668
    %888 = vmatpush1.bf16.msra.mxu0 %v667
    %889 = vmatprep.subr.bf16.mxu0 %v660
    %890 = vmatpush1.bf16.msra.mxu0 %v659
    %891 = vmatprep.subr.bf16.mxu0 %v652
    %892 = vmatpush1.bf16.msra.mxu0 %v651
    %893 = vmatprep.subr.bf16.mxu0 %v644
    %894 = vmatpush1.bf16.msra.mxu0 %v643
    %895 = vmatprep.subr.bf16.mxu0 %v636
    %896 = vmatpush1.bf16.msra.mxu0 %v635
    %897 = vmatprep.subr.bf16.mxu0 %v628
    %898 = vmatpush1.bf16.msra.mxu0 %v627
    %899 = vmatprep.subr.bf16.mxu0 %v748
    %900 = vmatpush2.bf16.msra.mxu0 %v747
    %901 = vmatprep.subr.bf16.mxu0 %v740
    %902 = vmatpush2.bf16.msra.mxu0 %v739
    %903 = vmatprep.subr.bf16.mxu0 %v732
    %904 = vmatpush2.bf16.msra.mxu0 %v731
    %905 = vmatprep.subr.bf16.mxu0 %v724
    %906 = vmatpush2.bf16.msra.mxu0 %v723
    %907 = vmatprep.subr.bf16.mxu0 %v716
    %908 = vmatpush2.bf16.msra.mxu0 %v715
    %909 = vmatprep.subr.bf16.mxu0 %v708
    %910 = vmatpush2.bf16.msra.mxu0 %v707
    %911 = vmatprep.subr.bf16.mxu0 %v700
    %912 = vmatpush2.bf16.msra.mxu0 %v699
    %913 = vmatprep.subr.bf16.mxu0 %v692
    %914 = vmatpush2.bf16.msra.mxu0 %v691
    %915 = vmatprep.mubr.bf16.mxu0 %v114
    %916 = vmatmul.mubr.bf16.gmra.mxu0 %v113
    %v917 = vpop.f32.mrf.mxu0
    %v918 = vadd.f32 0.0, %v917
    %v919 = vpop.f32.mrf.mxu0
    %v920 = vadd.f32 0.0, %v919
    %v921 = vpop.f32.mrf.mxu0
    %v922 = vpop.f32.mrf.mxu0
    %923 = vdwg.mxu0
    %924 = vmatprep.subr.bf16.mxu0 %v686
    %925 = vmatpush1.bf16.msra.mxu0 %v685
    %926 = vmatprep.subr.bf16.mxu0 %v678
    %927 = vmatpush1.bf16.msra.mxu0 %v677
    %928 = vmatprep.subr.bf16.mxu0 %v670
    %929 = vmatpush1.bf16.msra.mxu0 %v669
    %930 = vmatprep.subr.bf16.mxu0 %v662
    %931 = vmatpush1.bf16.msra.mxu0 %v661
    %932 = vmatprep.subr.bf16.mxu0 %v654
    %933 = vmatpush1.bf16.msra.mxu0 %v653
    %934 = vmatprep.subr.bf16.mxu0 %v646
    %935 = vmatpush1.bf16.msra.mxu0 %v645
    %936 = vmatprep.subr.bf16.mxu0 %v638
    %937 = vmatpush1.bf16.msra.mxu0 %v637
    %938 = vmatprep.subr.bf16.mxu0 %v630
    %939 = vmatpush1.bf16.msra.mxu0 %v629
    %940 = vmatprep.subr.bf16.mxu0 %v750
    %941 = vmatpush2.bf16.msra.mxu0 %v749
    %942 = vmatprep.subr.bf16.mxu0 %v742
    %943 = vmatpush2.bf16.msra.mxu0 %v741
    %944 = vmatprep.subr.bf16.mxu0 %v734
    %945 = vmatpush2.bf16.msra.mxu0 %v733
    %946 = vmatprep.subr.bf16.mxu0 %v726
    %947 = vmatpush2.bf16.msra.mxu0 %v725
    %948 = vmatprep.subr.bf16.mxu0 %v718
    %949 = vmatpush2.bf16.msra.mxu0 %v717
    %950 = vmatprep.subr.bf16.mxu0 %v710
    %951 = vmatpush2.bf16.msra.mxu0 %v709
    %952 = vmatprep.subr.bf16.mxu0 %v702
    %953 = vmatpush2.bf16.msra.mxu0 %v701
    %954 = vmatprep.subr.bf16.mxu0 %v694
    %955 = vmatpush2.bf16.msra.mxu0 %v693
    %956 = vmatprep.mubr.bf16.mxu0 %v114
    %957 = vmatmul.mubr.bf16.gmra.mxu0 %v113
    %v958 = vpop.f32.mrf.mxu0
    %v959 = vadd.f32 0.0, %v958
    %v960 = vpop.f32.mrf.mxu0
    %v961 = vadd.f32 0.0, %v960
    %v962 = vpop.f32.mrf.mxu0
    %v963 = vpop.f32.mrf.mxu0
    %964 = vdwg.mxu0
    %965 = vmatprep.subr.bf16.mxu0 %v688
    %966 = vmatpush1.bf16.msra.mxu0 %v687
    %967 = vmatprep.subr.bf16.mxu0 %v680
    %968 = vmatpush1.bf16.msra.mxu0 %v679
    %969 = vmatprep.subr.bf16.mxu0 %v672
    %970 = vmatpush1.bf16.msra.mxu0 %v671
    %971 = vmatprep.subr.bf16.mxu0 %v664
    %972 = vmatpush1.bf16.msra.mxu0 %v663
    %973 = vmatprep.subr.bf16.mxu0 %v656
    %974 = vmatpush1.bf16.msra.mxu0 %v655
    %975 = vmatprep.subr.bf16.mxu0 %v648
    %976 = vmatpush1.bf16.msra.mxu0 %v647
    %977 = vmatprep.subr.bf16.mxu0 %v640
    %978 = vmatpush1.bf16.msra.mxu0 %v639
    %979 = vmatprep.subr.bf16.mxu0 %v632
    %980 = vmatpush1.bf16.msra.mxu0 %v631
    %981 = vmatprep.subr.bf16.mxu0 %v752
    %982 = vmatpush2.bf16.msra.mxu0 %v751
    %983 = vmatprep.subr.bf16.mxu0 %v744
    %984 = vmatpush2.bf16.msra.mxu0 %v743
    %985 = vmatprep.subr.bf16.mxu0 %v736
    %986 = vmatpush2.bf16.msra.mxu0 %v735
    %987 = vmatprep.subr.bf16.mxu0 %v728
    %988 = vmatpush2.bf16.msra.mxu0 %v727
    %989 = vmatprep.subr.bf16.mxu0 %v720
    %990 = vmatpush2.bf16.msra.mxu0 %v719
    %991 = vmatprep.subr.bf16.mxu0 %v712
    %992 = vmatpush2.bf16.msra.mxu0 %v711
    %993 = vmatprep.subr.bf16.mxu0 %v704
    %994 = vmatpush2.bf16.msra.mxu0 %v703
    %995 = vmatprep.subr.bf16.mxu0 %v696
    %996 = vmatpush2.bf16.msra.mxu0 %v695
    %997 = vmatprep.mubr.bf16.mxu0 %v114
    %998 = vmatmul.mubr.bf16.gmra.mxu0 %v113
    %v999 = vpop.f32.mrf.mxu0
    %v1000 = vadd.f32 0.0, %v999
    %v1001 = vpop.f32.mrf.mxu0
    %v1002 = vadd.f32 0.0, %v1001
    %v1003 = vpop.f32.mrf.mxu0
    %v1004 = vpop.f32.mrf.mxu0
    %1005 = vdwg.mxu0
    %1006 = vmatprep.subr.bf16.mxu0 %v690
    %1007 = vmatpush1.bf16.msra.mxu0 %v689
    %1008 = vmatprep.subr.bf16.mxu0 %v682
    %1009 = vmatpush1.bf16.msra.mxu0 %v681
    %1010 = vmatprep.subr.bf16.mxu0 %v674
    %1011 = vmatpush1.bf16.msra.mxu0 %v673
    %1012 = vmatprep.subr.bf16.mxu0 %v666
    %1013 = vmatpush1.bf16.msra.mxu0 %v665
    %1014 = vmatprep.subr.bf16.mxu0 %v658
    %1015 = vmatpush1.bf16.msra.mxu0 %v657
    %1016 = vmatprep.subr.bf16.mxu0 %v650
    %1017 = vmatpush1.bf16.msra.mxu0 %v649
    %1018 = vmatprep.subr.bf16.mxu0 %v642
    %1019 = vmatpush1.bf16.msra.mxu0 %v641
    %1020 = vmatprep.subr.bf16.mxu0 %v634
    %1021 = vmatpush1.bf16.msra.mxu0 %v633
    %1022 = vmatprep.subr.bf16.mxu0 %v754
    %1023 = vmatpush2.bf16.msra.mxu0 %v753
    %1024 = vmatprep.subr.bf16.mxu0 %v746
    %1025 = vmatpush2.bf16.msra.mxu0 %v745
    %1026 = vmatprep.subr.bf16.mxu0 %v738
    %1027 = vmatpush2.bf16.msra.mxu0 %v737
    %1028 = vmatprep.subr.bf16.mxu0 %v730
    %1029 = vmatpush2.bf16.msra.mxu0 %v729
    %1030 = vmatprep.subr.bf16.mxu0 %v722
    %1031 = vmatpush2.bf16.msra.mxu0 %v721
    %1032 = vmatprep.subr.bf16.mxu0 %v714
    %1033 = vmatpush2.bf16.msra.mxu0 %v713
    %1034 = vmatprep.subr.bf16.mxu0 %v706
    %1035 = vmatpush2.bf16.msra.mxu0 %v705
    %1036 = vmatprep.subr.bf16.mxu0 %v698
    %1037 = vmatpush2.bf16.msra.mxu0 %v697
    %1038 = vmatprep.mubr.bf16.mxu0 %v114
    %1039 = vmatmul.mubr.bf16.gmra.mxu0 %v113
    %v1040 = vpop.f32.mrf.mxu0
    %v1041 = vadd.f32 0.0, %v1040
    %v1042 = vpop.f32.mrf.mxu0
    %v1043 = vadd.f32 0.0, %v1042
    %v1044 = vpop.f32.mrf.mxu0
    %v1045 = vpop.f32.mrf.mxu0
    %1046 = vdwg.mxu0
    %v1047 = vmul.f32 %v918, %v959
    %v1048 = vmul.f32 %v920, %v961
    %v1049 = vpack.c.bf16 %v1047, %v1047
    %v1050 = vpack.c.bf16 %v1048, %v1048
    %1051 = vrot.lane.b32.xlu0 %v959, 32
    %v1052 = vpop.permute.xlu0 %1051
    %1053 = vrot.lane.b32.xlu0 %v961, 32
    %v1054 = vpop.permute.xlu0 %1053
    %v1055 = vlaneseq
    %v1056 = vand.u32 %v1055, 127
    %vm1057 = vcmp.lt.s32.totalorder %v1056, 32
    %v1058 = vsel %vm1057, %v1052, %v1054
    %v1059 = vsel %vm1057, %v1054, %v1052
    %v1060 = vmul.f32 %v918, %v1059
    %v1061 = vmul.f32 %v920, %v1058
    %v1062 = vpack.c.bf16 %v1060, %v1060
    %v1063 = vpack.c.bf16 %v1061, %v1061
    %1064 = vrot.lane.b32.xlu0 %v959, 64
    %v1065 = vpop.permute.xlu0 %1064
    %1066 = vrot.lane.b32.xlu0 %v961, 64
    %v1067 = vpop.permute.xlu0 %1066
    %vm1068 = vcmp.lt.s32.totalorder %v1056, 64
    %v1069 = vsel %vm1068, %v1065, %v1067
    %v1070 = vsel %vm1068, %v1067, %v1065
    %v1071 = vmul.f32 %v918, %v1070
    %v1072 = vmul.f32 %v920, %v1069
    %v1073 = vpack.c.bf16 %v1071, %v1071
    %v1074 = vpack.c.bf16 %v1072, %v1072
    %1075 = vrot.lane.b32.xlu0 %v959, 96
    %v1076 = vpop.permute.xlu0 %1075
    %1077 = vrot.lane.b32.xlu0 %v961, 96
    %v1078 = vpop.permute.xlu0 %1077
    %vm1079 = vcmp.lt.s32.totalorder %v1056, 96
    %v1080 = vsel %vm1079, %v1076, %v1078
    %v1081 = vsel %vm1079, %v1078, %v1076
    %v1082 = vmul.f32 %v918, %v1081
    %v1083 = vmul.f32 %v920, %v1080
    %v1084 = vpack.c.bf16 %v1082, %v1082
    %v1085 = vpack.c.bf16 %v1083, %v1083
    %v1086 = vmul.f32 %v918, %v961
    %v1087 = vmul.f32 %v920, %v959
    %v1088 = vpack.c.bf16 %v1086, %v1086
    %v1089 = vpack.c.bf16 %v1087, %v1087
    %v1090 = vmul.f32 %v918, %v1058
    %v1091 = vmul.f32 %v920, %v1059
    %v1092 = vpack.c.bf16 %v1090, %v1090
    %v1093 = vpack.c.bf16 %v1091, %v1091
    %v1094 = vmul.f32 %v918, %v1069
    %v1095 = vmul.f32 %v920, %v1070
    %v1096 = vpack.c.bf16 %v1094, %v1094
    %v1097 = vpack.c.bf16 %v1095, %v1095
    %v1098 = vmul.f32 %v918, %v1080
    %v1099 = vmul.f32 %v920, %v1081
    %v1100 = vpack.c.bf16 %v1098, %v1098
    %v1101 = vpack.c.bf16 %v1099, %v1099
    %v1104 = vrot.slane %v1062, 4
    %v1105 = vrot.slane %v1063, 4
    %v1108 = vrot.slane %v1084, 4
    %v1109 = vrot.slane %v1085, 4
    %v1112 = vrot.slane %v1092, 4
    %v1113 = vrot.slane %v1093, 4
    %v1116 = vrot.slane %v1100, 4
    %v1117 = vrot.slane %v1101, 4
    %vm1118 = vcmask 1043456
    %v1121 = vsel %vm1118, %v1049, %v1104
    %v1125 = vsel %vm1118, %v1050, %v1105
    %v1129 = vsel %vm1118, %v1073, %v1108
    %v1133 = vsel %vm1118, %v1074, %v1109
    %v1137 = vsel %vm1118, %v1088, %v1112
    %v1141 = vsel %vm1118, %v1089, %v1113
    %v1145 = vsel %vm1118, %v1096, %v1116
    %v1149 = vsel %vm1118, %v1097, %v1117
    %v1151 = vld [vmem:[#allocation7] sm:$0xff]
    %v1152 = vld [vmem:[#allocation7 + $0x8] sm:$0xff]
    %v1153 = vld [vmem:[#allocation7 + $0x10] sm:$0xff]
    %v1154 = vld [vmem:[#allocation7 + $0x18] sm:$0xff]
    %v1155 = vld [vmem:[#allocation7 + $0x20] sm:$0xff]
    %v1156 = vld [vmem:[#allocation7 + $0x28] sm:$0xff]
    %v1157 = vld [vmem:[#allocation7 + $0x30] sm:$0xff]
    %v1158 = vld [vmem:[#allocation7 + $0x38] sm:$0xff]
    %v1159 = vld [vmem:[#allocation7 + $0x40] sm:$0xff]
    %v1160 = vld [vmem:[#allocation7 + $0x48] sm:$0xff]
    %v1161 = vld [vmem:[#allocation7 + $0x50] sm:$0xff]
    %v1162 = vld [vmem:[#allocation7 + $0x58] sm:$0xff]
    %v1163 = vld [vmem:[#allocation7 + $0x60] sm:$0xff]
    %v1164 = vld [vmem:[#allocation7 + $0x68] sm:$0xff]
    %v1165 = vld [vmem:[#allocation7 + $0x70] sm:$0xff]
    %v1166 = vld [vmem:[#allocation7 + $0x78] sm:$0xff]
    %v1167 = vld [vmem:[#allocation7 + $0x80] sm:$0xff]
    %v1168 = vld [vmem:[#allocation7 + $0x88] sm:$0xff]
    %v1169 = vld [vmem:[#allocation7 + $0x90] sm:$0xff]
    %v1170 = vld [vmem:[#allocation7 + $0x98] sm:$0xff]
    %v1171 = vld [vmem:[#allocation7 + $0xa0] sm:$0xff]
    %v1172 = vld [vmem:[#allocation7 + $0xa8] sm:$0xff]
    %v1173 = vld [vmem:[#allocation7 + $0xb0] sm:$0xff]
    %v1174 = vld [vmem:[#allocation7 + $0xb8] sm:$0xff]
    %v1175 = vld [vmem:[#allocation7 + $0xc0] sm:$0xff]
    %v1176 = vld [vmem:[#allocation7 + $0xc8] sm:$0xff]
    %v1177 = vld [vmem:[#allocation7 + $0xd0] sm:$0xff]
    %v1178 = vld [vmem:[#allocation7 + $0xd8] sm:$0xff]
    %v1179 = vld [vmem:[#allocation7 + $0xe0] sm:$0xff]
    %v1180 = vld [vmem:[#allocation7 + $0xe8] sm:$0xff]
    %v1181 = vld [vmem:[#allocation7 + $0xf0] sm:$0xff]
    %v1182 = vld [vmem:[#allocation7 + $0xf8] sm:$0xff]
    %v1215 = vunpack.c.l.b16 %v1151
    %v1216 = vunpack.c.h.b16 %v1151
    %v1217 = vunpack.c.l.b16 %v1152
    %v1218 = vunpack.c.h.b16 %v1152
    %v1219 = vunpack.c.l.b16 %v1153
    %v1220 = vunpack.c.h.b16 %v1153
    %v1221 = vunpack.c.l.b16 %v1154
    %v1222 = vunpack.c.h.b16 %v1154
    %v1223 = vunpack.c.l.b16 %v1155
    %v1224 = vunpack.c.h.b16 %v1155
    %v1225 = vunpack.c.l.b16 %v1156
    %v1226 = vunpack.c.h.b16 %v1156
    %v1227 = vunpack.c.l.b16 %v1157
    %v1228 = vunpack.c.h.b16 %v1157
    %v1229 = vunpack.c.l.b16 %v1158
    %v1230 = vunpack.c.h.b16 %v1158
    %v1231 = vunpack.c.l.b16 %v1159
    %v1232 = vunpack.c.h.b16 %v1159
    %v1233 = vunpack.c.l.b16 %v1160
    %v1234 = vunpack.c.h.b16 %v1160
    %v1235 = vunpack.c.l.b16 %v1161
    %v1236 = vunpack.c.h.b16 %v1161
    %v1237 = vunpack.c.l.b16 %v1162
    %v1238 = vunpack.c.h.b16 %v1162
    %v1239 = vunpack.c.l.b16 %v1163
    %v1240 = vunpack.c.h.b16 %v1163
    %v1241 = vunpack.c.l.b16 %v1164
    %v1242 = vunpack.c.h.b16 %v1164
    %v1243 = vunpack.c.l.b16 %v1165
    %v1244 = vunpack.c.h.b16 %v1165
    %v1245 = vunpack.c.l.b16 %v1166
    %v1246 = vunpack.c.h.b16 %v1166
    %v1247 = vunpack.c.l.b16 %v1167
    %v1248 = vunpack.c.h.b16 %v1167
    %v1249 = vunpack.c.l.b16 %v1168
    %v1250 = vunpack.c.h.b16 %v1168
    %v1251 = vunpack.c.l.b16 %v1169
    %v1252 = vunpack.c.h.b16 %v1169
    %v1253 = vunpack.c.l.b16 %v1170
    %v1254 = vunpack.c.h.b16 %v1170
    %v1255 = vunpack.c.l.b16 %v1171
    %v1256 = vunpack.c.h.b16 %v1171
    %v1257 = vunpack.c.l.b16 %v1172
    %v1258 = vunpack.c.h.b16 %v1172
    %v1259 = vunpack.c.l.b16 %v1173
    %v1260 = vunpack.c.h.b16 %v1173
    %v1261 = vunpack.c.l.b16 %v1174
    %v1262 = vunpack.c.h.b16 %v1174
    %v1263 = vunpack.c.l.b16 %v1175
    %v1264 = vunpack.c.h.b16 %v1175
    %v1265 = vunpack.c.l.b16 %v1176
    %v1266 = vunpack.c.h.b16 %v1176
    %v1267 = vunpack.c.l.b16 %v1177
    %v1268 = vunpack.c.h.b16 %v1177
    %v1269 = vunpack.c.l.b16 %v1178
    %v1270 = vunpack.c.h.b16 %v1178
    %v1271 = vunpack.c.l.b16 %v1179
    %v1272 = vunpack.c.h.b16 %v1179
    %v1273 = vunpack.c.l.b16 %v1180
    %v1274 = vunpack.c.h.b16 %v1180
    %v1275 = vunpack.c.l.b16 %v1181
    %v1276 = vunpack.c.h.b16 %v1181
    %v1277 = vunpack.c.l.b16 %v1182
    %v1278 = vunpack.c.h.b16 %v1182
    %v1279 = vpack.c.b16 %v1217, %v1215
    %v1280 = vpack.c.b16 %v1218, %v1216
    %v1281 = vpack.c.b16 %v1221, %v1219
    %v1282 = vpack.c.b16 %v1222, %v1220
    %v1283 = vpack.c.b16 %v1225, %v1223
    %v1284 = vpack.c.b16 %v1226, %v1224
    %v1285 = vpack.c.b16 %v1229, %v1227
    %v1286 = vpack.c.b16 %v1230, %v1228
    %v1287 = vpack.c.b16 %v1233, %v1231
    %v1288 = vpack.c.b16 %v1234, %v1232
    %v1289 = vpack.c.b16 %v1237, %v1235
    %v1290 = vpack.c.b16 %v1238, %v1236
    %v1291 = vpack.c.b16 %v1241, %v1239
    %v1292 = vpack.c.b16 %v1242, %v1240
    %v1293 = vpack.c.b16 %v1245, %v1243
    %v1294 = vpack.c.b16 %v1246, %v1244
    %v1295 = vpack.c.b16 %v1249, %v1247
    %v1296 = vpack.c.b16 %v1250, %v1248
    %v1297 = vpack.c.b16 %v1253, %v1251
    %v1298 = vpack.c.b16 %v1254, %v1252
    %v1299 = vpack.c.b16 %v1257, %v1255
    %v1300 = vpack.c.b16 %v1258, %v1256
    %v1301 = vpack.c.b16 %v1261, %v1259
    %v1302 = vpack.c.b16 %v1262, %v1260
    %v1303 = vpack.c.b16 %v1265, %v1263
    %v1304 = vpack.c.b16 %v1266, %v1264
    %v1305 = vpack.c.b16 %v1269, %v1267
    %v1306 = vpack.c.b16 %v1270, %v1268
    %v1307 = vpack.c.b16 %v1273, %v1271
    %v1308 = vpack.c.b16 %v1274, %v1272
    %v1309 = vpack.c.b16 %v1277, %v1275
    %v1310 = vpack.c.b16 %v1278, %v1276
    %1343 = vmatprep.subr.bf16.mxu0 %v1294
    %1344 = vmatpush1.bf16.msra.mxu0 %v1293
    %1345 = vmatprep.subr.bf16.mxu0 %v1292
    %1346 = vmatpush1.bf16.msra.mxu0 %v1291
    %1347 = vmatprep.subr.bf16.mxu0 %v1290
    %1348 = vmatpush1.bf16.msra.mxu0 %v1289
    %1349 = vmatprep.subr.bf16.mxu0 %v1288
    %1350 = vmatpush1.bf16.msra.mxu0 %v1287
    %1351 = vmatprep.subr.bf16.mxu0 %v1286
    %1352 = vmatpush1.bf16.msra.mxu0 %v1285
    %1353 = vmatprep.subr.bf16.mxu0 %v1284
    %1354 = vmatpush1.bf16.msra.mxu0 %v1283
    %1355 = vmatprep.subr.bf16.mxu0 %v1282
    %1356 = vmatpush1.bf16.msra.mxu0 %v1281
    %1357 = vmatprep.subr.bf16.mxu0 %v1280
    %1358 = vmatpush1.bf16.msra.mxu0 %v1279
    %1359 = vmatprep.subr.bf16.mxu0 %v1310
    %1360 = vmatpush2.bf16.msra.mxu0 %v1309
    %1361 = vmatprep.subr.bf16.mxu0 %v1308
    %1362 = vmatpush2.bf16.msra.mxu0 %v1307
    %1363 = vmatprep.subr.bf16.mxu0 %v1306
    %1364 = vmatpush2.bf16.msra.mxu0 %v1305
    %1365 = vmatprep.subr.bf16.mxu0 %v1304
    %1366 = vmatpush2.bf16.msra.mxu0 %v1303
    %1367 = vmatprep.subr.bf16.mxu0 %v1302
    %1368 = vmatpush2.bf16.msra.mxu0 %v1301
    %1369 = vmatprep.subr.bf16.mxu0 %v1300
    %1370 = vmatpush2.bf16.msra.mxu0 %v1299
    %1371 = vmatprep.subr.bf16.mxu0 %v1298
    %1372 = vmatpush2.bf16.msra.mxu0 %v1297
    %1373 = vmatprep.subr.bf16.mxu0 %v1296
    %1374 = vmatpush2.bf16.msra.mxu0 %v1295
    %1375 = vmatprep.mubr.bf16.mxu0 %v1125
    %1376 = vmatmul.mubr.bf16.gmra.mxu0 %v1121
    %v1377 = vpop.f32.mrf.mxu0
    %v1378 = vadd.f32 0.0, %v1377
    %v1379 = vpop.f32.mrf.mxu0
    %v1380 = vadd.f32 0.0, %v1379
    %v1381 = vpop.f32.mrf.mxu0
    %v1382 = vadd.f32 0.0, %v1381
    %v1383 = vpop.f32.mrf.mxu0
    %v1384 = vadd.f32 0.0, %v1383
    %1385 = vmatprep.mubr.bf16.mxu0 %v1133
    %1386 = vmatmul.mubr.bf16.gmra.mxu0 %v1129
    %v1387 = vpop.f32.mrf.mxu0
    %v1388 = vadd.f32 0.0, %v1387
    %v1389 = vpop.f32.mrf.mxu0
    %v1390 = vadd.f32 0.0, %v1389
    %v1391 = vpop.f32.mrf.mxu0
    %v1392 = vadd.f32 0.0, %v1391
    %v1393 = vpop.f32.mrf.mxu0
    %v1394 = vadd.f32 0.0, %v1393
    %1395 = vmatprep.mubr.bf16.mxu0 %v1141
    %1396 = vmatmul.mubr.bf16.gmra.mxu0 %v1137
    %v1397 = vpop.f32.mrf.mxu0
    %v1398 = vadd.f32 0.0, %v1397
    %v1399 = vpop.f32.mrf.mxu0
    %v1400 = vadd.f32 0.0, %v1399
    %v1401 = vpop.f32.mrf.mxu0
    %v1402 = vadd.f32 0.0, %v1401
    %v1403 = vpop.f32.mrf.mxu0
    %v1404 = vadd.f32 0.0, %v1403
    %1405 = vmatprep.mubr.bf16.mxu0 %v1149
    %1406 = vmatmul.mubr.bf16.gmra.mxu0 %v1145
    %v1407 = vpop.f32.mrf.mxu0
    %v1408 = vadd.f32 0.0, %v1407
    %v1409 = vpop.f32.mrf.mxu0
    %v1410 = vadd.f32 0.0, %v1409
    %v1411 = vpop.f32.mrf.mxu0
    %v1412 = vadd.f32 0.0, %v1411
    %v1413 = vpop.f32.mrf.mxu0
    %v1414 = vadd.f32 0.0, %v1413
    %1415 = vdwg.mxu0
    %v1416 = vmax.f32 %v1378, %v1382
    %v1417 = vmax.f32 %v1380, %v1384
    %v1418 = vmax.f32 %v1416, %v1388
    %v1419 = vmax.f32 %v1417, %v1390
    %v1420 = vmax.f32 %v1418, %v1392
    %v1421 = vmax.f32 %v1419, %v1394
    %v1422 = vmax.f32 %v1420, %v1398
    %v1423 = vmax.f32 %v1421, %v1400
    %v1424 = vmax.f32 %v1422, %v1402
    %v1425 = vmax.f32 %v1423, %v1404
    %v1426 = vmax.f32 %v1424, %v1408
    %v1427 = vmax.f32 %v1425, %v1410
    %v1428 = vmax.f32 %v1426, %v1412
    %v1429 = vmax.f32 %v1427, %v1414
    %v1430 = vsub.f32 %v1378, %v1428
    %v1431 = vsub.f32 %v1380, %v1429
    %v1432 = vmul.f32 %v1430, 1.442695
    %v1433 = vpow.pop %v1432
    %v1434 = vmul.f32 %v1431, 1.442695
    %v1435 = vpow.pop %v1434
    %v1436 = vsub.f32 %v1382, %v1428
    %v1437 = vsub.f32 %v1384, %v1429
    %v1438 = vmul.f32 %v1436, 1.442695
    %v1439 = vpow.pop %v1438
    %v1440 = vmul.f32 %v1437, 1.442695
    %v1441 = vpow.pop %v1440
    %v1442 = vsub.f32 %v1388, %v1428
    %v1443 = vsub.f32 %v1390, %v1429
    %v1444 = vmul.f32 %v1442, 1.442695
    %v1445 = vpow.pop %v1444
    %v1446 = vmul.f32 %v1443, 1.442695
    %v1447 = vpow.pop %v1446
    %v1448 = vsub.f32 %v1392, %v1428
    %v1449 = vsub.f32 %v1394, %v1429
    %v1450 = vmul.f32 %v1448, 1.442695
    %v1451 = vpow.pop %v1450
    %v1452 = vmul.f32 %v1449, 1.442695
    %v1453 = vpow.pop %v1452
    %v1454 = vsub.f32 %v1398, %v1428
    %v1455 = vsub.f32 %v1400, %v1429
    %v1456 = vmul.f32 %v1454, 1.442695
    %v1457 = vpow.pop %v1456
    %v1458 = vmul.f32 %v1455, 1.442695
    %v1459 = vpow.pop %v1458
    %v1460 = vsub.f32 %v1402, %v1428
    %v1461 = vsub.f32 %v1404, %v1429
    %v1462 = vmul.f32 %v1460, 1.442695
    %v1463 = vpow.pop %v1462
    %v1464 = vmul.f32 %v1461, 1.442695
    %v1465 = vpow.pop %v1464
    %v1466 = vsub.f32 %v1408, %v1428
    %v1467 = vsub.f32 %v1410, %v1429
    %v1468 = vmul.f32 %v1466, 1.442695
    %v1469 = vpow.pop %v1468
    %v1470 = vmul.f32 %v1467, 1.442695
    %v1471 = vpow.pop %v1470
    %v1472 = vsub.f32 %v1412, %v1428
    %v1473 = vsub.f32 %v1414, %v1429
    %v1474 = vmul.f32 %v1472, 1.442695
    %v1475 = vpow.pop %v1474
    %v1476 = vmul.f32 %v1473, 1.442695
    %v1477 = vpow.pop %v1476
    %v1478 = vadd.f32 %v1433, %v1439
    %v1479 = vadd.f32 %v1435, %v1441
    %v1480 = vadd.f32 %v1478, %v1445
    %v1481 = vadd.f32 %v1479, %v1447
    %v1482 = vadd.f32 %v1480, %v1451
    %v1483 = vadd.f32 %v1481, %v1453
    %v1484 = vadd.f32 %v1482, %v1457
    %v1485 = vadd.f32 %v1483, %v1459
    %v1486 = vadd.f32 %v1484, %v1463
    %v1487 = vadd.f32 %v1485, %v1465
    %v1488 = vadd.f32 %v1486, %v1469
    %v1489 = vadd.f32 %v1487, %v1471
    %v1490 = vadd.f32 %v1488, %v1475
    %v1491 = vadd.f32 %v1489, %v1477
    %v1492 = vrcp.pop %v1490
    %v1493 = vrcp.pop %v1491
    %v1494 = vmul.f32 %v1433, %v1000
    %v1495 = vmul.f32 %v1435, %v1002
    %1496 = vrot.lane.b32.xlu0 %v1000, 32
    %v1497 = vpop.permute.xlu0 %1496
    %1498 = vrot.lane.b32.xlu0 %v1002, 32
    %v1499 = vpop.permute.xlu0 %1498
    %v1500 = vsel %vm1057, %v1497, %v1499
    %v1501 = vsel %vm1057, %v1499, %v1497
    %v1502 = vmul.f32 %v1439, %v1501
    %v1503 = vmul.f32 %v1441, %v1500
    %v1504 = vadd.f32 %v1494, %v1502
    %v1505 = vadd.f32 %v1495, %v1503
    %1506 = vrot.lane.b32.xlu0 %v1000, 64
    %v1507 = vpop.permute.xlu0 %1506
    %1508 = vrot.lane.b32.xlu0 %v1002, 64
    %v1509 = vpop.permute.xlu0 %1508
    %v1510 = vsel %vm1068, %v1507, %v1509
    %v1511 = vsel %vm1068, %v1509, %v1507
    %v1512 = vmul.f32 %v1445, %v1511
    %v1513 = vmul.f32 %v1447, %v1510
    %v1514 = vadd.f32 %v1504, %v1512
    %v1515 = vadd.f32 %v1505, %v1513
    %1516 = vrot.lane.b32.xlu0 %v1000, 96
    %v1517 = vpop.permute.xlu0 %1516
    %1518 = vrot.lane.b32.xlu0 %v1002, 96
    %v1519 = vpop.permute.xlu0 %1518
    %v1520 = vsel %vm1079, %v1517, %v1519
    %v1521 = vsel %vm1079, %v1519, %v1517
    %v1522 = vmul.f32 %v1451, %v1521
    %v1523 = vmul.f32 %v1453, %v1520
    %v1524 = vadd.f32 %v1514, %v1522
    %v1525 = vadd.f32 %v1515, %v1523
    %v1526 = vmul.f32 %v1457, %v1002
    %v1527 = vmul.f32 %v1459, %v1000
    %v1528 = vadd.f32 %v1524, %v1526
    %v1529 = vadd.f32 %v1525, %v1527
    %v1530 = vmul.f32 %v1463, %v1500
    %v1531 = vmul.f32 %v1465, %v1501
    %v1532 = vadd.f32 %v1528, %v1530
    %v1533 = vadd.f32 %v1529, %v1531
    %v1534 = vmul.f32 %v1469, %v1510
    %v1535 = vmul.f32 %v1471, %v1511
    %v1536 = vadd.f32 %v1532, %v1534
    %v1537 = vadd.f32 %v1533, %v1535
    %v1538 = vmul.f32 %v1475, %v1520
    %v1539 = vmul.f32 %v1477, %v1521
    %v1540 = vadd.f32 %v1536, %v1538
    %v1541 = vadd.f32 %v1537, %v1539
    %v1542 = vmul.f32 %v1540, %v1492
    %v1543 = vmul.f32 %v1541, %v1493
    %v1544 = vadd.f32 %v1542, %v1041
    %v1545 = vadd.f32 %v1543, %v1043
    %v1546 = vmax.f32 %v1544, 0.0
    %v1547 = vmax.f32 %v1545, 0.0
    %v1548 = vadd.f32 %v1546, %v1547
    %1549 = vadd.xlane.f32.xlu0 %v1548
    %v1550 = vpop.xlane.xlu0 %1549
    %v1551 = vrcp.pop 256.0
    %v1552 = vmul.f32 %v1550, %v1551
    %v1553 = vsub.f32 %v1546, %v1552
    %v1554 = vsub.f32 %v1547, %v1552
    %v1555 = vmul.f32 %v1553, %v1553
    %v1556 = vmul.f32 %v1554, %v1554
    %v1557 = vadd.f32 %v1555, %v1556
    %1558 = vadd.xlane.f32.xlu0 %v1557
    %v1559 = vpop.xlane.xlu0 %1558
    %v1560 = vmul.f32 %v1559, %v1551
    %v1561 = vadd.f32 %v1560, 1e-05
    %v1562 = vrsqrt.pop %v1561
    %v1563 = vmul.f32 %v1553, %v1562
    %v1564 = vmul.f32 %v1554, %v1562
    %v1565 = vld [vmem:[%s3] sm:$0x3]
    %v1567 = vlaneseq
    %v1568 = vshrl.u32 %v1567, 7
    %v1569 = vsub.s32 0, %v1568
    %v1570 = vrot.slane %v1565, %v1569
    %v1571 = vlaneseq
    %v1572 = vshrl.u32 %v1571, 7
    %v1573 = vsub.s32 1, %v1572
    %v1574 = vrot.slane %v1565, %v1573
    %v1577 = vmul.f32 %v1563, %v1570
    %v1578 = vmul.f32 %v1564, %v1574
    %v1579 = vld [vmem:[#allocation8] sm:$0x3]
    %v1581 = vlaneseq
    %v1582 = vshrl.u32 %v1581, 7
    %v1583 = vsub.s32 0, %v1582
    %v1584 = vrot.slane %v1579, %v1583
    %v1585 = vlaneseq
    %v1586 = vshrl.u32 %v1585, 7
    %v1587 = vsub.s32 1, %v1586
    %v1588 = vrot.slane %v1579, %v1587
    %v1591 = vadd.f32 %v1577, %v1584
    %v1592 = vadd.f32 %v1578, %v1588
    %v1593 = vpack.c.bf16 %v1591, %v1591
    %v1594 = vpack.c.bf16 %v1592, %v1592
    %v1595 = vld [vmem:[#allocation10] sm:$0xff]
    %v1596 = vld [vmem:[#allocation10 + $0x8] sm:$0xff]
    %v1597 = vld [vmem:[#allocation10 + $0x10] sm:$0xff]
    %v1598 = vld [vmem:[#allocation10 + $0x18] sm:$0xff]
    %v1599 = vld [vmem:[#allocation10 + $0x20] sm:$0xff]
    %v1600 = vld [vmem:[#allocation10 + $0x28] sm:$0xff]
    %v1601 = vld [vmem:[#allocation10 + $0x30] sm:$0xff]
    %v1602 = vld [vmem:[#allocation10 + $0x38] sm:$0xff]
    %v1603 = vld [vmem:[#allocation10 + $0x40] sm:$0xff]
    %v1604 = vld [vmem:[#allocation10 + $0x48] sm:$0xff]
    %v1605 = vld [vmem:[#allocation10 + $0x50] sm:$0xff]
    %v1606 = vld [vmem:[#allocation10 + $0x58] sm:$0xff]
    %v1607 = vld [vmem:[#allocation10 + $0x60] sm:$0xff]
    %v1608 = vld [vmem:[#allocation10 + $0x68] sm:$0xff]
    %v1609 = vld [vmem:[#allocation10 + $0x70] sm:$0xff]
    %v1610 = vld [vmem:[#allocation10 + $0x78] sm:$0xff]
    %v1611 = vld [vmem:[#allocation10 + $0x80] sm:$0xff]
    %v1612 = vld [vmem:[#allocation10 + $0x88] sm:$0xff]
    %v1613 = vld [vmem:[#allocation10 + $0x90] sm:$0xff]
    %v1614 = vld [vmem:[#allocation10 + $0x98] sm:$0xff]
    %v1615 = vld [vmem:[#allocation10 + $0xa0] sm:$0xff]
    %v1616 = vld [vmem:[#allocation10 + $0xa8] sm:$0xff]
    %v1617 = vld [vmem:[#allocation10 + $0xb0] sm:$0xff]
    %v1618 = vld [vmem:[#allocation10 + $0xb8] sm:$0xff]
    %v1619 = vld [vmem:[#allocation10 + $0xc0] sm:$0xff]
    %v1620 = vld [vmem:[#allocation10 + $0xc8] sm:$0xff]
    %v1621 = vld [vmem:[#allocation10 + $0xd0] sm:$0xff]
    %v1622 = vld [vmem:[#allocation10 + $0xd8] sm:$0xff]
    %v1623 = vld [vmem:[#allocation10 + $0xe0] sm:$0xff]
    %v1624 = vld [vmem:[#allocation10 + $0xe8] sm:$0xff]
    %v1625 = vld [vmem:[#allocation10 + $0xf0] sm:$0xff]
    %v1626 = vld [vmem:[#allocation10 + $0xf8] sm:$0xff]
    %v1627 = vld [vmem:[#allocation10 + $0x100] sm:$0xff]
    %v1628 = vld [vmem:[#allocation10 + $0x108] sm:$0xff]
    %v1629 = vld [vmem:[#allocation10 + $0x110] sm:$0xff]
    %v1630 = vld [vmem:[#allocation10 + $0x118] sm:$0xff]
    %v1631 = vld [vmem:[#allocation10 + $0x120] sm:$0xff]
    %v1632 = vld [vmem:[#allocation10 + $0x128] sm:$0xff]
    %v1633 = vld [vmem:[#allocation10 + $0x130] sm:$0xff]
    %v1634 = vld [vmem:[#allocation10 + $0x138] sm:$0xff]
    %v1635 = vld [vmem:[#allocation10 + $0x140] sm:$0xff]
    %v1636 = vld [vmem:[#allocation10 + $0x148] sm:$0xff]
    %v1637 = vld [vmem:[#allocation10 + $0x150] sm:$0xff]
    %v1638 = vld [vmem:[#allocation10 + $0x158] sm:$0xff]
    %v1639 = vld [vmem:[#allocation10 + $0x160] sm:$0xff]
    %v1640 = vld [vmem:[#allocation10 + $0x168] sm:$0xff]
    %v1641 = vld [vmem:[#allocation10 + $0x170] sm:$0xff]
    %v1642 = vld [vmem:[#allocation10 + $0x178] sm:$0xff]
    %v1643 = vld [vmem:[#allocation10 + $0x180] sm:$0xff]
    %v1644 = vld [vmem:[#allocation10 + $0x188] sm:$0xff]
    %v1645 = vld [vmem:[#allocation10 + $0x190] sm:$0xff]
    %v1646 = vld [vmem:[#allocation10 + $0x198] sm:$0xff]
    %v1647 = vld [vmem:[#allocation10 + $0x1a0] sm:$0xff]
    %v1648 = vld [vmem:[#allocation10 + $0x1a8] sm:$0xff]
    %v1649 = vld [vmem:[#allocation10 + $0x1b0] sm:$0xff]
    %v1650 = vld [vmem:[#allocation10 + $0x1b8] sm:$0xff]
    %v1651 = vld [vmem:[#allocation10 + $0x1c0] sm:$0xff]
    %v1652 = vld [vmem:[#allocation10 + $0x1c8] sm:$0xff]
    %v1653 = vld [vmem:[#allocation10 + $0x1d0] sm:$0xff]
    %v1654 = vld [vmem:[#allocation10 + $0x1d8] sm:$0xff]
    %v1655 = vld [vmem:[#allocation10 + $0x1e0] sm:$0xff]
    %v1656 = vld [vmem:[#allocation10 + $0x1e8] sm:$0xff]
    %v1657 = vld [vmem:[#allocation10 + $0x1f0] sm:$0xff]
    %v1658 = vld [vmem:[#allocation10 + $0x1f8] sm:$0xff]
    %v1659 = vld [vmem:[#allocation10 + $0x200] sm:$0xff]
    %v1660 = vld [vmem:[#allocation10 + $0x208] sm:$0xff]
    %v1661 = vld [vmem:[#allocation10 + $0x210] sm:$0xff]
    %v1662 = vld [vmem:[#allocation10 + $0x218] sm:$0xff]
    %v1663 = vld [vmem:[#allocation10 + $0x220] sm:$0xff]
    %v1664 = vld [vmem:[#allocation10 + $0x228] sm:$0xff]
    %v1665 = vld [vmem:[#allocation10 + $0x230] sm:$0xff]
    %v1666 = vld [vmem:[#allocation10 + $0x238] sm:$0xff]
    %v1667 = vld [vmem:[#allocation10 + $0x240] sm:$0xff]
    %v1668 = vld [vmem:[#allocation10 + $0x248] sm:$0xff]
    %v1669 = vld [vmem:[#allocation10 + $0x250] sm:$0xff]
    %v1670 = vld [vmem:[#allocation10 + $0x258] sm:$0xff]
    %v1671 = vld [vmem:[#allocation10 + $0x260] sm:$0xff]
    %v1672 = vld [vmem:[#allocation10 + $0x268] sm:$0xff]
    %v1673 = vld [vmem:[#allocation10 + $0x270] sm:$0xff]
    %v1674 = vld [vmem:[#allocation10 + $0x278] sm:$0xff]
    %v1675 = vld [vmem:[#allocation10 + $0x280] sm:$0xff]
    %v1676 = vld [vmem:[#allocation10 + $0x288] sm:$0xff]
    %v1677 = vld [vmem:[#allocation10 + $0x290] sm:$0xff]
    %v1678 = vld [vmem:[#allocation10 + $0x298] sm:$0xff]
    %v1679 = vld [vmem:[#allocation10 + $0x2a0] sm:$0xff]
    %v1680 = vld [vmem:[#allocation10 + $0x2a8] sm:$0xff]
    %v1681 = vld [vmem:[#allocation10 + $0x2b0] sm:$0xff]
    %v1682 = vld [vmem:[#allocation10 + $0x2b8] sm:$0xff]
    %v1683 = vld [vmem:[#allocation10 + $0x2c0] sm:$0xff]
    %v1684 = vld [vmem:[#allocation10 + $0x2c8] sm:$0xff]
    %v1685 = vld [vmem:[#allocation10 + $0x2d0] sm:$0xff]
    %v1686 = vld [vmem:[#allocation10 + $0x2d8] sm:$0xff]
    %v1687 = vld [vmem:[#allocation10 + $0x2e0] sm:$0xff]
    %v1688 = vld [vmem:[#allocation10 + $0x2e8] sm:$0xff]
    %v1689 = vld [vmem:[#allocation10 + $0x2f0] sm:$0xff]
    %v1690 = vld [vmem:[#allocation10 + $0x2f8] sm:$0xff]
    %v1691 = vld [vmem:[#allocation10 + $0x300] sm:$0xff]
    %v1692 = vld [vmem:[#allocation10 + $0x308] sm:$0xff]
    %v1693 = vld [vmem:[#allocation10 + $0x310] sm:$0xff]
    %v1694 = vld [vmem:[#allocation10 + $0x318] sm:$0xff]
    %v1695 = vld [vmem:[#allocation10 + $0x320] sm:$0xff]
    %v1696 = vld [vmem:[#allocation10 + $0x328] sm:$0xff]
    %v1697 = vld [vmem:[#allocation10 + $0x330] sm:$0xff]
    %v1698 = vld [vmem:[#allocation10 + $0x338] sm:$0xff]
    %v1699 = vld [vmem:[#allocation10 + $0x340] sm:$0xff]
    %v1700 = vld [vmem:[#allocation10 + $0x348] sm:$0xff]
    %v1701 = vld [vmem:[#allocation10 + $0x350] sm:$0xff]
    %v1702 = vld [vmem:[#allocation10 + $0x358] sm:$0xff]
    %v1703 = vld [vmem:[#allocation10 + $0x360] sm:$0xff]
    %v1704 = vld [vmem:[#allocation10 + $0x368] sm:$0xff]
    %v1705 = vld [vmem:[#allocation10 + $0x370] sm:$0xff]
    %v1706 = vld [vmem:[#allocation10 + $0x378] sm:$0xff]
    %v1707 = vld [vmem:[#allocation10 + $0x380] sm:$0xff]
    %v1708 = vld [vmem:[#allocation10 + $0x388] sm:$0xff]
    %v1709 = vld [vmem:[#allocation10 + $0x390] sm:$0xff]
    %v1710 = vld [vmem:[#allocation10 + $0x398] sm:$0xff]
    %v1711 = vld [vmem:[#allocation10 + $0x3a0] sm:$0xff]
    %v1712 = vld [vmem:[#allocation10 + $0x3a8] sm:$0xff]
    %v1713 = vld [vmem:[#allocation10 + $0x3b0] sm:$0xff]
    %v1714 = vld [vmem:[#allocation10 + $0x3b8] sm:$0xff]
    %v1715 = vld [vmem:[#allocation10 + $0x3c0] sm:$0xff]
    %v1716 = vld [vmem:[#allocation10 + $0x3c8] sm:$0xff]
    %v1717 = vld [vmem:[#allocation10 + $0x3d0] sm:$0xff]
    %v1718 = vld [vmem:[#allocation10 + $0x3d8] sm:$0xff]
    %v1719 = vld [vmem:[#allocation10 + $0x3e0] sm:$0xff]
    %v1720 = vld [vmem:[#allocation10 + $0x3e8] sm:$0xff]
    %v1721 = vld [vmem:[#allocation10 + $0x3f0] sm:$0xff]
    %v1722 = vld [vmem:[#allocation10 + $0x3f8] sm:$0xff]
    %v1723 = vld [vmem:[%s6] sm:$0xff]
    %v1725 = vlaneseq
    %v1726 = vshrl.u32 %v1725, 7
    %v1727 = vsub.s32 0, %v1726
    %v1728 = vrot.slane %v1723, %v1727
    %v1729 = vlaneseq
    %v1730 = vshrl.u32 %v1729, 7
    %v1731 = vsub.s32 1, %v1730
    %v1732 = vrot.slane %v1723, %v1731
    %v1733 = vlaneseq
    %v1734 = vshrl.u32 %v1733, 7
    %v1735 = vsub.s32 2, %v1734
    %v1736 = vrot.slane %v1723, %v1735
    %v1737 = vlaneseq
    %v1738 = vshrl.u32 %v1737, 7
    %v1739 = vsub.s32 3, %v1738
    %v1740 = vrot.slane %v1723, %v1739
    %v1741 = vlaneseq
    %v1742 = vshrl.u32 %v1741, 7
    %v1743 = vsub.s32 4, %v1742
    %v1744 = vrot.slane %v1723, %v1743
    %v1745 = vlaneseq
    %v1746 = vshrl.u32 %v1745, 7
    %v1747 = vsub.s32 5, %v1746
    %v1748 = vrot.slane %v1723, %v1747
    %v1749 = vlaneseq
    %v1750 = vshrl.u32 %v1749, 7
    %v1751 = vsub.s32 6, %v1750
    %v1752 = vrot.slane %v1723, %v1751
    %v1753 = vlaneseq
    %v1754 = vshrl.u32 %v1753, 7
    %v1755 = vsub.s32 7, %v1754
    %v1756 = vrot.slane %v1723, %v1755
    %v1893 = vunpack.c.l.b16 %v1595
    %v1894 = vunpack.c.h.b16 %v1595
    %v1895 = vunpack.c.l.b16 %v1596
    %v1896 = vunpack.c.h.b16 %v1596
    %v1897 = vunpack.c.l.b16 %v1597
    %v1898 = vunpack.c.h.b16 %v1597
    %v1899 = vunpack.c.l.b16 %v1598
    %v1900 = vunpack.c.h.b16 %v1598
    %v1901 = vunpack.c.l.b16 %v1599
    %v1902 = vunpack.c.h.b16 %v1599
    %v1903 = vunpack.c.l.b16 %v1600
    %v1904 = vunpack.c.h.b16 %v1600
    %v1905 = vunpack.c.l.b16 %v1601
    %v1906 = vunpack.c.h.b16 %v1601
    %v1907 = vunpack.c.l.b16 %v1602
    %v1908 = vunpack.c.h.b16 %v1602
    %v1909 = vunpack.c.l.b16 %v1603
    %v1910 = vunpack.c.h.b16 %v1603
    %v1911 = vunpack.c.l.b16 %v1604
    %v1912 = vunpack.c.h.b16 %v1604
    %v1913 = vunpack.c.l.b16 %v1605
    %v1914 = vunpack.c.h.b16 %v1605
    %v1915 = vunpack.c.l.b16 %v1606
    %v1916 = vunpack.c.h.b16 %v1606
    %v1917 = vunpack.c.l.b16 %v1607
    %v1918 = vunpack.c.h.b16 %v1607
    %v1919 = vunpack.c.l.b16 %v1608
    %v1920 = vunpack.c.h.b16 %v1608
    %v1921 = vunpack.c.l.b16 %v1609
    %v1922 = vunpack.c.h.b16 %v1609
    %v1923 = vunpack.c.l.b16 %v1610
    %v1924 = vunpack.c.h.b16 %v1610
    %v1925 = vunpack.c.l.b16 %v1611
    %v1926 = vunpack.c.h.b16 %v1611
    %v1927 = vunpack.c.l.b16 %v1612
    %v1928 = vunpack.c.h.b16 %v1612
    %v1929 = vunpack.c.l.b16 %v1613
    %v1930 = vunpack.c.h.b16 %v1613
    %v1931 = vunpack.c.l.b16 %v1614
    %v1932 = vunpack.c.h.b16 %v1614
    %v1933 = vunpack.c.l.b16 %v1615
    %v1934 = vunpack.c.h.b16 %v1615
    %v1935 = vunpack.c.l.b16 %v1616
    %v1936 = vunpack.c.h.b16 %v1616
    %v1937 = vunpack.c.l.b16 %v1617
    %v1938 = vunpack.c.h.b16 %v1617
    %v1939 = vunpack.c.l.b16 %v1618
    %v1940 = vunpack.c.h.b16 %v1618
    %v1941 = vunpack.c.l.b16 %v1619
    %v1942 = vunpack.c.h.b16 %v1619
    %v1943 = vunpack.c.l.b16 %v1620
    %v1944 = vunpack.c.h.b16 %v1620
    %v1945 = vunpack.c.l.b16 %v1621
    %v1946 = vunpack.c.h.b16 %v1621
    %v1947 = vunpack.c.l.b16 %v1622
    %v1948 = vunpack.c.h.b16 %v1622
    %v1949 = vunpack.c.l.b16 %v1623
    %v1950 = vunpack.c.h.b16 %v1623
    %v1951 = vunpack.c.l.b16 %v1624
    %v1952 = vunpack.c.h.b16 %v1624
    %v1953 = vunpack.c.l.b16 %v1625
    %v1954 = vunpack.c.h.b16 %v1625
    %v1955 = vunpack.c.l.b16 %v1626
    %v1956 = vunpack.c.h.b16 %v1626
    %v1957 = vunpack.c.l.b16 %v1627
    %v1958 = vunpack.c.h.b16 %v1627
    %v1959 = vunpack.c.l.b16 %v1628
    %v1960 = vunpack.c.h.b16 %v1628
    %v1961 = vunpack.c.l.b16 %v1629
    %v1962 = vunpack.c.h.b16 %v1629
    %v1963 = vunpack.c.l.b16 %v1630
    %v1964 = vunpack.c.h.b16 %v1630
    %v1965 = vunpack.c.l.b16 %v1631
    %v1966 = vunpack.c.h.b16 %v1631
    %v1967 = vunpack.c.l.b16 %v1632
    %v1968 = vunpack.c.h.b16 %v1632
    %v1969 = vunpack.c.l.b16 %v1633
    %v1970 = vunpack.c.h.b16 %v1633
    %v1971 = vunpack.c.l.b16 %v1634
    %v1972 = vunpack.c.h.b16 %v1634
    %v1973 = vunpack.c.l.b16 %v1635
    %v1974 = vunpack.c.h.b16 %v1635
    %v1975 = vunpack.c.l.b16 %v1636
    %v1976 = vunpack.c.h.b16 %v1636
    %v1977 = vunpack.c.l.b16 %v1637
    %v1978 = vunpack.c.h.b16 %v1637
    %v1979 = vunpack.c.l.b16 %v1638
    %v1980 = vunpack.c.h.b16 %v1638
    %v1981 = vunpack.c.l.b16 %v1639
    %v1982 = vunpack.c.h.b16 %v1639
    %v1983 = vunpack.c.l.b16 %v1640
    %v1984 = vunpack.c.h.b16 %v1640
    %v1985 = vunpack.c.l.b16 %v1641
    %v1986 = vunpack.c.h.b16 %v1641
    %v1987 = vunpack.c.l.b16 %v1642
    %v1988 = vunpack.c.h.b16 %v1642
    %v1989 = vunpack.c.l.b16 %v1643
    %v1990 = vunpack.c.h.b16 %v1643
    %v1991 = vunpack.c.l.b16 %v1644
    %v1992 = vunpack.c.h.b16 %v1644
    %v1993 = vunpack.c.l.b16 %v1645
    %v1994 = vunpack.c.h.b16 %v1645
    %v1995 = vunpack.c.l.b16 %v1646
    %v1996 = vunpack.c.h.b16 %v1646
    %v1997 = vunpack.c.l.b16 %v1647
    %v1998 = vunpack.c.h.b16 %v1647
    %v1999 = vunpack.c.l.b16 %v1648
    %v2000 = vunpack.c.h.b16 %v1648
    %v2001 = vunpack.c.l.b16 %v1649
    %v2002 = vunpack.c.h.b16 %v1649
    %v2003 = vunpack.c.l.b16 %v1650
    %v2004 = vunpack.c.h.b16 %v1650
    %v2005 = vunpack.c.l.b16 %v1651
    %v2006 = vunpack.c.h.b16 %v1651
    %v2007 = vunpack.c.l.b16 %v1652
    %v2008 = vunpack.c.h.b16 %v1652
    %v2009 = vunpack.c.l.b16 %v1653
    %v2010 = vunpack.c.h.b16 %v1653
    %v2011 = vunpack.c.l.b16 %v1654
    %v2012 = vunpack.c.h.b16 %v1654
    %v2013 = vunpack.c.l.b16 %v1655
    %v2014 = vunpack.c.h.b16 %v1655
    %v2015 = vunpack.c.l.b16 %v1656
    %v2016 = vunpack.c.h.b16 %v1656
    %v2017 = vunpack.c.l.b16 %v1657
    %v2018 = vunpack.c.h.b16 %v1657
    %v2019 = vunpack.c.l.b16 %v1658
    %v2020 = vunpack.c.h.b16 %v1658
    %v2021 = vunpack.c.l.b16 %v1659
    %v2022 = vunpack.c.h.b16 %v1659
    %v2023 = vunpack.c.l.b16 %v1660
    %v2024 = vunpack.c.h.b16 %v1660
    %v2025 = vunpack.c.l.b16 %v1661
    %v2026 = vunpack.c.h.b16 %v1661
    %v2027 = vunpack.c.l.b16 %v1662
    %v2028 = vunpack.c.h.b16 %v1662
    %v2029 = vunpack.c.l.b16 %v1663
    %v2030 = vunpack.c.h.b16 %v1663
    %v2031 = vunpack.c.l.b16 %v1664
    %v2032 = vunpack.c.h.b16 %v1664
    %v2033 = vunpack.c.l.b16 %v1665
    %v2034 = vunpack.c.h.b16 %v1665
    %v2035 = vunpack.c.l.b16 %v1666
    %v2036 = vunpack.c.h.b16 %v1666
    %v2037 = vunpack.c.l.b16 %v1667
    %v2038 = vunpack.c.h.b16 %v1667
    %v2039 = vunpack.c.l.b16 %v1668
    %v2040 = vunpack.c.h.b16 %v1668
    %v2041 = vunpack.c.l.b16 %v1669
    %v2042 = vunpack.c.h.b16 %v1669
    %v2043 = vunpack.c.l.b16 %v1670
    %v2044 = vunpack.c.h.b16 %v1670
    %v2045 = vunpack.c.l.b16 %v1671
    %v2046 = vunpack.c.h.b16 %v1671
    %v2047 = vunpack.c.l.b16 %v1672
    %v2048 = vunpack.c.h.b16 %v1672
    %v2049 = vunpack.c.l.b16 %v1673
    %v2050 = vunpack.c.h.b16 %v1673
    %v2051 = vunpack.c.l.b16 %v1674
    %v2052 = vunpack.c.h.b16 %v1674
    %v2053 = vunpack.c.l.b16 %v1675
    %v2054 = vunpack.c.h.b16 %v1675
    %v2055 = vunpack.c.l.b16 %v1676
    %v2056 = vunpack.c.h.b16 %v1676
    %v2057 = vunpack.c.l.b16 %v1677
    %v2058 = vunpack.c.h.b16 %v1677
    %v2059 = vunpack.c.l.b16 %v1678
    %v2060 = vunpack.c.h.b16 %v1678
    %v2061 = vunpack.c.l.b16 %v1679
    %v2062 = vunpack.c.h.b16 %v1679
    %v2063 = vunpack.c.l.b16 %v1680
    %v2064 = vunpack.c.h.b16 %v1680
    %v2065 = vunpack.c.l.b16 %v1681
    %v2066 = vunpack.c.h.b16 %v1681
    %v2067 = vunpack.c.l.b16 %v1682
    %v2068 = vunpack.c.h.b16 %v1682
    %v2069 = vunpack.c.l.b16 %v1683
    %v2070 = vunpack.c.h.b16 %v1683
    %v2071 = vunpack.c.l.b16 %v1684
    %v2072 = vunpack.c.h.b16 %v1684
    %v2073 = vunpack.c.l.b16 %v1685
    %v2074 = vunpack.c.h.b16 %v1685
    %v2075 = vunpack.c.l.b16 %v1686
    %v2076 = vunpack.c.h.b16 %v1686
    %v2077 = vunpack.c.l.b16 %v1687
    %v2078 = vunpack.c.h.b16 %v1687
    %v2079 = vunpack.c.l.b16 %v1688
    %v2080 = vunpack.c.h.b16 %v1688
    %v2081 = vunpack.c.l.b16 %v1689
    %v2082 = vunpack.c.h.b16 %v1689
    %v2083 = vunpack.c.l.b16 %v1690
    %v2084 = vunpack.c.h.b16 %v1690
    %v2085 = vunpack.c.l.b16 %v1691
    %v2086 = vunpack.c.h.b16 %v1691
    %v2087 = vunpack.c.l.b16 %v1692
    %v2088 = vunpack.c.h.b16 %v1692
    %v2089 = vunpack.c.l.b16 %v1693
    %v2090 = vunpack.c.h.b16 %v1693
    %v2091 = vunpack.c.l.b16 %v1694
    %v2092 = vunpack.c.h.b16 %v1694
    %v2093 = vunpack.c.l.b16 %v1695
    %v2094 = vunpack.c.h.b16 %v1695
    %v2095 = vunpack.c.l.b16 %v1696
    %v2096 = vunpack.c.h.b16 %v1696
    %v2097 = vunpack.c.l.b16 %v1697
    %v2098 = vunpack.c.h.b16 %v1697
    %v2099 = vunpack.c.l.b16 %v1698
    %v2100 = vunpack.c.h.b16 %v1698
    %v2101 = vunpack.c.l.b16 %v1699
    %v2102 = vunpack.c.h.b16 %v1699
    %v2103 = vunpack.c.l.b16 %v1700
    %v2104 = vunpack.c.h.b16 %v1700
    %v2105 = vunpack.c.l.b16 %v1701
    %v2106 = vunpack.c.h.b16 %v1701
    %v2107 = vunpack.c.l.b16 %v1702
    %v2108 = vunpack.c.h.b16 %v1702
    %v2109 = vunpack.c.l.b16 %v1703
    %v2110 = vunpack.c.h.b16 %v1703
    %v2111 = vunpack.c.l.b16 %v1704
    %v2112 = vunpack.c.h.b16 %v1704
    %v2113 = vunpack.c.l.b16 %v1705
    %v2114 = vunpack.c.h.b16 %v1705
    %v2115 = vunpack.c.l.b16 %v1706
    %v2116 = vunpack.c.h.b16 %v1706
    %v2117 = vunpack.c.l.b16 %v1707
    %v2118 = vunpack.c.h.b16 %v1707
    %v2119 = vunpack.c.l.b16 %v1708
    %v2120 = vunpack.c.h.b16 %v1708
    %v2121 = vunpack.c.l.b16 %v1709
    %v2122 = vunpack.c.h.b16 %v1709
    %v2123 = vunpack.c.l.b16 %v1710
    %v2124 = vunpack.c.h.b16 %v1710
    %v2125 = vunpack.c.l.b16 %v1711
    %v2126 = vunpack.c.h.b16 %v1711
    %v2127 = vunpack.c.l.b16 %v1712
    %v2128 = vunpack.c.h.b16 %v1712
    %v2129 = vunpack.c.l.b16 %v1713
    %v2130 = vunpack.c.h.b16 %v1713
    %v2131 = vunpack.c.l.b16 %v1714
    %v2132 = vunpack.c.h.b16 %v1714
    %v2133 = vunpack.c.l.b16 %v1715
    %v2134 = vunpack.c.h.b16 %v1715
    %v2135 = vunpack.c.l.b16 %v1716
    %v2136 = vunpack.c.h.b16 %v1716
    %v2137 = vunpack.c.l.b16 %v1717
    %v2138 = vunpack.c.h.b16 %v1717
    %v2139 = vunpack.c.l.b16 %v1718
    %v2140 = vunpack.c.h.b16 %v1718
    %v2141 = vunpack.c.l.b16 %v1719
    %v2142 = vunpack.c.h.b16 %v1719
    %v2143 = vunpack.c.l.b16 %v1720
    %v2144 = vunpack.c.h.b16 %v1720
    %v2145 = vunpack.c.l.b16 %v1721
    %v2146 = vunpack.c.h.b16 %v1721
    %v2147 = vunpack.c.l.b16 %v1722
    %v2148 = vunpack.c.h.b16 %v1722
    %v2149 = vpack.c.b16 %v1901, %v1893
    %v2150 = vpack.c.b16 %v1902, %v1894
    %v2151 = vpack.c.b16 %v1903, %v1895
    %v2152 = vpack.c.b16 %v1904, %v1896
    %v2153 = vpack.c.b16 %v1905, %v1897
    %v2154 = vpack.c.b16 %v1906, %v1898
    %v2155 = vpack.c.b16 %v1907, %v1899
    %v2156 = vpack.c.b16 %v1908, %v1900
    %v2157 = vpack.c.b16 %v1917, %v1909
    %v2158 = vpack.c.b16 %v1918, %v1910
    %v2159 = vpack.c.b16 %v1919, %v1911
    %v2160 = vpack.c.b16 %v1920, %v1912
    %v2161 = vpack.c.b16 %v1921, %v1913
    %v2162 = vpack.c.b16 %v1922, %v1914
    %v2163 = vpack.c.b16 %v1923, %v1915
    %v2164 = vpack.c.b16 %v1924, %v1916
    %v2165 = vpack.c.b16 %v1933, %v1925
    %v2166 = vpack.c.b16 %v1934, %v1926
    %v2167 = vpack.c.b16 %v1935, %v1927
    %v2168 = vpack.c.b16 %v1936, %v1928
    %v2169 = vpack.c.b16 %v1937, %v1929
    %v2170 = vpack.c.b16 %v1938, %v1930
    %v2171 = vpack.c.b16 %v1939, %v1931
    %v2172 = vpack.c.b16 %v1940, %v1932
    %v2173 = vpack.c.b16 %v1949, %v1941
    %v2174 = vpack.c.b16 %v1950, %v1942
    %v2175 = vpack.c.b16 %v1951, %v1943
    %v2176 = vpack.c.b16 %v1952, %v1944
    %v2177 = vpack.c.b16 %v1953, %v1945
    %v2178 = vpack.c.b16 %v1954, %v1946
    %v2179 = vpack.c.b16 %v1955, %v1947
    %v2180 = vpack.c.b16 %v1956, %v1948
    %v2181 = vpack.c.b16 %v1965, %v1957
    %v2182 = vpack.c.b16 %v1966, %v1958
    %v2183 = vpack.c.b16 %v1967, %v1959
    %v2184 = vpack.c.b16 %v1968, %v1960
    %v2185 = vpack.c.b16 %v1969, %v1961
    %v2186 = vpack.c.b16 %v1970, %v1962
    %v2187 = vpack.c.b16 %v1971, %v1963
    %v2188 = vpack.c.b16 %v1972, %v1964
    %v2189 = vpack.c.b16 %v1981, %v1973
    %v2190 = vpack.c.b16 %v1982, %v1974
    %v2191 = vpack.c.b16 %v1983, %v1975
    %v2192 = vpack.c.b16 %v1984, %v1976
    %v2193 = vpack.c.b16 %v1985, %v1977
    %v2194 = vpack.c.b16 %v1986, %v1978
    %v2195 = vpack.c.b16 %v1987, %v1979
    %v2196 = vpack.c.b16 %v1988, %v1980
    %v2197 = vpack.c.b16 %v1997, %v1989
    %v2198 = vpack.c.b16 %v1998, %v1990
    %v2199 = vpack.c.b16 %v1999, %v1991
    %v2200 = vpack.c.b16 %v2000, %v1992
    %v2201 = vpack.c.b16 %v2001, %v1993
    %v2202 = vpack.c.b16 %v2002, %v1994
    %v2203 = vpack.c.b16 %v2003, %v1995
    %v2204 = vpack.c.b16 %v2004, %v1996
    %v2205 = vpack.c.b16 %v2013, %v2005
    %v2206 = vpack.c.b16 %v2014, %v2006
    %v2207 = vpack.c.b16 %v2015, %v2007
    %v2208 = vpack.c.b16 %v2016, %v2008
    %v2209 = vpack.c.b16 %v2017, %v2009
    %v2210 = vpack.c.b16 %v2018, %v2010
    %v2211 = vpack.c.b16 %v2019, %v2011
    %v2212 = vpack.c.b16 %v2020, %v2012
    %v2213 = vpack.c.b16 %v2029, %v2021
    %v2214 = vpack.c.b16 %v2030, %v2022
    %v2215 = vpack.c.b16 %v2031, %v2023
    %v2216 = vpack.c.b16 %v2032, %v2024
    %v2217 = vpack.c.b16 %v2033, %v2025
    %v2218 = vpack.c.b16 %v2034, %v2026
    %v2219 = vpack.c.b16 %v2035, %v2027
    %v2220 = vpack.c.b16 %v2036, %v2028
    %v2221 = vpack.c.b16 %v2045, %v2037
    %v2222 = vpack.c.b16 %v2046, %v2038
    %v2223 = vpack.c.b16 %v2047, %v2039
    %v2224 = vpack.c.b16 %v2048, %v2040
    %v2225 = vpack.c.b16 %v2049, %v2041
    %v2226 = vpack.c.b16 %v2050, %v2042
    %v2227 = vpack.c.b16 %v2051, %v2043
    %v2228 = vpack.c.b16 %v2052, %v2044
    %v2229 = vpack.c.b16 %v2061, %v2053
    %v2230 = vpack.c.b16 %v2062, %v2054
    %v2231 = vpack.c.b16 %v2063, %v2055
    %v2232 = vpack.c.b16 %v2064, %v2056
    %v2233 = vpack.c.b16 %v2065, %v2057
    %v2234 = vpack.c.b16 %v2066, %v2058
    %v2235 = vpack.c.b16 %v2067, %v2059
    %v2236 = vpack.c.b16 %v2068, %v2060
    %v2237 = vpack.c.b16 %v2077, %v2069
    %v2238 = vpack.c.b16 %v2078, %v2070
    %v2239 = vpack.c.b16 %v2079, %v2071
    %v2240 = vpack.c.b16 %v2080, %v2072
    %v2241 = vpack.c.b16 %v2081, %v2073
    %v2242 = vpack.c.b16 %v2082, %v2074
    %v2243 = vpack.c.b16 %v2083, %v2075
    %v2244 = vpack.c.b16 %v2084, %v2076
    %v2245 = vpack.c.b16 %v2093, %v2085
    %v2246 = vpack.c.b16 %v2094, %v2086
    %v2247 = vpack.c.b16 %v2095, %v2087
    %v2248 = vpack.c.b16 %v2096, %v2088
    %v2249 = vpack.c.b16 %v2097, %v2089
    %v2250 = vpack.c.b16 %v2098, %v2090
    %v2251 = vpack.c.b16 %v2099, %v2091
    %v2252 = vpack.c.b16 %v2100, %v2092
    %v2253 = vpack.c.b16 %v2109, %v2101
    %v2254 = vpack.c.b16 %v2110, %v2102
    %v2255 = vpack.c.b16 %v2111, %v2103
    %v2256 = vpack.c.b16 %v2112, %v2104
    %v2257 = vpack.c.b16 %v2113, %v2105
    %v2258 = vpack.c.b16 %v2114, %v2106
    %v2259 = vpack.c.b16 %v2115, %v2107
    %v2260 = vpack.c.b16 %v2116, %v2108
    %v2261 = vpack.c.b16 %v2125, %v2117
    %v2262 = vpack.c.b16 %v2126, %v2118
    %v2263 = vpack.c.b16 %v2127, %v2119
    %v2264 = vpack.c.b16 %v2128, %v2120
    %v2265 = vpack.c.b16 %v2129, %v2121
    %v2266 = vpack.c.b16 %v2130, %v2122
    %v2267 = vpack.c.b16 %v2131, %v2123
    %v2268 = vpack.c.b16 %v2132, %v2124
    %v2269 = vpack.c.b16 %v2141, %v2133
    %v2270 = vpack.c.b16 %v2142, %v2134
    %v2271 = vpack.c.b16 %v2143, %v2135
    %v2272 = vpack.c.b16 %v2144, %v2136
    %v2273 = vpack.c.b16 %v2145, %v2137
    %v2274 = vpack.c.b16 %v2146, %v2138
    %v2275 = vpack.c.b16 %v2147, %v2139
    %v2276 = vpack.c.b16 %v2148, %v2140
    %2405 = vmatprep.subr.bf16.mxu0 %v2206
    %2406 = vmatpush1.bf16.msra.mxu0 %v2205
    %2407 = vmatprep.subr.bf16.mxu0 %v2198
    %2408 = vmatpush1.bf16.msra.mxu0 %v2197
    %2409 = vmatprep.subr.bf16.mxu0 %v2190
    %2410 = vmatpush1.bf16.msra.mxu0 %v2189
    %2411 = vmatprep.subr.bf16.mxu0 %v2182
    %2412 = vmatpush1.bf16.msra.mxu0 %v2181
    %2413 = vmatprep.subr.bf16.mxu0 %v2174
    %2414 = vmatpush1.bf16.msra.mxu0 %v2173
    %2415 = vmatprep.subr.bf16.mxu0 %v2166
    %2416 = vmatpush1.bf16.msra.mxu0 %v2165
    %2417 = vmatprep.subr.bf16.mxu0 %v2158
    %2418 = vmatpush1.bf16.msra.mxu0 %v2157
    %2419 = vmatprep.subr.bf16.mxu0 %v2150
    %2420 = vmatpush1.bf16.msra.mxu0 %v2149
    %2421 = vmatprep.subr.bf16.mxu0 %v2270
    %2422 = vmatpush2.bf16.msra.mxu0 %v2269
    %2423 = vmatprep.subr.bf16.mxu0 %v2262
    %2424 = vmatpush2.bf16.msra.mxu0 %v2261
    %2425 = vmatprep.subr.bf16.mxu0 %v2254
    %2426 = vmatpush2.bf16.msra.mxu0 %v2253
    %2427 = vmatprep.subr.bf16.mxu0 %v2246
    %2428 = vmatpush2.bf16.msra.mxu0 %v2245
    %2429 = vmatprep.subr.bf16.mxu0 %v2238
    %2430 = vmatpush2.bf16.msra.mxu0 %v2237
    %2431 = vmatprep.subr.bf16.mxu0 %v2230
    %2432 = vmatpush2.bf16.msra.mxu0 %v2229
    %2433 = vmatprep.subr.bf16.mxu0 %v2222
    %2434 = vmatpush2.bf16.msra.mxu0 %v2221
    %2435 = vmatprep.subr.bf16.mxu0 %v2214
    %2436 = vmatpush2.bf16.msra.mxu0 %v2213
    %2437 = vmatprep.mubr.bf16.mxu0 %v1594
    %2438 = vmatmul.mubr.bf16.gmra.mxu0 %v1593
    %v2439 = vpop.f32.mrf.mxu0
    %v2440 = vadd.f32 %v1728, %v2439
    %v2441 = vpop.f32.mrf.mxu0
    %v2442 = vadd.f32 %v1732, %v2441
    %v2443 = vpop.f32.mrf.mxu0
    %v2444 = vpop.f32.mrf.mxu0
    %2445 = vdwg.mxu0
    %2446 = vmatprep.subr.bf16.mxu0 %v2208
    %2447 = vmatpush1.bf16.msra.mxu0 %v2207
    %2448 = vmatprep.subr.bf16.mxu0 %v2200
    %2449 = vmatpush1.bf16.msra.mxu0 %v2199
    %2450 = vmatprep.subr.bf16.mxu0 %v2192
    %2451 = vmatpush1.bf16.msra.mxu0 %v2191
    %2452 = vmatprep.subr.bf16.mxu0 %v2184
    %2453 = vmatpush1.bf16.msra.mxu0 %v2183
    %2454 = vmatprep.subr.bf16.mxu0 %v2176
    %2455 = vmatpush1.bf16.msra.mxu0 %v2175
    %2456 = vmatprep.subr.bf16.mxu0 %v2168
    %2457 = vmatpush1.bf16.msra.mxu0 %v2167
    %2458 = vmatprep.subr.bf16.mxu0 %v2160
    %2459 = vmatpush1.bf16.msra.mxu0 %v2159
    %2460 = vmatprep.subr.bf16.mxu0 %v2152
    %2461 = vmatpush1.bf16.msra.mxu0 %v2151
    %2462 = vmatprep.subr.bf16.mxu0 %v2272
    %2463 = vmatpush2.bf16.msra.mxu0 %v2271
    %2464 = vmatprep.subr.bf16.mxu0 %v2264
    %2465 = vmatpush2.bf16.msra.mxu0 %v2263
    %2466 = vmatprep.subr.bf16.mxu0 %v2256
    %2467 = vmatpush2.bf16.msra.mxu0 %v2255
    %2468 = vmatprep.subr.bf16.mxu0 %v2248
    %2469 = vmatpush2.bf16.msra.mxu0 %v2247
    %2470 = vmatprep.subr.bf16.mxu0 %v2240
    %2471 = vmatpush2.bf16.msra.mxu0 %v2239
    %2472 = vmatprep.subr.bf16.mxu0 %v2232
    %2473 = vmatpush2.bf16.msra.mxu0 %v2231
    %2474 = vmatprep.subr.bf16.mxu0 %v2224
    %2475 = vmatpush2.bf16.msra.mxu0 %v2223
    %2476 = vmatprep.subr.bf16.mxu0 %v2216
    %2477 = vmatpush2.bf16.msra.mxu0 %v2215
    %2478 = vmatprep.mubr.bf16.mxu0 %v1594
    %2479 = vmatmul.mubr.bf16.gmra.mxu0 %v1593
    %v2480 = vpop.f32.mrf.mxu0
    %v2481 = vadd.f32 %v1736, %v2480
    %v2482 = vpop.f32.mrf.mxu0
    %v2483 = vadd.f32 %v1740, %v2482
    %v2484 = vpop.f32.mrf.mxu0
    %v2485 = vpop.f32.mrf.mxu0
    %2486 = vdwg.mxu0
    %2487 = vmatprep.subr.bf16.mxu0 %v2210
    %2488 = vmatpush1.bf16.msra.mxu0 %v2209
    %2489 = vmatprep.subr.bf16.mxu0 %v2202
    %2490 = vmatpush1.bf16.msra.mxu0 %v2201
    %2491 = vmatprep.subr.bf16.mxu0 %v2194
    %2492 = vmatpush1.bf16.msra.mxu0 %v2193
    %2493 = vmatprep.subr.bf16.mxu0 %v2186
    %2494 = vmatpush1.bf16.msra.mxu0 %v2185
    %2495 = vmatprep.subr.bf16.mxu0 %v2178
    %2496 = vmatpush1.bf16.msra.mxu0 %v2177
    %2497 = vmatprep.subr.bf16.mxu0 %v2170
    %2498 = vmatpush1.bf16.msra.mxu0 %v2169
    %2499 = vmatprep.subr.bf16.mxu0 %v2162
    %2500 = vmatpush1.bf16.msra.mxu0 %v2161
    %2501 = vmatprep.subr.bf16.mxu0 %v2154
    %2502 = vmatpush1.bf16.msra.mxu0 %v2153
    %2503 = vmatprep.subr.bf16.mxu0 %v2274
    %2504 = vmatpush2.bf16.msra.mxu0 %v2273
    %2505 = vmatprep.subr.bf16.mxu0 %v2266
    %2506 = vmatpush2.bf16.msra.mxu0 %v2265
    %2507 = vmatprep.subr.bf16.mxu0 %v2258
    %2508 = vmatpush2.bf16.msra.mxu0 %v2257
    %2509 = vmatprep.subr.bf16.mxu0 %v2250
    %2510 = vmatpush2.bf16.msra.mxu0 %v2249
    %2511 = vmatprep.subr.bf16.mxu0 %v2242
    %2512 = vmatpush2.bf16.msra.mxu0 %v2241
    %2513 = vmatprep.subr.bf16.mxu0 %v2234
    %2514 = vmatpush2.bf16.msra.mxu0 %v2233
    %2515 = vmatprep.subr.bf16.mxu0 %v2226
    %2516 = vmatpush2.bf16.msra.mxu0 %v2225
    %2517 = vmatprep.subr.bf16.mxu0 %v2218
    %2518 = vmatpush2.bf16.msra.mxu0 %v2217
    %2519 = vmatprep.mubr.bf16.mxu0 %v1594
    %2520 = vmatmul.mubr.bf16.gmra.mxu0 %v1593
    %v2521 = vpop.f32.mrf.mxu0
    %v2522 = vadd.f32 %v1744, %v2521
    %v2523 = vpop.f32.mrf.mxu0
    %v2524 = vadd.f32 %v1748, %v2523
    %v2525 = vpop.f32.mrf.mxu0
    %v2526 = vpop.f32.mrf.mxu0
    %2527 = vdwg.mxu0
    %2528 = vmatprep.subr.bf16.mxu0 %v2212
    %2529 = vmatpush1.bf16.msra.mxu0 %v2211
    %2530 = vmatprep.subr.bf16.mxu0 %v2204
    %2531 = vmatpush1.bf16.msra.mxu0 %v2203
    %2532 = vmatprep.subr.bf16.mxu0 %v2196
    %2533 = vmatpush1.bf16.msra.mxu0 %v2195
    %2534 = vmatprep.subr.bf16.mxu0 %v2188
    %2535 = vmatpush1.bf16.msra.mxu0 %v2187
    %2536 = vmatprep.subr.bf16.mxu0 %v2180
    %2537 = vmatpush1.bf16.msra.mxu0 %v2179
    %2538 = vmatprep.subr.bf16.mxu0 %v2172
    %2539 = vmatpush1.bf16.msra.mxu0 %v2171
    %2540 = vmatprep.subr.bf16.mxu0 %v2164
    %2541 = vmatpush1.bf16.msra.mxu0 %v2163
    %2542 = vmatprep.subr.bf16.mxu0 %v2156
    %2543 = vmatpush1.bf16.msra.mxu0 %v2155
    %2544 = vmatprep.subr.bf16.mxu0 %v2276
    %2545 = vmatpush2.bf16.msra.mxu0 %v2275
    %2546 = vmatprep.subr.bf16.mxu0 %v2268
    %2547 = vmatpush2.bf16.msra.mxu0 %v2267
    %2548 = vmatprep.subr.bf16.mxu0 %v2260
    %2549 = vmatpush2.bf16.msra.mxu0 %v2259
    %2550 = vmatprep.subr.bf16.mxu0 %v2252
    %2551 = vmatpush2.bf16.msra.mxu0 %v2251
    %2552 = vmatprep.subr.bf16.mxu0 %v2244
    %2553 = vmatpush2.bf16.msra.mxu0 %v2243
    %2554 = vmatprep.subr.bf16.mxu0 %v2236
    %2555 = vmatpush2.bf16.msra.mxu0 %v2235
    %2556 = vmatprep.subr.bf16.mxu0 %v2228
    %2557 = vmatpush2.bf16.msra.mxu0 %v2227
    %2558 = vmatprep.subr.bf16.mxu0 %v2220
    %2559 = vmatpush2.bf16.msra.mxu0 %v2219
    %2560 = vmatprep.mubr.bf16.mxu0 %v1594
    %2561 = vmatmul.mubr.bf16.gmra.mxu0 %v1593
    %v2562 = vpop.f32.mrf.mxu0
    %v2563 = vadd.f32 %v1752, %v2562
    %v2564 = vpop.f32.mrf.mxu0
    %v2565 = vadd.f32 %v1756, %v2564
    %v2566 = vpop.f32.mrf.mxu0
    %v2567 = vpop.f32.mrf.mxu0
    %2568 = vdwg.mxu0
    %v2569 = vmul.f32 %v2440, 0.5
    %v2570 = vmul.f32 %v2442, 0.5
    %v2571 = vmul.f32 %v2481, 0.5
    %v2572 = vmul.f32 %v2483, 0.5
    %v2573 = vmul.f32 %v2522, 0.5
    %v2574 = vmul.f32 %v2524, 0.5
    %v2575 = vmul.f32 %v2563, 0.5
    %v2576 = vmul.f32 %v2565, 0.5
    %v2577 = vmul.f32 %v2440, 0.70710677
    %v2578 = vmul.f32 %v2442, 0.70710677
    %v2579 = vmul.f32 %v2481, 0.70710677
    %v2580 = vmul.f32 %v2483, 0.70710677
    %v2581 = vmul.f32 %v2522, 0.70710677
    %v2582 = vmul.f32 %v2524, 0.70710677
    %v2583 = vmul.f32 %v2563, 0.70710677
    %v2584 = vmul.f32 %v2565, 0.70710677
    %v2585 = verf.f32.pop %v2577
    %v2586 = verf.f32.pop %v2578
    %v2587 = verf.f32.pop %v2579
    %v2588 = verf.f32.pop %v2580
    %v2589 = verf.f32.pop %v2581
    %v2590 = verf.f32.pop %v2582
    %v2591 = verf.f32.pop %v2583
    %v2592 = verf.f32.pop %v2584
    %v2593 = vadd.f32 %v2585, 1.0
    %v2594 = vadd.f32 %v2586, 1.0
    %v2595 = vadd.f32 %v2587, 1.0
    %v2596 = vadd.f32 %v2588, 1.0
    %v2597 = vadd.f32 %v2589, 1.0
    %v2598 = vadd.f32 %v2590, 1.0
    %v2599 = vadd.f32 %v2591, 1.0
    %v2600 = vadd.f32 %v2592, 1.0
    %v2601 = vmul.f32 %v2569, %v2593
    %v2602 = vmul.f32 %v2570, %v2594
    %v2603 = vmul.f32 %v2571, %v2595
    %v2604 = vmul.f32 %v2572, %v2596
    %v2605 = vmul.f32 %v2573, %v2597
    %v2606 = vmul.f32 %v2574, %v2598
    %v2607 = vmul.f32 %v2575, %v2599
    %v2608 = vmul.f32 %v2576, %v2600
    %v2609 = vpack.c.bf16 %v2601, %v2601
    %v2610 = vpack.c.bf16 %v2602, %v2602
    %v2611 = vpack.c.bf16 %v2603, %v2603
    %v2612 = vpack.c.bf16 %v2604, %v2604
    %v2613 = vpack.c.bf16 %v2605, %v2605
    %v2614 = vpack.c.bf16 %v2606, %v2606
    %v2615 = vpack.c.bf16 %v2607, %v2607
    %v2616 = vpack.c.bf16 %v2608, %v2608
    %v2617 = vld [vmem:[#allocation11] sm:$0xff]
    %v2618 = vld [vmem:[#allocation11 + $0x8] sm:$0xff]
    %v2619 = vld [vmem:[#allocation11 + $0x10] sm:$0xff]
    %v2620 = vld [vmem:[#allocation11 + $0x18] sm:$0xff]
    %v2621 = vld [vmem:[#allocation11 + $0x20] sm:$0xff]
    %v2622 = vld [vmem:[#allocation11 + $0x28] sm:$0xff]
    %v2623 = vld [vmem:[#allocation11 + $0x30] sm:$0xff]
    %v2624 = vld [vmem:[#allocation11 + $0x38] sm:$0xff]
    %v2625 = vld [vmem:[#allocation11 + $0x40] sm:$0xff]
    %v2626 = vld [vmem:[#allocation11 + $0x48] sm:$0xff]
    %v2627 = vld [vmem:[#allocation11 + $0x50] sm:$0xff]
    %v2628 = vld [vmem:[#allocation11 + $0x58] sm:$0xff]
    %v2629 = vld [vmem:[#allocation11 + $0x60] sm:$0xff]
    %v2630 = vld [vmem:[#allocation11 + $0x68] sm:$0xff]
    %v2631 = vld [vmem:[#allocation11 + $0x70] sm:$0xff]
    %v2632 = vld [vmem:[#allocation11 + $0x78] sm:$0xff]
    %v2633 = vld [vmem:[#allocation11 + $0x80] sm:$0xff]
    %v2634 = vld [vmem:[#allocation11 + $0x88] sm:$0xff]
    %v2635 = vld [vmem:[#allocation11 + $0x90] sm:$0xff]
    %v2636 = vld [vmem:[#allocation11 + $0x98] sm:$0xff]
    %v2637 = vld [vmem:[#allocation11 + $0xa0] sm:$0xff]
    %v2638 = vld [vmem:[#allocation11 + $0xa8] sm:$0xff]
    %v2639 = vld [vmem:[#allocation11 + $0xb0] sm:$0xff]
    %v2640 = vld [vmem:[#allocation11 + $0xb8] sm:$0xff]
    %v2641 = vld [vmem:[#allocation11 + $0xc0] sm:$0xff]
    %v2642 = vld [vmem:[#allocation11 + $0xc8] sm:$0xff]
    %v2643 = vld [vmem:[#allocation11 + $0xd0] sm:$0xff]
    %v2644 = vld [vmem:[#allocation11 + $0xd8] sm:$0xff]
    %v2645 = vld [vmem:[#allocation11 + $0xe0] sm:$0xff]
    %v2646 = vld [vmem:[#allocation11 + $0xe8] sm:$0xff]
    %v2647 = vld [vmem:[#allocation11 + $0xf0] sm:$0xff]
    %v2648 = vld [vmem:[#allocation11 + $0xf8] sm:$0xff]
    %v2649 = vld [vmem:[#allocation11 + $0x100] sm:$0xff]
    %v2650 = vld [vmem:[#allocation11 + $0x108] sm:$0xff]
    %v2651 = vld [vmem:[#allocation11 + $0x110] sm:$0xff]
    %v2652 = vld [vmem:[#allocation11 + $0x118] sm:$0xff]
    %v2653 = vld [vmem:[#allocation11 + $0x120] sm:$0xff]
    %v2654 = vld [vmem:[#allocation11 + $0x128] sm:$0xff]
    %v2655 = vld [vmem:[#allocation11 + $0x130] sm:$0xff]
    %v2656 = vld [vmem:[#allocation11 + $0x138] sm:$0xff]
    %v2657 = vld [vmem:[#allocation11 + $0x140] sm:$0xff]
    %v2658 = vld [vmem:[#allocation11 + $0x148] sm:$0xff]
    %v2659 = vld [vmem:[#allocation11 + $0x150] sm:$0xff]
    %v2660 = vld [vmem:[#allocation11 + $0x158] sm:$0xff]
    %v2661 = vld [vmem:[#allocation11 + $0x160] sm:$0xff]
    %v2662 = vld [vmem:[#allocation11 + $0x168] sm:$0xff]
    %v2663 = vld [vmem:[#allocation11 + $0x170] sm:$0xff]
    %v2664 = vld [vmem:[#allocation11 + $0x178] sm:$0xff]
    %v2665 = vld [vmem:[#allocation11 + $0x180] sm:$0xff]
    %v2666 = vld [vmem:[#allocation11 + $0x188] sm:$0xff]
    %v2667 = vld [vmem:[#allocation11 + $0x190] sm:$0xff]
    %v2668 = vld [vmem:[#allocation11 + $0x198] sm:$0xff]
    %v2669 = vld [vmem:[#allocation11 + $0x1a0] sm:$0xff]
    %v2670 = vld [vmem:[#allocation11 + $0x1a8] sm:$0xff]
    %v2671 = vld [vmem:[#allocation11 + $0x1b0] sm:$0xff]
    %v2672 = vld [vmem:[#allocation11 + $0x1b8] sm:$0xff]
    %v2673 = vld [vmem:[#allocation11 + $0x1c0] sm:$0xff]
    %v2674 = vld [vmem:[#allocation11 + $0x1c8] sm:$0xff]
    %v2675 = vld [vmem:[#allocation11 + $0x1d0] sm:$0xff]
    %v2676 = vld [vmem:[#allocation11 + $0x1d8] sm:$0xff]
    %v2677 = vld [vmem:[#allocation11 + $0x1e0] sm:$0xff]
    %v2678 = vld [vmem:[#allocation11 + $0x1e8] sm:$0xff]
    %v2679 = vld [vmem:[#allocation11 + $0x1f0] sm:$0xff]
    %v2680 = vld [vmem:[#allocation11 + $0x1f8] sm:$0xff]
    %v2681 = vld [vmem:[#allocation11 + $0x200] sm:$0xff]
    %v2682 = vld [vmem:[#allocation11 + $0x208] sm:$0xff]
    %v2683 = vld [vmem:[#allocation11 + $0x210] sm:$0xff]
    %v2684 = vld [vmem:[#allocation11 + $0x218] sm:$0xff]
    %v2685 = vld [vmem:[#allocation11 + $0x220] sm:$0xff]
    %v2686 = vld [vmem:[#allocation11 + $0x228] sm:$0xff]
    %v2687 = vld [vmem:[#allocation11 + $0x230] sm:$0xff]
    %v2688 = vld [vmem:[#allocation11 + $0x238] sm:$0xff]
    %v2689 = vld [vmem:[#allocation11 + $0x240] sm:$0xff]
    %v2690 = vld [vmem:[#allocation11 + $0x248] sm:$0xff]
    %v2691 = vld [vmem:[#allocation11 + $0x250] sm:$0xff]
    %v2692 = vld [vmem:[#allocation11 + $0x258] sm:$0xff]
    %v2693 = vld [vmem:[#allocation11 + $0x260] sm:$0xff]
    %v2694 = vld [vmem:[#allocation11 + $0x268] sm:$0xff]
    %v2695 = vld [vmem:[#allocation11 + $0x270] sm:$0xff]
    %v2696 = vld [vmem:[#allocation11 + $0x278] sm:$0xff]
    %v2697 = vld [vmem:[#allocation11 + $0x280] sm:$0xff]
    %v2698 = vld [vmem:[#allocation11 + $0x288] sm:$0xff]
    %v2699 = vld [vmem:[#allocation11 + $0x290] sm:$0xff]
    %v2700 = vld [vmem:[#allocation11 + $0x298] sm:$0xff]
    %v2701 = vld [vmem:[#allocation11 + $0x2a0] sm:$0xff]
    %v2702 = vld [vmem:[#allocation11 + $0x2a8] sm:$0xff]
    %v2703 = vld [vmem:[#allocation11 + $0x2b0] sm:$0xff]
    %v2704 = vld [vmem:[#allocation11 + $0x2b8] sm:$0xff]
    %v2705 = vld [vmem:[#allocation11 + $0x2c0] sm:$0xff]
    %v2706 = vld [vmem:[#allocation11 + $0x2c8] sm:$0xff]
    %v2707 = vld [vmem:[#allocation11 + $0x2d0] sm:$0xff]
    %v2708 = vld [vmem:[#allocation11 + $0x2d8] sm:$0xff]
    %v2709 = vld [vmem:[#allocation11 + $0x2e0] sm:$0xff]
    %v2710 = vld [vmem:[#allocation11 + $0x2e8] sm:$0xff]
    %v2711 = vld [vmem:[#allocation11 + $0x2f0] sm:$0xff]
    %v2712 = vld [vmem:[#allocation11 + $0x2f8] sm:$0xff]
    %v2713 = vld [vmem:[#allocation11 + $0x300] sm:$0xff]
    %v2714 = vld [vmem:[#allocation11 + $0x308] sm:$0xff]
    %v2715 = vld [vmem:[#allocation11 + $0x310] sm:$0xff]
    %v2716 = vld [vmem:[#allocation11 + $0x318] sm:$0xff]
    %v2717 = vld [vmem:[#allocation11 + $0x320] sm:$0xff]
    %v2718 = vld [vmem:[#allocation11 + $0x328] sm:$0xff]
    %v2719 = vld [vmem:[#allocation11 + $0x330] sm:$0xff]
    %v2720 = vld [vmem:[#allocation11 + $0x338] sm:$0xff]
    %v2721 = vld [vmem:[#allocation11 + $0x340] sm:$0xff]
    %v2722 = vld [vmem:[#allocation11 + $0x348] sm:$0xff]
    %v2723 = vld [vmem:[#allocation11 + $0x350] sm:$0xff]
    %v2724 = vld [vmem:[#allocation11 + $0x358] sm:$0xff]
    %v2725 = vld [vmem:[#allocation11 + $0x360] sm:$0xff]
    %v2726 = vld [vmem:[#allocation11 + $0x368] sm:$0xff]
    %v2727 = vld [vmem:[#allocation11 + $0x370] sm:$0xff]
    %v2728 = vld [vmem:[#allocation11 + $0x378] sm:$0xff]
    %v2729 = vld [vmem:[#allocation11 + $0x380] sm:$0xff]
    %v2730 = vld [vmem:[#allocation11 + $0x388] sm:$0xff]
    %v2731 = vld [vmem:[#allocation11 + $0x390] sm:$0xff]
    %v2732 = vld [vmem:[#allocation11 + $0x398] sm:$0xff]
    %v2733 = vld [vmem:[#allocation11 + $0x3a0] sm:$0xff]
    %v2734 = vld [vmem:[#allocation11 + $0x3a8] sm:$0xff]
    %v2735 = vld [vmem:[#allocation11 + $0x3b0] sm:$0xff]
    %v2736 = vld [vmem:[#allocation11 + $0x3b8] sm:$0xff]
    %v2737 = vld [vmem:[#allocation11 + $0x3c0] sm:$0xff]
    %v2738 = vld [vmem:[#allocation11 + $0x3c8] sm:$0xff]
    %v2739 = vld [vmem:[#allocation11 + $0x3d0] sm:$0xff]
    %v2740 = vld [vmem:[#allocation11 + $0x3d8] sm:$0xff]
    %v2741 = vld [vmem:[#allocation11 + $0x3e0] sm:$0xff]
    %v2742 = vld [vmem:[#allocation11 + $0x3e8] sm:$0xff]
    %v2743 = vld [vmem:[#allocation11 + $0x3f0] sm:$0xff]
    %v2744 = vld [vmem:[#allocation11 + $0x3f8] sm:$0xff]
    %v2745 = vld [vmem:[%s8] sm:$0x3]
    %v2747 = vlaneseq
    %v2748 = vshrl.u32 %v2747, 7
    %v2749 = vsub.s32 0, %v2748
    %v2750 = vrot.slane %v2745, %v2749
    %v2751 = vlaneseq
    %v2752 = vshrl.u32 %v2751, 7
    %v2753 = vsub.s32 1, %v2752
    %v2754 = vrot.slane %v2745, %v2753
    %v2885 = vunpack.c.l.b16 %v2617
    %v2886 = vunpack.c.h.b16 %v2617
    %v2887 = vunpack.c.l.b16 %v2618
    %v2888 = vunpack.c.h.b16 %v2618
    %v2889 = vunpack.c.l.b16 %v2619
    %v2890 = vunpack.c.h.b16 %v2619
    %v2891 = vunpack.c.l.b16 %v2620
    %v2892 = vunpack.c.h.b16 %v2620
    %v2893 = vunpack.c.l.b16 %v2621
    %v2894 = vunpack.c.h.b16 %v2621
    %v2895 = vunpack.c.l.b16 %v2622
    %v2896 = vunpack.c.h.b16 %v2622
    %v2897 = vunpack.c.l.b16 %v2623
    %v2898 = vunpack.c.h.b16 %v2623
    %v2899 = vunpack.c.l.b16 %v2624
    %v2900 = vunpack.c.h.b16 %v2624
    %v2901 = vunpack.c.l.b16 %v2625
    %v2902 = vunpack.c.h.b16 %v2625
    %v2903 = vunpack.c.l.b16 %v2626
    %v2904 = vunpack.c.h.b16 %v2626
    %v2905 = vunpack.c.l.b16 %v2627
    %v2906 = vunpack.c.h.b16 %v2627
    %v2907 = vunpack.c.l.b16 %v2628
    %v2908 = vunpack.c.h.b16 %v2628
    %v2909 = vunpack.c.l.b16 %v2629
    %v2910 = vunpack.c.h.b16 %v2629
    %v2911 = vunpack.c.l.b16 %v2630
    %v2912 = vunpack.c.h.b16 %v2630
    %v2913 = vunpack.c.l.b16 %v2631
    %v2914 = vunpack.c.h.b16 %v2631
    %v2915 = vunpack.c.l.b16 %v2632
    %v2916 = vunpack.c.h.b16 %v2632
    %v2917 = vunpack.c.l.b16 %v2633
    %v2918 = vunpack.c.h.b16 %v2633
    %v2919 = vunpack.c.l.b16 %v2634
    %v2920 = vunpack.c.h.b16 %v2634
    %v2921 = vunpack.c.l.b16 %v2635
    %v2922 = vunpack.c.h.b16 %v2635
    %v2923 = vunpack.c.l.b16 %v2636
    %v2924 = vunpack.c.h.b16 %v2636
    %v2925 = vunpack.c.l.b16 %v2637
    %v2926 = vunpack.c.h.b16 %v2637
    %v2927 = vunpack.c.l.b16 %v2638
    %v2928 = vunpack.c.h.b16 %v2638
    %v2929 = vunpack.c.l.b16 %v2639
    %v2930 = vunpack.c.h.b16 %v2639
    %v2931 = vunpack.c.l.b16 %v2640
    %v2932 = vunpack.c.h.b16 %v2640
    %v2933 = vunpack.c.l.b16 %v2641
    %v2934 = vunpack.c.h.b16 %v2641
    %v2935 = vunpack.c.l.b16 %v2642
    %v2936 = vunpack.c.h.b16 %v2642
    %v2937 = vunpack.c.l.b16 %v2643
    %v2938 = vunpack.c.h.b16 %v2643
    %v2939 = vunpack.c.l.b16 %v2644
    %v2940 = vunpack.c.h.b16 %v2644
    %v2941 = vunpack.c.l.b16 %v2645
    %v2942 = vunpack.c.h.b16 %v2645
    %v2943 = vunpack.c.l.b16 %v2646
    %v2944 = vunpack.c.h.b16 %v2646
    %v2945 = vunpack.c.l.b16 %v2647
    %v2946 = vunpack.c.h.b16 %v2647
    %v2947 = vunpack.c.l.b16 %v2648
    %v2948 = vunpack.c.h.b16 %v2648
    %v2949 = vunpack.c.l.b16 %v2649
    %v2950 = vunpack.c.h.b16 %v2649
    %v2951 = vunpack.c.l.b16 %v2650
    %v2952 = vunpack.c.h.b16 %v2650
    %v2953 = vunpack.c.l.b16 %v2651
    %v2954 = vunpack.c.h.b16 %v2651
    %v2955 = vunpack.c.l.b16 %v2652
    %v2956 = vunpack.c.h.b16 %v2652
    %v2957 = vunpack.c.l.b16 %v2653
    %v2958 = vunpack.c.h.b16 %v2653
    %v2959 = vunpack.c.l.b16 %v2654
    %v2960 = vunpack.c.h.b16 %v2654
    %v2961 = vunpack.c.l.b16 %v2655
    %v2962 = vunpack.c.h.b16 %v2655
    %v2963 = vunpack.c.l.b16 %v2656
    %v2964 = vunpack.c.h.b16 %v2656
    %v2965 = vunpack.c.l.b16 %v2657
    %v2966 = vunpack.c.h.b16 %v2657
    %v2967 = vunpack.c.l.b16 %v2658
    %v2968 = vunpack.c.h.b16 %v2658
    %v2969 = vunpack.c.l.b16 %v2659
    %v2970 = vunpack.c.h.b16 %v2659
    %v2971 = vunpack.c.l.b16 %v2660
    %v2972 = vunpack.c.h.b16 %v2660
    %v2973 = vunpack.c.l.b16 %v2661
    %v2974 = vunpack.c.h.b16 %v2661
    %v2975 = vunpack.c.l.b16 %v2662
    %v2976 = vunpack.c.h.b16 %v2662
    %v2977 = vunpack.c.l.b16 %v2663
    %v2978 = vunpack.c.h.b16 %v2663
    %v2979 = vunpack.c.l.b16 %v2664
    %v2980 = vunpack.c.h.b16 %v2664
    %v2981 = vunpack.c.l.b16 %v2665
    %v2982 = vunpack.c.h.b16 %v2665
    %v2983 = vunpack.c.l.b16 %v2666
    %v2984 = vunpack.c.h.b16 %v2666
    %v2985 = vunpack.c.l.b16 %v2667
    %v2986 = vunpack.c.h.b16 %v2667
    %v2987 = vunpack.c.l.b16 %v2668
    %v2988 = vunpack.c.h.b16 %v2668
    %v2989 = vunpack.c.l.b16 %v2669
    %v2990 = vunpack.c.h.b16 %v2669
    %v2991 = vunpack.c.l.b16 %v2670
    %v2992 = vunpack.c.h.b16 %v2670
    %v2993 = vunpack.c.l.b16 %v2671
    %v2994 = vunpack.c.h.b16 %v2671
    %v2995 = vunpack.c.l.b16 %v2672
    %v2996 = vunpack.c.h.b16 %v2672
    %v2997 = vunpack.c.l.b16 %v2673
    %v2998 = vunpack.c.h.b16 %v2673
    %v2999 = vunpack.c.l.b16 %v2674
    %v3000 = vunpack.c.h.b16 %v2674
    %v3001 = vunpack.c.l.b16 %v2675
    %v3002 = vunpack.c.h.b16 %v2675
    %v3003 = vunpack.c.l.b16 %v2676
    %v3004 = vunpack.c.h.b16 %v2676
    %v3005 = vunpack.c.l.b16 %v2677
    %v3006 = vunpack.c.h.b16 %v2677
    %v3007 = vunpack.c.l.b16 %v2678
    %v3008 = vunpack.c.h.b16 %v2678
    %v3009 = vunpack.c.l.b16 %v2679
    %v3010 = vunpack.c.h.b16 %v2679
    %v3011 = vunpack.c.l.b16 %v2680
    %v3012 = vunpack.c.h.b16 %v2680
    %v3013 = vunpack.c.l.b16 %v2681
    %v3014 = vunpack.c.h.b16 %v2681
    %v3015 = vunpack.c.l.b16 %v2682
    %v3016 = vunpack.c.h.b16 %v2682
    %v3017 = vunpack.c.l.b16 %v2683
    %v3018 = vunpack.c.h.b16 %v2683
    %v3019 = vunpack.c.l.b16 %v2684
    %v3020 = vunpack.c.h.b16 %v2684
    %v3021 = vunpack.c.l.b16 %v2685
    %v3022 = vunpack.c.h.b16 %v2685
    %v3023 = vunpack.c.l.b16 %v2686
    %v3024 = vunpack.c.h.b16 %v2686
    %v3025 = vunpack.c.l.b16 %v2687
    %v3026 = vunpack.c.h.b16 %v2687
    %v3027 = vunpack.c.l.b16 %v2688
    %v3028 = vunpack.c.h.b16 %v2688
    %v3029 = vunpack.c.l.b16 %v2689
    %v3030 = vunpack.c.h.b16 %v2689
    %v3031 = vunpack.c.l.b16 %v2690
    %v3032 = vunpack.c.h.b16 %v2690
    %v3033 = vunpack.c.l.b16 %v2691
    %v3034 = vunpack.c.h.b16 %v2691
    %v3035 = vunpack.c.l.b16 %v2692
    %v3036 = vunpack.c.h.b16 %v2692
    %v3037 = vunpack.c.l.b16 %v2693
    %v3038 = vunpack.c.h.b16 %v2693
    %v3039 = vunpack.c.l.b16 %v2694
    %v3040 = vunpack.c.h.b16 %v2694
    %v3041 = vunpack.c.l.b16 %v2695
    %v3042 = vunpack.c.h.b16 %v2695
    %v3043 = vunpack.c.l.b16 %v2696
    %v3044 = vunpack.c.h.b16 %v2696
    %v3045 = vunpack.c.l.b16 %v2697
    %v3046 = vunpack.c.h.b16 %v2697
    %v3047 = vunpack.c.l.b16 %v2698
    %v3048 = vunpack.c.h.b16 %v2698
    %v3049 = vunpack.c.l.b16 %v2699
    %v3050 = vunpack.c.h.b16 %v2699
    %v3051 = vunpack.c.l.b16 %v2700
    %v3052 = vunpack.c.h.b16 %v2700
    %v3053 = vunpack.c.l.b16 %v2701
    %v3054 = vunpack.c.h.b16 %v2701
    %v3055 = vunpack.c.l.b16 %v2702
    %v3056 = vunpack.c.h.b16 %v2702
    %v3057 = vunpack.c.l.b16 %v2703
    %v3058 = vunpack.c.h.b16 %v2703
    %v3059 = vunpack.c.l.b16 %v2704
    %v3060 = vunpack.c.h.b16 %v2704
    %v3061 = vunpack.c.l.b16 %v2705
    %v3062 = vunpack.c.h.b16 %v2705
    %v3063 = vunpack.c.l.b16 %v2706
    %v3064 = vunpack.c.h.b16 %v2706
    %v3065 = vunpack.c.l.b16 %v2707
    %v3066 = vunpack.c.h.b16 %v2707
    %v3067 = vunpack.c.l.b16 %v2708
    %v3068 = vunpack.c.h.b16 %v2708
    %v3069 = vunpack.c.l.b16 %v2709
    %v3070 = vunpack.c.h.b16 %v2709
    %v3071 = vunpack.c.l.b16 %v2710
    %v3072 = vunpack.c.h.b16 %v2710
    %v3073 = vunpack.c.l.b16 %v2711
    %v3074 = vunpack.c.h.b16 %v2711
    %v3075 = vunpack.c.l.b16 %v2712
    %v3076 = vunpack.c.h.b16 %v2712
    %v3077 = vunpack.c.l.b16 %v2713
    %v3078 = vunpack.c.h.b16 %v2713
    %v3079 = vunpack.c.l.b16 %v2714
    %v3080 = vunpack.c.h.b16 %v2714
    %v3081 = vunpack.c.l.b16 %v2715
    %v3082 = vunpack.c.h.b16 %v2715
    %v3083 = vunpack.c.l.b16 %v2716
    %v3084 = vunpack.c.h.b16 %v2716
    %v3085 = vunpack.c.l.b16 %v2717
    %v3086 = vunpack.c.h.b16 %v2717
    %v3087 = vunpack.c.l.b16 %v2718
    %v3088 = vunpack.c.h.b16 %v2718
    %v3089 = vunpack.c.l.b16 %v2719
    %v3090 = vunpack.c.h.b16 %v2719
    %v3091 = vunpack.c.l.b16 %v2720
    %v3092 = vunpack.c.h.b16 %v2720
    %v3093 = vunpack.c.l.b16 %v2721
    %v3094 = vunpack.c.h.b16 %v2721
    %v3095 = vunpack.c.l.b16 %v2722
    %v3096 = vunpack.c.h.b16 %v2722
    %v3097 = vunpack.c.l.b16 %v2723
    %v3098 = vunpack.c.h.b16 %v2723
    %v3099 = vunpack.c.l.b16 %v2724
    %v3100 = vunpack.c.h.b16 %v2724
    %v3101 = vunpack.c.l.b16 %v2725
    %v3102 = vunpack.c.h.b16 %v2725
    %v3103 = vunpack.c.l.b16 %v2726
    %v3104 = vunpack.c.h.b16 %v2726
    %v3105 = vunpack.c.l.b16 %v2727
    %v3106 = vunpack.c.h.b16 %v2727
    %v3107 = vunpack.c.l.b16 %v2728
    %v3108 = vunpack.c.h.b16 %v2728
    %v3109 = vunpack.c.l.b16 %v2729
    %v3110 = vunpack.c.h.b16 %v2729
    %v3111 = vunpack.c.l.b16 %v2730
    %v3112 = vunpack.c.h.b16 %v2730
    %v3113 = vunpack.c.l.b16 %v2731
    %v3114 = vunpack.c.h.b16 %v2731
    %v3115 = vunpack.c.l.b16 %v2732
    %v3116 = vunpack.c.h.b16 %v2732
    %v3117 = vunpack.c.l.b16 %v2733
    %v3118 = vunpack.c.h.b16 %v2733
    %v3119 = vunpack.c.l.b16 %v2734
    %v3120 = vunpack.c.h.b16 %v2734
    %v3121 = vunpack.c.l.b16 %v2735
    %v3122 = vunpack.c.h.b16 %v2735
    %v3123 = vunpack.c.l.b16 %v2736
    %v3124 = vunpack.c.h.b16 %v2736
    %v3125 = vunpack.c.l.b16 %v2737
    %v3126 = vunpack.c.h.b16 %v2737
    %v3127 = vunpack.c.l.b16 %v2738
    %v3128 = vunpack.c.h.b16 %v2738
    %v3129 = vunpack.c.l.b16 %v2739
    %v3130 = vunpack.c.h.b16 %v2739
    %v3131 = vunpack.c.l.b16 %v2740
    %v3132 = vunpack.c.h.b16 %v2740
    %v3133 = vunpack.c.l.b16 %v2741
    %v3134 = vunpack.c.h.b16 %v2741
    %v3135 = vunpack.c.l.b16 %v2742
    %v3136 = vunpack.c.h.b16 %v2742
    %v3137 = vunpack.c.l.b16 %v2743
    %v3138 = vunpack.c.h.b16 %v2743
    %v3139 = vunpack.c.l.b16 %v2744
    %v3140 = vunpack.c.h.b16 %v2744
    %v3141 = vpack.c.b16 %v2887, %v2885
    %v3142 = vpack.c.b16 %v2888, %v2886
    %v3143 = vpack.c.b16 %v2891, %v2889
    %v3144 = vpack.c.b16 %v2892, %v2890
    %v3145 = vpack.c.b16 %v2895, %v2893
    %v3146 = vpack.c.b16 %v2896, %v2894
    %v3147 = vpack.c.b16 %v2899, %v2897
    %v3148 = vpack.c.b16 %v2900, %v2898
    %v3149 = vpack.c.b16 %v2903, %v2901
    %v3150 = vpack.c.b16 %v2904, %v2902
    %v3151 = vpack.c.b16 %v2907, %v2905
    %v3152 = vpack.c.b16 %v2908, %v2906
    %v3153 = vpack.c.b16 %v2911, %v2909
    %v3154 = vpack.c.b16 %v2912, %v2910
    %v3155 = vpack.c.b16 %v2915, %v2913
    %v3156 = vpack.c.b16 %v2916, %v2914
    %v3157 = vpack.c.b16 %v2919, %v2917
    %v3158 = vpack.c.b16 %v2920, %v2918
    %v3159 = vpack.c.b16 %v2923, %v2921
    %v3160 = vpack.c.b16 %v2924, %v2922
    %v3161 = vpack.c.b16 %v2927, %v2925
    %v3162 = vpack.c.b16 %v2928, %v2926
    %v3163 = vpack.c.b16 %v2931, %v2929
    %v3164 = vpack.c.b16 %v2932, %v2930
    %v3165 = vpack.c.b16 %v2935, %v2933
    %v3166 = vpack.c.b16 %v2936, %v2934
    %v3167 = vpack.c.b16 %v2939, %v2937
    %v3168 = vpack.c.b16 %v2940, %v2938
    %v3169 = vpack.c.b16 %v2943, %v2941
    %v3170 = vpack.c.b16 %v2944, %v2942
    %v3171 = vpack.c.b16 %v2947, %v2945
    %v3172 = vpack.c.b16 %v2948, %v2946
    %v3173 = vpack.c.b16 %v2951, %v2949
    %v3174 = vpack.c.b16 %v2952, %v2950
    %v3175 = vpack.c.b16 %v2955, %v2953
    %v3176 = vpack.c.b16 %v2956, %v2954
    %v3177 = vpack.c.b16 %v2959, %v2957
    %v3178 = vpack.c.b16 %v2960, %v2958
    %v3179 = vpack.c.b16 %v2963, %v2961
    %v3180 = vpack.c.b16 %v2964, %v2962
    %v3181 = vpack.c.b16 %v2967, %v2965
    %v3182 = vpack.c.b16 %v2968, %v2966
    %v3183 = vpack.c.b16 %v2971, %v2969
    %v3184 = vpack.c.b16 %v2972, %v2970
    %v3185 = vpack.c.b16 %v2975, %v2973
    %v3186 = vpack.c.b16 %v2976, %v2974
    %v3187 = vpack.c.b16 %v2979, %v2977
    %v3188 = vpack.c.b16 %v2980, %v2978
    %v3189 = vpack.c.b16 %v2983, %v2981
    %v3190 = vpack.c.b16 %v2984, %v2982
    %v3191 = vpack.c.b16 %v2987, %v2985
    %v3192 = vpack.c.b16 %v2988, %v2986
    %v3193 = vpack.c.b16 %v2991, %v2989
    %v3194 = vpack.c.b16 %v2992, %v2990
    %v3195 = vpack.c.b16 %v2995, %v2993
    %v3196 = vpack.c.b16 %v2996, %v2994
    %v3197 = vpack.c.b16 %v2999, %v2997
    %v3198 = vpack.c.b16 %v3000, %v2998
    %v3199 = vpack.c.b16 %v3003, %v3001
    %v3200 = vpack.c.b16 %v3004, %v3002
    %v3201 = vpack.c.b16 %v3007, %v3005
    %v3202 = vpack.c.b16 %v3008, %v3006
    %v3203 = vpack.c.b16 %v3011, %v3009
    %v3204 = vpack.c.b16 %v3012, %v3010
    %v3205 = vpack.c.b16 %v3015, %v3013
    %v3206 = vpack.c.b16 %v3016, %v3014
    %v3207 = vpack.c.b16 %v3019, %v3017
    %v3208 = vpack.c.b16 %v3020, %v3018
    %v3209 = vpack.c.b16 %v3023, %v3021
    %v3210 = vpack.c.b16 %v3024, %v3022
    %v3211 = vpack.c.b16 %v3027, %v3025
    %v3212 = vpack.c.b16 %v3028, %v3026
    %v3213 = vpack.c.b16 %v3031, %v3029
    %v3214 = vpack.c.b16 %v3032, %v3030
    %v3215 = vpack.c.b16 %v3035, %v3033
    %v3216 = vpack.c.b16 %v3036, %v3034
    %v3217 = vpack.c.b16 %v3039, %v3037
    %v3218 = vpack.c.b16 %v3040, %v3038
    %v3219 = vpack.c.b16 %v3043, %v3041
    %v3220 = vpack.c.b16 %v3044, %v3042
    %v3221 = vpack.c.b16 %v3047, %v3045
    %v3222 = vpack.c.b16 %v3048, %v3046
    %v3223 = vpack.c.b16 %v3051, %v3049
    %v3224 = vpack.c.b16 %v3052, %v3050
    %v3225 = vpack.c.b16 %v3055, %v3053
    %v3226 = vpack.c.b16 %v3056, %v3054
    %v3227 = vpack.c.b16 %v3059, %v3057
    %v3228 = vpack.c.b16 %v3060, %v3058
    %v3229 = vpack.c.b16 %v3063, %v3061
    %v3230 = vpack.c.b16 %v3064, %v3062
    %v3231 = vpack.c.b16 %v3067, %v3065
    %v3232 = vpack.c.b16 %v3068, %v3066
    %v3233 = vpack.c.b16 %v3071, %v3069
    %v3234 = vpack.c.b16 %v3072, %v3070
    %v3235 = vpack.c.b16 %v3075, %v3073
    %v3236 = vpack.c.b16 %v3076, %v3074
    %v3237 = vpack.c.b16 %v3079, %v3077
    %v3238 = vpack.c.b16 %v3080, %v3078
    %v3239 = vpack.c.b16 %v3083, %v3081
    %v3240 = vpack.c.b16 %v3084, %v3082
    %v3241 = vpack.c.b16 %v3087, %v3085
    %v3242 = vpack.c.b16 %v3088, %v3086
    %v3243 = vpack.c.b16 %v3091, %v3089
    %v3244 = vpack.c.b16 %v3092, %v3090
    %v3245 = vpack.c.b16 %v3095, %v3093
    %v3246 = vpack.c.b16 %v3096, %v3094
    %v3247 = vpack.c.b16 %v3099, %v3097
    %v3248 = vpack.c.b16 %v3100, %v3098
    %v3249 = vpack.c.b16 %v3103, %v3101
    %v3250 = vpack.c.b16 %v3104, %v3102
    %v3251 = vpack.c.b16 %v3107, %v3105
    %v3252 = vpack.c.b16 %v3108, %v3106
    %v3253 = vpack.c.b16 %v3111, %v3109
    %v3254 = vpack.c.b16 %v3112, %v3110
    %v3255 = vpack.c.b16 %v3115, %v3113
    %v3256 = vpack.c.b16 %v3116, %v3114
    %v3257 = vpack.c.b16 %v3119, %v3117
    %v3258 = vpack.c.b16 %v3120, %v3118
    %v3259 = vpack.c.b16 %v3123, %v3121
    %v3260 = vpack.c.b16 %v3124, %v3122
    %v3261 = vpack.c.b16 %v3127, %v3125
    %v3262 = vpack.c.b16 %v3128, %v3126
    %v3263 = vpack.c.b16 %v3131, %v3129
    %v3264 = vpack.c.b16 %v3132, %v3130
    %v3265 = vpack.c.b16 %v3135, %v3133
    %v3266 = vpack.c.b16 %v3136, %v3134
    %v3267 = vpack.c.b16 %v3139, %v3137
    %v3268 = vpack.c.b16 %v3140, %v3138
    %3397 = vmatprep.subr.bf16.mxu0 %v3156
    %3398 = vmatpush1.bf16.msra.mxu0 %v3155
    %3399 = vmatprep.subr.bf16.mxu0 %v3154
    %3400 = vmatpush1.bf16.msra.mxu0 %v3153
    %3401 = vmatprep.subr.bf16.mxu0 %v3152
    %3402 = vmatpush1.bf16.msra.mxu0 %v3151
    %3403 = vmatprep.subr.bf16.mxu0 %v3150
    %3404 = vmatpush1.bf16.msra.mxu0 %v3149
    %3405 = vmatprep.subr.bf16.mxu0 %v3148
    %3406 = vmatpush1.bf16.msra.mxu0 %v3147
    %3407 = vmatprep.subr.bf16.mxu0 %v3146
    %3408 = vmatpush1.bf16.msra.mxu0 %v3145
    %3409 = vmatprep.subr.bf16.mxu0 %v3144
    %3410 = vmatpush1.bf16.msra.mxu0 %v3143
    %3411 = vmatprep.subr.bf16.mxu0 %v3142
    %3412 = vmatpush1.bf16.msra.mxu0 %v3141
    %3413 = vmatprep.subr.bf16.mxu0 %v3172
    %3414 = vmatpush2.bf16.msra.mxu0 %v3171
    %3415 = vmatprep.subr.bf16.mxu0 %v3170
    %3416 = vmatpush2.bf16.msra.mxu0 %v3169
    %3417 = vmatprep.subr.bf16.mxu0 %v3168
    %3418 = vmatpush2.bf16.msra.mxu0 %v3167
    %3419 = vmatprep.subr.bf16.mxu0 %v3166
    %3420 = vmatpush2.bf16.msra.mxu0 %v3165
    %3421 = vmatprep.subr.bf16.mxu0 %v3164
    %3422 = vmatpush2.bf16.msra.mxu0 %v3163
    %3423 = vmatprep.subr.bf16.mxu0 %v3162
    %3424 = vmatpush2.bf16.msra.mxu0 %v3161
    %3425 = vmatprep.subr.bf16.mxu0 %v3160
    %3426 = vmatpush2.bf16.msra.mxu0 %v3159
    %3427 = vmatprep.subr.bf16.mxu0 %v3158
    %3428 = vmatpush2.bf16.msra.mxu0 %v3157
    %3429 = vmatprep.mubr.bf16.mxu0 %v2610
    %3430 = vmatmul.mubr.bf16.gmra.mxu0 %v2609
    %v3431 = vpop.f32.mrf.mxu0
    %v3432 = vadd.f32 %v2750, %v3431
    %v3433 = vpop.f32.mrf.mxu0
    %v3434 = vadd.f32 %v2754, %v3433
    %v3435 = vpop.f32.mrf.mxu0
    %v3436 = vpop.f32.mrf.mxu0
    %3437 = vdwg.mxu0
    %3438 = vmatprep.subr.bf16.mxu0 %v3188
    %3439 = vmatpush1.bf16.msra.mxu0 %v3187
    %3440 = vmatprep.subr.bf16.mxu0 %v3186
    %3441 = vmatpush1.bf16.msra.mxu0 %v3185
    %3442 = vmatprep.subr.bf16.mxu0 %v3184
    %3443 = vmatpush1.bf16.msra.mxu0 %v3183
    %3444 = vmatprep.subr.bf16.mxu0 %v3182
    %3445 = vmatpush1.bf16.msra.mxu0 %v3181
    %3446 = vmatprep.subr.bf16.mxu0 %v3180
    %3447 = vmatpush1.bf16.msra.mxu0 %v3179
    %3448 = vmatprep.subr.bf16.mxu0 %v3178
    %3449 = vmatpush1.bf16.msra.mxu0 %v3177
    %3450 = vmatprep.subr.bf16.mxu0 %v3176
    %3451 = vmatpush1.bf16.msra.mxu0 %v3175
    %3452 = vmatprep.subr.bf16.mxu0 %v3174
    %3453 = vmatpush1.bf16.msra.mxu0 %v3173
    %3454 = vmatprep.subr.bf16.mxu0 %v3204
    %3455 = vmatpush2.bf16.msra.mxu0 %v3203
    %3456 = vmatprep.subr.bf16.mxu0 %v3202
    %3457 = vmatpush2.bf16.msra.mxu0 %v3201
    %3458 = vmatprep.subr.bf16.mxu0 %v3200
    %3459 = vmatpush2.bf16.msra.mxu0 %v3199
    %3460 = vmatprep.subr.bf16.mxu0 %v3198
    %3461 = vmatpush2.bf16.msra.mxu0 %v3197
    %3462 = vmatprep.subr.bf16.mxu0 %v3196
    %3463 = vmatpush2.bf16.msra.mxu0 %v3195
    %3464 = vmatprep.subr.bf16.mxu0 %v3194
    %3465 = vmatpush2.bf16.msra.mxu0 %v3193
    %3466 = vmatprep.subr.bf16.mxu0 %v3192
    %3467 = vmatpush2.bf16.msra.mxu0 %v3191
    %3468 = vmatprep.subr.bf16.mxu0 %v3190
    %3469 = vmatpush2.bf16.msra.mxu0 %v3189
    %3470 = vmatprep.mubr.bf16.mxu0 %v2612
    %3471 = vmatmul.mubr.bf16.gmra.mxu0 %v2611
    %v3472 = vpop.f32.mrf.mxu0
    %v3473 = vadd.f32 %v3432, %v3472
    %v3474 = vpop.f32.mrf.mxu0
    %v3475 = vadd.f32 %v3434, %v3474
    %v3476 = vpop.f32.mrf.mxu0
    %v3477 = vpop.f32.mrf.mxu0
    %3478 = vdwg.mxu0
    %3479 = vmatprep.subr.bf16.mxu0 %v3220
    %3480 = vmatpush1.bf16.msra.mxu0 %v3219
    %3481 = vmatprep.subr.bf16.mxu0 %v3218
    %3482 = vmatpush1.bf16.msra.mxu0 %v3217
    %3483 = vmatprep.subr.bf16.mxu0 %v3216
    %3484 = vmatpush1.bf16.msra.mxu0 %v3215
    %3485 = vmatprep.subr.bf16.mxu0 %v3214
    %3486 = vmatpush1.bf16.msra.mxu0 %v3213
    %3487 = vmatprep.subr.bf16.mxu0 %v3212
    %3488 = vmatpush1.bf16.msra.mxu0 %v3211
    %3489 = vmatprep.subr.bf16.mxu0 %v3210
    %3490 = vmatpush1.bf16.msra.mxu0 %v3209
    %3491 = vmatprep.subr.bf16.mxu0 %v3208
    %3492 = vmatpush1.bf16.msra.mxu0 %v3207
    %3493 = vmatprep.subr.bf16.mxu0 %v3206
    %3494 = vmatpush1.bf16.msra.mxu0 %v3205
    %3495 = vmatprep.subr.bf16.mxu0 %v3236
    %3496 = vmatpush2.bf16.msra.mxu0 %v3235
    %3497 = vmatprep.subr.bf16.mxu0 %v3234
    %3498 = vmatpush2.bf16.msra.mxu0 %v3233
    %3499 = vmatprep.subr.bf16.mxu0 %v3232
    %3500 = vmatpush2.bf16.msra.mxu0 %v3231
    %3501 = vmatprep.subr.bf16.mxu0 %v3230
    %3502 = vmatpush2.bf16.msra.mxu0 %v3229
    %3503 = vmatprep.subr.bf16.mxu0 %v3228
    %3504 = vmatpush2.bf16.msra.mxu0 %v3227
    %3505 = vmatprep.subr.bf16.mxu0 %v3226
    %3506 = vmatpush2.bf16.msra.mxu0 %v3225
    %3507 = vmatprep.subr.bf16.mxu0 %v3224
    %3508 = vmatpush2.bf16.msra.mxu0 %v3223
    %3509 = vmatprep.subr.bf16.mxu0 %v3222
    %3510 = vmatpush2.bf16.msra.mxu0 %v3221
    %3511 = vmatprep.mubr.bf16.mxu0 %v2614
    %3512 = vmatmul.mubr.bf16.gmra.mxu0 %v2613
    %v3513 = vpop.f32.mrf.mxu0
    %v3514 = vadd.f32 %v3473, %v3513
    %v3515 = vpop.f32.mrf.mxu0
    %v3516 = vadd.f32 %v3475, %v3515
    %v3517 = vpop.f32.mrf.mxu0
    %v3518 = vpop.f32.mrf.mxu0
    %3519 = vdwg.mxu0
    %3520 = vmatprep.subr.bf16.mxu0 %v3252
    %3521 = vmatpush1.bf16.msra.mxu0 %v3251
    %3522 = vmatprep.subr.bf16.mxu0 %v3250
    %3523 = vmatpush1.bf16.msra.mxu0 %v3249
    %3524 = vmatprep.subr.bf16.mxu0 %v3248
    %3525 = vmatpush1.bf16.msra.mxu0 %v3247
    %3526 = vmatprep.subr.bf16.mxu0 %v3246
    %3527 = vmatpush1.bf16.msra.mxu0 %v3245
    %3528 = vmatprep.subr.bf16.mxu0 %v3244
    %3529 = vmatpush1.bf16.msra.mxu0 %v3243
    %3530 = vmatprep.subr.bf16.mxu0 %v3242
    %3531 = vmatpush1.bf16.msra.mxu0 %v3241
    %3532 = vmatprep.subr.bf16.mxu0 %v3240
    %3533 = vmatpush1.bf16.msra.mxu0 %v3239
    %3534 = vmatprep.subr.bf16.mxu0 %v3238
    %3535 = vmatpush1.bf16.msra.mxu0 %v3237
    %3536 = vmatprep.subr.bf16.mxu0 %v3268
    %3537 = vmatpush2.bf16.msra.mxu0 %v3267
    %3538 = vmatprep.subr.bf16.mxu0 %v3266
    %3539 = vmatpush2.bf16.msra.mxu0 %v3265
    %3540 = vmatprep.subr.bf16.mxu0 %v3264
    %3541 = vmatpush2.bf16.msra.mxu0 %v3263
    %3542 = vmatprep.subr.bf16.mxu0 %v3262
    %3543 = vmatpush2.bf16.msra.mxu0 %v3261
    %3544 = vmatprep.subr.bf16.mxu0 %v3260
    %3545 = vmatpush2.bf16.msra.mxu0 %v3259
    %3546 = vmatprep.subr.bf16.mxu0 %v3258
    %3547 = vmatpush2.bf16.msra.mxu0 %v3257
    %3548 = vmatprep.subr.bf16.mxu0 %v3256
    %3549 = vmatpush2.bf16.msra.mxu0 %v3255
    %3550 = vmatprep.subr.bf16.mxu0 %v3254
    %3551 = vmatpush2.bf16.msra.mxu0 %v3253
    %3552 = vmatprep.mubr.bf16.mxu0 %v2616
    %3553 = vmatmul.mubr.bf16.gmra.mxu0 %v2615
    %v3554 = vpop.f32.mrf.mxu0
    %v3555 = vadd.f32 %v3514, %v3554
    %v3556 = vpop.f32.mrf.mxu0
    %v3557 = vadd.f32 %v3516, %v3556
    %v3558 = vpop.f32.mrf.mxu0
    %v3559 = vpop.f32.mrf.mxu0
    %3560 = vdwg.mxu0
    %v3561 = vadd.f32 %v3555, %v111
    %v3562 = vadd.f32 %v3557, %v112
    %3563 = vst [vmem:[#allocation13] sm:$0xff] %v3561
    %3564 = vst [vmem:[#allocation13 + $0x8] sm:$0xff] %v3562
    // Predicated region
    $region62: #{tpu_custom_call.1} parent=1 // pred_check
      _
    $region63: #{tpu_custom_call.1} parent=1 // pred_check_branch
      %3566 = sbr.rel (0) target = $region65
    $region64: #{tpu_custom_call.1} parent=1 // pred_region
      %s3568 = ssub.s32 256, 256
      %3569 = vsyncadd [#allocation4], %s3568
      %s3571 = sshll.u32 [#allocation13], 4
      %s3572 = int_to_ptr.vmem [resolvable:$true] %s3571
      %3574 = dma.vmem_to_hbm [thread:$0]  %s3572, 256, %s9, [#allocation4]
    $region65: #{tpu_custom_call.1} parent=1 // pred_fallthru
      _
    // Predicated region
    $region66: #{tpu_custom_call.1} parent=1 // pred_check
      _
    $region67: #{tpu_custom_call.1} parent=1 // pred_check_branch
      %3576 = sbr.rel (0) target = $region69
    $region68: #{tpu_custom_call.1} parent=1 // pred_region
      %3577 = dma.done [#allocation4], 256
    $region69: #{tpu_custom_call.1} parent=1 // pred_fallthru
      _
    %3578 = vsyncpa [#allocation3], 1
    %3579 = vsyncpa [#allocation6], 1
    %3580 = vsyncpa [#allocation9], 1
    %3581 = vsyncpa [#allocation12], 1
    %3582 = vsyncpa [#allocation4], 1

// kernel: tpu_custom_call.1
$region0: #{tpu_custom_call.1}
  #allocation0 [shape = 'u32[]', space=smem, size = 0x4, offset = 0x4, fixed_abs, tag = 'smem constant byte address 0x4 - core index']
  #allocation1 [shape = 'u32[144,128]{1,0:T(1,128)}', space=vmem, size = 0x12000, scoped, tag = 'internal scratch']
  %s0 = inlined_call_operand.hbm [shape: f32[8,256], index: 0, kind: input, shape index: {}]
  %s1 = inlined_call_operand.hbm [shape: bf16[256,1024], index: 1, kind: input, shape index: {}]
  %s2 = inlined_call_operand.hbm [shape: bf16[256,256], index: 2, kind: input, shape index: {}]
  %s3 = inlined_call_operand.vmem [shape: f32[1,256], index: 3, kind: input, shape index: {}]
  %s4 = inlined_call_operand.hbm [shape: f32[1,256], index: 4, kind: input, shape index: {}]
  %s5 = inlined_call_operand.hbm [shape: bf16[256,1024], index: 5, kind: input, shape index: {}]
  %s6 = inlined_call_operand.vmem [shape: f32[1,1024], index: 6, kind: input, shape index: {}]
  %s7 = inlined_call_operand.hbm [shape: bf16[1024,256], index: 7, kind: input, shape index: {}]
  %s8 = inlined_call_operand.vmem [shape: f32[1,256], index: 8, kind: input, shape index: {}]
  %s9 = inlined_call_operand.hbm [shape: f32[8,256], index: 9, kind: output, shape index: {}]
  %s10 = sld [smem:[#allocation0]]
  $region70: #{tpu_custom_call.1} parent=0
    _
  %s12 = ssub.s32 1, %s10
  %s13 = scalar_select 0, %s12, %s10
  $region1: #{tpu_custom_call.1} parent=0
    #allocation2 [shape = 'u8[8192]{0}', space=vmem, size = 0x2000, scoped, tag = 'input window, operand 0, single buffered']
    #allocation3 [shape = 's32[1]{0}', space=sflag, size = 0x4, scoped, tag = 'scoped memory for tpu_custom_call.1']
    #allocation4 [shape = 's32[1]{0}', space=sflag, size = 0x4, scoped, tag = 'scoped memory for tpu_custom_call.1']
    #allocation5 [shape = 'u8[524288]{0}', space=vmem, size = 0x80000, scoped, tag = 'input window, operand 1, single buffered']
    #allocation6 [shape = 's32[1]{0}', space=sflag, size = 0x4, scoped, tag = 'scoped memory for tpu_custom_call.1']
    #allocation7 [shape = 'u8[131072]{0}', space=vmem, size = 0x20000, scoped, tag = 'input window, operand 2, single buffered']
    #allocation8 [shape = 'u8[1024]{0}', space=vmem, size = 0x400, scoped, tag = 'input window, operand 4, single buffered']
    #allocation9 [shape = 's32[1]{0}', space=sflag, size = 0x4, scoped, tag = 'scoped memory for tpu_custom_call.1']
    #allocation10 [shape = 'u8[524288]{0}', space=vmem, size = 0x80000, scoped, tag = 'input window, operand 5, single buffered']
    #allocation11 [shape = 'u8[524288]{0}', space=vmem, size = 0x80000, scoped, tag = 'input window, operand 7, single buffered']
    #allocation12 [shape = 's32[1]{0}', space=sflag, size = 0x4, scoped, tag = 'scoped memory for tpu_custom_call.1']
    #allocation13 [shape = 'u8[8192]{0}', space=vmem, size = 0x2000, scoped, tag = 'output window, operand 0, single buffered']
    %14 = vsyncpa [#allocation3], 0
    %15 = vsyncpa [#allocation6], 0
    %16 = vsyncpa [#allocation9], 0
    %17 = vsyncpa [#allocation12], 0
    %18 = vsyncpa [#allocation4], 0
    // Predicated region
    $region2: #{tpu_custom_call.1} parent=1 // pred_check
      _
    $region3: #{tpu_custom_call.1} parent=1 // pred_check_branch
      %20 = sbr.rel (0) target = $region5
    $region4: #{tpu_custom_call.1} parent=1 // pred_region
      %s22 = ssub.s32 256, 256
      %23 = vsyncadd [#allocation3], %s22
      %s25 = sshll.u32 [#allocation2], 4
      %s26 = int_to_ptr.vmem [resolvable:$true] %s25
      %28 = dma.hbm_to_vmem [thread:$0]  %s0, 256, %s26, [#allocation3]
    $region5: #{tpu_custom_call.1} parent=1 // pred_fallthru
      _
    // Predicated region
    $region6: #{tpu_custom_call.1} parent=1 // pred_check
      _
    $region7: #{tpu_custom_call.1} parent=1 // pred_check_branch
      %30 = sbr.rel (0) target = $region9
    $region8: #{tpu_custom_call.1} parent=1 // pred_region
      %s32 = ssub.s32 16384, 16384
      %33 = vsyncadd [#allocation6], %s32
      %s34 = sshll.u32 [#allocation5], 4
      %s35 = int_to_ptr.vmem [resolvable:$true] %s34
      %40 = dma.hbm_to_vmem [thread:$0]  %s1, 16384, %s35, [#allocation6], 512, 512, 32
    $region9: #{tpu_custom_call.1} parent=1 // pred_fallthru
      _
    // Predicated region
    $region10: #{tpu_custom_call.1} parent=1 // pred_check
      _
    $region11: #{tpu_custom_call.1} parent=1 // pred_check_branch
      %42 = sbr.rel (0) target = $region13
    $region12: #{tpu_custom_call.1} parent=1 // pred_region
      %s44 = ssub.s32 4096, 4096
      %45 = vsyncadd [#allocation6], %s44
      %s46 = sshll.u32 [#allocation7], 4
      %s47 = int_to_ptr.vmem [resolvable:$true] %s46
      %52 = dma.hbm_to_vmem [thread:$0]  %s2, 4096, %s47, [#allocation6], 128, 128, 8
    $region13: #{tpu_custom_call.1} parent=1 // pred_fallthru
      _
    // Predicated region
    $region14: #{tpu_custom_call.1} parent=1 // pred_check
      _
    $region15: #{tpu_custom_call.1} parent=1 // pred_check_branch
      %54 = sbr.rel (0) target = $region17
    $region16: #{tpu_custom_call.1} parent=1 // pred_region
      _
    $region17: #{tpu_custom_call.1} parent=1 // pred_fallthru
      _
    // Predicated region
    $region18: #{tpu_custom_call.1} parent=1 // pred_check
      _
    $region19: #{tpu_custom_call.1} parent=1 // pred_check_branch
      %56 = sbr.rel (0) target = $region21
    $region20: #{tpu_custom_call.1} parent=1 // pred_region
      %s58 = ssub.s32 32, 32
      %59 = vsyncadd [#allocation9], %s58
      %s61 = sshll.u32 [#allocation8], 4
      %s62 = int_to_ptr.vmem [resolvable:$true] %s61
      %64 = dma.hbm_to_vmem [thread:$0]  %s4, 32, %s62, [#allocation9]
    $region21: #{tpu_custom_call.1} parent=1 // pred_fallthru
      _
    // Predicated region
    $region22: #{tpu_custom_call.1} parent=1 // pred_check
      _
    $region23: #{tpu_custom_call.1} parent=1 // pred_check_branch
      %66 = sbr.rel (0) target = $region25
    $region24: #{tpu_custom_call.1} parent=1 // pred_region
      %s68 = ssub.s32 16384, 16384
      %69 = vsyncadd [#allocation9], %s68
      %s70 = sshll.u32 [#allocation10], 4
      %s71 = int_to_ptr.vmem [resolvable:$true] %s70
      %76 = dma.hbm_to_vmem [thread:$0]  %s5, 16384, %s71, [#allocation9], 512, 512, 32
    $region25: #{tpu_custom_call.1} parent=1 // pred_fallthru
      _
    // Predicated region
    $region26: #{tpu_custom_call.1} parent=1 // pred_check
      _
    $region27: #{tpu_custom_call.1} parent=1 // pred_check_branch
      %78 = sbr.rel (0) target = $region29
    $region28: #{tpu_custom_call.1} parent=1 // pred_region
      _
    $region29: #{tpu_custom_call.1} parent=1 // pred_fallthru
      _
    // Predicated region
    $region30: #{tpu_custom_call.1} parent=1 // pred_check
      _
    $region31: #{tpu_custom_call.1} parent=1 // pred_check_branch
      %80 = sbr.rel (0) target = $region33
    $region32: #{tpu_custom_call.1} parent=1 // pred_region
      %s82 = ssub.s32 16384, 16384
      %83 = vsyncadd [#allocation12], %s82
      %s84 = sshll.u32 [#allocation11], 4
      %s85 = int_to_ptr.vmem [resolvable:$true] %s84
      %90 = dma.hbm_to_vmem [thread:$0]  %s7, 16384, %s85, [#allocation12], 128, 128, 8
    $region33: #{tpu_custom_call.1} parent=1 // pred_fallthru
      _
    // Predicated region
    $region34: #{tpu_custom_call.1} parent=1 // pred_check
      _
    $region35: #{tpu_custom_call.1} parent=1 // pred_check_branch
      %92 = sbr.rel (0) target = $region37
    $region36: #{tpu_custom_call.1} parent=1 // pred_region
      _
    $region37: #{tpu_custom_call.1} parent=1 // pred_fallthru
      _
    // Predicated region
    $region38: #{tpu_custom_call.1} parent=1 // pred_check
      _
    $region39: #{tpu_custom_call.1} parent=1 // pred_check_branch
      %94 = sbr.rel (0) target = $region41
    $region40: #{tpu_custom_call.1} parent=1 // pred_region
      %95 = dma.done [#allocation3], 256
    $region41: #{tpu_custom_call.1} parent=1 // pred_fallthru
      _
    // Predicated region
    $region42: #{tpu_custom_call.1} parent=1 // pred_check
      _
    $region43: #{tpu_custom_call.1} parent=1 // pred_check_branch
      %97 = sbr.rel (0) target = $region45
    $region44: #{tpu_custom_call.1} parent=1 // pred_region
      %98 = dma.done [#allocation6], 16384
    $region45: #{tpu_custom_call.1} parent=1 // pred_fallthru
      _
    // Predicated region
    $region46: #{tpu_custom_call.1} parent=1 // pred_check
      _
    $region47: #{tpu_custom_call.1} parent=1 // pred_check_branch
      %100 = sbr.rel (0) target = $region49
    $region48: #{tpu_custom_call.1} parent=1 // pred_region
      %101 = dma.done [#allocation6], 4096
    $region49: #{tpu_custom_call.1} parent=1 // pred_fallthru
      _
    // Predicated region
    $region50: #{tpu_custom_call.1} parent=1 // pred_check
      _
    $region51: #{tpu_custom_call.1} parent=1 // pred_check_branch
      %103 = sbr.rel (0) target = $region53
    $region52: #{tpu_custom_call.1} parent=1 // pred_region
      %104 = dma.done [#allocation9], 32
    $region53: #{tpu_custom_call.1} parent=1 // pred_fallthru
      _
    // Predicated region
    $region54: #{tpu_custom_call.1} parent=1 // pred_check
      _
    $region55: #{tpu_custom_call.1} parent=1 // pred_check_branch
      %106 = sbr.rel (0) target = $region57
    $region56: #{tpu_custom_call.1} parent=1 // pred_region
      %107 = dma.done [#allocation9], 16384
    $region57: #{tpu_custom_call.1} parent=1 // pred_fallthru
      _
    // Predicated region
    $region58: #{tpu_custom_call.1} parent=1 // pred_check
      _
    $region59: #{tpu_custom_call.1} parent=1 // pred_check_branch
      %109 = sbr.rel (0) target = $region61
    $region60: #{tpu_custom_call.1} parent=1 // pred_region
      %110 = dma.done [#allocation12], 16384
    $region61: #{tpu_custom_call.1} parent=1 // pred_fallthru
      _
    %v111 = vld [vmem:[#allocation2] sm:$0xff]
    %v112 = vld [vmem:[#allocation2 + $0x8] sm:$0xff]
    %v113 = vpack.c.bf16 %v111, %v111
    %v114 = vpack.c.bf16 %v112, %v112
    %v115 = vld [vmem:[#allocation5] sm:$0xff]
    %v116 = vld [vmem:[#allocation5 + $0x8] sm:$0xff]
    %v117 = vld [vmem:[#allocation5 + $0x10] sm:$0xff]
    %v118 = vld [vmem:[#allocation5 + $0x18] sm:$0xff]
    %v119 = vld [vmem:[#allocation5 + $0x20] sm:$0xff]
    %v120 = vld [vmem:[#allocation5 + $0x28] sm:$0xff]
    %v121 = vld [vmem:[#allocation5 + $0x30] sm:$0xff]
    %v122 = vld [vmem:[#allocation5 + $0x38] sm:$0xff]
    %v123 = vld [vmem:[#allocation5 + $0x40] sm:$0xff]
    %v124 = vld [vmem:[#allocation5 + $0x48] sm:$0xff]
    %v125 = vld [vmem:[#allocation5 + $0x50] sm:$0xff]
    %v126 = vld [vmem:[#allocation5 + $0x58] sm:$0xff]
    %v127 = vld [vmem:[#allocation5 + $0x60] sm:$0xff]
    %v128 = vld [vmem:[#allocation5 + $0x68] sm:$0xff]
    %v129 = vld [vmem:[#allocation5 + $0x70] sm:$0xff]
    %v130 = vld [vmem:[#allocation5 + $0x78] sm:$0xff]
    %v131 = vld [vmem:[#allocation5 + $0x80] sm:$0xff]
    %v132 = vld [vmem:[#allocation5 + $0x88] sm:$0xff]
    %v133 = vld [vmem:[#allocation5 + $0x90] sm:$0xff]
    %v134 = vld [vmem:[#allocation5 + $0x98] sm:$0xff]
    %v135 = vld [vmem:[#allocation5 + $0xa0] sm:$0xff]
    %v136 = vld [vmem:[#allocation5 + $0xa8] sm:$0xff]
    %v137 = vld [vmem:[#allocation5 + $0xb0] sm:$0xff]
    %v138 = vld [vmem:[#allocation5 + $0xb8] sm:$0xff]
    %v139 = vld [vmem:[#allocation5 + $0xc0] sm:$0xff]
    %v140 = vld [vmem:[#allocation5 + $0xc8] sm:$0xff]
    %v141 = vld [vmem:[#allocation5 + $0xd0] sm:$0xff]
    %v142 = vld [vmem:[#allocation5 + $0xd8] sm:$0xff]
    %v143 = vld [vmem:[#allocation5 + $0xe0] sm:$0xff]
    %v144 = vld [vmem:[#allocation5 + $0xe8] sm:$0xff]
    %v145 = vld [vmem:[#allocation5 + $0xf0] sm:$0xff]
    %v146 = vld [vmem:[#allocation5 + $0xf8] sm:$0xff]
    %v147 = vld [vmem:[#allocation5 + $0x100] sm:$0xff]
    %v148 = vld [vmem:[#allocation5 + $0x108] sm:$0xff]
    %v149 = vld [vmem:[#allocation5 + $0x110] sm:$0xff]
    %v150 = vld [vmem:[#allocation5 + $0x118] sm:$0xff]
    %v151 = vld [vmem:[#allocation5 + $0x120] sm:$0xff]
    %v152 = vld [vmem:[#allocation5 + $0x128] sm:$0xff]
    %v153 = vld [vmem:[#allocation5 + $0x130] sm:$0xff]
    %v154 = vld [vmem:[#allocation5 + $0x138] sm:$0xff]
    %v155 = vld [vmem:[#allocation5 + $0x140] sm:$0xff]
    %v156 = vld [vmem:[#allocation5 + $0x148] sm:$0xff]
    %v157 = vld [vmem:[#allocation5 + $0x150] sm:$0xff]
    %v158 = vld [vmem:[#allocation5 + $0x158] sm:$0xff]
    %v159 = vld [vmem:[#allocation5 + $0x160] sm:$0xff]
    %v160 = vld [vmem:[#allocation5 + $0x168] sm:$0xff]
    %v161 = vld [vmem:[#allocation5 + $0x170] sm:$0xff]
    %v162 = vld [vmem:[#allocation5 + $0x178] sm:$0xff]
    %v163 = vld [vmem:[#allocation5 + $0x180] sm:$0xff]
    %v164 = vld [vmem:[#allocation5 + $0x188] sm:$0xff]
    %v165 = vld [vmem:[#allocation5 + $0x190] sm:$0xff]
    %v166 = vld [vmem:[#allocation5 + $0x198] sm:$0xff]
    %v167 = vld [vmem:[#allocation5 + $0x1a0] sm:$0xff]
    %v168 = vld [vmem:[#allocation5 + $0x1a8] sm:$0xff]
    %v169 = vld [vmem:[#allocation5 + $0x1b0] sm:$0xff]
    %v170 = vld [vmem:[#allocation5 + $0x1b8] sm:$0xff]
    %v171 = vld [vmem:[#allocation5 + $0x1c0] sm:$0xff]
    %v172 = vld [vmem:[#allocation5 + $0x1c8] sm:$0xff]
    %v173 = vld [vmem:[#allocation5 + $0x1d0] sm:$0xff]
    %v174 = vld [vmem:[#allocation5 + $0x1d8] sm:$0xff]
    %v175 = vld [vmem:[#allocation5 + $0x1e0] sm:$0xff]
    %v176 = vld [vmem:[#allocation5 + $0x1e8] sm:$0xff]
    %v177 = vld [vmem:[#allocation5 + $0x1f0] sm:$0xff]
    %v178 = vld [vmem:[#allocation5 + $0x1f8] sm:$0xff]
    %v179 = vld [vmem:[#allocation5 + $0x200] sm:$0xff]
    %v180 = vld [vmem:[#allocation5 + $0x208] sm:$0xff]
    %v181 = vld [vmem:[#allocation5 + $0x210] sm:$0xff]
    %v182 = vld [vmem:[#allocation5 + $0x218] sm:$0xff]
    %v183 = vld [vmem:[#allocation5 + $0x220] sm:$0xff]
    %v184 = vld [vmem:[#allocation5 + $0x228] sm:$0xff]
    %v185 = vld [vmem:[#allocation5 + $0x230] sm:$0xff]
    %v186 = vld [vmem:[#allocation5 + $0x238] sm:$0xff]
    %v187 = vld [vmem:[#allocation5 + $0x240] sm:$0xff]
    %v188 = vld [vmem:[#allocation5 + $0x248] sm:$0xff]
    %v189 = vld [vmem:[#allocation5 + $0x250] sm:$0xff]
    %v190 = vld [vmem:[#allocation5 + $0x258] sm:$0xff]
    %v191 = vld [vmem:[#allocation5 + $0x260] sm:$0xff]
    %v192 = vld [vmem:[#allocation5 + $0x268] sm:$0xff]
    %v193 = vld [vmem:[#allocation5 + $0x270] sm:$0xff]
    %v194 = vld [vmem:[#allocation5 + $0x278] sm:$0xff]
    %v195 = vld [vmem:[#allocation5 + $0x280] sm:$0xff]
    %v196 = vld [vmem:[#allocation5 + $0x288] sm:$0xff]
    %v197 = vld [vmem:[#allocation5 + $0x290] sm:$0xff]
    %v198 = vld [vmem:[#allocation5 + $0x298] sm:$0xff]
    %v199 = vld [vmem:[#allocation5 + $0x2a0] sm:$0xff]
    %v200 = vld [vmem:[#allocation5 + $0x2a8] sm:$0xff]
    %v201 = vld [vmem:[#allocation5 + $0x2b0] sm:$0xff]
    %v202 = vld [vmem:[#allocation5 + $0x2b8] sm:$0xff]
    %v203 = vld [vmem:[#allocation5 + $0x2c0] sm:$0xff]
    %v204 = vld [vmem:[#allocation5 + $0x2c8] sm:$0xff]
    %v205 = vld [vmem:[#allocation5 + $0x2d0] sm:$0xff]
    %v206 = vld [vmem:[#allocation5 + $0x2d8] sm:$0xff]
    %v207 = vld [vmem:[#allocation5 + $0x2e0] sm:$0xff]
    %v208 = vld [vmem:[#allocation5 + $0x2e8] sm:$0xff]
    %v209 = vld [vmem:[#allocation5 + $0x2f0] sm:$0xff]
    %v210 = vld [vmem:[#allocation5 + $0x2f8] sm:$0xff]
    %v211 = vld [vmem:[#allocation5 + $0x300] sm:$0xff]
    %v212 = vld [vmem:[#allocation5 + $0x308] sm:$0xff]
    %v213 = vld [vmem:[#allocation5 + $0x310] sm:$0xff]
    %v214 = vld [vmem:[#allocation5 + $0x318] sm:$0xff]
    %v215 = vld [vmem:[#allocation5 + $0x320] sm:$0xff]
    %v216 = vld [vmem:[#allocation5 + $0x328] sm:$0xff]
    %v217 = vld [vmem:[#allocation5 + $0x330] sm:$0xff]
    %v218 = vld [vmem:[#allocation5 + $0x338] sm:$0xff]
    %v219 = vld [vmem:[#allocation5 + $0x340] sm:$0xff]
    %v220 = vld [vmem:[#allocation5 + $0x348] sm:$0xff]
    %v221 = vld [vmem:[#allocation5 + $0x350] sm:$0xff]
    %v222 = vld [vmem:[#allocation5 + $0x358] sm:$0xff]
    %v223 = vld [vmem:[#allocation5 + $0x360] sm:$0xff]
    %v224 = vld [vmem:[#allocation5 + $0x368] sm:$0xff]
    %v225 = vld [vmem:[#allocation5 + $0x370] sm:$0xff]
    %v226 = vld [vmem:[#allocation5 + $0x378] sm:$0xff]
    %v227 = vld [vmem:[#allocation5 + $0x380] sm:$0xff]
    %v228 = vld [vmem:[#allocation5 + $0x388] sm:$0xff]
    %v229 = vld [vmem:[#allocation5 + $0x390] sm:$0xff]
    %v230 = vld [vmem:[#allocation5 + $0x398] sm:$0xff]
    %v231 = vld [vmem:[#allocation5 + $0x3a0] sm:$0xff]
    %v232 = vld [vmem:[#allocation5 + $0x3a8] sm:$0xff]
    %v233 = vld [vmem:[#allocation5 + $0x3b0] sm:$0xff]
    %v234 = vld [vmem:[#allocation5 + $0x3b8] sm:$0xff]
    %v235 = vld [vmem:[#allocation5 + $0x3c0] sm:$0xff]
    %v236 = vld [vmem:[#allocation5 + $0x3c8] sm:$0xff]
    %v237 = vld [vmem:[#allocation5 + $0x3d0] sm:$0xff]
    %v238 = vld [vmem:[#allocation5 + $0x3d8] sm:$0xff]
    %v239 = vld [vmem:[#allocation5 + $0x3e0] sm:$0xff]
    %v240 = vld [vmem:[#allocation5 + $0x3e8] sm:$0xff]
    %v241 = vld [vmem:[#allocation5 + $0x3f0] sm:$0xff]
    %v242 = vld [vmem:[#allocation5 + $0x3f8] sm:$0xff]
    %v371 = vunpack.c.l.b16 %v115
    %v372 = vunpack.c.h.b16 %v115
    %v373 = vunpack.c.l.b16 %v116
    %v374 = vunpack.c.h.b16 %v116
    %v375 = vunpack.c.l.b16 %v117
    %v376 = vunpack.c.h.b16 %v117
    %v377 = vunpack.c.l.b16 %v118
    %v378 = vunpack.c.h.b16 %v118
    %v379 = vunpack.c.l.b16 %v119
    %v380 = vunpack.c.h.b16 %v119
    %v381 = vunpack.c.l.b16 %v120
    %v382 = vunpack.c.h.b16 %v120
    %v383 = vunpack.c.l.b16 %v121
    %v384 = vunpack.c.h.b16 %v121
    %v385 = vunpack.c.l.b16 %v122
    %v386 = vunpack.c.h.b16 %v122
    %v387 = vunpack.c.l.b16 %v123
    %v388 = vunpack.c.h.b16 %v123
    %v389 = vunpack.c.l.b16 %v124
    %v390 = vunpack.c.h.b16 %v124
    %v391 = vunpack.c.l.b16 %v125
    %v392 = vunpack.c.h.b16 %v125
    %v393 = vunpack.c.l.b16 %v126
    %v394 = vunpack.c.h.b16 %v126
    %v395 = vunpack.c.l.b16 %v127
    %v396 = vunpack.c.h.b16 %v127
    %v397 = vunpack.c.l.b16 %v128
    %v398 = vunpack.c.h.b16 %v128
    %v399 = vunpack.c.l.b16 %v129
    %v400 = vunpack.c.h.b16 %v129
    %v401 = vunpack.c.l.b16 %v130
    %v402 = vunpack.c.h.b16 %v130
    %v403 = vunpack.c.l.b16 %v131
    %v404 = vunpack.c.h.b16 %v131
    %v405 = vunpack.c.l.b16 %v132
    %v406 = vunpack.c.h.b16 %v132
    %v407 = vunpack.c.l.b16 %v133
    %v408 = vunpack.c.h.b16 %v133
    %v409 = vunpack.c.l.b16 %v134
    %v410 = vunpack.c.h.b16 %v134
    %v411 = vunpack.c.l.b16 %v135
    %v412 = vunpack.c.h.b16 %v135
    %v413 = vunpack.c.l.b16 %v136
    %v414 = vunpack.c.h.b16 %v136
    %v415 = vunpack.c.l.b16 %v137
    %v416 = vunpack.c.h.b16 %v137
    %v417 = vunpack.c.l.b16 %v138
    %v418 = vunpack.c.h.b16 %v138
    %v419 = vunpack.c.l.b16 %v139
    %v420 = vunpack.c.h.b16 %v139
    %v421 = vunpack.c.l.b16 %v140
    %v422 = vunpack.c.h.b16 %v140
    %v423 = vunpack.c.l.b16 %v141
    %v424 = vunpack.c.h.b16 %v141
    %v425 = vunpack.c.l.b16 %v142
    %v426 = vunpack.c.h.b16 %v142
    %v427 = vunpack.c.l.b16 %v143
    %v428 = vunpack.c.h.b16 %v143
    %v429 = vunpack.c.l.b16 %v144
    %v430 = vunpack.c.h.b16 %v144
    %v431 = vunpack.c.l.b16 %v145
    %v432 = vunpack.c.h.b16 %v145
    %v433 = vunpack.c.l.b16 %v146
    %v434 = vunpack.c.h.b16 %v146
    %v435 = vunpack.c.l.b16 %v147
    %v436 = vunpack.c.h.b16 %v147
    %v437 = vunpack.c.l.b16 %v148
    %v438 = vunpack.c.h.b16 %v148
    %v439 = vunpack.c.l.b16 %v149
    %v440 = vunpack.c.h.b16 %v149
    %v441 = vunpack.c.l.b16 %v150
    %v442 = vunpack.c.h.b16 %v150
    %v443 = vunpack.c.l.b16 %v151
    %v444 = vunpack.c.h.b16 %v151
    %v445 = vunpack.c.l.b16 %v152
    %v446 = vunpack.c.h.b16 %v152
    %v447 = vunpack.c.l.b16 %v153
    %v448 = vunpack.c.h.b16 %v153
    %v449 = vunpack.c.l.b16 %v154
    %v450 = vunpack.c.h.b16 %v154
    %v451 = vunpack.c.l.b16 %v155
    %v452 = vunpack.c.h.b16 %v155
    %v453 = vunpack.c.l.b16 %v156
    %v454 = vunpack.c.h.b16 %v156
    %v455 = vunpack.c.l.b16 %v157
    %v456 = vunpack.c.h.b16 %v157
    %v457 = vunpack.c.l.b16 %v158
    %v458 = vunpack.c.h.b16 %v158
    %v459 = vunpack.c.l.b16 %v159
    %v460 = vunpack.c.h.b16 %v159
    %v461 = vunpack.c.l.b16 %v160
    %v462 = vunpack.c.h.b16 %v160
    %v463 = vunpack.c.l.b16 %v161
    %v464 = vunpack.c.h.b16 %v161
    %v465 = vunpack.c.l.b16 %v162
    %v466 = vunpack.c.h.b16 %v162
    %v467 = vunpack.c.l.b16 %v163
    %v468 = vunpack.c.h.b16 %v163
    %v469 = vunpack.c.l.b16 %v164
    %v470 = vunpack.c.h.b16 %v164
    %v471 = vunpack.c.l.b16 %v165
    %v472 = vunpack.c.h.b16 %v165
    %v473 = vunpack.c.l.b16 %v166
    %v474 = vunpack.c.h.b16 %v166
    %v475 = vunpack.c.l.b16 %v167
    %v476 = vunpack.c.h.b16 %v167
    %v477 = vunpack.c.l.b16 %v168
    %v478 = vunpack.c.h.b16 %v168
    %v479 = vunpack.c.l.b16 %v169
    %v480 = vunpack.c.h.b16 %v169
    %v481 = vunpack.c.l.b16 %v170
    %v482 = vunpack.c.h.b16 %v170
    %v483 = vunpack.c.l.b16 %v171
    %v484 = vunpack.c.h.b16 %v171
    %v485 = vunpack.c.l.b16 %v172
    %v486 = vunpack.c.h.b16 %v172
    %v487 = vunpack.c.l.b16 %v173
    %v488 = vunpack.c.h.b16 %v173
    %v489 = vunpack.c.l.b16 %v174
    %v490 = vunpack.c.h.b16 %v174
    %v491 = vunpack.c.l.b16 %v175
    %v492 = vunpack.c.h.b16 %v175
    %v493 = vunpack.c.l.b16 %v176
    %v494 = vunpack.c.h.b16 %v176
    %v495 = vunpack.c.l.b16 %v177
    %v496 = vunpack.c.h.b16 %v177
    %v497 = vunpack.c.l.b16 %v178
    %v498 = vunpack.c.h.b16 %v178
    %v499 = vunpack.c.l.b16 %v179
    %v500 = vunpack.c.h.b16 %v179
    %v501 = vunpack.c.l.b16 %v180
    %v502 = vunpack.c.h.b16 %v180
    %v503 = vunpack.c.l.b16 %v181
    %v504 = vunpack.c.h.b16 %v181
    %v505 = vunpack.c.l.b16 %v182
    %v506 = vunpack.c.h.b16 %v182
    %v507 = vunpack.c.l.b16 %v183
    %v508 = vunpack.c.h.b16 %v183
    %v509 = vunpack.c.l.b16 %v184
    %v510 = vunpack.c.h.b16 %v184
    %v511 = vunpack.c.l.b16 %v185
    %v512 = vunpack.c.h.b16 %v185
    %v513 = vunpack.c.l.b16 %v186
    %v514 = vunpack.c.h.b16 %v186
    %v515 = vunpack.c.l.b16 %v187
    %v516 = vunpack.c.h.b16 %v187
    %v517 = vunpack.c.l.b16 %v188
    %v518 = vunpack.c.h.b16 %v188
    %v519 = vunpack.c.l.b16 %v189
    %v520 = vunpack.c.h.b16 %v189
    %v521 = vunpack.c.l.b16 %v190
    %v522 = vunpack.c.h.b16 %v190
    %v523 = vunpack.c.l.b16 %v191
    %v524 = vunpack.c.h.b16 %v191
    %v525 = vunpack.c.l.b16 %v192
    %v526 = vunpack.c.h.b16 %v192
    %v527 = vunpack.c.l.b16 %v193
    %v528 = vunpack.c.h.b16 %v193
    %v529 = vunpack.c.l.b16 %v194
    %v530 = vunpack.c.h.b16 %v194
    %v531 = vunpack.c.l.b16 %v195
    %v532 = vunpack.c.h.b16 %v195
    %v533 = vunpack.c.l.b16 %v196
    %v534 = vunpack.c.h.b16 %v196
    %v535 = vunpack.c.l.b16 %v197
    %v536 = vunpack.c.h.b16 %v197
    %v537 = vunpack.c.l.b16 %v198
    %v538 = vunpack.c.h.b16 %v198
    %v539 = vunpack.c.l.b16 %v199
    %v540 = vunpack.c.h.b16 %v199
    %v541 = vunpack.c.l.b16 %v200
    %v542 = vunpack.c.h.b16 %v200
    %v543 = vunpack.c.l.b16 %v201
    %v544 = vunpack.c.h.b16 %v201
    %v545 = vunpack.c.l.b16 %v202
    %v546 = vunpack.c.h.b16 %v202
    %v547 = vunpack.c.l.b16 %v203
    %v548 = vunpack.c.h.b16 %v203
    %v549 = vunpack.c.l.b16 %v204
    %v550 = vunpack.c.h.b16 %v204
    %v551 = vunpack.c.l.b16 %v205
    %v552 = vunpack.c.h.b16 %v205
    %v553 = vunpack.c.l.b16 %v206
    %v554 = vunpack.c.h.b16 %v206
    %v555 = vunpack.c.l.b16 %v207
    %v556 = vunpack.c.h.b16 %v207
    %v557 = vunpack.c.l.b16 %v208
    %v558 = vunpack.c.h.b16 %v208
    %v559 = vunpack.c.l.b16 %v209
    %v560 = vunpack.c.h.b16 %v209
    %v561 = vunpack.c.l.b16 %v210
    %v562 = vunpack.c.h.b16 %v210
    %v563 = vunpack.c.l.b16 %v211
    %v564 = vunpack.c.h.b16 %v211
    %v565 = vunpack.c.l.b16 %v212
    %v566 = vunpack.c.h.b16 %v212
    %v567 = vunpack.c.l.b16 %v213
    %v568 = vunpack.c.h.b16 %v213
    %v569 = vunpack.c.l.b16 %v214
    %v570 = vunpack.c.h.b16 %v214
    %v571 = vunpack.c.l.b16 %v215
    %v572 = vunpack.c.h.b16 %v215
    %v573 = vunpack.c.l.b16 %v216
    %v574 = vunpack.c.h.b16 %v216
    %v575 = vunpack.c.l.b16 %v217
    %v576 = vunpack.c.h.b16 %v217
    %v577 = vunpack.c.l.b16 %v218
    %v578 = vunpack.c.h.b16 %v218
    %v579 = vunpack.c.l.b16 %v219
    %v580 = vunpack.c.h.b16 %v219
    %v581 = vunpack.c.l.b16 %v220
    %v582 = vunpack.c.h.b16 %v220
    %v583 = vunpack.c.l.b16 %v221
    %v584 = vunpack.c.h.b16 %v221
    %v585 = vunpack.c.l.b16 %v222
    %v586 = vunpack.c.h.b16 %v222
    %v587 = vunpack.c.l.b16 %v223
    %v588 = vunpack.c.h.b16 %v223
    %v589 = vunpack.c.l.b16 %v224
    %v590 = vunpack.c.h.b16 %v224
    %v591 = vunpack.c.l.b16 %v225
    %v592 = vunpack.c.h.b16 %v225
    %v593 = vunpack.c.l.b16 %v226
    %v594 = vunpack.c.h.b16 %v226
    %v595 = vunpack.c.l.b16 %v227
    %v596 = vunpack.c.h.b16 %v227
    %v597 = vunpack.c.l.b16 %v228
    %v598 = vunpack.c.h.b16 %v228
    %v599 = vunpack.c.l.b16 %v229
    %v600 = vunpack.c.h.b16 %v229
    %v601 = vunpack.c.l.b16 %v230
    %v602 = vunpack.c.h.b16 %v230
    %v603 = vunpack.c.l.b16 %v231
    %v604 = vunpack.c.h.b16 %v231
    %v605 = vunpack.c.l.b16 %v232
    %v606 = vunpack.c.h.b16 %v232
    %v607 = vunpack.c.l.b16 %v233
    %v608 = vunpack.c.h.b16 %v233
    %v609 = vunpack.c.l.b16 %v234
    %v610 = vunpack.c.h.b16 %v234
    %v611 = vunpack.c.l.b16 %v235
    %v612 = vunpack.c.h.b16 %v235
    %v613 = vunpack.c.l.b16 %v236
    %v614 = vunpack.c.h.b16 %v236
    %v615 = vunpack.c.l.b16 %v237
    %v616 = vunpack.c.h.b16 %v237
    %v617 = vunpack.c.l.b16 %v238
    %v618 = vunpack.c.h.b16 %v238
    %v619 = vunpack.c.l.b16 %v239
    %v620 = vunpack.c.h.b16 %v239
    %v621 = vunpack.c.l.b16 %v240
    %v622 = vunpack.c.h.b16 %v240
    %v623 = vunpack.c.l.b16 %v241
    %v624 = vunpack.c.h.b16 %v241
    %v625 = vunpack.c.l.b16 %v242
    %v626 = vunpack.c.h.b16 %v242
    %v627 = vpack.c.b16 %v379, %v371
    %v628 = vpack.c.b16 %v380, %v372
    %v629 = vpack.c.b16 %v381, %v373
    %v630 = vpack.c.b16 %v382, %v374
    %v631 = vpack.c.b16 %v383, %v375
    %v632 = vpack.c.b16 %v384, %v376
    %v633 = vpack.c.b16 %v385, %v377
    %v634 = vpack.c.b16 %v386, %v378
    %v635 = vpack.c.b16 %v395, %v387
    %v636 = vpack.c.b16 %v396, %v388
    %v637 = vpack.c.b16 %v397, %v389
    %v638 = vpack.c.b16 %v398, %v390
    %v639 = vpack.c.b16 %v399, %v391
    %v640 = vpack.c.b16 %v400, %v392
    %v641 = vpack.c.b16 %v401, %v393
    %v642 = vpack.c.b16 %v402, %v394
    %v643 = vpack.c.b16 %v411, %v403
    %v644 = vpack.c.b16 %v412, %v404
    %v645 = vpack.c.b16 %v413, %v405
    %v646 = vpack.c.b16 %v414, %v406
    %v647 = vpack.c.b16 %v415, %v407
    %v648 = vpack.c.b16 %v416, %v408
    %v649 = vpack.c.b16 %v417, %v409
    %v650 = vpack.c.b16 %v418, %v410
    %v651 = vpack.c.b16 %v427, %v419
    %v652 = vpack.c.b16 %v428, %v420
    %v653 = vpack.c.b16 %v429, %v421
    %v654 = vpack.c.b16 %v430, %v422
    %v655 = vpack.c.b16 %v431, %v423
    %v656 = vpack.c.b16 %v432, %v424
    %v657 = vpack.c.b16 %v433, %v425
    %v658 = vpack.c.b16 %v434, %v426
    %v659 = vpack.c.b16 %v443, %v435
    %v660 = vpack.c.b16 %v444, %v436
    %v661 = vpack.c.b16 %v445, %v437
    %v662 = vpack.c.b16 %v446, %v438
    %v663 = vpack.c.b16 %v447, %v439
    %v664 = vpack.c.b16 %v448, %v440
    %v665 = vpack.c.b16 %v449, %v441
    %v666 = vpack.c.b16 %v450, %v442
    %v667 = vpack.c.b16 %v459, %v451
    %v668 = vpack.c.b16 %v460, %v452
    %v669 = vpack.c.b16 %v461, %v453
    %v670 = vpack.c.b16 %v462, %v454
    %v671 = vpack.c.b16 %v463, %v455
    %v672 = vpack.c.b16 %v464, %v456
    %v673 = vpack.c.b16 %v465, %v457
    %v674 = vpack.c.b16 %v466, %v458
    %v675 = vpack.c.b16 %v475, %v467
    %v676 = vpack.c.b16 %v476, %v468
    %v677 = vpack.c.b16 %v477, %v469
    %v678 = vpack.c.b16 %v478, %v470
    %v679 = vpack.c.b16 %v479, %v471
    %v680 = vpack.c.b16 %v480, %v472
    %v681 = vpack.c.b16 %v481, %v473
    %v682 = vpack.c.b16 %v482, %v474
    %v683 = vpack.c.b16 %v491, %v483
    %v684 = vpack.c.b16 %v492, %v484
    %v685 = vpack.c.b16 %v493, %v485
    %v686 = vpack.c.b16 %v494, %v486
    %v687 = vpack.c.b16 %v495, %v487
    %v688 = vpack.c.b16 %v496, %v488
    %v689 = vpack.c.b16 %v497, %v489
    %v690 = vpack.c.b16 %v498, %v490
    %v691 = vpack.c.b16 %v507, %v499
    %v692 = vpack.c.b16 %v508, %v500
    %v693 = vpack.c.b16 %v509, %v501
    %v694 = vpack.c.b16 %v510, %v502
    %v695 = vpack.c.b16 %v511, %v503
    %v696 = vpack.c.b16 %v512, %v504
    %v697 = vpack.c.b16 %v513, %v505
    %v698 = vpack.c.b16 %v514, %v506
    %v699 = vpack.c.b16 %v523, %v515
    %v700 = vpack.c.b16 %v524, %v516
    %v701 = vpack.c.b16 %v525, %v517
    %v702 = vpack.c.b16 %v526, %v518
    %v703 = vpack.c.b16 %v527, %v519
    %v704 = vpack.c.b16 %v528, %v520
    %v705 = vpack.c.b16 %v529, %v521
    %v706 = vpack.c.b16 %v530, %v522
    %v707 = vpack.c.b16 %v539, %v531
    %v708 = vpack.c.b16 %v540, %v532
    %v709 = vpack.c.b16 %v541, %v533
    %v710 = vpack.c.b16 %v542, %v534
    %v711 = vpack.c.b16 %v543, %v535
    %v712 = vpack.c.b16 %v544, %v536
    %v713 = vpack.c.b16 %v545, %v537
    %v714 = vpack.c.b16 %v546, %v538
    %v715 = vpack.c.b16 %v555, %v547
    %v716 = vpack.c.b16 %v556, %v548
    %v717 = vpack.c.b16 %v557, %v549
    %v718 = vpack.c.b16 %v558, %v550
    %v719 = vpack.c.b16 %v559, %v551
    %v720 = vpack.c.b16 %v560, %v552
    %v721 = vpack.c.b16 %v561, %v553
    %v722 = vpack.c.b16 %v562, %v554
    %v723 = vpack.c.b16 %v571, %v563
    %v724 = vpack.c.b16 %v572, %v564
    %v725 = vpack.c.b16 %v573, %v565
    %v726 = vpack.c.b16 %v574, %v566
    %v727 = vpack.c.b16 %v575, %v567
    %v728 = vpack.c.b16 %v576, %v568
    %v729 = vpack.c.b16 %v577, %v569
    %v730 = vpack.c.b16 %v578, %v570
    %v731 = vpack.c.b16 %v587, %v579
    %v732 = vpack.c.b16 %v588, %v580
    %v733 = vpack.c.b16 %v589, %v581
    %v734 = vpack.c.b16 %v590, %v582
    %v735 = vpack.c.b16 %v591, %v583
    %v736 = vpack.c.b16 %v592, %v584
    %v737 = vpack.c.b16 %v593, %v585
    %v738 = vpack.c.b16 %v594, %v586
    %v739 = vpack.c.b16 %v603, %v595
    %v740 = vpack.c.b16 %v604, %v596
    %v741 = vpack.c.b16 %v605, %v597
    %v742 = vpack.c.b16 %v606, %v598
    %v743 = vpack.c.b16 %v607, %v599
    %v744 = vpack.c.b16 %v608, %v600
    %v745 = vpack.c.b16 %v609, %v601
    %v746 = vpack.c.b16 %v610, %v602
    %v747 = vpack.c.b16 %v619, %v611
    %v748 = vpack.c.b16 %v620, %v612
    %v749 = vpack.c.b16 %v621, %v613
    %v750 = vpack.c.b16 %v622, %v614
    %v751 = vpack.c.b16 %v623, %v615
    %v752 = vpack.c.b16 %v624, %v616
    %v753 = vpack.c.b16 %v625, %v617
    %v754 = vpack.c.b16 %v626, %v618
    %883 = vmatprep.subr.bf16.mxu0 %v684
    %884 = vmatpush1.bf16.msra.mxu0 %v683
    %885 = vmatprep.subr.bf16.mxu0 %v676
    %886 = vmatpush1.bf16.msra.mxu0 %v675
    %887 = vmatprep.subr.bf16.mxu0 %v668
    %888 = vmatpush1.bf16.msra.mxu0 %v667
    %889 = vmatprep.subr.bf16.mxu0 %v660
    %890 = vmatpush1.bf16.msra.mxu0 %v659
    %891 = vmatprep.subr.bf16.mxu0 %v652
    %892 = vmatpush1.bf16.msra.mxu0 %v651
    %893 = vmatprep.subr.bf16.mxu0 %v644
    %894 = vmatpush1.bf16.msra.mxu0 %v643
    %895 = vmatprep.subr.bf16.mxu0 %v636
    %896 = vmatpush1.bf16.msra.mxu0 %v635
    %897 = vmatprep.subr.bf16.mxu0 %v628
    %898 = vmatpush1.bf16.msra.mxu0 %v627
    %899 = vmatprep.subr.bf16.mxu0 %v748
    %900 = vmatpush2.bf16.msra.mxu0 %v747
    %901 = vmatprep.subr.bf16.mxu0 %v740
    %902 = vmatpush2.bf16.msra.mxu0 %v739
    %903 = vmatprep.subr.bf16.mxu0 %v732
    %904 = vmatpush2.bf16.msra.mxu0 %v731
    %905 = vmatprep.subr.bf16.mxu0 %v724
    %906 = vmatpush2.bf16.msra.mxu0 %v723
    %907 = vmatprep.subr.bf16.mxu0 %v716
    %908 = vmatpush2.bf16.msra.mxu0 %v715
    %909 = vmatprep.subr.bf16.mxu0 %v708
    %910 = vmatpush2.bf16.msra.mxu0 %v707
    %911 = vmatprep.subr.bf16.mxu0 %v700
    %912 = vmatpush2.bf16.msra.mxu0 %v699
    %913 = vmatprep.subr.bf16.mxu0 %v692
    %914 = vmatpush2.bf16.msra.mxu0 %v691
    %915 = vmatprep.mubr.bf16.mxu0 %v114
    %916 = vmatmul.mubr.bf16.gmra.mxu0 %v113
    %v917 = vpop.f32.mrf.mxu0
    %v918 = vadd.f32 0.0, %v917
    %v919 = vpop.f32.mrf.mxu0
    %v920 = vadd.f32 0.0, %v919
    %v921 = vpop.f32.mrf.mxu0
    %v922 = vpop.f32.mrf.mxu0
    %923 = vdwg.mxu0
    %924 = vmatprep.subr.bf16.mxu0 %v686
    %925 = vmatpush1.bf16.msra.mxu0 %v685
    %926 = vmatprep.subr.bf16.mxu0 %v678
    %927 = vmatpush1.bf16.msra.mxu0 %v677
    %928 = vmatprep.subr.bf16.mxu0 %v670
    %929 = vmatpush1.bf16.msra.mxu0 %v669
    %930 = vmatprep.subr.bf16.mxu0 %v662
    %931 = vmatpush1.bf16.msra.mxu0 %v661
    %932 = vmatprep.subr.bf16.mxu0 %v654
    %933 = vmatpush1.bf16.msra.mxu0 %v653
    %934 = vmatprep.subr.bf16.mxu0 %v646
    %935 = vmatpush1.bf16.msra.mxu0 %v645
    %936 = vmatprep.subr.bf16.mxu0 %v638
    %937 = vmatpush1.bf16.msra.mxu0 %v637
    %938 = vmatprep.subr.bf16.mxu0 %v630
    %939 = vmatpush1.bf16.msra.mxu0 %v629
    %940 = vmatprep.subr.bf16.mxu0 %v750
    %941 = vmatpush2.bf16.msra.mxu0 %v749
    %942 = vmatprep.subr.bf16.mxu0 %v742
    %943 = vmatpush2.bf16.msra.mxu0 %v741
    %944 = vmatprep.subr.bf16.mxu0 %v734
    %945 = vmatpush2.bf16.msra.mxu0 %v733
    %946 = vmatprep.subr.bf16.mxu0 %v726
    %947 = vmatpush2.bf16.msra.mxu0 %v725
    %948 = vmatprep.subr.bf16.mxu0 %v718
    %949 = vmatpush2.bf16.msra.mxu0 %v717
    %950 = vmatprep.subr.bf16.mxu0 %v710
    %951 = vmatpush2.bf16.msra.mxu0 %v709
    %952 = vmatprep.subr.bf16.mxu0 %v702
    %953 = vmatpush2.bf16.msra.mxu0 %v701
    %954 = vmatprep.subr.bf16.mxu0 %v694
    %955 = vmatpush2.bf16.msra.mxu0 %v693
    %956 = vmatprep.mubr.bf16.mxu0 %v114
    %957 = vmatmul.mubr.bf16.gmra.mxu0 %v113
    %v958 = vpop.f32.mrf.mxu0
    %v959 = vadd.f32 0.0, %v958
    %v960 = vpop.f32.mrf.mxu0
    %v961 = vadd.f32 0.0, %v960
    %v962 = vpop.f32.mrf.mxu0
    %v963 = vpop.f32.mrf.mxu0
    %964 = vdwg.mxu0
    %965 = vmatprep.subr.bf16.mxu0 %v688
    %966 = vmatpush1.bf16.msra.mxu0 %v687
    %967 = vmatprep.subr.bf16.mxu0 %v680
    %968 = vmatpush1.bf16.msra.mxu0 %v679
    %969 = vmatprep.subr.bf16.mxu0 %v672
    %970 = vmatpush1.bf16.msra.mxu0 %v671
    %971 = vmatprep.subr.bf16.mxu0 %v664
    %972 = vmatpush1.bf16.msra.mxu0 %v663
    %973 = vmatprep.subr.bf16.mxu0 %v656
    %974 = vmatpush1.bf16.msra.mxu0 %v655
    %975 = vmatprep.subr.bf16.mxu0 %v648
    %976 = vmatpush1.bf16.msra.mxu0 %v647
    %977 = vmatprep.subr.bf16.mxu0 %v640
    %978 = vmatpush1.bf16.msra.mxu0 %v639
    %979 = vmatprep.subr.bf16.mxu0 %v632
    %980 = vmatpush1.bf16.msra.mxu0 %v631
    %981 = vmatprep.subr.bf16.mxu0 %v752
    %982 = vmatpush2.bf16.msra.mxu0 %v751
    %983 = vmatprep.subr.bf16.mxu0 %v744
    %984 = vmatpush2.bf16.msra.mxu0 %v743
    %985 = vmatprep.subr.bf16.mxu0 %v736
    %986 = vmatpush2.bf16.msra.mxu0 %v735
    %987 = vmatprep.subr.bf16.mxu0 %v728
    %988 = vmatpush2.bf16.msra.mxu0 %v727
    %989 = vmatprep.subr.bf16.mxu0 %v720
    %990 = vmatpush2.bf16.msra.mxu0 %v719
    %991 = vmatprep.subr.bf16.mxu0 %v712
    %992 = vmatpush2.bf16.msra.mxu0 %v711
    %993 = vmatprep.subr.bf16.mxu0 %v704
    %994 = vmatpush2.bf16.msra.mxu0 %v703
    %995 = vmatprep.subr.bf16.mxu0 %v696
    %996 = vmatpush2.bf16.msra.mxu0 %v695
    %997 = vmatprep.mubr.bf16.mxu0 %v114
    %998 = vmatmul.mubr.bf16.gmra.mxu0 %v113
    %v999 = vpop.f32.mrf.mxu0
    %v1000 = vadd.f32 0.0, %v999
    %v1001 = vpop.f32.mrf.mxu0
    %v1002 = vadd.f32 0.0, %v1001
    %v1003 = vpop.f32.mrf.mxu0
    %v1004 = vpop.f32.mrf.mxu0
    %1005 = vdwg.mxu0
    %1006 = vmatprep.subr.bf16.mxu0 %v690
    %1007 = vmatpush1.bf16.msra.mxu0 %v689
    %1008 = vmatprep.subr.bf16.mxu0 %v682
    %1009 = vmatpush1.bf16.msra.mxu0 %v681
    %1010 = vmatprep.subr.bf16.mxu0 %v674
    %1011 = vmatpush1.bf16.msra.mxu0 %v673
    %1012 = vmatprep.subr.bf16.mxu0 %v666
    %1013 = vmatpush1.bf16.msra.mxu0 %v665
    %1014 = vmatprep.subr.bf16.mxu0 %v658
    %1015 = vmatpush1.bf16.msra.mxu0 %v657
    %1016 = vmatprep.subr.bf16.mxu0 %v650
    %1017 = vmatpush1.bf16.msra.mxu0 %v649
    %1018 = vmatprep.subr.bf16.mxu0 %v642
    %1019 = vmatpush1.bf16.msra.mxu0 %v641
    %1020 = vmatprep.subr.bf16.mxu0 %v634
    %1021 = vmatpush1.bf16.msra.mxu0 %v633
    %1022 = vmatprep.subr.bf16.mxu0 %v754
    %1023 = vmatpush2.bf16.msra.mxu0 %v753
    %1024 = vmatprep.subr.bf16.mxu0 %v746
    %1025 = vmatpush2.bf16.msra.mxu0 %v745
    %1026 = vmatprep.subr.bf16.mxu0 %v738
    %1027 = vmatpush2.bf16.msra.mxu0 %v737
    %1028 = vmatprep.subr.bf16.mxu0 %v730
    %1029 = vmatpush2.bf16.msra.mxu0 %v729
    %1030 = vmatprep.subr.bf16.mxu0 %v722
    %1031 = vmatpush2.bf16.msra.mxu0 %v721
    %1032 = vmatprep.subr.bf16.mxu0 %v714
    %1033 = vmatpush2.bf16.msra.mxu0 %v713
    %1034 = vmatprep.subr.bf16.mxu0 %v706
    %1035 = vmatpush2.bf16.msra.mxu0 %v705
    %1036 = vmatprep.subr.bf16.mxu0 %v698
    %1037 = vmatpush2.bf16.msra.mxu0 %v697
    %1038 = vmatprep.mubr.bf16.mxu0 %v114
    %1039 = vmatmul.mubr.bf16.gmra.mxu0 %v113
    %v1040 = vpop.f32.mrf.mxu0
    %v1041 = vadd.f32 0.0, %v1040
    %v1042 = vpop.f32.mrf.mxu0
    %v1043 = vadd.f32 0.0, %v1042
    %v1044 = vpop.f32.mrf.mxu0
    %v1045 = vpop.f32.mrf.mxu0
    %1046 = vdwg.mxu0
    %v1047 = vmul.f32 %v918, %v959
    %v1048 = vmul.f32 %v920, %v961
    %v1049 = vpack.c.bf16 %v1047, %v1047
    %v1050 = vpack.c.bf16 %v1048, %v1048
    %1051 = vrot.lane.b32.xlu0 %v959, 32
    %v1052 = vpop.permute.xlu0 %1051
    %1053 = vrot.lane.b32.xlu0 %v961, 32
    %v1054 = vpop.permute.xlu0 %1053
    %v1055 = vlaneseq
    %v1056 = vand.u32 %v1055, 127
    %vm1057 = vcmp.lt.s32.totalorder %v1056, 32
    %v1058 = vsel %vm1057, %v1052, %v1054
    %v1059 = vsel %vm1057, %v1054, %v1052
    %v1060 = vmul.f32 %v918, %v1059
    %v1061 = vmul.f32 %v920, %v1058
    %v1062 = vpack.c.bf16 %v1060, %v1060
    %v1063 = vpack.c.bf16 %v1061, %v1061
    %1064 = vrot.lane.b32.xlu0 %v959, 64
    %v1065 = vpop.permute.xlu0 %1064
    %1066 = vrot.lane.b32.xlu0 %v961, 64
    %v1067 = vpop.permute.xlu0 %1066
    %vm1068 = vcmp.lt.s32.totalorder %v1056, 64
    %v1069 = vsel %vm1068, %v1065, %v1067
    %v1070 = vsel %vm1068, %v1067, %v1065
    %v1071 = vmul.f32 %v918, %v1070
    %v1072 = vmul.f32 %v920, %v1069
    %v1073 = vpack.c.bf16 %v1071, %v1071
    %v1074 = vpack.c.bf16 %v1072, %v1072
    %1075 = vrot.lane.b32.xlu0 %v959, 96
    %v1076 = vpop.permute.xlu0 %1075
    %1077 = vrot.lane.b32.xlu0 %v961, 96
    %v1078 = vpop.permute.xlu0 %1077
    %vm1079 = vcmp.lt.s32.totalorder %v1056, 96
    %v1080 = vsel %vm1079, %v1076, %v1078
    %v1081 = vsel %vm1079, %v1078, %v1076
    %v1082 = vmul.f32 %v918, %v1081
    %v1083 = vmul.f32 %v920, %v1080
    %v1084 = vpack.c.bf16 %v1082, %v1082
    %v1085 = vpack.c.bf16 %v1083, %v1083
    %v1086 = vmul.f32 %v918, %v961
    %v1087 = vmul.f32 %v920, %v959
    %v1088 = vpack.c.bf16 %v1086, %v1086
    %v1089 = vpack.c.bf16 %v1087, %v1087
    %v1090 = vmul.f32 %v918, %v1058
    %v1091 = vmul.f32 %v920, %v1059
    %v1092 = vpack.c.bf16 %v1090, %v1090
    %v1093 = vpack.c.bf16 %v1091, %v1091
    %v1094 = vmul.f32 %v918, %v1069
    %v1095 = vmul.f32 %v920, %v1070
    %v1096 = vpack.c.bf16 %v1094, %v1094
    %v1097 = vpack.c.bf16 %v1095, %v1095
    %v1098 = vmul.f32 %v918, %v1080
    %v1099 = vmul.f32 %v920, %v1081
    %v1100 = vpack.c.bf16 %v1098, %v1098
    %v1101 = vpack.c.bf16 %v1099, %v1099
    %v1104 = vrot.slane %v1062, 4
    %v1105 = vrot.slane %v1063, 4
    %v1108 = vrot.slane %v1084, 4
    %v1109 = vrot.slane %v1085, 4
    %v1112 = vrot.slane %v1092, 4
    %v1113 = vrot.slane %v1093, 4
    %v1116 = vrot.slane %v1100, 4
    %v1117 = vrot.slane %v1101, 4
    %vm1118 = vcmask 1043456
    %v1121 = vsel %vm1118, %v1049, %v1104
    %v1125 = vsel %vm1118, %v1050, %v1105
    %v1129 = vsel %vm1118, %v1073, %v1108
    %v1133 = vsel %vm1118, %v1074, %v1109
    %v1137 = vsel %vm1118, %v1088, %v1112
    %v1141 = vsel %vm1118, %v1089, %v1113
    %v1145 = vsel %vm1118, %v1096, %v1116
    %v1149 = vsel %vm1118, %v1097, %v1117
    %v1151 = vld [vmem:[#allocation7] sm:$0xff]
    %v1152 = vld [vmem:[#allocation7 + $0x8] sm:$0xff]
    %v1153 = vld [vmem:[#allocation7 + $0x10] sm:$0xff]
    %v1154 = vld [vmem:[#allocation7 + $0x18] sm:$0xff]
    %v1155 = vld [vmem:[#allocation7 + $0x20] sm:$0xff]
    %v1156 = vld [vmem:[#allocation7 + $0x28] sm:$0xff]
    %v1157 = vld [vmem:[#allocation7 + $0x30] sm:$0xff]
    %v1158 = vld [vmem:[#allocation7 + $0x38] sm:$0xff]
    %v1159 = vld [vmem:[#allocation7 + $0x40] sm:$0xff]
    %v1160 = vld [vmem:[#allocation7 + $0x48] sm:$0xff]
    %v1161 = vld [vmem:[#allocation7 + $0x50] sm:$0xff]
    %v1162 = vld [vmem:[#allocation7 + $0x58] sm:$0xff]
    %v1163 = vld [vmem:[#allocation7 + $0x60] sm:$0xff]
    %v1164 = vld [vmem:[#allocation7 + $0x68] sm:$0xff]
    %v1165 = vld [vmem:[#allocation7 + $0x70] sm:$0xff]
    %v1166 = vld [vmem:[#allocation7 + $0x78] sm:$0xff]
    %v1167 = vld [vmem:[#allocation7 + $0x80] sm:$0xff]
    %v1168 = vld [vmem:[#allocation7 + $0x88] sm:$0xff]
    %v1169 = vld [vmem:[#allocation7 + $0x90] sm:$0xff]
    %v1170 = vld [vmem:[#allocation7 + $0x98] sm:$0xff]
    %v1171 = vld [vmem:[#allocation7 + $0xa0] sm:$0xff]
    %v1172 = vld [vmem:[#allocation7 + $0xa8] sm:$0xff]
    %v1173 = vld [vmem:[#allocation7 + $0xb0] sm:$0xff]
    %v1174 = vld [vmem:[#allocation7 + $0xb8] sm:$0xff]
    %v1175 = vld [vmem:[#allocation7 + $0xc0] sm:$0xff]
    %v1176 = vld [vmem:[#allocation7 + $0xc8] sm:$0xff]
    %v1177 = vld [vmem:[#allocation7 + $0xd0] sm:$0xff]
    %v1178 = vld [vmem:[#allocation7 + $0xd8] sm:$0xff]
    %v1179 = vld [vmem:[#allocation7 + $0xe0] sm:$0xff]
    %v1180 = vld [vmem:[#allocation7 + $0xe8] sm:$0xff]
    %v1181 = vld [vmem:[#allocation7 + $0xf0] sm:$0xff]
    %v1182 = vld [vmem:[#allocation7 + $0xf8] sm:$0xff]
    %v1215 = vunpack.c.l.b16 %v1151
    %v1216 = vunpack.c.h.b16 %v1151
    %v1217 = vunpack.c.l.b16 %v1152
    %v1218 = vunpack.c.h.b16 %v1152
    %v1219 = vunpack.c.l.b16 %v1153
    %v1220 = vunpack.c.h.b16 %v1153
    %v1221 = vunpack.c.l.b16 %v1154
    %v1222 = vunpack.c.h.b16 %v1154
    %v1223 = vunpack.c.l.b16 %v1155
    %v1224 = vunpack.c.h.b16 %v1155
    %v1225 = vunpack.c.l.b16 %v1156
    %v1226 = vunpack.c.h.b16 %v1156
    %v1227 = vunpack.c.l.b16 %v1157
    %v1228 = vunpack.c.h.b16 %v1157
    %v1229 = vunpack.c.l.b16 %v1158
    %v1230 = vunpack.c.h.b16 %v1158
    %v1231 = vunpack.c.l.b16 %v1159
    %v1232 = vunpack.c.h.b16 %v1159
    %v1233 = vunpack.c.l.b16 %v1160
    %v1234 = vunpack.c.h.b16 %v1160
    %v1235 = vunpack.c.l.b16 %v1161
    %v1236 = vunpack.c.h.b16 %v1161
    %v1237 = vunpack.c.l.b16 %v1162
    %v1238 = vunpack.c.h.b16 %v1162
    %v1239 = vunpack.c.l.b16 %v1163
    %v1240 = vunpack.c.h.b16 %v1163
    %v1241 = vunpack.c.l.b16 %v1164
    %v1242 = vunpack.c.h.b16 %v1164
    %v1243 = vunpack.c.l.b16 %v1165
    %v1244 = vunpack.c.h.b16 %v1165
    %v1245 = vunpack.c.l.b16 %v1166
    %v1246 = vunpack.c.h.b16 %v1166
    %v1247 = vunpack.c.l.b16 %v1167
    %v1248 = vunpack.c.h.b16 %v1167
    %v1249 = vunpack.c.l.b16 %v1168
    %v1250 = vunpack.c.h.b16 %v1168
    %v1251 = vunpack.c.l.b16 %v1169
    %v1252 = vunpack.c.h.b16 %v1169
    %v1253 = vunpack.c.l.b16 %v1170
    %v1254 = vunpack.c.h.b16 %v1170
    %v1255 = vunpack.c.l.b16 %v1171
    %v1256 = vunpack.c.h.b16 %v1171
    %v1257 = vunpack.c.l.b16 %v1172
    %v1258 = vunpack.c.h.b16 %v1172
    %v1259 = vunpack.c.l.b16 %v1173
    %v1260 = vunpack.c.h.b16 %v1173
    %v1261 = vunpack.c.l.b16 %v1174
    %v1262 = vunpack.c.h.b16 %v1174
    %v1263 = vunpack.c.l.b16 %v1175
    %v1264 = vunpack.c.h.b16 %v1175
    %v1265 = vunpack.c.l.b16 %v1176
    %v1266 = vunpack.c.h.b16 %v1176
    %v1267 = vunpack.c.l.b16 %v1177
    %v1268 = vunpack.c.h.b16 %v1177
    %v1269 = vunpack.c.l.b16 %v1178
    %v1270 = vunpack.c.h.b16 %v1178
    %v1271 = vunpack.c.l.b16 %v1179
    %v1272 = vunpack.c.h.b16 %v1179
    %v1273 = vunpack.c.l.b16 %v1180
    %v1274 = vunpack.c.h.b16 %v1180
    %v1275 = vunpack.c.l.b16 %v1181
    %v1276 = vunpack.c.h.b16 %v1181
    %v1277 = vunpack.c.l.b16 %v1182
    %v1278 = vunpack.c.h.b16 %v1182
    %v1279 = vpack.c.b16 %v1217, %v1215
    %v1280 = vpack.c.b16 %v1218, %v1216
    %v1281 = vpack.c.b16 %v1221, %v1219
    %v1282 = vpack.c.b16 %v1222, %v1220
    %v1283 = vpack.c.b16 %v1225, %v1223
    %v1284 = vpack.c.b16 %v1226, %v1224
    %v1285 = vpack.c.b16 %v1229, %v1227
    %v1286 = vpack.c.b16 %v1230, %v1228
    %v1287 = vpack.c.b16 %v1233, %v1231
    %v1288 = vpack.c.b16 %v1234, %v1232
    %v1289 = vpack.c.b16 %v1237, %v1235
    %v1290 = vpack.c.b16 %v1238, %v1236
    %v1291 = vpack.c.b16 %v1241, %v1239
    %v1292 = vpack.c.b16 %v1242, %v1240
    %v1293 = vpack.c.b16 %v1245, %v1243
    %v1294 = vpack.c.b16 %v1246, %v1244
    %v1295 = vpack.c.b16 %v1249, %v1247
    %v1296 = vpack.c.b16 %v1250, %v1248
    %v1297 = vpack.c.b16 %v1253, %v1251
    %v1298 = vpack.c.b16 %v1254, %v1252
    %v1299 = vpack.c.b16 %v1257, %v1255
    %v1300 = vpack.c.b16 %v1258, %v1256
    %v1301 = vpack.c.b16 %v1261, %v1259
    %v1302 = vpack.c.b16 %v1262, %v1260
    %v1303 = vpack.c.b16 %v1265, %v1263
    %v1304 = vpack.c.b16 %v1266, %v1264
    %v1305 = vpack.c.b16 %v1269, %v1267
    %v1306 = vpack.c.b16 %v1270, %v1268
    %v1307 = vpack.c.b16 %v1273, %v1271
    %v1308 = vpack.c.b16 %v1274, %v1272
    %v1309 = vpack.c.b16 %v1277, %v1275
    %v1310 = vpack.c.b16 %v1278, %v1276
    %1343 = vmatprep.subr.bf16.mxu0 %v1294
    %1344 = vmatpush1.bf16.msra.mxu0 %v1293
    %1345 = vmatprep.subr.bf16.mxu0 %v1292
    %1346 = vmatpush1.bf16.msra.mxu0 %v1291
    %1347 = vmatprep.subr.bf16.mxu0 %v1290
    %1348 = vmatpush1.bf16.msra.mxu0 %v1289
    %1349 = vmatprep.subr.bf16.mxu0 %v1288
    %1350 = vmatpush1.bf16.msra.mxu0 %v1287
    %1351 = vmatprep.subr.bf16.mxu0 %v1286
    %1352 = vmatpush1.bf16.msra.mxu0 %v1285
    %1353 = vmatprep.subr.bf16.mxu0 %v1284
    %1354 = vmatpush1.bf16.msra.mxu0 %v1283
    %1355 = vmatprep.subr.bf16.mxu0 %v1282
    %1356 = vmatpush1.bf16.msra.mxu0 %v1281
    %1357 = vmatprep.subr.bf16.mxu0 %v1280
    %1358 = vmatpush1.bf16.msra.mxu0 %v1279
    %1359 = vmatprep.subr.bf16.mxu0 %v1310
    %1360 = vmatpush2.bf16.msra.mxu0 %v1309
    %1361 = vmatprep.subr.bf16.mxu0 %v1308
    %1362 = vmatpush2.bf16.msra.mxu0 %v1307
    %1363 = vmatprep.subr.bf16.mxu0 %v1306
    %1364 = vmatpush2.bf16.msra.mxu0 %v1305
    %1365 = vmatprep.subr.bf16.mxu0 %v1304
    %1366 = vmatpush2.bf16.msra.mxu0 %v1303
    %1367 = vmatprep.subr.bf16.mxu0 %v1302
    %1368 = vmatpush2.bf16.msra.mxu0 %v1301
    %1369 = vmatprep.subr.bf16.mxu0 %v1300
    %1370 = vmatpush2.bf16.msra.mxu0 %v1299
    %1371 = vmatprep.subr.bf16.mxu0 %v1298
    %1372 = vmatpush2.bf16.msra.mxu0 %v1297
    %1373 = vmatprep.subr.bf16.mxu0 %v1296
    %1374 = vmatpush2.bf16.msra.mxu0 %v1295
    %1375 = vmatprep.mubr.bf16.mxu0 %v1125
    %1376 = vmatmul.mubr.bf16.gmra.mxu0 %v1121
    %v1377 = vpop.f32.mrf.mxu0
    %v1378 = vadd.f32 0.0, %v1377
    %v1379 = vpop.f32.mrf.mxu0
    %v1380 = vadd.f32 0.0, %v1379
    %v1381 = vpop.f32.mrf.mxu0
    %v1382 = vadd.f32 0.0, %v1381
    %v1383 = vpop.f32.mrf.mxu0
    %v1384 = vadd.f32 0.0, %v1383
    %1385 = vmatprep.mubr.bf16.mxu0 %v1133
    %1386 = vmatmul.mubr.bf16.gmra.mxu0 %v1129
    %v1387 = vpop.f32.mrf.mxu0
    %v1388 = vadd.f32 0.0, %v1387
    %v1389 = vpop.f32.mrf.mxu0
    %v1390 = vadd.f32 0.0, %v1389
    %v1391 = vpop.f32.mrf.mxu0
    %v1392 = vadd.f32 0.0, %v1391
    %v1393 = vpop.f32.mrf.mxu0
    %v1394 = vadd.f32 0.0, %v1393
    %1395 = vmatprep.mubr.bf16.mxu0 %v1141
    %1396 = vmatmul.mubr.bf16.gmra.mxu0 %v1137
    %v1397 = vpop.f32.mrf.mxu0
    %v1398 = vadd.f32 0.0, %v1397
    %v1399 = vpop.f32.mrf.mxu0
    %v1400 = vadd.f32 0.0, %v1399
    %v1401 = vpop.f32.mrf.mxu0
    %v1402 = vadd.f32 0.0, %v1401
    %v1403 = vpop.f32.mrf.mxu0
    %v1404 = vadd.f32 0.0, %v1403
    %1405 = vmatprep.mubr.bf16.mxu0 %v1149
    %1406 = vmatmul.mubr.bf16.gmra.mxu0 %v1145
    %v1407 = vpop.f32.mrf.mxu0
    %v1408 = vadd.f32 0.0, %v1407
    %v1409 = vpop.f32.mrf.mxu0
    %v1410 = vadd.f32 0.0, %v1409
    %v1411 = vpop.f32.mrf.mxu0
    %v1412 = vadd.f32 0.0, %v1411
    %v1413 = vpop.f32.mrf.mxu0
    %v1414 = vadd.f32 0.0, %v1413
    %1415 = vdwg.mxu0
    %v1416 = vmax.f32 %v1378, %v1382
    %v1417 = vmax.f32 %v1380, %v1384
    %v1418 = vmax.f32 %v1416, %v1388
    %v1419 = vmax.f32 %v1417, %v1390
    %v1420 = vmax.f32 %v1418, %v1392
    %v1421 = vmax.f32 %v1419, %v1394
    %v1422 = vmax.f32 %v1420, %v1398
    %v1423 = vmax.f32 %v1421, %v1400
    %v1424 = vmax.f32 %v1422, %v1402
    %v1425 = vmax.f32 %v1423, %v1404
    %v1426 = vmax.f32 %v1424, %v1408
    %v1427 = vmax.f32 %v1425, %v1410
    %v1428 = vmax.f32 %v1426, %v1412
    %v1429 = vmax.f32 %v1427, %v1414
    %v1430 = vsub.f32 %v1378, %v1428
    %v1431 = vsub.f32 %v1380, %v1429
    %v1432 = vmul.f32 %v1430, 1.442695
    %v1433 = vpow.pop %v1432
    %v1434 = vmul.f32 %v1431, 1.442695
    %v1435 = vpow.pop %v1434
    %v1436 = vsub.f32 %v1382, %v1428
    %v1437 = vsub.f32 %v1384, %v1429
    %v1438 = vmul.f32 %v1436, 1.442695
    %v1439 = vpow.pop %v1438
    %v1440 = vmul.f32 %v1437, 1.442695
    %v1441 = vpow.pop %v1440
    %v1442 = vsub.f32 %v1388, %v1428
    %v1443 = vsub.f32 %v1390, %v1429
    %v1444 = vmul.f32 %v1442, 1.442695
    %v1445 = vpow.pop %v1444
    %v1446 = vmul.f32 %v1443, 1.442695
    %v1447 = vpow.pop %v1446
    %v1448 = vsub.f32 %v1392, %v1428
    %v1449 = vsub.f32 %v1394, %v1429
    %v1450 = vmul.f32 %v1448, 1.442695
    %v1451 = vpow.pop %v1450
    %v1452 = vmul.f32 %v1449, 1.442695
    %v1453 = vpow.pop %v1452
    %v1454 = vsub.f32 %v1398, %v1428
    %v1455 = vsub.f32 %v1400, %v1429
    %v1456 = vmul.f32 %v1454, 1.442695
    %v1457 = vpow.pop %v1456
    %v1458 = vmul.f32 %v1455, 1.442695
    %v1459 = vpow.pop %v1458
    %v1460 = vsub.f32 %v1402, %v1428
    %v1461 = vsub.f32 %v1404, %v1429
    %v1462 = vmul.f32 %v1460, 1.442695
    %v1463 = vpow.pop %v1462
    %v1464 = vmul.f32 %v1461, 1.442695
    %v1465 = vpow.pop %v1464
    %v1466 = vsub.f32 %v1408, %v1428
    %v1467 = vsub.f32 %v1410, %v1429
    %v1468 = vmul.f32 %v1466, 1.442695
    %v1469 = vpow.pop %v1468
    %v1470 = vmul.f32 %v1467, 1.442695
    %v1471 = vpow.pop %v1470
    %v1472 = vsub.f32 %v1412, %v1428
    %v1473 = vsub.f32 %v1414, %v1429
    %v1474 = vmul.f32 %v1472, 1.442695
    %v1475 = vpow.pop %v1474
    %v1476 = vmul.f32 %v1473, 1.442695
    %v1477 = vpow.pop %v1476
    %v1478 = vadd.f32 %v1433, %v1439
    %v1479 = vadd.f32 %v1435, %v1441
    %v1480 = vadd.f32 %v1478, %v1445
    %v1481 = vadd.f32 %v1479, %v1447
    %v1482 = vadd.f32 %v1480, %v1451
    %v1483 = vadd.f32 %v1481, %v1453
    %v1484 = vadd.f32 %v1482, %v1457
    %v1485 = vadd.f32 %v1483, %v1459
    %v1486 = vadd.f32 %v1484, %v1463
    %v1487 = vadd.f32 %v1485, %v1465
    %v1488 = vadd.f32 %v1486, %v1469
    %v1489 = vadd.f32 %v1487, %v1471
    %v1490 = vadd.f32 %v1488, %v1475
    %v1491 = vadd.f32 %v1489, %v1477
    %v1492 = vrcp.pop %v1490
    %v1493 = vrcp.pop %v1491
    %v1494 = vmul.f32 %v1433, %v1000
    %v1495 = vmul.f32 %v1435, %v1002
    %1496 = vrot.lane.b32.xlu0 %v1000, 32
    %v1497 = vpop.permute.xlu0 %1496
    %1498 = vrot.lane.b32.xlu0 %v1002, 32
    %v1499 = vpop.permute.xlu0 %1498
    %v1500 = vsel %vm1057, %v1497, %v1499
    %v1501 = vsel %vm1057, %v1499, %v1497
    %v1502 = vmul.f32 %v1439, %v1501
    %v1503 = vmul.f32 %v1441, %v1500
    %v1504 = vadd.f32 %v1494, %v1502
    %v1505 = vadd.f32 %v1495, %v1503
    %1506 = vrot.lane.b32.xlu0 %v1000, 64
    %v1507 = vpop.permute.xlu0 %1506
    %1508 = vrot.lane.b32.xlu0 %v1002, 64
    %v1509 = vpop.permute.xlu0 %1508
    %v1510 = vsel %vm1068, %v1507, %v1509
    %v1511 = vsel %vm1068, %v1509, %v1507
    %v1512 = vmul.f32 %v1445, %v1511
    %v1513 = vmul.f32 %v1447, %v1510
    %v1514 = vadd.f32 %v1504, %v1512
    %v1515 = vadd.f32 %v1505, %v1513
    %1516 = vrot.lane.b32.xlu0 %v1000, 96
    %v1517 = vpop.permute.xlu0 %1516
    %1518 = vrot.lane.b32.xlu0 %v1002, 96
    %v1519 = vpop.permute.xlu0 %1518
    %v1520 = vsel %vm1079, %v1517, %v1519
    %v1521 = vsel %vm1079, %v1519, %v1517
    %v1522 = vmul.f32 %v1451, %v1521
    %v1523 = vmul.f32 %v1453, %v1520
    %v1524 = vadd.f32 %v1514, %v1522
    %v1525 = vadd.f32 %v1515, %v1523
    %v1526 = vmul.f32 %v1457, %v1002
    %v1527 = vmul.f32 %v1459, %v1000
    %v1528 = vadd.f32 %v1524, %v1526
    %v1529 = vadd.f32 %v1525, %v1527
    %v1530 = vmul.f32 %v1463, %v1500
    %v1531 = vmul.f32 %v1465, %v1501
    %v1532 = vadd.f32 %v1528, %v1530
    %v1533 = vadd.f32 %v1529, %v1531
    %v1534 = vmul.f32 %v1469, %v1510
    %v1535 = vmul.f32 %v1471, %v1511
    %v1536 = vadd.f32 %v1532, %v1534
    %v1537 = vadd.f32 %v1533, %v1535
    %v1538 = vmul.f32 %v1475, %v1520
    %v1539 = vmul.f32 %v1477, %v1521
    %v1540 = vadd.f32 %v1536, %v1538
    %v1541 = vadd.f32 %v1537, %v1539
    %v1542 = vmul.f32 %v1540, %v1492
    %v1543 = vmul.f32 %v1541, %v1493
    %v1544 = vadd.f32 %v1542, %v1041
    %v1545 = vadd.f32 %v1543, %v1043
    %v1546 = vmax.f32 %v1544, 0.0
    %v1547 = vmax.f32 %v1545, 0.0
    %v1548 = vadd.f32 %v1546, %v1547
    %1549 = vadd.xlane.f32.xlu0 %v1548
    %v1550 = vpop.xlane.xlu0 %1549
    %v1551 = vrcp.pop 256.0
    %v1552 = vmul.f32 %v1550, %v1551
    %v1553 = vsub.f32 %v1546, %v1552
    %v1554 = vsub.f32 %v1547, %v1552
    %v1555 = vmul.f32 %v1553, %v1553
    %v1556 = vmul.f32 %v1554, %v1554
    %v1557 = vadd.f32 %v1555, %v1556
    %1558 = vadd.xlane.f32.xlu0 %v1557
    %v1559 = vpop.xlane.xlu0 %1558
    %v1560 = vmul.f32 %v1559, %v1551
    %v1561 = vadd.f32 %v1560, 1e-05
    %v1562 = vrsqrt.pop %v1561
    %v1563 = vmul.f32 %v1553, %v1562
    %v1564 = vmul.f32 %v1554, %v1562
    %v1565 = vld [vmem:[%s3] sm:$0x3]
    %v1567 = vlaneseq
    %v1568 = vshrl.u32 %v1567, 7
    %v1569 = vsub.s32 0, %v1568
    %v1570 = vrot.slane %v1565, %v1569
    %v1571 = vlaneseq
    %v1572 = vshrl.u32 %v1571, 7
    %v1573 = vsub.s32 1, %v1572
    %v1574 = vrot.slane %v1565, %v1573
    %v1577 = vmul.f32 %v1563, %v1570
    %v1578 = vmul.f32 %v1564, %v1574
    %v1579 = vld [vmem:[#allocation8] sm:$0x3]
    %v1581 = vlaneseq
    %v1582 = vshrl.u32 %v1581, 7
    %v1583 = vsub.s32 0, %v1582
    %v1584 = vrot.slane %v1579, %v1583
    %v1585 = vlaneseq
    %v1586 = vshrl.u32 %v1585, 7
    %v1587 = vsub.s32 1, %v1586
    %v1588 = vrot.slane %v1579, %v1587
    %v1591 = vadd.f32 %v1577, %v1584
    %v1592 = vadd.f32 %v1578, %v1588
    %v1593 = vpack.c.bf16 %v1591, %v1591
    %v1594 = vpack.c.bf16 %v1592, %v1592
    %v1595 = vld [vmem:[#allocation10] sm:$0xff]
    %v1596 = vld [vmem:[#allocation10 + $0x8] sm:$0xff]
    %v1597 = vld [vmem:[#allocation10 + $0x10] sm:$0xff]
    %v1598 = vld [vmem:[#allocation10 + $0x18] sm:$0xff]
    %v1599 = vld [vmem:[#allocation10 + $0x20] sm:$0xff]
    %v1600 = vld [vmem:[#allocation10 + $0x28] sm:$0xff]
    %v1601 = vld [vmem:[#allocation10 + $0x30] sm:$0xff]
    %v1602 = vld [vmem:[#allocation10 + $0x38] sm:$0xff]
    %v1603 = vld [vmem:[#allocation10 + $0x40] sm:$0xff]
    %v1604 = vld [vmem:[#allocation10 + $0x48] sm:$0xff]
    %v1605 = vld [vmem:[#allocation10 + $0x50] sm:$0xff]
    %v1606 = vld [vmem:[#allocation10 + $0x58] sm:$0xff]
    %v1607 = vld [vmem:[#allocation10 + $0x60] sm:$0xff]
    %v1608 = vld [vmem:[#allocation10 + $0x68] sm:$0xff]
    %v1609 = vld [vmem:[#allocation10 + $0x70] sm:$0xff]
    %v1610 = vld [vmem:[#allocation10 + $0x78] sm:$0xff]
    %v1611 = vld [vmem:[#allocation10 + $0x80] sm:$0xff]
    %v1612 = vld [vmem:[#allocation10 + $0x88] sm:$0xff]
    %v1613 = vld [vmem:[#allocation10 + $0x90] sm:$0xff]
    %v1614 = vld [vmem:[#allocation10 + $0x98] sm:$0xff]
    %v1615 = vld [vmem:[#allocation10 + $0xa0] sm:$0xff]
    %v1616 = vld [vmem:[#allocation10 + $0xa8] sm:$0xff]
    %v1617 = vld [vmem:[#allocation10 + $0xb0] sm:$0xff]
    %v1618 = vld [vmem:[#allocation10 + $0xb8] sm:$0xff]
    %v1619 = vld [vmem:[#allocation10 + $0xc0] sm:$0xff]
    %v1620 = vld [vmem:[#allocation10 + $0xc8] sm:$0xff]
    %v1621 = vld [vmem:[#allocation10 + $0xd0] sm:$0xff]
    %v1622 = vld [vmem:[#allocation10 + $0xd8] sm:$0xff]
    %v1623 = vld [vmem:[#allocation10 + $0xe0] sm:$0xff]
    %v1624 = vld [vmem:[#allocation10 + $0xe8] sm:$0xff]
    %v1625 = vld [vmem:[#allocation10 + $0xf0] sm:$0xff]
    %v1626 = vld [vmem:[#allocation10 + $0xf8] sm:$0xff]
    %v1627 = vld [vmem:[#allocation10 + $0x100] sm:$0xff]
    %v1628 = vld [vmem:[#allocation10 + $0x108] sm:$0xff]
    %v1629 = vld [vmem:[#allocation10 + $0x110] sm:$0xff]
    %v1630 = vld [vmem:[#allocation10 + $0x118] sm:$0xff]
    %v1631 = vld [vmem:[#allocation10 + $0x120] sm:$0xff]
    %v1632 = vld [vmem:[#allocation10 + $0x128] sm:$0xff]
    %v1633 = vld [vmem:[#allocation10 + $0x130] sm:$0xff]
    %v1634 = vld [vmem:[#allocation10 + $0x138] sm:$0xff]
    %v1635 = vld [vmem:[#allocation10 + $0x140] sm:$0xff]
    %v1636 = vld [vmem:[#allocation10 + $0x148] sm:$0xff]
    %v1637 = vld [vmem:[#allocation10 + $0x150] sm:$0xff]
    %v1638 = vld [vmem:[#allocation10 + $0x158] sm:$0xff]
    %v1639 = vld [vmem:[#allocation10 + $0x160] sm:$0xff]
    %v1640 = vld [vmem:[#allocation10 + $0x168] sm:$0xff]
    %v1641 = vld [vmem:[#allocation10 + $0x170] sm:$0xff]
    %v1642 = vld [vmem:[#allocation10 + $0x178] sm:$0xff]
    %v1643 = vld [vmem:[#allocation10 + $0x180] sm:$0xff]
    %v1644 = vld [vmem:[#allocation10 + $0x188] sm:$0xff]
    %v1645 = vld [vmem:[#allocation10 + $0x190] sm:$0xff]
    %v1646 = vld [vmem:[#allocation10 + $0x198] sm:$0xff]
    %v1647 = vld [vmem:[#allocation10 + $0x1a0] sm:$0xff]
    %v1648 = vld [vmem:[#allocation10 + $0x1a8] sm:$0xff]
    %v1649 = vld [vmem:[#allocation10 + $0x1b0] sm:$0xff]
    %v1650 = vld [vmem:[#allocation10 + $0x1b8] sm:$0xff]
    %v1651 = vld [vmem:[#allocation10 + $0x1c0] sm:$0xff]
    %v1652 = vld [vmem:[#allocation10 + $0x1c8] sm:$0xff]
    %v1653 = vld [vmem:[#allocation10 + $0x1d0] sm:$0xff]
    %v1654 = vld [vmem:[#allocation10 + $0x1d8] sm:$0xff]
    %v1655 = vld [vmem:[#allocation10 + $0x1e0] sm:$0xff]
    %v1656 = vld [vmem:[#allocation10 + $0x1e8] sm:$0xff]
    %v1657 = vld [vmem:[#allocation10 + $0x1f0] sm:$0xff]
    %v1658 = vld [vmem:[#allocation10 + $0x1f8] sm:$0xff]
    %v1659 = vld [vmem:[#allocation10 + $0x200] sm:$0xff]
    %v1660 = vld [vmem:[#allocation10 + $0x208] sm:$0xff]
    %v1661 = vld [vmem:[#allocation10 + $0x210] sm:$0xff]
    %v1662 = vld [vmem:[#allocation10 + $0x218] sm:$0xff]
    %v1663 = vld [vmem:[#allocation10 + $0x220] sm:$0xff]
    %v1664 = vld [vmem:[#allocation10 + $0x228] sm:$0xff]
    %v1665 = vld [vmem:[#allocation10 + $0x230] sm:$0xff]
    %v1666 = vld [vmem:[#allocation10 + $0x238] sm:$0xff]
    %v1667 = vld [vmem:[#allocation10 + $0x240] sm:$0xff]
    %v1668 = vld [vmem:[#allocation10 + $0x248] sm:$0xff]
    %v1669 = vld [vmem:[#allocation10 + $0x250] sm:$0xff]
    %v1670 = vld [vmem:[#allocation10 + $0x258] sm:$0xff]
    %v1671 = vld [vmem:[#allocation10 + $0x260] sm:$0xff]
    %v1672 = vld [vmem:[#allocation10 + $0x268] sm:$0xff]
    %v1673 = vld [vmem:[#allocation10 + $0x270] sm:$0xff]
    %v1674 = vld [vmem:[#allocation10 + $0x278] sm:$0xff]
    %v1675 = vld [vmem:[#allocation10 + $0x280] sm:$0xff]
    %v1676 = vld [vmem:[#allocation10 + $0x288] sm:$0xff]
    %v1677 = vld [vmem:[#allocation10 + $0x290] sm:$0xff]
    %v1678 = vld [vmem:[#allocation10 + $0x298] sm:$0xff]
    %v1679 = vld [vmem:[#allocation10 + $0x2a0] sm:$0xff]
    %v1680 = vld [vmem:[#allocation10 + $0x2a8] sm:$0xff]
    %v1681 = vld [vmem:[#allocation10 + $0x2b0] sm:$0xff]
    %v1682 = vld [vmem:[#allocation10 + $0x2b8] sm:$0xff]
    %v1683 = vld [vmem:[#allocation10 + $0x2c0] sm:$0xff]
    %v1684 = vld [vmem:[#allocation10 + $0x2c8] sm:$0xff]
    %v1685 = vld [vmem:[#allocation10 + $0x2d0] sm:$0xff]
    %v1686 = vld [vmem:[#allocation10 + $0x2d8] sm:$0xff]
    %v1687 = vld [vmem:[#allocation10 + $0x2e0] sm:$0xff]
    %v1688 = vld [vmem:[#allocation10 + $0x2e8] sm:$0xff]
    %v1689 = vld [vmem:[#allocation10 + $0x2f0] sm:$0xff]
    %v1690 = vld [vmem:[#allocation10 + $0x2f8] sm:$0xff]
    %v1691 = vld [vmem:[#allocation10 + $0x300] sm:$0xff]
    %v1692 = vld [vmem:[#allocation10 + $0x308] sm:$0xff]
    %v1693 = vld [vmem:[#allocation10 + $0x310] sm:$0xff]
    %v1694 = vld [vmem:[#allocation10 + $0x318] sm:$0xff]
    %v1695 = vld [vmem:[#allocation10 + $0x320] sm:$0xff]
    %v1696 = vld [vmem:[#allocation10 + $0x328] sm:$0xff]
    %v1697 = vld [vmem:[#allocation10 + $0x330] sm:$0xff]
    %v1698 = vld [vmem:[#allocation10 + $0x338] sm:$0xff]
    %v1699 = vld [vmem:[#allocation10 + $0x340] sm:$0xff]
    %v1700 = vld [vmem:[#allocation10 + $0x348] sm:$0xff]
    %v1701 = vld [vmem:[#allocation10 + $0x350] sm:$0xff]
    %v1702 = vld [vmem:[#allocation10 + $0x358] sm:$0xff]
    %v1703 = vld [vmem:[#allocation10 + $0x360] sm:$0xff]
    %v1704 = vld [vmem:[#allocation10 + $0x368] sm:$0xff]
    %v1705 = vld [vmem:[#allocation10 + $0x370] sm:$0xff]
    %v1706 = vld [vmem:[#allocation10 + $0x378] sm:$0xff]
    %v1707 = vld [vmem:[#allocation10 + $0x380] sm:$0xff]
    %v1708 = vld [vmem:[#allocation10 + $0x388] sm:$0xff]
    %v1709 = vld [vmem:[#allocation10 + $0x390] sm:$0xff]
    %v1710 = vld [vmem:[#allocation10 + $0x398] sm:$0xff]
    %v1711 = vld [vmem:[#allocation10 + $0x3a0] sm:$0xff]
    %v1712 = vld [vmem:[#allocation10 + $0x3a8] sm:$0xff]
    %v1713 = vld [vmem:[#allocation10 + $0x3b0] sm:$0xff]
    %v1714 = vld [vmem:[#allocation10 + $0x3b8] sm:$0xff]
    %v1715 = vld [vmem:[#allocation10 + $0x3c0] sm:$0xff]
    %v1716 = vld [vmem:[#allocation10 + $0x3c8] sm:$0xff]
    %v1717 = vld [vmem:[#allocation10 + $0x3d0] sm:$0xff]
    %v1718 = vld [vmem:[#allocation10 + $0x3d8] sm:$0xff]
    %v1719 = vld [vmem:[#allocation10 + $0x3e0] sm:$0xff]
    %v1720 = vld [vmem:[#allocation10 + $0x3e8] sm:$0xff]
    %v1721 = vld [vmem:[#allocation10 + $0x3f0] sm:$0xff]
    %v1722 = vld [vmem:[#allocation10 + $0x3f8] sm:$0xff]
    %v1723 = vld [vmem:[%s6] sm:$0xff]
    %v1725 = vlaneseq
    %v1726 = vshrl.u32 %v1725, 7
    %v1727 = vsub.s32 0, %v1726
    %v1728 = vrot.slane %v1723, %v1727
    %v1729 = vlaneseq
    %v1730 = vshrl.u32 %v1729, 7
    %v1731 = vsub.s32 1, %v1730
    %v1732 = vrot.slane %v1723, %v1731
    %v1733 = vlaneseq
    %v1734 = vshrl.u32 %v1733, 7
    %v1735 = vsub.s32 2, %v1734
    %v1736 = vrot.slane %v1723, %v1735
    %v1737 = vlaneseq
    %v1738 = vshrl.u32 %v1737, 7
    %v1739 = vsub.s32 3, %v1738
    %v1740 = vrot.slane %v1723, %v1739
    %v1741 = vlaneseq
    %v1742 = vshrl.u32 %v1741, 7
    %v1743 = vsub.s32 4, %v1742
    %v1744 = vrot.slane %v1723, %v1743
    %v1745 = vlaneseq
    %v1746 = vshrl.u32 %v1745, 7
    %v1747 = vsub.s32 5, %v1746
    %v1748 = vrot.slane %v1723, %v1747
    %v1749 = vlaneseq
    %v1750 = vshrl.u32 %v1749, 7
    %v1751 = vsub.s32 6, %v1750
    %v1752 = vrot.slane %v1723, %v1751
    %v1753 = vlaneseq
    %v1754 = vshrl.u32 %v1753, 7
    %v1755 = vsub.s32 7, %v1754
    %v1756 = vrot.slane %v1723, %v1755
    %v1893 = vunpack.c.l.b16 %v1595
    %v1894 = vunpack.c.h.b16 %v1595
    %v1895 = vunpack.c.l.b16 %v1596
    %v1896 = vunpack.c.h.b16 %v1596
    %v1897 = vunpack.c.l.b16 %v1597
    %v1898 = vunpack.c.h.b16 %v1597
    %v1899 = vunpack.c.l.b16 %v1598
    %v1900 = vunpack.c.h.b16 %v1598
    %v1901 = vunpack.c.l.b16 %v1599
    %v1902 = vunpack.c.h.b16 %v1599
    %v1903 = vunpack.c.l.b16 %v1600
    %v1904 = vunpack.c.h.b16 %v1600
    %v1905 = vunpack.c.l.b16 %v1601
    %v1906 = vunpack.c.h.b16 %v1601
    %v1907 = vunpack.c.l.b16 %v1602
    %v1908 = vunpack.c.h.b16 %v1602
    %v1909 = vunpack.c.l.b16 %v1603
    %v1910 = vunpack.c.h.b16 %v1603
    %v1911 = vunpack.c.l.b16 %v1604
    %v1912 = vunpack.c.h.b16 %v1604
    %v1913 = vunpack.c.l.b16 %v1605
    %v1914 = vunpack.c.h.b16 %v1605
    %v1915 = vunpack.c.l.b16 %v1606
    %v1916 = vunpack.c.h.b16 %v1606
    %v1917 = vunpack.c.l.b16 %v1607
    %v1918 = vunpack.c.h.b16 %v1607
    %v1919 = vunpack.c.l.b16 %v1608
    %v1920 = vunpack.c.h.b16 %v1608
    %v1921 = vunpack.c.l.b16 %v1609
    %v1922 = vunpack.c.h.b16 %v1609
    %v1923 = vunpack.c.l.b16 %v1610
    %v1924 = vunpack.c.h.b16 %v1610
    %v1925 = vunpack.c.l.b16 %v1611
    %v1926 = vunpack.c.h.b16 %v1611
    %v1927 = vunpack.c.l.b16 %v1612
    %v1928 = vunpack.c.h.b16 %v1612
    %v1929 = vunpack.c.l.b16 %v1613
    %v1930 = vunpack.c.h.b16 %v1613
    %v1931 = vunpack.c.l.b16 %v1614
    %v1932 = vunpack.c.h.b16 %v1614
    %v1933 = vunpack.c.l.b16 %v1615
    %v1934 = vunpack.c.h.b16 %v1615
    %v1935 = vunpack.c.l.b16 %v1616
    %v1936 = vunpack.c.h.b16 %v1616
    %v1937 = vunpack.c.l.b16 %v1617
    %v1938 = vunpack.c.h.b16 %v1617
    %v1939 = vunpack.c.l.b16 %v1618
    %v1940 = vunpack.c.h.b16 %v1618
    %v1941 = vunpack.c.l.b16 %v1619
    %v1942 = vunpack.c.h.b16 %v1619
    %v1943 = vunpack.c.l.b16 %v1620
    %v1944 = vunpack.c.h.b16 %v1620
    %v1945 = vunpack.c.l.b16 %v1621
    %v1946 = vunpack.c.h.b16 %v1621
    %v1947 = vunpack.c.l.b16 %v1622
    %v1948 = vunpack.c.h.b16 %v1622
    %v1949 = vunpack.c.l.b16 %v1623
    %v1950 = vunpack.c.h.b16 %v1623
    %v1951 = vunpack.c.l.b16 %v1624
    %v1952 = vunpack.c.h.b16 %v1624
    %v1953 = vunpack.c.l.b16 %v1625
    %v1954 = vunpack.c.h.b16 %v1625
    %v1955 = vunpack.c.l.b16 %v1626
    %v1956 = vunpack.c.h.b16 %v1626
    %v1957 = vunpack.c.l.b16 %v1627
    %v1958 = vunpack.c.h.b16 %v1627
    %v1959 = vunpack.c.l.b16 %v1628
    %v1960 = vunpack.c.h.b16 %v1628
    %v1961 = vunpack.c.l.b16 %v1629
    %v1962 = vunpack.c.h.b16 %v1629
    %v1963 = vunpack.c.l.b16 %v1630
    %v1964 = vunpack.c.h.b16 %v1630
    %v1965 = vunpack.c.l.b16 %v1631
    %v1966 = vunpack.c.h.b16 %v1631
    %v1967 = vunpack.c.l.b16 %v1632
    %v1968 = vunpack.c.h.b16 %v1632
    %v1969 = vunpack.c.l.b16 %v1633
    %v1970 = vunpack.c.h.b16 %v1633
    %v1971 = vunpack.c.l.b16 %v1634
    %v1972 = vunpack.c.h.b16 %v1634
    %v1973 = vunpack.c.l.b16 %v1635
    %v1974 = vunpack.c.h.b16 %v1635
    %v1975 = vunpack.c.l.b16 %v1636
    %v1976 = vunpack.c.h.b16 %v1636
    %v1977 = vunpack.c.l.b16 %v1637
    %v1978 = vunpack.c.h.b16 %v1637
    %v1979 = vunpack.c.l.b16 %v1638
    %v1980 = vunpack.c.h.b16 %v1638
    %v1981 = vunpack.c.l.b16 %v1639
    %v1982 = vunpack.c.h.b16 %v1639
    %v1983 = vunpack.c.l.b16 %v1640
    %v1984 = vunpack.c.h.b16 %v1640
    %v1985 = vunpack.c.l.b16 %v1641
    %v1986 = vunpack.c.h.b16 %v1641
    %v1987 = vunpack.c.l.b16 %v1642
    %v1988 = vunpack.c.h.b16 %v1642
    %v1989 = vunpack.c.l.b16 %v1643
    %v1990 = vunpack.c.h.b16 %v1643
    %v1991 = vunpack.c.l.b16 %v1644
    %v1992 = vunpack.c.h.b16 %v1644
    %v1993 = vunpack.c.l.b16 %v1645
    %v1994 = vunpack.c.h.b16 %v1645
    %v1995 = vunpack.c.l.b16 %v1646
    %v1996 = vunpack.c.h.b16 %v1646
    %v1997 = vunpack.c.l.b16 %v1647
    %v1998 = vunpack.c.h.b16 %v1647
    %v1999 = vunpack.c.l.b16 %v1648
    %v2000 = vunpack.c.h.b16 %v1648
    %v2001 = vunpack.c.l.b16 %v1649
    %v2002 = vunpack.c.h.b16 %v1649
    %v2003 = vunpack.c.l.b16 %v1650
    %v2004 = vunpack.c.h.b16 %v1650
    %v2005 = vunpack.c.l.b16 %v1651
    %v2006 = vunpack.c.h.b16 %v1651
    %v2007 = vunpack.c.l.b16 %v1652
    %v2008 = vunpack.c.h.b16 %v1652
    %v2009 = vunpack.c.l.b16 %v1653
    %v2010 = vunpack.c.h.b16 %v1653
    %v2011 = vunpack.c.l.b16 %v1654
    %v2012 = vunpack.c.h.b16 %v1654
    %v2013 = vunpack.c.l.b16 %v1655
    %v2014 = vunpack.c.h.b16 %v1655
    %v2015 = vunpack.c.l.b16 %v1656
    %v2016 = vunpack.c.h.b16 %v1656
    %v2017 = vunpack.c.l.b16 %v1657
    %v2018 = vunpack.c.h.b16 %v1657
    %v2019 = vunpack.c.l.b16 %v1658
    %v2020 = vunpack.c.h.b16 %v1658
    %v2021 = vunpack.c.l.b16 %v1659
    %v2022 = vunpack.c.h.b16 %v1659
    %v2023 = vunpack.c.l.b16 %v1660
    %v2024 = vunpack.c.h.b16 %v1660
    %v2025 = vunpack.c.l.b16 %v1661
    %v2026 = vunpack.c.h.b16 %v1661
    %v2027 = vunpack.c.l.b16 %v1662
    %v2028 = vunpack.c.h.b16 %v1662
    %v2029 = vunpack.c.l.b16 %v1663
    %v2030 = vunpack.c.h.b16 %v1663
    %v2031 = vunpack.c.l.b16 %v1664
    %v2032 = vunpack.c.h.b16 %v1664
    %v2033 = vunpack.c.l.b16 %v1665
    %v2034 = vunpack.c.h.b16 %v1665
    %v2035 = vunpack.c.l.b16 %v1666
    %v2036 = vunpack.c.h.b16 %v1666
    %v2037 = vunpack.c.l.b16 %v1667
    %v2038 = vunpack.c.h.b16 %v1667
    %v2039 = vunpack.c.l.b16 %v1668
    %v2040 = vunpack.c.h.b16 %v1668
    %v2041 = vunpack.c.l.b16 %v1669
    %v2042 = vunpack.c.h.b16 %v1669
    %v2043 = vunpack.c.l.b16 %v1670
    %v2044 = vunpack.c.h.b16 %v1670
    %v2045 = vunpack.c.l.b16 %v1671
    %v2046 = vunpack.c.h.b16 %v1671
    %v2047 = vunpack.c.l.b16 %v1672
    %v2048 = vunpack.c.h.b16 %v1672
    %v2049 = vunpack.c.l.b16 %v1673
    %v2050 = vunpack.c.h.b16 %v1673
    %v2051 = vunpack.c.l.b16 %v1674
    %v2052 = vunpack.c.h.b16 %v1674
    %v2053 = vunpack.c.l.b16 %v1675
    %v2054 = vunpack.c.h.b16 %v1675
    %v2055 = vunpack.c.l.b16 %v1676
    %v2056 = vunpack.c.h.b16 %v1676
    %v2057 = vunpack.c.l.b16 %v1677
    %v2058 = vunpack.c.h.b16 %v1677
    %v2059 = vunpack.c.l.b16 %v1678
    %v2060 = vunpack.c.h.b16 %v1678
    %v2061 = vunpack.c.l.b16 %v1679
    %v2062 = vunpack.c.h.b16 %v1679
    %v2063 = vunpack.c.l.b16 %v1680
    %v2064 = vunpack.c.h.b16 %v1680
    %v2065 = vunpack.c.l.b16 %v1681
    %v2066 = vunpack.c.h.b16 %v1681
    %v2067 = vunpack.c.l.b16 %v1682
    %v2068 = vunpack.c.h.b16 %v1682
    %v2069 = vunpack.c.l.b16 %v1683
    %v2070 = vunpack.c.h.b16 %v1683
    %v2071 = vunpack.c.l.b16 %v1684
    %v2072 = vunpack.c.h.b16 %v1684
    %v2073 = vunpack.c.l.b16 %v1685
    %v2074 = vunpack.c.h.b16 %v1685
    %v2075 = vunpack.c.l.b16 %v1686
    %v2076 = vunpack.c.h.b16 %v1686
    %v2077 = vunpack.c.l.b16 %v1687
    %v2078 = vunpack.c.h.b16 %v1687
    %v2079 = vunpack.c.l.b16 %v1688
    %v2080 = vunpack.c.h.b16 %v1688
    %v2081 = vunpack.c.l.b16 %v1689
    %v2082 = vunpack.c.h.b16 %v1689
    %v2083 = vunpack.c.l.b16 %v1690
    %v2084 = vunpack.c.h.b16 %v1690
    %v2085 = vunpack.c.l.b16 %v1691
    %v2086 = vunpack.c.h.b16 %v1691
    %v2087 = vunpack.c.l.b16 %v1692
    %v2088 = vunpack.c.h.b16 %v1692
    %v2089 = vunpack.c.l.b16 %v1693
    %v2090 = vunpack.c.h.b16 %v1693
    %v2091 = vunpack.c.l.b16 %v1694
    %v2092 = vunpack.c.h.b16 %v1694
    %v2093 = vunpack.c.l.b16 %v1695
    %v2094 = vunpack.c.h.b16 %v1695
    %v2095 = vunpack.c.l.b16 %v1696
    %v2096 = vunpack.c.h.b16 %v1696
    %v2097 = vunpack.c.l.b16 %v1697
    %v2098 = vunpack.c.h.b16 %v1697
    %v2099 = vunpack.c.l.b16 %v1698
    %v2100 = vunpack.c.h.b16 %v1698
    %v2101 = vunpack.c.l.b16 %v1699
    %v2102 = vunpack.c.h.b16 %v1699
    %v2103 = vunpack.c.l.b16 %v1700
    %v2104 = vunpack.c.h.b16 %v1700
    %v2105 = vunpack.c.l.b16 %v1701
    %v2106 = vunpack.c.h.b16 %v1701
    %v2107 = vunpack.c.l.b16 %v1702
    %v2108 = vunpack.c.h.b16 %v1702
    %v2109 = vunpack.c.l.b16 %v1703
    %v2110 = vunpack.c.h.b16 %v1703
    %v2111 = vunpack.c.l.b16 %v1704
    %v2112 = vunpack.c.h.b16 %v1704
    %v2113 = vunpack.c.l.b16 %v1705
    %v2114 = vunpack.c.h.b16 %v1705
    %v2115 = vunpack.c.l.b16 %v1706
    %v2116 = vunpack.c.h.b16 %v1706
    %v2117 = vunpack.c.l.b16 %v1707
    %v2118 = vunpack.c.h.b16 %v1707
    %v2119 = vunpack.c.l.b16 %v1708
    %v2120 = vunpack.c.h.b16 %v1708
    %v2121 = vunpack.c.l.b16 %v1709
    %v2122 = vunpack.c.h.b16 %v1709
    %v2123 = vunpack.c.l.b16 %v1710
    %v2124 = vunpack.c.h.b16 %v1710
    %v2125 = vunpack.c.l.b16 %v1711
    %v2126 = vunpack.c.h.b16 %v1711
    %v2127 = vunpack.c.l.b16 %v1712
    %v2128 = vunpack.c.h.b16 %v1712
    %v2129 = vunpack.c.l.b16 %v1713
    %v2130 = vunpack.c.h.b16 %v1713
    %v2131 = vunpack.c.l.b16 %v1714
    %v2132 = vunpack.c.h.b16 %v1714
    %v2133 = vunpack.c.l.b16 %v1715
    %v2134 = vunpack.c.h.b16 %v1715
    %v2135 = vunpack.c.l.b16 %v1716
    %v2136 = vunpack.c.h.b16 %v1716
    %v2137 = vunpack.c.l.b16 %v1717
    %v2138 = vunpack.c.h.b16 %v1717
    %v2139 = vunpack.c.l.b16 %v1718
    %v2140 = vunpack.c.h.b16 %v1718
    %v2141 = vunpack.c.l.b16 %v1719
    %v2142 = vunpack.c.h.b16 %v1719
    %v2143 = vunpack.c.l.b16 %v1720
    %v2144 = vunpack.c.h.b16 %v1720
    %v2145 = vunpack.c.l.b16 %v1721
    %v2146 = vunpack.c.h.b16 %v1721
    %v2147 = vunpack.c.l.b16 %v1722
    %v2148 = vunpack.c.h.b16 %v1722
    %v2149 = vpack.c.b16 %v1901, %v1893
    %v2150 = vpack.c.b16 %v1902, %v1894
    %v2151 = vpack.c.b16 %v1903, %v1895
    %v2152 = vpack.c.b16 %v1904, %v1896
    %v2153 = vpack.c.b16 %v1905, %v1897
    %v2154 = vpack.c.b16 %v1906, %v1898
    %v2155 = vpack.c.b16 %v1907, %v1899
    %v2156 = vpack.c.b16 %v1908, %v1900
    %v2157 = vpack.c.b16 %v1917, %v1909
    %v2158 = vpack.c.b16 %v1918, %v1910
    %v2159 = vpack.c.b16 %v1919, %v1911
    %v2160 = vpack.c.b16 %v1920, %v1912
    %v2161 = vpack.c.b16 %v1921, %v1913
    %v2162 = vpack.c.b16 %v1922, %v1914
    %v2163 = vpack.c.b16 %v1923, %v1915
    %v2164 = vpack.c.b16 %v1924, %v1916
    %v2165 = vpack.c.b16 %v1933, %v1925
    %v2166 = vpack.c.b16 %v1934, %v1926
    %v2167 = vpack.c.b16 %v1935, %v1927
    %v2168 = vpack.c.b16 %v1936, %v1928
    %v2169 = vpack.c.b16 %v1937, %v1929
    %v2170 = vpack.c.b16 %v1938, %v1930
    %v2171 = vpack.c.b16 %v1939, %v1931
    %v2172 = vpack.c.b16 %v1940, %v1932
    %v2173 = vpack.c.b16 %v1949, %v1941
    %v2174 = vpack.c.b16 %v1950, %v1942
    %v2175 = vpack.c.b16 %v1951, %v1943
    %v2176 = vpack.c.b16 %v1952, %v1944
    %v2177 = vpack.c.b16 %v1953, %v1945
    %v2178 = vpack.c.b16 %v1954, %v1946
    %v2179 = vpack.c.b16 %v1955, %v1947
    %v2180 = vpack.c.b16 %v1956, %v1948
    %v2181 = vpack.c.b16 %v1965, %v1957
    %v2182 = vpack.c.b16 %v1966, %v1958
    %v2183 = vpack.c.b16 %v1967, %v1959
    %v2184 = vpack.c.b16 %v1968, %v1960
    %v2185 = vpack.c.b16 %v1969, %v1961
    %v2186 = vpack.c.b16 %v1970, %v1962
    %v2187 = vpack.c.b16 %v1971, %v1963
    %v2188 = vpack.c.b16 %v1972, %v1964
    %v2189 = vpack.c.b16 %v1981, %v1973
    %v2190 = vpack.c.b16 %v1982, %v1974
    %v2191 = vpack.c.b16 %v1983, %v1975
    %v2192 = vpack.c.b16 %v1984, %v1976
    %v2193 = vpack.c.b16 %v1985, %v1977
    %v2194 = vpack.c.b16 %v1986, %v1978
    %v2195 = vpack.c.b16 %v1987, %v1979
    %v2196 = vpack.c.b16 %v1988, %v1980
    %v2197 = vpack.c.b16 %v1997, %v1989
    %v2198 = vpack.c.b16 %v1998, %v1990
    %v2199 = vpack.c.b16 %v1999, %v1991
    %v2200 = vpack.c.b16 %v2000, %v1992
    %v2201 = vpack.c.b16 %v2001, %v1993
    %v2202 = vpack.c.b16 %v2002, %v1994
    %v2203 = vpack.c.b16 %v2003, %v1995
    %v2204 = vpack.c.b16 %v2004, %v1996
    %v2205 = vpack.c.b16 %v2013, %v2005
    %v2206 = vpack.c.b16 %v2014, %v2006
    %v2207 = vpack.c.b16 %v2015, %v2007
    %v2208 = vpack.c.b16 %v2016, %v2008
    %v2209 = vpack.c.b16 %v2017, %v2009
    %v2210 = vpack.c.b16 %v2018, %v2010
    %v2211 = vpack.c.b16 %v2019, %v2011
    %v2212 = vpack.c.b16 %v2020, %v2012
    %v2213 = vpack.c.b16 %v2029, %v2021
    %v2214 = vpack.c.b16 %v2030, %v2022
    %v2215 = vpack.c.b16 %v2031, %v2023
    %v2216 = vpack.c.b16 %v2032, %v2024
    %v2217 = vpack.c.b16 %v2033, %v2025
    %v2218 = vpack.c.b16 %v2034, %v2026
    %v2219 = vpack.c.b16 %v2035, %v2027
    %v2220 = vpack.c.b16 %v2036, %v2028
    %v2221 = vpack.c.b16 %v2045, %v2037
    %v2222 = vpack.c.b16 %v2046, %v2038
    %v2223 = vpack.c.b16 %v2047, %v2039
    %v2224 = vpack.c.b16 %v2048, %v2040
    %v2225 = vpack.c.b16 %v2049, %v2041
    %v2226 = vpack.c.b16 %v2050, %v2042
    %v2227 = vpack.c.b16 %v2051, %v2043
    %v2228 = vpack.c.b16 %v2052, %v2044
    %v2229 = vpack.c.b16 %v2061, %v2053
    %v2230 = vpack.c.b16 %v2062, %v2054
    %v2231 = vpack.c.b16 %v2063, %v2055
    %v2232 = vpack.c.b16 %v2064, %v2056
    %v2233 = vpack.c.b16 %v2065, %v2057
    %v2234 = vpack.c.b16 %v2066, %v2058
    %v2235 = vpack.c.b16 %v2067, %v2059
    %v2236 = vpack.c.b16 %v2068, %v2060
    %v2237 = vpack.c.b16 %v2077, %v2069
    %v2238 = vpack.c.b16 %v2078, %v2070
    %v2239 = vpack.c.b16 %v2079, %v2071
    %v2240 = vpack.c.b16 %v2080, %v2072
    %v2241 = vpack.c.b16 %v2081, %v2073
    %v2242 = vpack.c.b16 %v2082, %v2074
    %v2243 = vpack.c.b16 %v2083, %v2075
    %v2244 = vpack.c.b16 %v2084, %v2076
    %v2245 = vpack.c.b16 %v2093, %v2085
    %v2246 = vpack.c.b16 %v2094, %v2086
    %v2247 = vpack.c.b16 %v2095, %v2087
    %v2248 = vpack.c.b16 %v2096, %v2088
    %v2249 = vpack.c.b16 %v2097, %v2089
    %v2250 = vpack.c.b16 %v2098, %v2090
    %v2251 = vpack.c.b16 %v2099, %v2091
    %v2252 = vpack.c.b16 %v2100, %v2092
    %v2253 = vpack.c.b16 %v2109, %v2101
    %v2254 = vpack.c.b16 %v2110, %v2102
    %v2255 = vpack.c.b16 %v2111, %v2103
    %v2256 = vpack.c.b16 %v2112, %v2104
    %v2257 = vpack.c.b16 %v2113, %v2105
    %v2258 = vpack.c.b16 %v2114, %v2106
    %v2259 = vpack.c.b16 %v2115, %v2107
    %v2260 = vpack.c.b16 %v2116, %v2108
    %v2261 = vpack.c.b16 %v2125, %v2117
    %v2262 = vpack.c.b16 %v2126, %v2118
    %v2263 = vpack.c.b16 %v2127, %v2119
    %v2264 = vpack.c.b16 %v2128, %v2120
    %v2265 = vpack.c.b16 %v2129, %v2121
    %v2266 = vpack.c.b16 %v2130, %v2122
    %v2267 = vpack.c.b16 %v2131, %v2123
    %v2268 = vpack.c.b16 %v2132, %v2124
    %v2269 = vpack.c.b16 %v2141, %v2133
    %v2270 = vpack.c.b16 %v2142, %v2134
    %v2271 = vpack.c.b16 %v2143, %v2135
    %v2272 = vpack.c.b16 %v2144, %v2136
    %v2273 = vpack.c.b16 %v2145, %v2137
    %v2274 = vpack.c.b16 %v2146, %v2138
    %v2275 = vpack.c.b16 %v2147, %v2139
    %v2276 = vpack.c.b16 %v2148, %v2140
    %2405 = vmatprep.subr.bf16.mxu0 %v2206
    %2406 = vmatpush1.bf16.msra.mxu0 %v2205
    %2407 = vmatprep.subr.bf16.mxu0 %v2198
    %2408 = vmatpush1.bf16.msra.mxu0 %v2197
    %2409 = vmatprep.subr.bf16.mxu0 %v2190
    %2410 = vmatpush1.bf16.msra.mxu0 %v2189
    %2411 = vmatprep.subr.bf16.mxu0 %v2182
    %2412 = vmatpush1.bf16.msra.mxu0 %v2181
    %2413 = vmatprep.subr.bf16.mxu0 %v2174
    %2414 = vmatpush1.bf16.msra.mxu0 %v2173
    %2415 = vmatprep.subr.bf16.mxu0 %v2166
    %2416 = vmatpush1.bf16.msra.mxu0 %v2165
    %2417 = vmatprep.subr.bf16.mxu0 %v2158
    %2418 = vmatpush1.bf16.msra.mxu0 %v2157
    %2419 = vmatprep.subr.bf16.mxu0 %v2150
    %2420 = vmatpush1.bf16.msra.mxu0 %v2149
    %2421 = vmatprep.subr.bf16.mxu0 %v2270
    %2422 = vmatpush2.bf16.msra.mxu0 %v2269
    %2423 = vmatprep.subr.bf16.mxu0 %v2262
    %2424 = vmatpush2.bf16.msra.mxu0 %v2261
    %2425 = vmatprep.subr.bf16.mxu0 %v2254
    %2426 = vmatpush2.bf16.msra.mxu0 %v2253
    %2427 = vmatprep.subr.bf16.mxu0 %v2246
    %2428 = vmatpush2.bf16.msra.mxu0 %v2245
    %2429 = vmatprep.subr.bf16.mxu0 %v2238
    %2430 = vmatpush2.bf16.msra.mxu0 %v2237
    %2431 = vmatprep.subr.bf16.mxu0 %v2230
    %2432 = vmatpush2.bf16.msra.mxu0 %v2229
    %2433 = vmatprep.subr.bf16.mxu0 %v2222
    %2434 = vmatpush2.bf16.msra.mxu0 %v2221
    %2435 = vmatprep.subr.bf16.mxu0 %v2214
    %2436 = vmatpush2.bf16.msra.mxu0 %v2213
    %2437 = vmatprep.mubr.bf16.mxu0 %v1594
    %2438 = vmatmul.mubr.bf16.gmra.mxu0 %v1593
    %v2439 = vpop.f32.mrf.mxu0
    %v2440 = vadd.f32 %v1728, %v2439
    %v2441 = vpop.f32.mrf.mxu0
    %v2442 = vadd.f32 %v1732, %v2441
    %v2443 = vpop.f32.mrf.mxu0
    %v2444 = vpop.f32.mrf.mxu0
    %2445 = vdwg.mxu0
    %2446 = vmatprep.subr.bf16.mxu0 %v2208
    %2447 = vmatpush1.bf16.msra.mxu0 %v2207
    %2448 = vmatprep.subr.bf16.mxu0 %v2200
    %2449 = vmatpush1.bf16.msra.mxu0 %v2199
    %2450 = vmatprep.subr.bf16.mxu0 %v2192
    %2451 = vmatpush1.bf16.msra.mxu0 %v2191
    %2452 = vmatprep.subr.bf16.mxu0 %v2184
    %2453 = vmatpush1.bf16.msra.mxu0 %v2183
    %2454 = vmatprep.subr.bf16.mxu0 %v2176
    %2455 = vmatpush1.bf16.msra.mxu0 %v2175
    %2456 = vmatprep.subr.bf16.mxu0 %v2168
    %2457 = vmatpush1.bf16.msra.mxu0 %v2167
    %2458 = vmatprep.subr.bf16.mxu0 %v2160
    %2459 = vmatpush1.bf16.msra.mxu0 %v2159
    %2460 = vmatprep.subr.bf16.mxu0 %v2152
    %2461 = vmatpush1.bf16.msra.mxu0 %v2151
    %2462 = vmatprep.subr.bf16.mxu0 %v2272
    %2463 = vmatpush2.bf16.msra.mxu0 %v2271
    %2464 = vmatprep.subr.bf16.mxu0 %v2264
    %2465 = vmatpush2.bf16.msra.mxu0 %v2263
    %2466 = vmatprep.subr.bf16.mxu0 %v2256
    %2467 = vmatpush2.bf16.msra.mxu0 %v2255
    %2468 = vmatprep.subr.bf16.mxu0 %v2248
    %2469 = vmatpush2.bf16.msra.mxu0 %v2247
    %2470 = vmatprep.subr.bf16.mxu0 %v2240
    %2471 = vmatpush2.bf16.msra.mxu0 %v2239
    %2472 = vmatprep.subr.bf16.mxu0 %v2232
    %2473 = vmatpush2.bf16.msra.mxu0 %v2231
    %2474 = vmatprep.subr.bf16.mxu0 %v2224
    %2475 = vmatpush2.bf16.msra.mxu0 %v2223
    %2476 = vmatprep.subr.bf16.mxu0 %v2216
    %2477 = vmatpush2.bf16.msra.mxu0 %v2215
    %2478 = vmatprep.mubr.bf16.mxu0 %v1594
    %2479 = vmatmul.mubr.bf16.gmra.mxu0 %v1593
    %v2480 = vpop.f32.mrf.mxu0
    %v2481 = vadd.f32 %v1736, %v2480
    %v2482 = vpop.f32.mrf.mxu0
    %v2483 = vadd.f32 %v1740, %v2482
    %v2484 = vpop.f32.mrf.mxu0
    %v2485 = vpop.f32.mrf.mxu0
    %2486 = vdwg.mxu0
    %2487 = vmatprep.subr.bf16.mxu0 %v2210
    %2488 = vmatpush1.bf16.msra.mxu0 %v2209
    %2489 = vmatprep.subr.bf16.mxu0 %v2202
    %2490 = vmatpush1.bf16.msra.mxu0 %v2201
    %2491 = vmatprep.subr.bf16.mxu0 %v2194
    %2492 = vmatpush1.bf16.msra.mxu0 %v2193
    %2493 = vmatprep.subr.bf16.mxu0 %v2186
    %2494 = vmatpush1.bf16.msra.mxu0 %v2185
    %2495 = vmatprep.subr.bf16.mxu0 %v2178
    %2496 = vmatpush1.bf16.msra.mxu0 %v2177
    %2497 = vmatprep.subr.bf16.mxu0 %v2170
    %2498 = vmatpush1.bf16.msra.mxu0 %v2169
    %2499 = vmatprep.subr.bf16.mxu0 %v2162
    %2500 = vmatpush1.bf16.msra.mxu0 %v2161
    %2501 = vmatprep.subr.bf16.mxu0 %v2154
    %2502 = vmatpush1.bf16.msra.mxu0 %v2153
    %2503 = vmatprep.subr.bf16.mxu0 %v2274
    %2504 = vmatpush2.bf16.msra.mxu0 %v2273
    %2505 = vmatprep.subr.bf16.mxu0 %v2266
    %2506 = vmatpush2.bf16.msra.mxu0 %v2265
    %2507 = vmatprep.subr.bf16.mxu0 %v2258
    %2508 = vmatpush2.bf16.msra.mxu0 %v2257
    %2509 = vmatprep.subr.bf16.mxu0 %v2250
    %2510 = vmatpush2.bf16.msra.mxu0 %v2249
    %2511 = vmatprep.subr.bf16.mxu0 %v2242
    %2512 = vmatpush2.bf16.msra.mxu0 %v2241
    %2513 = vmatprep.subr.bf16.mxu0 %v2234
    %2514 = vmatpush2.bf16.msra.mxu0 %v2233
    %2515 = vmatprep.subr.bf16.mxu0 %v2226
    %2516 = vmatpush2.bf16.msra.mxu0 %v2225
    %2517 = vmatprep.subr.bf16.mxu0 %v2218
    %2518 = vmatpush2.bf16.msra.mxu0 %v2217
    %2519 = vmatprep.mubr.bf16.mxu0 %v1594
    %2520 = vmatmul.mubr.bf16.gmra.mxu0 %v1593
    %v2521 = vpop.f32.mrf.mxu0
    %v2522 = vadd.f32 %v1744, %v2521
    %v2523 = vpop.f32.mrf.mxu0
    %v2524 = vadd.f32 %v1748, %v2523
    %v2525 = vpop.f32.mrf.mxu0
    %v2526 = vpop.f32.mrf.mxu0
    %2527 = vdwg.mxu0
    %2528 = vmatprep.subr.bf16.mxu0 %v2212
    %2529 = vmatpush1.bf16.msra.mxu0 %v2211
    %2530 = vmatprep.subr.bf16.mxu0 %v2204
    %2531 = vmatpush1.bf16.msra.mxu0 %v2203
    %2532 = vmatprep.subr.bf16.mxu0 %v2196
    %2533 = vmatpush1.bf16.msra.mxu0 %v2195
    %2534 = vmatprep.subr.bf16.mxu0 %v2188
    %2535 = vmatpush1.bf16.msra.mxu0 %v2187
    %2536 = vmatprep.subr.bf16.mxu0 %v2180
    %2537 = vmatpush1.bf16.msra.mxu0 %v2179
    %2538 = vmatprep.subr.bf16.mxu0 %v2172
    %2539 = vmatpush1.bf16.msra.mxu0 %v2171
    %2540 = vmatprep.subr.bf16.mxu0 %v2164
    %2541 = vmatpush1.bf16.msra.mxu0 %v2163
    %2542 = vmatprep.subr.bf16.mxu0 %v2156
    %2543 = vmatpush1.bf16.msra.mxu0 %v2155
    %2544 = vmatprep.subr.bf16.mxu0 %v2276
    %2545 = vmatpush2.bf16.msra.mxu0 %v2275
    %2546 = vmatprep.subr.bf16.mxu0 %v2268
    %2547 = vmatpush2.bf16.msra.mxu0 %v2267
    %2548 = vmatprep.subr.bf16.mxu0 %v2260
    %2549 = vmatpush2.bf16.msra.mxu0 %v2259
    %2550 = vmatprep.subr.bf16.mxu0 %v2252
    %2551 = vmatpush2.bf16.msra.mxu0 %v2251
    %2552 = vmatprep.subr.bf16.mxu0 %v2244
    %2553 = vmatpush2.bf16.msra.mxu0 %v2243
    %2554 = vmatprep.subr.bf16.mxu0 %v2236
    %2555 = vmatpush2.bf16.msra.mxu0 %v2235
    %2556 = vmatprep.subr.bf16.mxu0 %v2228
    %2557 = vmatpush2.bf16.msra.mxu0 %v2227
    %2558 = vmatprep.subr.bf16.mxu0 %v2220
    %2559 = vmatpush2.bf16.msra.mxu0 %v2219
    %2560 = vmatprep.mubr.bf16.mxu0 %v1594
    %2561 = vmatmul.mubr.bf16.gmra.mxu0 %v1593
    %v2562 = vpop.f32.mrf.mxu0
    %v2563 = vadd.f32 %v1752, %v2562
    %v2564 = vpop.f32.mrf.mxu0
    %v2565 = vadd.f32 %v1756, %v2564
    %v2566 = vpop.f32.mrf.mxu0
    %v2567 = vpop.f32.mrf.mxu0
    %2568 = vdwg.mxu0
    %v2569 = vmul.f32 %v2440, 0.5
    %v2570 = vmul.f32 %v2442, 0.5
    %v2571 = vmul.f32 %v2481, 0.5
    %v2572 = vmul.f32 %v2483, 0.5
    %v2573 = vmul.f32 %v2522, 0.5
    %v2574 = vmul.f32 %v2524, 0.5
    %v2575 = vmul.f32 %v2563, 0.5
    %v2576 = vmul.f32 %v2565, 0.5
    %v2577 = vmul.f32 %v2440, 0.70710677
    %v2578 = vmul.f32 %v2442, 0.70710677
    %v2579 = vmul.f32 %v2481, 0.70710677
    %v2580 = vmul.f32 %v2483, 0.70710677
    %v2581 = vmul.f32 %v2522, 0.70710677
    %v2582 = vmul.f32 %v2524, 0.70710677
    %v2583 = vmul.f32 %v2563, 0.70710677
    %v2584 = vmul.f32 %v2565, 0.70710677
    %v2585 = verf.f32.pop %v2577
    %v2586 = verf.f32.pop %v2578
    %v2587 = verf.f32.pop %v2579
    %v2588 = verf.f32.pop %v2580
    %v2589 = verf.f32.pop %v2581
    %v2590 = verf.f32.pop %v2582
    %v2591 = verf.f32.pop %v2583
    %v2592 = verf.f32.pop %v2584
    %v2593 = vadd.f32 %v2585, 1.0
    %v2594 = vadd.f32 %v2586, 1.0
    %v2595 = vadd.f32 %v2587, 1.0
    %v2596 = vadd.f32 %v2588, 1.0
    %v2597 = vadd.f32 %v2589, 1.0
    %v2598 = vadd.f32 %v2590, 1.0
    %v2599 = vadd.f32 %v2591, 1.0
    %v2600 = vadd.f32 %v2592, 1.0
    %v2601 = vmul.f32 %v2569, %v2593
    %v2602 = vmul.f32 %v2570, %v2594
    %v2603 = vmul.f32 %v2571, %v2595
    %v2604 = vmul.f32 %v2572, %v2596
    %v2605 = vmul.f32 %v2573, %v2597
    %v2606 = vmul.f32 %v2574, %v2598
    %v2607 = vmul.f32 %v2575, %v2599
    %v2608 = vmul.f32 %v2576, %v2600
    %v2609 = vpack.c.bf16 %v2601, %v2601
    %v2610 = vpack.c.bf16 %v2602, %v2602
    %v2611 = vpack.c.bf16 %v2603, %v2603
    %v2612 = vpack.c.bf16 %v2604, %v2604
    %v2613 = vpack.c.bf16 %v2605, %v2605
    %v2614 = vpack.c.bf16 %v2606, %v2606
    %v2615 = vpack.c.bf16 %v2607, %v2607
    %v2616 = vpack.c.bf16 %v2608, %v2608
    %v2617 = vld [vmem:[#allocation11] sm:$0xff]
    %v2618 = vld [vmem:[#allocation11 + $0x8] sm:$0xff]
    %v2619 = vld [vmem:[#allocation11 + $0x10] sm:$0xff]
    %v2620 = vld [vmem:[#allocation11 + $0x18] sm:$0xff]
    %v2621 = vld [vmem:[#allocation11 + $0x20] sm:$0xff]
    %v2622 = vld [vmem:[#allocation11 + $0x28] sm:$0xff]
    %v2623 = vld [vmem:[#allocation11 + $0x30] sm:$0xff]
    %v2624 = vld [vmem:[#allocation11 + $0x38] sm:$0xff]
    %v2625 = vld [vmem:[#allocation11 + $0x40] sm:$0xff]
    %v2626 = vld [vmem:[#allocation11 + $0x48] sm:$0xff]
    %v2627 = vld [vmem:[#allocation11 + $0x50] sm:$0xff]
    %v2628 = vld [vmem:[#allocation11 + $0x58] sm:$0xff]
    %v2629 = vld [vmem:[#allocation11 + $0x60] sm:$0xff]
    %v2630 = vld [vmem:[#allocation11 + $0x68] sm:$0xff]
    %v2631 = vld [vmem:[#allocation11 + $0x70] sm:$0xff]
    %v2632 = vld [vmem:[#allocation11 + $0x78] sm:$0xff]
    %v2633 = vld [vmem:[#allocation11 + $0x80] sm:$0xff]
    %v2634 = vld [vmem:[#allocation11 + $0x88] sm:$0xff]
    %v2635 = vld [vmem:[#allocation11 + $0x90] sm:$0xff]
    %v2636 = vld [vmem:[#allocation11 + $0x98] sm:$0xff]
    %v2637 = vld [vmem:[#allocation11 + $0xa0] sm:$0xff]
    %v2638 = vld [vmem:[#allocation11 + $0xa8] sm:$0xff]
    %v2639 = vld [vmem:[#allocation11 + $0xb0] sm:$0xff]
    %v2640 = vld [vmem:[#allocation11 + $0xb8] sm:$0xff]
    %v2641 = vld [vmem:[#allocation11 + $0xc0] sm:$0xff]
    %v2642 = vld [vmem:[#allocation11 + $0xc8] sm:$0xff]
    %v2643 = vld [vmem:[#allocation11 + $0xd0] sm:$0xff]
    %v2644 = vld [vmem:[#allocation11 + $0xd8] sm:$0xff]
    %v2645 = vld [vmem:[#allocation11 + $0xe0] sm:$0xff]
    %v2646 = vld [vmem:[#allocation11 + $0xe8] sm:$0xff]
    %v2647 = vld [vmem:[#allocation11 + $0xf0] sm:$0xff]
    %v2648 = vld [vmem:[#allocation11 + $0xf8] sm:$0xff]
    %v2649 = vld [vmem:[#allocation11 + $0x100] sm:$0xff]
    %v2650 = vld [vmem:[#allocation11 + $0x108] sm:$0xff]
    %v2651 = vld [vmem:[#allocation11 + $0x110] sm:$0xff]
    %v2652 = vld [vmem:[#allocation11 + $0x118] sm:$0xff]
    %v2653 = vld [vmem:[#allocation11 + $0x120] sm:$0xff]
    %v2654 = vld [vmem:[#allocation11 + $0x128] sm:$0xff]
    %v2655 = vld [vmem:[#allocation11 + $0x130] sm:$0xff]
    %v2656 = vld [vmem:[#allocation11 + $0x138] sm:$0xff]
    %v2657 = vld [vmem:[#allocation11 + $0x140] sm:$0xff]
    %v2658 = vld [vmem:[#allocation11 + $0x148] sm:$0xff]
    %v2659 = vld [vmem:[#allocation11 + $0x150] sm:$0xff]
    %v2660 = vld [vmem:[#allocation11 + $0x158] sm:$0xff]
    %v2661 = vld [vmem:[#allocation11 + $0x160] sm:$0xff]
    %v2662 = vld [vmem:[#allocation11 + $0x168] sm:$0xff]
    %v2663 = vld [vmem:[#allocation11 + $0x170] sm:$0xff]
    %v2664 = vld [vmem:[#allocation11 + $0x178] sm:$0xff]
    %v2665 = vld [vmem:[#allocation11 + $0x180] sm:$0xff]
    %v2666 = vld [vmem:[#allocation11 + $0x188] sm:$0xff]
    %v2667 = vld [vmem:[#allocation11 + $0x190] sm:$0xff]
    %v2668 = vld [vmem:[#allocation11 + $0x198] sm:$0xff]
    %v2669 = vld [vmem:[#allocation11 + $0x1a0] sm:$0xff]
    %v2670 = vld [vmem:[#allocation11 + $0x1a8] sm:$0xff]
    %v2671 = vld [vmem:[#allocation11 + $0x1b0] sm:$0xff]
    %v2672 = vld [vmem:[#allocation11 + $0x1b8] sm:$0xff]
    %v2673 = vld [vmem:[#allocation11 + $0x1c0] sm:$0xff]
    %v2674 = vld [vmem:[#allocation11 + $0x1c8] sm:$0xff]
    %v2675 = vld [vmem:[#allocation11 + $0x1d0] sm:$0xff]
    %v2676 = vld [vmem:[#allocation11 + $0x1d8] sm:$0xff]
    %v2677 = vld [vmem:[#allocation11 + $0x1e0] sm:$0xff]
    %v2678 = vld [vmem:[#allocation11 + $0x1e8] sm:$0xff]
    %v2679 = vld [vmem:[#allocation11 + $0x1f0] sm:$0xff]
    %v2680 = vld [vmem:[#allocation11 + $0x1f8] sm:$0xff]
    %v2681 = vld [vmem:[#allocation11 + $0x200] sm:$0xff]
    %v2682 = vld [vmem:[#allocation11 + $0x208] sm:$0xff]
    %v2683 = vld [vmem:[#allocation11 + $0x210] sm:$0xff]
    %v2684 = vld [vmem:[#allocation11 + $0x218] sm:$0xff]
    %v2685 = vld [vmem:[#allocation11 + $0x220] sm:$0xff]
    %v2686 = vld [vmem:[#allocation11 + $0x228] sm:$0xff]
    %v2687 = vld [vmem:[#allocation11 + $0x230] sm:$0xff]
    %v2688 = vld [vmem:[#allocation11 + $0x238] sm:$0xff]
    %v2689 = vld [vmem:[#allocation11 + $0x240] sm:$0xff]
    %v2690 = vld [vmem:[#allocation11 + $0x248] sm:$0xff]
    %v2691 = vld [vmem:[#allocation11 + $0x250] sm:$0xff]
    %v2692 = vld [vmem:[#allocation11 + $0x258] sm:$0xff]
    %v2693 = vld [vmem:[#allocation11 + $0x260] sm:$0xff]
    %v2694 = vld [vmem:[#allocation11 + $0x268] sm:$0xff]
    %v2695 = vld [vmem:[#allocation11 + $0x270] sm:$0xff]
    %v2696 = vld [vmem:[#allocation11 + $0x278] sm:$0xff]
    %v2697 = vld [vmem:[#allocation11 + $0x280] sm:$0xff]
    %v2698 = vld [vmem:[#allocation11 + $0x288] sm:$0xff]
    %v2699 = vld [vmem:[#allocation11 + $0x290] sm:$0xff]
    %v2700 = vld [vmem:[#allocation11 + $0x298] sm:$0xff]
    %v2701 = vld [vmem:[#allocation11 + $0x2a0] sm:$0xff]
    %v2702 = vld [vmem:[#allocation11 + $0x2a8] sm:$0xff]
    %v2703 = vld [vmem:[#allocation11 + $0x2b0] sm:$0xff]
    %v2704 = vld [vmem:[#allocation11 + $0x2b8] sm:$0xff]
    %v2705 = vld [vmem:[#allocation11 + $0x2c0] sm:$0xff]
    %v2706 = vld [vmem:[#allocation11 + $0x2c8] sm:$0xff]
    %v2707 = vld [vmem:[#allocation11 + $0x2d0] sm:$0xff]
    %v2708 = vld [vmem:[#allocation11 + $0x2d8] sm:$0xff]
    %v2709 = vld [vmem:[#allocation11 + $0x2e0] sm:$0xff]
    %v2710 = vld [vmem:[#allocation11 + $0x2e8] sm:$0xff]
    %v2711 = vld [vmem:[#allocation11 + $0x2f0] sm:$0xff]
    %v2712 = vld [vmem:[#allocation11 + $0x2f8] sm:$0xff]
    %v2713 = vld [vmem:[#allocation11 + $0x300] sm:$0xff]
    %v2714 = vld [vmem:[#allocation11 + $0x308] sm:$0xff]
    %v2715 = vld [vmem:[#allocation11 + $0x310] sm:$0xff]
    %v2716 = vld [vmem:[#allocation11 + $0x318] sm:$0xff]
    %v2717 = vld [vmem:[#allocation11 + $0x320] sm:$0xff]
    %v2718 = vld [vmem:[#allocation11 + $0x328] sm:$0xff]
    %v2719 = vld [vmem:[#allocation11 + $0x330] sm:$0xff]
    %v2720 = vld [vmem:[#allocation11 + $0x338] sm:$0xff]
    %v2721 = vld [vmem:[#allocation11 + $0x340] sm:$0xff]
    %v2722 = vld [vmem:[#allocation11 + $0x348] sm:$0xff]
    %v2723 = vld [vmem:[#allocation11 + $0x350] sm:$0xff]
    %v2724 = vld [vmem:[#allocation11 + $0x358] sm:$0xff]
    %v2725 = vld [vmem:[#allocation11 + $0x360] sm:$0xff]
    %v2726 = vld [vmem:[#allocation11 + $0x368] sm:$0xff]
    %v2727 = vld [vmem:[#allocation11 + $0x370] sm:$0xff]
    %v2728 = vld [vmem:[#allocation11 + $0x378] sm:$0xff]
    %v2729 = vld [vmem:[#allocation11 + $0x380] sm:$0xff]
    %v2730 = vld [vmem:[#allocation11 + $0x388] sm:$0xff]
    %v2731 = vld [vmem:[#allocation11 + $0x390] sm:$0xff]
    %v2732 = vld [vmem:[#allocation11 + $0x398] sm:$0xff]
    %v2733 = vld [vmem:[#allocation11 + $0x3a0] sm:$0xff]
    %v2734 = vld [vmem:[#allocation11 + $0x3a8] sm:$0xff]
    %v2735 = vld [vmem:[#allocation11 + $0x3b0] sm:$0xff]
    %v2736 = vld [vmem:[#allocation11 + $0x3b8] sm:$0xff]
    %v2737 = vld [vmem:[#allocation11 + $0x3c0] sm:$0xff]
    %v2738 = vld [vmem:[#allocation11 + $0x3c8] sm:$0xff]
    %v2739 = vld [vmem:[#allocation11 + $0x3d0] sm:$0xff]
    %v2740 = vld [vmem:[#allocation11 + $0x3d8] sm:$0xff]
    %v2741 = vld [vmem:[#allocation11 + $0x3e0] sm:$0xff]
    %v2742 = vld [vmem:[#allocation11 + $0x3e8] sm:$0xff]
    %v2743 = vld [vmem:[#allocation11 + $0x3f0] sm:$0xff]
    %v2744 = vld [vmem:[#allocation11 + $0x3f8] sm:$0xff]
    %v2745 = vld [vmem:[%s8] sm:$0x3]
    %v2747 = vlaneseq
    %v2748 = vshrl.u32 %v2747, 7
    %v2749 = vsub.s32 0, %v2748
    %v2750 = vrot.slane %v2745, %v2749
    %v2751 = vlaneseq
    %v2752 = vshrl.u32 %v2751, 7
    %v2753 = vsub.s32 1, %v2752
    %v2754 = vrot.slane %v2745, %v2753
    %v2885 = vunpack.c.l.b16 %v2617
    %v2886 = vunpack.c.h.b16 %v2617
    %v2887 = vunpack.c.l.b16 %v2618
    %v2888 = vunpack.c.h.b16 %v2618
    %v2889 = vunpack.c.l.b16 %v2619
    %v2890 = vunpack.c.h.b16 %v2619
    %v2891 = vunpack.c.l.b16 %v2620
    %v2892 = vunpack.c.h.b16 %v2620
    %v2893 = vunpack.c.l.b16 %v2621
    %v2894 = vunpack.c.h.b16 %v2621
    %v2895 = vunpack.c.l.b16 %v2622
    %v2896 = vunpack.c.h.b16 %v2622
    %v2897 = vunpack.c.l.b16 %v2623
    %v2898 = vunpack.c.h.b16 %v2623
    %v2899 = vunpack.c.l.b16 %v2624
    %v2900 = vunpack.c.h.b16 %v2624
    %v2901 = vunpack.c.l.b16 %v2625
    %v2902 = vunpack.c.h.b16 %v2625
    %v2903 = vunpack.c.l.b16 %v2626
    %v2904 = vunpack.c.h.b16 %v2626
    %v2905 = vunpack.c.l.b16 %v2627
    %v2906 = vunpack.c.h.b16 %v2627
    %v2907 = vunpack.c.l.b16 %v2628
    %v2908 = vunpack.c.h.b16 %v2628
    %v2909 = vunpack.c.l.b16 %v2629
    %v2910 = vunpack.c.h.b16 %v2629
    %v2911 = vunpack.c.l.b16 %v2630
    %v2912 = vunpack.c.h.b16 %v2630
    %v2913 = vunpack.c.l.b16 %v2631
    %v2914 = vunpack.c.h.b16 %v2631
    %v2915 = vunpack.c.l.b16 %v2632
    %v2916 = vunpack.c.h.b16 %v2632
    %v2917 = vunpack.c.l.b16 %v2633
    %v2918 = vunpack.c.h.b16 %v2633
    %v2919 = vunpack.c.l.b16 %v2634
    %v2920 = vunpack.c.h.b16 %v2634
    %v2921 = vunpack.c.l.b16 %v2635
    %v2922 = vunpack.c.h.b16 %v2635
    %v2923 = vunpack.c.l.b16 %v2636
    %v2924 = vunpack.c.h.b16 %v2636
    %v2925 = vunpack.c.l.b16 %v2637
    %v2926 = vunpack.c.h.b16 %v2637
    %v2927 = vunpack.c.l.b16 %v2638
    %v2928 = vunpack.c.h.b16 %v2638
    %v2929 = vunpack.c.l.b16 %v2639
    %v2930 = vunpack.c.h.b16 %v2639
    %v2931 = vunpack.c.l.b16 %v2640
    %v2932 = vunpack.c.h.b16 %v2640
    %v2933 = vunpack.c.l.b16 %v2641
    %v2934 = vunpack.c.h.b16 %v2641
    %v2935 = vunpack.c.l.b16 %v2642
    %v2936 = vunpack.c.h.b16 %v2642
    %v2937 = vunpack.c.l.b16 %v2643
    %v2938 = vunpack.c.h.b16 %v2643
    %v2939 = vunpack.c.l.b16 %v2644
    %v2940 = vunpack.c.h.b16 %v2644
    %v2941 = vunpack.c.l.b16 %v2645
    %v2942 = vunpack.c.h.b16 %v2645
    %v2943 = vunpack.c.l.b16 %v2646
    %v2944 = vunpack.c.h.b16 %v2646
    %v2945 = vunpack.c.l.b16 %v2647
    %v2946 = vunpack.c.h.b16 %v2647
    %v2947 = vunpack.c.l.b16 %v2648
    %v2948 = vunpack.c.h.b16 %v2648
    %v2949 = vunpack.c.l.b16 %v2649
    %v2950 = vunpack.c.h.b16 %v2649
    %v2951 = vunpack.c.l.b16 %v2650
    %v2952 = vunpack.c.h.b16 %v2650
    %v2953 = vunpack.c.l.b16 %v2651
    %v2954 = vunpack.c.h.b16 %v2651
    %v2955 = vunpack.c.l.b16 %v2652
    %v2956 = vunpack.c.h.b16 %v2652
    %v2957 = vunpack.c.l.b16 %v2653
    %v2958 = vunpack.c.h.b16 %v2653
    %v2959 = vunpack.c.l.b16 %v2654
    %v2960 = vunpack.c.h.b16 %v2654
    %v2961 = vunpack.c.l.b16 %v2655
    %v2962 = vunpack.c.h.b16 %v2655
    %v2963 = vunpack.c.l.b16 %v2656
    %v2964 = vunpack.c.h.b16 %v2656
    %v2965 = vunpack.c.l.b16 %v2657
    %v2966 = vunpack.c.h.b16 %v2657
    %v2967 = vunpack.c.l.b16 %v2658
    %v2968 = vunpack.c.h.b16 %v2658
    %v2969 = vunpack.c.l.b16 %v2659
    %v2970 = vunpack.c.h.b16 %v2659
    %v2971 = vunpack.c.l.b16 %v2660
    %v2972 = vunpack.c.h.b16 %v2660
    %v2973 = vunpack.c.l.b16 %v2661
    %v2974 = vunpack.c.h.b16 %v2661
    %v2975 = vunpack.c.l.b16 %v2662
    %v2976 = vunpack.c.h.b16 %v2662
    %v2977 = vunpack.c.l.b16 %v2663
    %v2978 = vunpack.c.h.b16 %v2663
    %v2979 = vunpack.c.l.b16 %v2664
    %v2980 = vunpack.c.h.b16 %v2664
    %v2981 = vunpack.c.l.b16 %v2665
    %v2982 = vunpack.c.h.b16 %v2665
    %v2983 = vunpack.c.l.b16 %v2666
    %v2984 = vunpack.c.h.b16 %v2666
    %v2985 = vunpack.c.l.b16 %v2667
    %v2986 = vunpack.c.h.b16 %v2667
    %v2987 = vunpack.c.l.b16 %v2668
    %v2988 = vunpack.c.h.b16 %v2668
    %v2989 = vunpack.c.l.b16 %v2669
    %v2990 = vunpack.c.h.b16 %v2669
    %v2991 = vunpack.c.l.b16 %v2670
    %v2992 = vunpack.c.h.b16 %v2670
    %v2993 = vunpack.c.l.b16 %v2671
    %v2994 = vunpack.c.h.b16 %v2671
    %v2995 = vunpack.c.l.b16 %v2672
    %v2996 = vunpack.c.h.b16 %v2672
    %v2997 = vunpack.c.l.b16 %v2673
    %v2998 = vunpack.c.h.b16 %v2673
    %v2999 = vunpack.c.l.b16 %v2674
    %v3000 = vunpack.c.h.b16 %v2674
    %v3001 = vunpack.c.l.b16 %v2675
    %v3002 = vunpack.c.h.b16 %v2675
    %v3003 = vunpack.c.l.b16 %v2676
    %v3004 = vunpack.c.h.b16 %v2676
    %v3005 = vunpack.c.l.b16 %v2677
    %v3006 = vunpack.c.h.b16 %v2677
    %v3007 = vunpack.c.l.b16 %v2678
    %v3008 = vunpack.c.h.b16 %v2678
    %v3009 = vunpack.c.l.b16 %v2679
    %v3010 = vunpack.c.h.b16 %v2679
    %v3011 = vunpack.c.l.b16 %v2680
    %v3012 = vunpack.c.h.b16 %v2680
    %v3013 = vunpack.c.l.b16 %v2681
    %v3014 = vunpack.c.h.b16 %v2681
    %v3015 = vunpack.c.l.b16 %v2682
    %v3016 = vunpack.c.h.b16 %v2682
    %v3017 = vunpack.c.l.b16 %v2683
    %v3018 = vunpack.c.h.b16 %v2683
    %v3019 = vunpack.c.l.b16 %v2684
    %v3020 = vunpack.c.h.b16 %v2684
    %v3021 = vunpack.c.l.b16 %v2685
    %v3022 = vunpack.c.h.b16 %v2685
    %v3023 = vunpack.c.l.b16 %v2686
    %v3024 = vunpack.c.h.b16 %v2686
    %v3025 = vunpack.c.l.b16 %v2687
    %v3026 = vunpack.c.h.b16 %v2687
    %v3027 = vunpack.c.l.b16 %v2688
    %v3028 = vunpack.c.h.b16 %v2688
    %v3029 = vunpack.c.l.b16 %v2689
    %v3030 = vunpack.c.h.b16 %v2689
    %v3031 = vunpack.c.l.b16 %v2690
    %v3032 = vunpack.c.h.b16 %v2690
    %v3033 = vunpack.c.l.b16 %v2691
    %v3034 = vunpack.c.h.b16 %v2691
    %v3035 = vunpack.c.l.b16 %v2692
    %v3036 = vunpack.c.h.b16 %v2692
    %v3037 = vunpack.c.l.b16 %v2693
    %v3038 = vunpack.c.h.b16 %v2693
    %v3039 = vunpack.c.l.b16 %v2694
    %v3040 = vunpack.c.h.b16 %v2694
    %v3041 = vunpack.c.l.b16 %v2695
    %v3042 = vunpack.c.h.b16 %v2695
    %v3043 = vunpack.c.l.b16 %v2696
    %v3044 = vunpack.c.h.b16 %v2696
    %v3045 = vunpack.c.l.b16 %v2697
    %v3046 = vunpack.c.h.b16 %v2697
    %v3047 = vunpack.c.l.b16 %v2698
    %v3048 = vunpack.c.h.b16 %v2698
    %v3049 = vunpack.c.l.b16 %v2699
    %v3050 = vunpack.c.h.b16 %v2699
    %v3051 = vunpack.c.l.b16 %v2700
    %v3052 = vunpack.c.h.b16 %v2700
    %v3053 = vunpack.c.l.b16 %v2701
    %v3054 = vunpack.c.h.b16 %v2701
    %v3055 = vunpack.c.l.b16 %v2702
    %v3056 = vunpack.c.h.b16 %v2702
    %v3057 = vunpack.c.l.b16 %v2703
    %v3058 = vunpack.c.h.b16 %v2703
    %v3059 = vunpack.c.l.b16 %v2704
    %v3060 = vunpack.c.h.b16 %v2704
    %v3061 = vunpack.c.l.b16 %v2705
    %v3062 = vunpack.c.h.b16 %v2705
    %v3063 = vunpack.c.l.b16 %v2706
    %v3064 = vunpack.c.h.b16 %v2706
    %v3065 = vunpack.c.l.b16 %v2707
    %v3066 = vunpack.c.h.b16 %v2707
    %v3067 = vunpack.c.l.b16 %v2708
    %v3068 = vunpack.c.h.b16 %v2708
    %v3069 = vunpack.c.l.b16 %v2709
    %v3070 = vunpack.c.h.b16 %v2709
    %v3071 = vunpack.c.l.b16 %v2710
    %v3072 = vunpack.c.h.b16 %v2710
    %v3073 = vunpack.c.l.b16 %v2711
    %v3074 = vunpack.c.h.b16 %v2711
    %v3075 = vunpack.c.l.b16 %v2712
    %v3076 = vunpack.c.h.b16 %v2712
    %v3077 = vunpack.c.l.b16 %v2713
    %v3078 = vunpack.c.h.b16 %v2713
    %v3079 = vunpack.c.l.b16 %v2714
    %v3080 = vunpack.c.h.b16 %v2714
    %v3081 = vunpack.c.l.b16 %v2715
    %v3082 = vunpack.c.h.b16 %v2715
    %v3083 = vunpack.c.l.b16 %v2716
    %v3084 = vunpack.c.h.b16 %v2716
    %v3085 = vunpack.c.l.b16 %v2717
    %v3086 = vunpack.c.h.b16 %v2717
    %v3087 = vunpack.c.l.b16 %v2718
    %v3088 = vunpack.c.h.b16 %v2718
    %v3089 = vunpack.c.l.b16 %v2719
    %v3090 = vunpack.c.h.b16 %v2719
    %v3091 = vunpack.c.l.b16 %v2720
    %v3092 = vunpack.c.h.b16 %v2720
    %v3093 = vunpack.c.l.b16 %v2721
    %v3094 = vunpack.c.h.b16 %v2721
    %v3095 = vunpack.c.l.b16 %v2722
    %v3096 = vunpack.c.h.b16 %v2722
    %v3097 = vunpack.c.l.b16 %v2723
    %v3098 = vunpack.c.h.b16 %v2723
    %v3099 = vunpack.c.l.b16 %v2724
    %v3100 = vunpack.c.h.b16 %v2724
    %v3101 = vunpack.c.l.b16 %v2725
    %v3102 = vunpack.c.h.b16 %v2725
    %v3103 = vunpack.c.l.b16 %v2726
    %v3104 = vunpack.c.h.b16 %v2726
    %v3105 = vunpack.c.l.b16 %v2727
    %v3106 = vunpack.c.h.b16 %v2727
    %v3107 = vunpack.c.l.b16 %v2728
    %v3108 = vunpack.c.h.b16 %v2728
    %v3109 = vunpack.c.l.b16 %v2729
    %v3110 = vunpack.c.h.b16 %v2729
    %v3111 = vunpack.c.l.b16 %v2730
    %v3112 = vunpack.c.h.b16 %v2730
    %v3113 = vunpack.c.l.b16 %v2731
    %v3114 = vunpack.c.h.b16 %v2731
    %v3115 = vunpack.c.l.b16 %v2732
    %v3116 = vunpack.c.h.b16 %v2732
    %v3117 = vunpack.c.l.b16 %v2733
    %v3118 = vunpack.c.h.b16 %v2733
    %v3119 = vunpack.c.l.b16 %v2734
    %v3120 = vunpack.c.h.b16 %v2734
    %v3121 = vunpack.c.l.b16 %v2735
    %v3122 = vunpack.c.h.b16 %v2735
    %v3123 = vunpack.c.l.b16 %v2736
    %v3124 = vunpack.c.h.b16 %v2736
    %v3125 = vunpack.c.l.b16 %v2737
    %v3126 = vunpack.c.h.b16 %v2737
    %v3127 = vunpack.c.l.b16 %v2738
    %v3128 = vunpack.c.h.b16 %v2738
    %v3129 = vunpack.c.l.b16 %v2739
    %v3130 = vunpack.c.h.b16 %v2739
    %v3131 = vunpack.c.l.b16 %v2740
    %v3132 = vunpack.c.h.b16 %v2740
    %v3133 = vunpack.c.l.b16 %v2741
    %v3134 = vunpack.c.h.b16 %v2741
    %v3135 = vunpack.c.l.b16 %v2742
    %v3136 = vunpack.c.h.b16 %v2742
    %v3137 = vunpack.c.l.b16 %v2743
    %v3138 = vunpack.c.h.b16 %v2743
    %v3139 = vunpack.c.l.b16 %v2744
    %v3140 = vunpack.c.h.b16 %v2744
    %v3141 = vpack.c.b16 %v2887, %v2885
    %v3142 = vpack.c.b16 %v2888, %v2886
    %v3143 = vpack.c.b16 %v2891, %v2889
    %v3144 = vpack.c.b16 %v2892, %v2890
    %v3145 = vpack.c.b16 %v2895, %v2893
    %v3146 = vpack.c.b16 %v2896, %v2894
    %v3147 = vpack.c.b16 %v2899, %v2897
    %v3148 = vpack.c.b16 %v2900, %v2898
    %v3149 = vpack.c.b16 %v2903, %v2901
    %v3150 = vpack.c.b16 %v2904, %v2902
    %v3151 = vpack.c.b16 %v2907, %v2905
    %v3152 = vpack.c.b16 %v2908, %v2906
    %v3153 = vpack.c.b16 %v2911, %v2909
    %v3154 = vpack.c.b16 %v2912, %v2910
    %v3155 = vpack.c.b16 %v2915, %v2913
    %v3156 = vpack.c.b16 %v2916, %v2914
    %v3157 = vpack.c.b16 %v2919, %v2917
    %v3158 = vpack.c.b16 %v2920, %v2918
    %v3159 = vpack.c.b16 %v2923, %v2921
    %v3160 = vpack.c.b16 %v2924, %v2922
    %v3161 = vpack.c.b16 %v2927, %v2925
    %v3162 = vpack.c.b16 %v2928, %v2926
    %v3163 = vpack.c.b16 %v2931, %v2929
    %v3164 = vpack.c.b16 %v2932, %v2930
    %v3165 = vpack.c.b16 %v2935, %v2933
    %v3166 = vpack.c.b16 %v2936, %v2934
    %v3167 = vpack.c.b16 %v2939, %v2937
    %v3168 = vpack.c.b16 %v2940, %v2938
    %v3169 = vpack.c.b16 %v2943, %v2941
    %v3170 = vpack.c.b16 %v2944, %v2942
    %v3171 = vpack.c.b16 %v2947, %v2945
    %v3172 = vpack.c.b16 %v2948, %v2946
    %v3173 = vpack.c.b16 %v2951, %v2949
    %v3174 = vpack.c.b16 %v2952, %v2950
    %v3175 = vpack.c.b16 %v2955, %v2953
    %v3176 = vpack.c.b16 %v2956, %v2954
    %v3177 = vpack.c.b16 %v2959, %v2957
    %v3178 = vpack.c.b16 %v2960, %v2958
    %v3179 = vpack.c.b16 %v2963, %v2961
    %v3180 = vpack.c.b16 %v2964, %v2962
    %v3181 = vpack.c.b16 %v2967, %v2965
    %v3182 = vpack.c.b16 %v2968, %v2966
    %v3183 = vpack.c.b16 %v2971, %v2969
    %v3184 = vpack.c.b16 %v2972, %v2970
    %v3185 = vpack.c.b16 %v2975, %v2973
    %v3186 = vpack.c.b16 %v2976, %v2974
    %v3187 = vpack.c.b16 %v2979, %v2977
    %v3188 = vpack.c.b16 %v2980, %v2978
    %v3189 = vpack.c.b16 %v2983, %v2981
    %v3190 = vpack.c.b16 %v2984, %v2982
    %v3191 = vpack.c.b16 %v2987, %v2985
    %v3192 = vpack.c.b16 %v2988, %v2986
    %v3193 = vpack.c.b16 %v2991, %v2989
    %v3194 = vpack.c.b16 %v2992, %v2990
    %v3195 = vpack.c.b16 %v2995, %v2993
    %v3196 = vpack.c.b16 %v2996, %v2994
    %v3197 = vpack.c.b16 %v2999, %v2997
    %v3198 = vpack.c.b16 %v3000, %v2998
    %v3199 = vpack.c.b16 %v3003, %v3001
    %v3200 = vpack.c.b16 %v3004, %v3002
    %v3201 = vpack.c.b16 %v3007, %v3005
    %v3202 = vpack.c.b16 %v3008, %v3006
    %v3203 = vpack.c.b16 %v3011, %v3009
    %v3204 = vpack.c.b16 %v3012, %v3010
    %v3205 = vpack.c.b16 %v3015, %v3013
    %v3206 = vpack.c.b16 %v3016, %v3014
    %v3207 = vpack.c.b16 %v3019, %v3017
    %v3208 = vpack.c.b16 %v3020, %v3018
    %v3209 = vpack.c.b16 %v3023, %v3021
    %v3210 = vpack.c.b16 %v3024, %v3022
    %v3211 = vpack.c.b16 %v3027, %v3025
    %v3212 = vpack.c.b16 %v3028, %v3026
    %v3213 = vpack.c.b16 %v3031, %v3029
    %v3214 = vpack.c.b16 %v3032, %v3030
    %v3215 = vpack.c.b16 %v3035, %v3033
    %v3216 = vpack.c.b16 %v3036, %v3034
    %v3217 = vpack.c.b16 %v3039, %v3037
    %v3218 = vpack.c.b16 %v3040, %v3038
    %v3219 = vpack.c.b16 %v3043, %v3041
    %v3220 = vpack.c.b16 %v3044, %v3042
    %v3221 = vpack.c.b16 %v3047, %v3045
    %v3222 = vpack.c.b16 %v3048, %v3046
    %v3223 = vpack.c.b16 %v3051, %v3049
    %v3224 = vpack.c.b16 %v3052, %v3050
    %v3225 = vpack.c.b16 %v3055, %v3053
    %v3226 = vpack.c.b16 %v3056, %v3054
    %v3227 = vpack.c.b16 %v3059, %v3057
    %v3228 = vpack.c.b16 %v3060, %v3058
    %v3229 = vpack.c.b16 %v3063, %v3061
    %v3230 = vpack.c.b16 %v3064, %v3062
    %v3231 = vpack.c.b16 %v3067, %v3065
    %v3232 = vpack.c.b16 %v3068, %v3066
    %v3233 = vpack.c.b16 %v3071, %v3069
    %v3234 = vpack.c.b16 %v3072, %v3070
    %v3235 = vpack.c.b16 %v3075, %v3073
    %v3236 = vpack.c.b16 %v3076, %v3074
    %v3237 = vpack.c.b16 %v3079, %v3077
    %v3238 = vpack.c.b16 %v3080, %v3078
    %v3239 = vpack.c.b16 %v3083, %v3081
    %v3240 = vpack.c.b16 %v3084, %v3082
    %v3241 = vpack.c.b16 %v3087, %v3085
    %v3242 = vpack.c.b16 %v3088, %v3086
    %v3243 = vpack.c.b16 %v3091, %v3089
    %v3244 = vpack.c.b16 %v3092, %v3090
    %v3245 = vpack.c.b16 %v3095, %v3093
    %v3246 = vpack.c.b16 %v3096, %v3094
    %v3247 = vpack.c.b16 %v3099, %v3097
    %v3248 = vpack.c.b16 %v3100, %v3098
    %v3249 = vpack.c.b16 %v3103, %v3101
    %v3250 = vpack.c.b16 %v3104, %v3102
    %v3251 = vpack.c.b16 %v3107, %v3105
    %v3252 = vpack.c.b16 %v3108, %v3106
    %v3253 = vpack.c.b16 %v3111, %v3109
    %v3254 = vpack.c.b16 %v3112, %v3110
    %v3255 = vpack.c.b16 %v3115, %v3113
    %v3256 = vpack.c.b16 %v3116, %v3114
    %v3257 = vpack.c.b16 %v3119, %v3117
    %v3258 = vpack.c.b16 %v3120, %v3118
    %v3259 = vpack.c.b16 %v3123, %v3121
    %v3260 = vpack.c.b16 %v3124, %v3122
    %v3261 = vpack.c.b16 %v3127, %v3125
    %v3262 = vpack.c.b16 %v3128, %v3126
    %v3263 = vpack.c.b16 %v3131, %v3129
    %v3264 = vpack.c.b16 %v3132, %v3130
    %v3265 = vpack.c.b16 %v3135, %v3133
    %v3266 = vpack.c.b16 %v3136, %v3134
    %v3267 = vpack.c.b16 %v3139, %v3137
    %v3268 = vpack.c.b16 %v3140, %v3138
    %3397 = vmatprep.subr.bf16.mxu0 %v3156
    %3398 = vmatpush1.bf16.msra.mxu0 %v3155
    %3399 = vmatprep.subr.bf16.mxu0 %v3154
    %3400 = vmatpush1.bf16.msra.mxu0 %v3153
    %3401 = vmatprep.subr.bf16.mxu0 %v3152
    %3402 = vmatpush1.bf16.msra.mxu0 %v3151
    %3403 = vmatprep.subr.bf16.mxu0 %v3150
    %3404 = vmatpush1.bf16.msra.mxu0 %v3149
    %3405 = vmatprep.subr.bf16.mxu0 %v3148
    %3406 = vmatpush1.bf16.msra.mxu0 %v3147
    %3407 = vmatprep.subr.bf16.mxu0 %v3146
    %3408 = vmatpush1.bf16.msra.mxu0 %v3145
    %3409 = vmatprep.subr.bf16.mxu0 %v3144
    %3410 = vmatpush1.bf16.msra.mxu0 %v3143
    %3411 = vmatprep.subr.bf16.mxu0 %v3142
    %3412 = vmatpush1.bf16.msra.mxu0 %v3141
    %3413 = vmatprep.subr.bf16.mxu0 %v3172
    %3414 = vmatpush2.bf16.msra.mxu0 %v3171
    %3415 = vmatprep.subr.bf16.mxu0 %v3170
    %3416 = vmatpush2.bf16.msra.mxu0 %v3169
    %3417 = vmatprep.subr.bf16.mxu0 %v3168
    %3418 = vmatpush2.bf16.msra.mxu0 %v3167
    %3419 = vmatprep.subr.bf16.mxu0 %v3166
    %3420 = vmatpush2.bf16.msra.mxu0 %v3165
    %3421 = vmatprep.subr.bf16.mxu0 %v3164
    %3422 = vmatpush2.bf16.msra.mxu0 %v3163
    %3423 = vmatprep.subr.bf16.mxu0 %v3162
    %3424 = vmatpush2.bf16.msra.mxu0 %v3161
    %3425 = vmatprep.subr.bf16.mxu0 %v3160
    %3426 = vmatpush2.bf16.msra.mxu0 %v3159
    %3427 = vmatprep.subr.bf16.mxu0 %v3158
    %3428 = vmatpush2.bf16.msra.mxu0 %v3157
    %3429 = vmatprep.mubr.bf16.mxu0 %v2610
    %3430 = vmatmul.mubr.bf16.gmra.mxu0 %v2609
    %v3431 = vpop.f32.mrf.mxu0
    %v3432 = vadd.f32 %v2750, %v3431
    %v3433 = vpop.f32.mrf.mxu0
    %v3434 = vadd.f32 %v2754, %v3433
    %v3435 = vpop.f32.mrf.mxu0
    %v3436 = vpop.f32.mrf.mxu0
    %3437 = vdwg.mxu0
    %3438 = vmatprep.subr.bf16.mxu0 %v3188
    %3439 = vmatpush1.bf16.msra.mxu0 %v3187
    %3440 = vmatprep.subr.bf16.mxu0 %v3186
    %3441 = vmatpush1.bf16.msra.mxu0 %v3185
    %3442 = vmatprep.subr.bf16.mxu0 %v3184
    %3443 = vmatpush1.bf16.msra.mxu0 %v3183
    %3444 = vmatprep.subr.bf16.mxu0 %v3182
    %3445 = vmatpush1.bf16.msra.mxu0 %v3181
    %3446 = vmatprep.subr.bf16.mxu0 %v3180
    %3447 = vmatpush1.bf16.msra.mxu0 %v3179
    %3448 = vmatprep.subr.bf16.mxu0 %v3178
    %3449 = vmatpush1.bf16.msra.mxu0 %v3177
    %3450 = vmatprep.subr.bf16.mxu0 %v3176
    %3451 = vmatpush1.bf16.msra.mxu0 %v3175
    %3452 = vmatprep.subr.bf16.mxu0 %v3174
    %3453 = vmatpush1.bf16.msra.mxu0 %v3173
    %3454 = vmatprep.subr.bf16.mxu0 %v3204
    %3455 = vmatpush2.bf16.msra.mxu0 %v3203
    %3456 = vmatprep.subr.bf16.mxu0 %v3202
    %3457 = vmatpush2.bf16.msra.mxu0 %v3201
    %3458 = vmatprep.subr.bf16.mxu0 %v3200
    %3459 = vmatpush2.bf16.msra.mxu0 %v3199
    %3460 = vmatprep.subr.bf16.mxu0 %v3198
    %3461 = vmatpush2.bf16.msra.mxu0 %v3197
    %3462 = vmatprep.subr.bf16.mxu0 %v3196
    %3463 = vmatpush2.bf16.msra.mxu0 %v3195
    %3464 = vmatprep.subr.bf16.mxu0 %v3194
    %3465 = vmatpush2.bf16.msra.mxu0 %v3193
    %3466 = vmatprep.subr.bf16.mxu0 %v3192
    %3467 = vmatpush2.bf16.msra.mxu0 %v3191
    %3468 = vmatprep.subr.bf16.mxu0 %v3190
    %3469 = vmatpush2.bf16.msra.mxu0 %v3189
    %3470 = vmatprep.mubr.bf16.mxu0 %v2612
    %3471 = vmatmul.mubr.bf16.gmra.mxu0 %v2611
    %v3472 = vpop.f32.mrf.mxu0
    %v3473 = vadd.f32 %v3432, %v3472
    %v3474 = vpop.f32.mrf.mxu0
    %v3475 = vadd.f32 %v3434, %v3474
    %v3476 = vpop.f32.mrf.mxu0
    %v3477 = vpop.f32.mrf.mxu0
    %3478 = vdwg.mxu0
    %3479 = vmatprep.subr.bf16.mxu0 %v3220
    %3480 = vmatpush1.bf16.msra.mxu0 %v3219
    %3481 = vmatprep.subr.bf16.mxu0 %v3218
    %3482 = vmatpush1.bf16.msra.mxu0 %v3217
    %3483 = vmatprep.subr.bf16.mxu0 %v3216
    %3484 = vmatpush1.bf16.msra.mxu0 %v3215
    %3485 = vmatprep.subr.bf16.mxu0 %v3214
    %3486 = vmatpush1.bf16.msra.mxu0 %v3213
    %3487 = vmatprep.subr.bf16.mxu0 %v3212
    %3488 = vmatpush1.bf16.msra.mxu0 %v3211
    %3489 = vmatprep.subr.bf16.mxu0 %v3210
    %3490 = vmatpush1.bf16.msra.mxu0 %v3209
    %3491 = vmatprep.subr.bf16.mxu0 %v3208
    %3492 = vmatpush1.bf16.msra.mxu0 %v3207
    %3493 = vmatprep.subr.bf16.mxu0 %v3206
    %3494 = vmatpush1.bf16.msra.mxu0 %v3205
    %3495 = vmatprep.subr.bf16.mxu0 %v3236
    %3496 = vmatpush2.bf16.msra.mxu0 %v3235
    %3497 = vmatprep.subr.bf16.mxu0 %v3234
    %3498 = vmatpush2.bf16.msra.mxu0 %v3233
    %3499 = vmatprep.subr.bf16.mxu0 %v3232
    %3500 = vmatpush2.bf16.msra.mxu0 %v3231
    %3501 = vmatprep.subr.bf16.mxu0 %v3230
    %3502 = vmatpush2.bf16.msra.mxu0 %v3229
    %3503 = vmatprep.subr.bf16.mxu0 %v3228
    %3504 = vmatpush2.bf16.msra.mxu0 %v3227
    %3505 = vmatprep.subr.bf16.mxu0 %v3226
    %3506 = vmatpush2.bf16.msra.mxu0 %v3225
    %3507 = vmatprep.subr.bf16.mxu0 %v3224
    %3508 = vmatpush2.bf16.msra.mxu0 %v3223
    %3509 = vmatprep.subr.bf16.mxu0 %v3222
    %3510 = vmatpush2.bf16.msra.mxu0 %v3221
    %3511 = vmatprep.mubr.bf16.mxu0 %v2614
    %3512 = vmatmul.mubr.bf16.gmra.mxu0 %v2613
    %v3513 = vpop.f32.mrf.mxu0
    %v3514 = vadd.f32 %v3473, %v3513
    %v3515 = vpop.f32.mrf.mxu0
    %v3516 = vadd.f32 %v3475, %v3515
    %v3517 = vpop.f32.mrf.mxu0
    %v3518 = vpop.f32.mrf.mxu0
    %3519 = vdwg.mxu0
    %3520 = vmatprep.subr.bf16.mxu0 %v3252
    %3521 = vmatpush1.bf16.msra.mxu0 %v3251
    %3522 = vmatprep.subr.bf16.mxu0 %v3250
    %3523 = vmatpush1.bf16.msra.mxu0 %v3249
    %3524 = vmatprep.subr.bf16.mxu0 %v3248
    %3525 = vmatpush1.bf16.msra.mxu0 %v3247
    %3526 = vmatprep.subr.bf16.mxu0 %v3246
    %3527 = vmatpush1.bf16.msra.mxu0 %v3245
    %3528 = vmatprep.subr.bf16.mxu0 %v3244
    %3529 = vmatpush1.bf16.msra.mxu0 %v3243
    %3530 = vmatprep.subr.bf16.mxu0 %v3242
    %3531 = vmatpush1.bf16.msra.mxu0 %v3241
    %3532 = vmatprep.subr.bf16.mxu0 %v3240
    %3533 = vmatpush1.bf16.msra.mxu0 %v3239
    %3534 = vmatprep.subr.bf16.mxu0 %v3238
    %3535 = vmatpush1.bf16.msra.mxu0 %v3237
    %3536 = vmatprep.subr.bf16.mxu0 %v3268
    %3537 = vmatpush2.bf16.msra.mxu0 %v3267
    %3538 = vmatprep.subr.bf16.mxu0 %v3266
    %3539 = vmatpush2.bf16.msra.mxu0 %v3265
    %3540 = vmatprep.subr.bf16.mxu0 %v3264
    %3541 = vmatpush2.bf16.msra.mxu0 %v3263
    %3542 = vmatprep.subr.bf16.mxu0 %v3262
    %3543 = vmatpush2.bf16.msra.mxu0 %v3261
    %3544 = vmatprep.subr.bf16.mxu0 %v3260
    %3545 = vmatpush2.bf16.msra.mxu0 %v3259
    %3546 = vmatprep.subr.bf16.mxu0 %v3258
    %3547 = vmatpush2.bf16.msra.mxu0 %v3257
    %3548 = vmatprep.subr.bf16.mxu0 %v3256
    %3549 = vmatpush2.bf16.msra.mxu0 %v3255
    %3550 = vmatprep.subr.bf16.mxu0 %v3254
    %3551 = vmatpush2.bf16.msra.mxu0 %v3253
    %3552 = vmatprep.mubr.bf16.mxu0 %v2616
    %3553 = vmatmul.mubr.bf16.gmra.mxu0 %v2615
    %v3554 = vpop.f32.mrf.mxu0
    %v3555 = vadd.f32 %v3514, %v3554
    %v3556 = vpop.f32.mrf.mxu0
    %v3557 = vadd.f32 %v3516, %v3556
    %v3558 = vpop.f32.mrf.mxu0
    %v3559 = vpop.f32.mrf.mxu0
    %3560 = vdwg.mxu0
    %v3561 = vadd.f32 %v3555, %v111
    %v3562 = vadd.f32 %v3557, %v112
    %3563 = vst [vmem:[#allocation13] sm:$0xff] %v3561
    %3564 = vst [vmem:[#allocation13 + $0x8] sm:$0xff] %v3562
    // Predicated region
    $region62: #{tpu_custom_call.1} parent=1 // pred_check
      _
    $region63: #{tpu_custom_call.1} parent=1 // pred_check_branch
      %3566 = sbr.rel (0) target = $region65
    $region64: #{tpu_custom_call.1} parent=1 // pred_region
      %s3568 = ssub.s32 256, 256
      %3569 = vsyncadd [#allocation4], %s3568
      %s3571 = sshll.u32 [#allocation13], 4
      %s3572 = int_to_ptr.vmem [resolvable:$true] %s3571
      %3574 = dma.vmem_to_hbm [thread:$0]  %s3572, 256, %s9, [#allocation4]
    $region65: #{tpu_custom_call.1} parent=1 // pred_fallthru
      _
    // Predicated region
    $region66: #{tpu_custom_call.1} parent=1 // pred_check
      _
    $region67: #{tpu_custom_call.1} parent=1 // pred_check_branch
      %3576 = sbr.rel (0) target = $region69
    $region68: #{tpu_custom_call.1} parent=1 // pred_region
      %3577 = dma.done [#allocation4], 256
    $region69: #{tpu_custom_call.1} parent=1 // pred_fallthru
      _
    %3578 = vsyncpa [#allocation3], 1
    %3579 = vsyncpa [#allocation6], 1
    %3580 = vsyncpa [#allocation9], 1
    %3581 = vsyncpa [#allocation12], 1
    %3582 = vsyncpa [#allocation4], 1

</llo_original>
